<compile_context>
chip_gen: v6e
topology: v6e:2x2x1
jax: 0.10.0
libtpu: 0.0.40
codegen_flags: <defaults>
</compile_context>

<pallas_src>
import jax
import jax.numpy as jnp
from jax.experimental import pallas as pl
from jax.experimental.pallas import tpu as pltpu

NC = 1          # input channels (module-level `nc = 1`)
NDF = 16        # small ndf for a quick synthetic run (module takes ndf as arg)
NB_LABEL = 10   # number of aux classes
LRELU_SLOPE = 0.2
BN_EPS = 1e-5
LANE = 128
VMEM_LIMIT = 32 * 1024 * 1024   # explicit scoped-VMEM limit, safe on v5e/v6e/v7x


def _rup(x, m=LANE):
    return ((x + m - 1) // m) * m


# ---------------------------------------------------------------------------
# Pallas kernels
# ---------------------------------------------------------------------------
def conv_act_kernel(p_ref, w_ref, o_ref):
    """bf16 patches @ bf16 W (f32 acc) + LeakyReLU(0.2).  No BN (conv1)."""
    y = jnp.dot(p_ref[...], w_ref[...], preferred_element_type=jnp.float32)
    y = jnp.where(y > 0, y, LRELU_SLOPE * y)
    o_ref[...] = y.astype(o_ref.dtype)


def conv_bn_act_kernel(p_ref, w_ref, g_ref, b_ref, o_ref):
    """bf16 patches @ bf16 W (f32 acc) + BatchNorm (batch stats) + LeakyReLU."""
    y = jnp.dot(p_ref[...], w_ref[...], preferred_element_type=jnp.float32)
    # rows of y are (n, ho, wo); columns are channels -> per-channel batch stats
    mean = jnp.mean(y, axis=0, keepdims=True)
    var = jnp.mean(jnp.square(y - mean), axis=0, keepdims=True)
    y = (y - mean) * jax.lax.rsqrt(var + BN_EPS) * g_ref[...] + b_ref[...]
    y = jnp.where(y > 0, y, LRELU_SLOPE * y)
    o_ref[...] = y.astype(o_ref.dtype)


def tail_kernel(p_ref, w5_ref, wd_ref, bd_ref, wa_ref, ba_ref,
                s_ref, c_ref, f_ref):
    """Fused conv5 (1x1 spatial output) + disc_linear+sigmoid + aux_linear+softmax."""
    feat = jnp.dot(p_ref[...], w5_ref[...], preferred_element_type=jnp.float32)
    f_ref[...] = feat
    s = jnp.dot(feat, wd_ref[...], preferred_element_type=jnp.float32) + bd_ref[...]
    s_ref[...] = pl.reciprocal(1.0 + jnp.exp(-s), approx=True)
    logits = jnp.dot(feat, wa_ref[...], preferred_element_type=jnp.float32) + ba_ref[...]
    m = jnp.max(logits, axis=-1, keepdims=True)
    e = jnp.exp(logits - m)
    c_ref[...] = e * pl.reciprocal(jnp.sum(e, axis=-1, keepdims=True), approx=True)


# ---------------------------------------------------------------------------
# pallas_call wrappers
# ---------------------------------------------------------------------------
def conv_act(patches, w_mat):
    """conv1: M-tiled parallel grid (no BN, so M tiling is exact)."""
    M, K = patches.shape
    cp = w_mat.shape[1]
    tm = 512 if M % 512 == 0 else (256 if M % 256 == 0 else M)
    return pl.pallas_call(
        conv_act_kernel,
        out_shape=jax.ShapeDtypeStruct((M, cp), jnp.bfloat16),
        grid_spec=pltpu.PrefetchScalarGridSpec(
            num_scalar_prefetch=0,
            grid=(M // tm,),
            in_specs=[pl.BlockSpec((tm, K), lambda i: (i, 0)),
                      pl.BlockSpec((K, cp), lambda i: (0, 0))],
            out_specs=pl.BlockSpec((tm, cp), lambda i: (i, 0))),
        compiler_params=pltpu.CompilerParams(
            dimension_semantics=("parallel",),
            vmem_limit_bytes=VMEM_LIMIT),
    )(patches, w_mat)


def conv_bn_act(patches, w_mat, gamma, beta):
    """conv2/3/4: Cout-tiled parallel grid (BN stats per channel => tiling-safe)."""
    M, K = patches.shape
    cp = w_mat.shape[1]
    tc = LANE if cp % LANE == 0 else cp
    return pl.pallas_call(
        conv_bn_act_kernel,
        out_shape=jax.ShapeDtypeStruct((M, cp), jnp.bfloat16),
        grid_spec=pltpu.PrefetchScalarGridSpec(
            num_scalar_prefetch=0,
            grid=(cp // tc,),
            in_specs=[pl.BlockSpec((M, K), lambda j: (0, 0)),
                      pl.BlockSpec((K, tc), lambda j: (0, j)),
                      pl.BlockSpec((1, tc), lambda j: (0, j)),
                      pl.BlockSpec((1, tc), lambda j: (0, j))],
            out_specs=pl.BlockSpec((M, tc), lambda j: (0, j))),
        compiler_params=pltpu.CompilerParams(
            dimension_semantics=("parallel",),
            vmem_limit_bytes=VMEM_LIMIT),
    )(patches, w_mat, gamma, beta)


def tail(p5, w5, wd, bd, wa, ba):
    """Fused conv5 + both classifier heads (tiny; single ungridded call)."""
    n = p5.shape[0]
    ndf = w5.shape[1]
    nb_label = wa.shape[1]
    vspec = pl.BlockSpec(memory_space=pltpu.MemorySpace.VMEM)
    return pl.pallas_call(
        tail_kernel,
        out_shape=(jax.ShapeDtypeStruct((n, 1), jnp.float32),
                   jax.ShapeDtypeStruct((n, nb_label), jnp.float32),
                   jax.ShapeDtypeStruct((n, ndf), jnp.float32)),
        in_specs=[vspec] * 6,
        out_specs=(vspec, vspec, vspec),
        compiler_params=pltpu.CompilerParams(vmem_limit_bytes=VMEM_LIMIT),
    )(p5, w5, wd, bd, wa, ba)


# ---------------------------------------------------------------------------
# Plain-JAX glue: im2col on NHWC (pure data movement)
# ---------------------------------------------------------------------------
def im2col_nhwc(x, kh, kw, stride, pad):
    """x: NHWC -> (N*Ho*Wo, kh*kw*C) patches; K ordered (kh, kw, c)."""
    n, h, w, c = x.shape
    xp = jnp.pad(x, ((0, 0), (pad, pad), (pad, pad), (0, 0)))
    ho = (h + 2 * pad - kh) // stride + 1
    wo = (w + 2 * pad - kw) // stride + 1
    cols = []
    for i in range(kh):
        for j in range(kw):
            cols.append(xp[:, i:i + stride * ho:stride, j:j + stride * wo:stride, :])
    patches = jnp.stack(cols, axis=3)                     # (N, Ho, Wo, kh*kw, C)
    patches = patches.reshape(n * ho * wo, kh * kw * c)
    return patches, ho, wo


# ---------------------------------------------------------------------------
# Parameter init (PyTorch layout, mirrors weights_init / nn defaults)
# ---------------------------------------------------------------------------
def init_params(key, ndf, nc, nb_label):
    ks = jax.random.split(key, 12)
    p = {}
    conv_shapes = {
        "conv1": (ndf, nc, 4, 4),
        "conv2": (ndf * 2, ndf, 4, 4),
        "conv3": (ndf * 4, ndf * 2, 4, 4),
        "conv4": (ndf * 8, ndf * 4, 4, 4),
        "conv5": (ndf, ndf * 8, 4, 4),
    }
    for i, (name, shp) in enumerate(conv_shapes.items()):
        p[name] = 0.02 * jax.random.normal(ks[i], shp, jnp.float32)      # N(0, 0.02)
    for i, idx in enumerate(("2", "3", "4")):
        c = conv_shapes["conv" + idx][0]
        p["bn%s_gamma" % idx] = 1.0 + 0.02 * jax.random.normal(
            ks[5 + i], (1, c), jnp.float32)                              # N(1, 0.02)
        p["bn%s_beta" % idx] = jnp.zeros((1, c), jnp.float32)
    # Linear layers: PyTorch default uniform(-1/sqrt(fan_in), 1/sqrt(fan_in))
    bound = 1.0 / jnp.sqrt(float(ndf))
    p["w_disc"] = jax.random.uniform(ks[8], (ndf, 1), jnp.float32, -bound, bound)
    p["b_disc"] = jax.random.uniform(ks[9], (1, 1), jnp.float32, -bound, bound)
    p["w_aux"] = jax.random.uniform(ks[10], (ndf, nb_label), jnp.float32, -bound, bound)
    p["b_aux"] = jax.random.uniform(ks[11], (1, nb_label), jnp.float32, -bound, bound)
    return p


def _prep_conv_w(w, cin_pad, cout_pad, dtype=jnp.bfloat16):
    """(Cout, Cin, kh, kw) -> (kh*kw*cin_pad, cout_pad), zero-padded, bf16."""
    cout, cin, kh, kw = w.shape
    w = jnp.transpose(w, (2, 3, 1, 0))                                   # (kh,kw,cin,cout)
    w = jnp.pad(w, ((0, 0), (0, 0), (0, cin_pad - cin), (0, cout_pad - cout)))
    return w.reshape(kh * kw * cin_pad, cout_pad).astype(dtype)


def prepare_params(p, ndf, nc, nb_label):
    """One-time conversion of PyTorch-layout params to padded matmul layouts."""
    c1, c2, c3, c4 = ndf, ndf * 2, ndf * 4, ndf * 8
    c1p, c2p, c3p, c4p = _rup(c1), _rup(c2), _rup(c3), _rup(c4)
    pp = {
        "w1": _prep_conv_w(p["conv1"], nc, c1p),
        "w2": _prep_conv_w(p["conv2"], c1p, c2p),
        "w3": _prep_conv_w(p["conv3"], c2p, c3p),
        "w4": _prep_conv_w(p["conv4"], c3p, c4p),
        "w5": _prep_conv_w(p["conv5"], c4p, ndf),   # feat dim stays exact (ndf)
        "wd": p["w_disc"], "bd": p["b_disc"],
        "wa": p["w_aux"], "ba": p["b_aux"],
    }
    for idx, c, cp in (("2", c2, c2p), ("3", c3, c3p), ("4", c4, c4p)):
        pp["g" + idx] = jnp.pad(p["bn%s_gamma" % idx], ((0, 0), (0, cp - c)),
                                constant_values=1.0)
        pp["b" + idx] = jnp.pad(p["bn%s_beta" % idx], ((0, 0), (0, cp - c)),
                                constant_values=0.0)
    return pp


# ---------------------------------------------------------------------------
# Full forward pass (NHWC internally, NCHW at the boundary like PyTorch)
# ---------------------------------------------------------------------------
@jax.jit
def netd_forward(x_nchw, pp):
    n = x_nchw.shape[0]
    # Single boundary transpose to NHWC + bf16 cast (MXU-native, half HBM traffic)
    h = jnp.transpose(x_nchw, (0, 2, 3, 1)).astype(jnp.bfloat16)

    # conv1 + LeakyReLU   (Dropout p=0.5 is identity in eval mode)
    patches, ho, wo = im2col_nhwc(h, 4, 4, 2, 1)
    h = conv_act(patches, pp["w1"]).reshape(n, ho, wo, -1)

    # conv{2,3,4} + BatchNorm (batch stats) + LeakyReLU  (Dropouts identity)
    for idx in ("2", "3", "4"):
        patches, ho, wo = im2col_nhwc(h, 4, 4, 2, 1)
        h = conv_bn_act(patches, pp["w" + idx], pp["g" + idx],
                        pp["b" + idx]).reshape(n, ho, wo, -1)

    # conv5 (4x4/s1/p0 over a 4x4 map == a plain matmul) fused with both heads
    assert h.shape[1] == 4 and h.shape[2] == 4, "netD expects 64x64 inputs"
    p5 = h.reshape(n, -1)                       # (N, 4*4*C4pad), (h, w, c) order
    s, c, feat = tail(p5, pp["w5"], pp["wd"], pp["bd"], pp["wa"], pp["ba"])
    return s, c, feat


if __name__ == "__main__":
    key = jax.random.PRNGKey(0)
    k_x, k_p = jax.random.split(key)
    # Input spatial size must be 64 for the 4x4/s1/p0 conv5 to reach 1x1.
    x = jax.random.normal(k_x, (2, NC, 64, 64), jnp.float32)
    params = init_params(k_p, NDF, NC, NB_LABEL)
    pp = prepare_params(params, NDF, NC, NB_LABEL)

    s, c, feat = netd_forward(x, pp)
    jax.block_until_ready((s, c, feat))

    assert s.shape == (2, 1)
    assert c.shape == (2, NB_LABEL)
    assert feat.shape == (2, NDF)
    assert bool(jnp.all(jnp.isfinite(s)))
    assert bool(jnp.all(jnp.isfinite(c)))
    assert bool(jnp.all(jnp.isfinite(feat)))
    print("KERNEL_OK")
</pallas_src>

<mosaic_0001>
module attributes {stable_mosaic.version = 11 : i64} {
  func.func @conv_act_kernel(%arg0: i32, %arg1: memref<512x16xbf16, #tpu.memory_space<vmem>>, %arg2: memref<16x128xbf16, #tpu.memory_space<vmem>>, %arg3: memref<512x128xbf16, #tpu.memory_space<vmem>>) attributes {dimension_semantics = [#tpu.dimension_semantics<parallel>], iteration_bounds = array<i64: 4>, scalar_prefetch = 0 : i64, scratch_operands = 0 : i64, tpu.core_type = #tpu.core_type<tc>, window_params = [{transform_indices = @transform_0, window_bounds = array<i64: 512, 16>}, {pipeline_mode = #tpu.pipeline_mode<synchronous>, transform_indices = @transform_1, window_bounds = array<i64: 16, 128>}, {transform_indices = @transform_2, window_bounds = array<i64: 512, 128>}]} {
    %c0 = arith.constant 0 : index
    %c0_0 = arith.constant 0 : index
    %0 = vector.load %arg1[%c0, %c0_0] : memref<512x16xbf16, #tpu.memory_space<vmem>>, vector<512x16xbf16>
    %c0_1 = arith.constant 0 : index
    %c0_2 = arith.constant 0 : index
    %1 = vector.load %arg2[%c0_1, %c0_2] : memref<16x128xbf16, #tpu.memory_space<vmem>>, vector<16x128xbf16>
    %cst = arith.constant dense<0.000000e+00> : vector<512x128xf32>
    %2 = tpu.matmul %0, %1, %cst {dimension_numbers = #tpu.dot_dimension_numbers<[1], [0], [0], [1], [0, 0, 1, 1], [], []>} : vector<512x16xbf16>, vector<16x128xbf16>, vector<512x128xf32> -> vector<512x128xf32>
    %cst_3 = arith.constant 0.000000e+00 : f32
    %3 = vector.broadcast %cst_3 : f32 to vector<512x128xf32>
    %4 = arith.cmpf ogt, %2, %3 : vector<512x128xf32>
    %cst_4 = arith.constant 2.000000e-01 : f32
    %5 = vector.broadcast %cst_4 : f32 to vector<512x128xf32>
    %6 = arith.mulf %5, %2 : vector<512x128xf32>
    %7 = arith.select %4, %2, %6 : vector<512x128xi1>, vector<512x128xf32>
    %8 = arith.truncf %7 : vector<512x128xf32> to vector<512x128xbf16>
    %c0_5 = arith.constant 0 : index
    %c0_6 = arith.constant 0 : index
    %9 = vector.load %arg3[%c0_5, %c0_6] : memref<512x128xbf16, #tpu.memory_space<vmem>>, vector<512x128xbf16>
    tpu.vector_store %arg3[%c0_5, %c0_6], %8 {strides = array<i32>} : memref<512x128xbf16, #tpu.memory_space<vmem>>, vector<512x128xbf16>,
    return
  }
  func.func @transform_0(%arg0: i32) -> (i32, i32) {
    %c0_i32 = arith.constant 0 : i32
    %c0_i32_0 = arith.constant 0 : i32
    return %arg0, %c0_i32 : i32, i32
  }
  func.func @transform_1(%arg0: i32) -> (i32, i32) {
    %c0_i32 = arith.constant 0 : i32
    %c0_i32_0 = arith.constant 0 : i32
    %c0_i32_1 = arith.constant 0 : i32
    return %c0_i32, %c0_i32_0 : i32, i32
  }
  func.func @transform_2(%arg0: i32) -> (i32, i32) {
    %c0_i32 = arith.constant 0 : i32
    %c0_i32_0 = arith.constant 0 : i32
    return %arg0, %c0_i32 : i32, i32
  }
}

module attributes {stable_mosaic.version = 11 : i64} {
  func.func @conv_bn_act_kernel(%arg0: i32, %arg1: memref<512x2048xbf16, #tpu.memory_space<vmem>>, %arg2: memref<2048x128xbf16, #tpu.memory_space<vmem>>, %arg3: memref<1x128xf32, #tpu.memory_space<vmem>>, %arg4: memref<1x128xf32, #tpu.memory_space<vmem>>, %arg5: memref<512x128xbf16, #tpu.memory_space<vmem>>) attributes {dimension_semantics = [#tpu.dimension_semantics<parallel>], iteration_bounds = array<i64: 1>, scalar_prefetch = 0 : i64, scratch_operands = 0 : i64, tpu.core_type = #tpu.core_type<tc>, window_params = [{pipeline_mode = #tpu.pipeline_mode<synchronous>, transform_indices = @transform_0, window_bounds = array<i64: 512, 2048>}, {transform_indices = @transform_1, window_bounds = array<i64: 2048, 128>}, {transform_indices = @transform_2, window_bounds = array<i64: 1, 128>}, {transform_indices = @transform_3, window_bounds = array<i64: 1, 128>}, {transform_indices = @transform_4, window_bounds = array<i64: 512, 128>}]} {
    %c0 = arith.constant 0 : index
    %c0_0 = arith.constant 0 : index
    %0 = vector.load %arg1[%c0, %c0_0] : memref<512x2048xbf16, #tpu.memory_space<vmem>>, vector<512x2048xbf16>
    %c0_1 = arith.constant 0 : index
    %c0_2 = arith.constant 0 : index
    %1 = vector.load %arg2[%c0_1, %c0_2] : memref<2048x128xbf16, #tpu.memory_space<vmem>>, vector<2048x128xbf16>
    %cst = arith.constant dense<0.000000e+00> : vector<512x128xf32>
    %2 = tpu.matmul %0, %1, %cst {dimension_numbers = #tpu.dot_dimension_numbers<[1], [0], [0], [1], [0, 0, 1, 1], [], []>} : vector<512x2048xbf16>, vector<2048x128xbf16>, vector<512x128xf32> -> vector<512x128xf32>
    %cst_3 = arith.constant dense<0.000000e+00> : vector<128xf32>
    %3 = vector.multi_reduction <add>, %2, %cst_3 [0] : vector<512x128xf32> to vector<128xf32>
    %4 = vector.shape_cast %3 : vector<128xf32> to vector<1x128xf32>
    %cst_4 = arith.constant 5.120000e+02 : f32
    %5 = vector.broadcast %cst_4 : f32 to vector<1x128xf32>
    %6 = arith.divf %4, %5 : vector<1x128xf32>
    %7 = vector.broadcast %6 : vector<1x128xf32> to vector<512x128xf32>
    %8 = arith.subf %2, %7 : vector<512x128xf32>
    %9 = arith.mulf %8, %8 : vector<512x128xf32>
    %cst_5 = arith.constant dense<0.000000e+00> : vector<128xf32>
    %10 = vector.multi_reduction <add>, %9, %cst_5 [0] : vector<512x128xf32> to vector<128xf32>
    %11 = vector.shape_cast %10 : vector<128xf32> to vector<1x128xf32>
    %cst_6 = arith.constant 5.120000e+02 : f32
    %12 = vector.broadcast %cst_6 : f32 to vector<1x128xf32>
    %13 = arith.divf %11, %12 : vector<1x128xf32>
    %14 = vector.broadcast %6 : vector<1x128xf32> to vector<512x128xf32>
    %15 = arith.subf %2, %14 : vector<512x128xf32>
    %cst_7 = arith.constant 9.99999974E-6 : f32
    %16 = vector.broadcast %cst_7 : f32 to vector<1x128xf32>
    %17 = arith.addf %13, %16 : vector<1x128xf32>
    %18 = math.rsqrt %17 : vector<1x128xf32>
    %19 = vector.broadcast %18 : vector<1x128xf32> to vector<512x128xf32>
    %20 = arith.mulf %15, %19 : vector<512x128xf32>
    %c0_8 = arith.constant 0 : index
    %c0_9 = arith.constant 0 : index
    %21 = vector.load %arg3[%c0_8, %c0_9] : memref<1x128xf32, #tpu.memory_space<vmem>>, vector<1x128xf32>
    %22 = vector.broadcast %21 : vector<1x128xf32> to vector<512x128xf32>
    %23 = arith.mulf %20, %22 : vector<512x128xf32>
    %c0_10 = arith.constant 0 : index
    %c0_11 = arith.constant 0 : index
    %24 = vector.load %arg4[%c0_10, %c0_11] : memref<1x128xf32, #tpu.memory_space<vmem>>, vector<1x128xf32>
    %25 = vector.broadcast %24 : vector<1x128xf32> to vector<512x128xf32>
    %26 = arith.addf %23, %25 : vector<512x128xf32>
    %cst_12 = arith.constant 0.000000e+00 : f32
    %27 = vector.broadcast %cst_12 : f32 to vector<512x128xf32>
    %28 = arith.cmpf ogt, %26, %27 : vector<512x128xf32>
    %cst_13 = arith.constant 2.000000e-01 : f32
    %29 = vector.broadcast %cst_13 : f32 to vector<512x128xf32>
    %30 = arith.mulf %29, %26 : vector<512x128xf32>
    %31 = arith.select %28, %26, %30 : vector<512x128xi1>, vector<512x128xf32>
    %32 = arith.truncf %31 : vector<512x128xf32> to vector<512x128xbf16>
    %c0_14 = arith.constant 0 : index
    %c0_15 = arith.constant 0 : index
    %33 = vector.load %arg5[%c0_14, %c0_15] : memref<512x128xbf16, #tpu.memory_space<vmem>>, vector<512x128xbf16>
    tpu.vector_store %arg5[%c0_14, %c0_15], %32 {strides = array<i32>} : memref<512x128xbf16, #tpu.memory_space<vmem>>, vector<512x128xbf16>,
    return
  }
  func.func @transform_0(%arg0: i32) -> (i32, i32) {
    %c0_i32 = arith.constant 0 : i32
    %c0_i32_0 = arith.constant 0 : i32
    %c0_i32_1 = arith.constant 0 : i32
    return %c0_i32, %c0_i32_0 : i32, i32
  }
  func.func @transform_1(%arg0: i32) -> (i32, i32) {
    %c0_i32 = arith.constant 0 : i32
    %c0_i32_0 = arith.constant 0 : i32
    return %c0_i32, %arg0 : i32, i32
  }
  func.func @transform_2(%arg0: i32) -> (i32, i32) {
    %c0_i32 = arith.constant 0 : i32
    %c0_i32_0 = arith.constant 0 : i32
    return %c0_i32, %arg0 : i32, i32
  }
  func.func @transform_3(%arg0: i32) -> (i32, i32) {
    %c0_i32 = arith.constant 0 : i32
    %c0_i32_0 = arith.constant 0 : i32
    return %c0_i32, %arg0 : i32, i32
  }
  func.func @transform_4(%arg0: i32) -> (i32, i32) {
    %c0_i32 = arith.constant 0 : i32
    %c0_i32_0 = arith.constant 0 : i32
    return %c0_i32, %arg0 : i32, i32
  }
}

module attributes {stable_mosaic.version = 11 : i64} {
  func.func @conv_bn_act_kernel(%arg0: i32, %arg1: memref<128x2048xbf16, #tpu.memory_space<vmem>>, %arg2: memref<2048x128xbf16, #tpu.memory_space<vmem>>, %arg3: memref<1x128xf32, #tpu.memory_space<vmem>>, %arg4: memref<1x128xf32, #tpu.memory_space<vmem>>, %arg5: memref<128x128xbf16, #tpu.memory_space<vmem>>) attributes {dimension_semantics = [#tpu.dimension_semantics<parallel>], iteration_bounds = array<i64: 1>, scalar_prefetch = 0 : i64, scratch_operands = 0 : i64, tpu.core_type = #tpu.core_type<tc>, window_params = [{pipeline_mode = #tpu.pipeline_mode<synchronous>, transform_indices = @transform_0, window_bounds = array<i64: 128, 2048>}, {transform_indices = @transform_1, window_bounds = array<i64: 2048, 128>}, {transform_indices = @transform_2, window_bounds = array<i64: 1, 128>}, {transform_indices = @transform_3, window_bounds = array<i64: 1, 128>}, {transform_indices = @transform_4, window_bounds = array<i64: 128, 128>}]} {
    %c0 = arith.constant 0 : index
    %c0_0 = arith.constant 0 : index
    %0 = vector.load %arg1[%c0, %c0_0] : memref<128x2048xbf16, #tpu.memory_space<vmem>>, vector<128x2048xbf16>
    %c0_1 = arith.constant 0 : index
    %c0_2 = arith.constant 0 : index
    %1 = vector.load %arg2[%c0_1, %c0_2] : memref<2048x128xbf16, #tpu.memory_space<vmem>>, vector<2048x128xbf16>
    %cst = arith.constant dense<0.000000e+00> : vector<128x128xf32>
    %2 = tpu.matmul %0, %1, %cst {dimension_numbers = #tpu.dot_dimension_numbers<[1], [0], [0], [1], [0, 0, 1, 1], [], []>} : vector<128x2048xbf16>, vector<2048x128xbf16>, vector<128x128xf32> -> vector<128x128xf32>
    %cst_3 = arith.constant dense<0.000000e+00> : vector<128xf32>
    %3 = vector.multi_reduction <add>, %2, %cst_3 [0] : vector<128x128xf32> to vector<128xf32>
    %4 = vector.shape_cast %3 : vector<128xf32> to vector<1x128xf32>
    %cst_4 = arith.constant 1.280000e+02 : f32
    %5 = vector.broadcast %cst_4 : f32 to vector<1x128xf32>
    %6 = arith.divf %4, %5 : vector<1x128xf32>
    %7 = vector.broadcast %6 : vector<1x128xf32> to vector<128x128xf32>
    %8 = arith.subf %2, %7 : vector<128x128xf32>
    %9 = arith.mulf %8, %8 : vector<128x128xf32>
    %cst_5 = arith.constant dense<0.000000e+00> : vector<128xf32>
    %10 = vector.multi_reduction <add>, %9, %cst_5 [0] : vector<128x128xf32> to vector<128xf32>
    %11 = vector.shape_cast %10 : vector<128xf32> to vector<1x128xf32>
    %cst_6 = arith.constant 1.280000e+02 : f32
    %12 = vector.broadcast %cst_6 : f32 to vector<1x128xf32>
    %13 = arith.divf %11, %12 : vector<1x128xf32>
    %14 = vector.broadcast %6 : vector<1x128xf32> to vector<128x128xf32>
    %15 = arith.subf %2, %14 : vector<128x128xf32>
    %cst_7 = arith.constant 9.99999974E-6 : f32
    %16 = vector.broadcast %cst_7 : f32 to vector<1x128xf32>
    %17 = arith.addf %13, %16 : vector<1x128xf32>
    %18 = math.rsqrt %17 : vector<1x128xf32>
    %19 = vector.broadcast %18 : vector<1x128xf32> to vector<128x128xf32>
    %20 = arith.mulf %15, %19 : vector<128x128xf32>
    %c0_8 = arith.constant 0 : index
    %c0_9 = arith.constant 0 : index
    %21 = vector.load %arg3[%c0_8, %c0_9] : memref<1x128xf32, #tpu.memory_space<vmem>>, vector<1x128xf32>
    %22 = vector.broadcast %21 : vector<1x128xf32> to vector<128x128xf32>
    %23 = arith.mulf %20, %22 : vector<128x128xf32>
    %c0_10 = arith.constant 0 : index
    %c0_11 = arith.constant 0 : index
    %24 = vector.load %arg4[%c0_10, %c0_11] : memref<1x128xf32, #tpu.memory_space<vmem>>, vector<1x128xf32>
    %25 = vector.broadcast %24 : vector<1x128xf32> to vector<128x128xf32>
    %26 = arith.addf %23, %25 : vector<128x128xf32>
    %cst_12 = arith.constant 0.000000e+00 : f32
    %27 = vector.broadcast %cst_12 : f32 to vector<128x128xf32>
    %28 = arith.cmpf ogt, %26, %27 : vector<128x128xf32>
    %cst_13 = arith.constant 2.000000e-01 : f32
    %29 = vector.broadcast %cst_13 : f32 to vector<128x128xf32>
    %30 = arith.mulf %29, %26 : vector<128x128xf32>
    %31 = arith.select %28, %26, %30 : vector<128x128xi1>, vector<128x128xf32>
    %32 = arith.truncf %31 : vector<128x128xf32> to vector<128x128xbf16>
    %c0_14 = arith.constant 0 : index
    %c0_15 = arith.constant 0 : index
    %33 = vector.load %arg5[%c0_14, %c0_15] : memref<128x128xbf16, #tpu.memory_space<vmem>>, vector<128x128xbf16>
    tpu.vector_store %arg5[%c0_14, %c0_15], %32 {strides = array<i32>} : memref<128x128xbf16, #tpu.memory_space<vmem>>, vector<128x128xbf16>,
    return
  }
  func.func @transform_0(%arg0: i32) -> (i32, i32) {
    %c0_i32 = arith.constant 0 : i32
    %c0_i32_0 = arith.constant 0 : i32
    %c0_i32_1 = arith.constant 0 : i32
    return %c0_i32, %c0_i32_0 : i32, i32
  }
  func.func @transform_1(%arg0: i32) -> (i32, i32) {
    %c0_i32 = arith.constant 0 : i32
    %c0_i32_0 = arith.constant 0 : i32
    return %c0_i32, %arg0 : i32, i32
  }
  func.func @transform_2(%arg0: i32) -> (i32, i32) {
    %c0_i32 = arith.constant 0 : i32
    %c0_i32_0 = arith.constant 0 : i32
    return %c0_i32, %arg0 : i32, i32
  }
  func.func @transform_3(%arg0: i32) -> (i32, i32) {
    %c0_i32 = arith.constant 0 : i32
    %c0_i32_0 = arith.constant 0 : i32
    return %c0_i32, %arg0 : i32, i32
  }
  func.func @transform_4(%arg0: i32) -> (i32, i32) {
    %c0_i32 = arith.constant 0 : i32
    %c0_i32_0 = arith.constant 0 : i32
    return %c0_i32, %arg0 : i32, i32
  }
}

module attributes {stable_mosaic.version = 11 : i64} {
  func.func @conv_bn_act_kernel(%arg0: i32, %arg1: memref<32x2048xbf16, #tpu.memory_space<vmem>>, %arg2: memref<2048x128xbf16, #tpu.memory_space<vmem>>, %arg3: memref<1x128xf32, #tpu.memory_space<vmem>>, %arg4: memref<1x128xf32, #tpu.memory_space<vmem>>, %arg5: memref<32x128xbf16, #tpu.memory_space<vmem>>) attributes {dimension_semantics = [#tpu.dimension_semantics<parallel>], iteration_bounds = array<i64: 1>, scalar_prefetch = 0 : i64, scratch_operands = 0 : i64, tpu.core_type = #tpu.core_type<tc>, window_params = [{pipeline_mode = #tpu.pipeline_mode<synchronous>, transform_indices = @transform_0, window_bounds = array<i64: 32, 2048>}, {transform_indices = @transform_1, window_bounds = array<i64: 2048, 128>}, {transform_indices = @transform_2, window_bounds = array<i64: 1, 128>}, {transform_indices = @transform_3, window_bounds = array<i64: 1, 128>}, {transform_indices = @transform_4, window_bounds = array<i64: 32, 128>}]} {
    %c0 = arith.constant 0 : index
    %c0_0 = arith.constant 0 : index
    %0 = vector.load %arg1[%c0, %c0_0] : memref<32x2048xbf16, #tpu.memory_space<vmem>>, vector<32x2048xbf16>
    %c0_1 = arith.constant 0 : index
    %c0_2 = arith.constant 0 : index
    %1 = vector.load %arg2[%c0_1, %c0_2] : memref<2048x128xbf16, #tpu.memory_space<vmem>>, vector<2048x128xbf16>
    %cst = arith.constant dense<0.000000e+00> : vector<32x128xf32>
    %2 = tpu.matmul %0, %1, %cst {dimension_numbers = #tpu.dot_dimension_numbers<[1], [0], [0], [1], [0, 0, 1, 1], [], []>} : vector<32x2048xbf16>, vector<2048x128xbf16>, vector<32x128xf32> -> vector<32x128xf32>
    %cst_3 = arith.constant dense<0.000000e+00> : vector<128xf32>
    %3 = vector.multi_reduction <add>, %2, %cst_3 [0] : vector<32x128xf32> to vector<128xf32>
    %4 = vector.shape_cast %3 : vector<128xf32> to vector<1x128xf32>
    %cst_4 = arith.constant 3.200000e+01 : f32
    %5 = vector.broadcast %cst_4 : f32 to vector<1x128xf32>
    %6 = arith.divf %4, %5 : vector<1x128xf32>
    %7 = vector.broadcast %6 : vector<1x128xf32> to vector<32x128xf32>
    %8 = arith.subf %2, %7 : vector<32x128xf32>
    %9 = arith.mulf %8, %8 : vector<32x128xf32>
    %cst_5 = arith.constant dense<0.000000e+00> : vector<128xf32>
    %10 = vector.multi_reduction <add>, %9, %cst_5 [0] : vector<32x128xf32> to vector<128xf32>
    %11 = vector.shape_cast %10 : vector<128xf32> to vector<1x128xf32>
    %cst_6 = arith.constant 3.200000e+01 : f32
    %12 = vector.broadcast %cst_6 : f32 to vector<1x128xf32>
    %13 = arith.divf %11, %12 : vector<1x128xf32>
    %14 = vector.broadcast %6 : vector<1x128xf32> to vector<32x128xf32>
    %15 = arith.subf %2, %14 : vector<32x128xf32>
    %cst_7 = arith.constant 9.99999974E-6 : f32
    %16 = vector.broadcast %cst_7 : f32 to vector<1x128xf32>
    %17 = arith.addf %13, %16 : vector<1x128xf32>
    %18 = math.rsqrt %17 : vector<1x128xf32>
    %19 = vector.broadcast %18 : vector<1x128xf32> to vector<32x128xf32>
    %20 = arith.mulf %15, %19 : vector<32x128xf32>
    %c0_8 = arith.constant 0 : index
    %c0_9 = arith.constant 0 : index
    %21 = vector.load %arg3[%c0_8, %c0_9] : memref<1x128xf32, #tpu.memory_space<vmem>>, vector<1x128xf32>
    %22 = vector.broadcast %21 : vector<1x128xf32> to vector<32x128xf32>
    %23 = arith.mulf %20, %22 : vector<32x128xf32>
    %c0_10 = arith.constant 0 : index
    %c0_11 = arith.constant 0 : index
    %24 = vector.load %arg4[%c0_10, %c0_11] : memref<1x128xf32, #tpu.memory_space<vmem>>, vector<1x128xf32>
    %25 = vector.broadcast %24 : vector<1x128xf32> to vector<32x128xf32>
    %26 = arith.addf %23, %25 : vector<32x128xf32>
    %cst_12 = arith.constant 0.000000e+00 : f32
    %27 = vector.broadcast %cst_12 : f32 to vector<32x128xf32>
    %28 = arith.cmpf ogt, %26, %27 : vector<32x128xf32>
    %cst_13 = arith.constant 2.000000e-01 : f32
    %29 = vector.broadcast %cst_13 : f32 to vector<32x128xf32>
    %30 = arith.mulf %29, %26 : vector<32x128xf32>
    %31 = arith.select %28, %26, %30 : vector<32x128xi1>, vector<32x128xf32>
    %32 = arith.truncf %31 : vector<32x128xf32> to vector<32x128xbf16>
    %c0_14 = arith.constant 0 : index
    %c0_15 = arith.constant 0 : index
    %33 = vector.load %arg5[%c0_14, %c0_15] : memref<32x128xbf16, #tpu.memory_space<vmem>>, vector<32x128xbf16>
    tpu.vector_store %arg5[%c0_14, %c0_15], %32 {strides = array<i32>} : memref<32x128xbf16, #tpu.memory_space<vmem>>, vector<32x128xbf16>,
    return
  }
  func.func @transform_0(%arg0: i32) -> (i32, i32) {
    %c0_i32 = arith.constant 0 : i32
    %c0_i32_0 = arith.constant 0 : i32
    %c0_i32_1 = arith.constant 0 : i32
    return %c0_i32, %c0_i32_0 : i32, i32
  }
  func.func @transform_1(%arg0: i32) -> (i32, i32) {
    %c0_i32 = arith.constant 0 : i32
    %c0_i32_0 = arith.constant 0 : i32
    return %c0_i32, %arg0 : i32, i32
  }
  func.func @transform_2(%arg0: i32) -> (i32, i32) {
    %c0_i32 = arith.constant 0 : i32
    %c0_i32_0 = arith.constant 0 : i32
    return %c0_i32, %arg0 : i32, i32
  }
  func.func @transform_3(%arg0: i32) -> (i32, i32) {
    %c0_i32 = arith.constant 0 : i32
    %c0_i32_0 = arith.constant 0 : i32
    return %c0_i32, %arg0 : i32, i32
  }
  func.func @transform_4(%arg0: i32) -> (i32, i32) {
    %c0_i32 = arith.constant 0 : i32
    %c0_i32_0 = arith.constant 0 : i32
    return %c0_i32, %arg0 : i32, i32
  }
}

module attributes {stable_mosaic.version = 11 : i64} {
  func.func @tail_kernel(%arg0: memref<2x2048xbf16, #tpu.memory_space<vmem>>, %arg1: memref<2048x16xbf16, #tpu.memory_space<vmem>>, %arg2: memref<16x1xf32, #tpu.memory_space<vmem>>, %arg3: memref<1x1xf32, #tpu.memory_space<vmem>>, %arg4: memref<16x10xf32, #tpu.memory_space<vmem>>, %arg5: memref<1x10xf32, #tpu.memory_space<vmem>>, %arg6: memref<2x1xf32, #tpu.memory_space<vmem>>, %arg7: memref<2x10xf32, #tpu.memory_space<vmem>>, %arg8: memref<2x16xf32, #tpu.memory_space<vmem>>) attributes {dimension_semantics = [], scalar_prefetch = 0 : i64, scratch_operands = 0 : i64, tpu.core_type = #tpu.core_type<tc>} {
    %c0 = arith.constant 0 : index
    %c0_0 = arith.constant 0 : index
    %0 = vector.load %arg0[%c0, %c0_0] : memref<2x2048xbf16, #tpu.memory_space<vmem>>, vector<2x2048xbf16>
    %c0_1 = arith.constant 0 : index
    %c0_2 = arith.constant 0 : index
    %1 = vector.load %arg1[%c0_1, %c0_2] : memref<2048x16xbf16, #tpu.memory_space<vmem>>, vector<2048x16xbf16>
    %cst = arith.constant dense<0.000000e+00> : vector<2x16xf32>
    %2 = tpu.matmul %0, %1, %cst {dimension_numbers = #tpu.dot_dimension_numbers<[1], [0], [0], [1], [0, 0, 1, 1], [], []>} : vector<2x2048xbf16>, vector<2048x16xbf16>, vector<2x16xf32> -> vector<2x16xf32>
    %c0_3 = arith.constant 0 : index
    %c0_4 = arith.constant 0 : index
    %3 = vector.load %arg8[%c0_3, %c0_4] : memref<2x16xf32, #tpu.memory_space<vmem>>, vector<2x16xf32>
    tpu.vector_store %arg8[%c0_3, %c0_4], %2 {strides = array<i32>} : memref<2x16xf32, #tpu.memory_space<vmem>>, vector<2x16xf32>,
    %c0_5 = arith.constant 0 : index
    %c0_6 = arith.constant 0 : index
    %4 = vector.load %arg2[%c0_5, %c0_6] : memref<16x1xf32, #tpu.memory_space<vmem>>, vector<16x1xf32>
    %cst_7 = arith.constant dense<0.000000e+00> : vector<2x1xf32>
    %5 = tpu.matmul %2, %4, %cst_7 {dimension_numbers = #tpu.dot_dimension_numbers<[1], [0], [0], [1], [0, 0, 1, 1], [], []>} : vector<2x16xf32>, vector<16x1xf32>, vector<2x1xf32> -> vector<2x1xf32>
    %c0_8 = arith.constant 0 : index
    %c0_9 = arith.constant 0 : index
    %6 = vector.load %arg3[%c0_8, %c0_9] : memref<1x1xf32, #tpu.memory_space<vmem>>, vector<1x1xf32>
    %7 = vector.broadcast %6 : vector<1x1xf32> to vector<2x1xf32>
    %8 = arith.addf %5, %7 : vector<2x1xf32>
    %cst_10 = arith.constant 0.000000e+00 : f32
    %9 = vector.broadcast %cst_10 : f32 to vector<2x1xf32>
    %10 = arith.subf %9, %8 : vector<2x1xf32>
    %11 = math.exp %10 : vector<2x1xf32>
    %cst_11 = arith.constant 1.000000e+00 : f32
    %12 = vector.broadcast %cst_11 : f32 to vector<2x1xf32>
    %13 = arith.addf %12, %11 : vector<2x1xf32>
    %14 = tpu.reciprocal %13 {approx = true} : vector<2x1xf32> -> vector<2x1xf32>
    %c0_12 = arith.constant 0 : index
    %c0_13 = arith.constant 0 : index
    %15 = vector.load %arg6[%c0_12, %c0_13] : memref<2x1xf32, #tpu.memory_space<vmem>>, vector<2x1xf32>
    tpu.vector_store %arg6[%c0_12, %c0_13], %14 {strides = array<i32>} : memref<2x1xf32, #tpu.memory_space<vmem>>, vector<2x1xf32>,
    %c0_14 = arith.constant 0 : index
    %c0_15 = arith.constant 0 : index
    %16 = vector.load %arg4[%c0_14, %c0_15] : memref<16x10xf32, #tpu.memory_space<vmem>>, vector<16x10xf32>
    %cst_16 = arith.constant dense<0.000000e+00> : vector<2x10xf32>
    %17 = tpu.matmul %2, %16, %cst_16 {dimension_numbers = #tpu.dot_dimension_numbers<[1], [0], [0], [1], [0, 0, 1, 1], [], []>} : vector<2x16xf32>, vector<16x10xf32>, vector<2x10xf32> -> vector<2x10xf32>
    %c0_17 = arith.constant 0 : index
    %c0_18 = arith.constant 0 : index
    %18 = vector.load %arg5[%c0_17, %c0_18] : memref<1x10xf32, #tpu.memory_space<vmem>>, vector<1x10xf32>
    %19 = vector.broadcast %18 : vector<1x10xf32> to vector<2x10xf32>
    %20 = arith.addf %17, %19 : vector<2x10xf32>
    %cst_19 = arith.constant dense<0xFF800000> : vector<2xf32>
    %21 = vector.multi_reduction <maximumf>, %20, %cst_19 [1] : vector<2x10xf32> to vector<2xf32>
    %22 = vector.shape_cast %21 : vector<2xf32> to vector<2x1xf32>
    %23 = vector.broadcast %22 : vector<2x1xf32> to vector<2x10xf32>
    %24 = arith.subf %20, %23 : vector<2x10xf32>
    %25 = math.exp %24 : vector<2x10xf32>
    %cst_20 = arith.constant dense<0.000000e+00> : vector<2xf32>
    %26 = vector.multi_reduction <add>, %25, %cst_20 [1] : vector<2x10xf32> to vector<2xf32>
    %27 = vector.shape_cast %26 : vector<2xf32> to vector<2x1xf32>
    %28 = tpu.reciprocal %27 {approx = true} : vector<2x1xf32> -> vector<2x1xf32>
    %29 = vector.broadcast %28 : vector<2x1xf32> to vector<2x10xf32>
    %30 = arith.mulf %25, %29 : vector<2x10xf32>
    %c0_21 = arith.constant 0 : index
    %c0_22 = arith.constant 0 : index
    %31 = vector.load %arg7[%c0_21, %c0_22] : memref<2x10xf32, #tpu.memory_space<vmem>>, vector<2x10xf32>
    tpu.vector_store %arg7[%c0_21, %c0_22], %30 {strides = array<i32>} : memref<2x10xf32, #tpu.memory_space<vmem>>, vector<2x10xf32>,
    return
  }
}

</mosaic_0001>

<llo_original>
// kernel: netd_forward.5
$region0: #{netd_forward.5}
  #allocation0 [shape = 'u32[]', space=smem, size = 0x4, offset = 0x4, fixed_abs, tag = 'smem constant byte address 0x4 - core index']
  #allocation1 [shape = 'u32[144,128]{1,0:T(1,128)}', space=vmem, size = 0x12000, scoped, tag = 'internal scratch']
  %s0 = inlined_call_operand.vmem [shape: bf16[2048,16], index: 0, kind: input, shape index: {}]
  %s1 = inlined_call_operand.hbm [shape: bf16[16,128], index: 1, kind: input, shape index: {}]
  %s2 = inlined_call_operand.vmem [shape: bf16[2048,128], index: 2, kind: output, shape index: {}]
  %s3 = sld [smem:[#allocation0]]
  $region45: #{netd_forward.5} parent=0
    _
  %s5 = ssub.s32 1, %s3
  %s6 = scalar_select 0, %s5, %s3
  $region1: #{netd_forward.5} parent=0
    #allocation2 [shape = 'u8[4096]{0}', space=vmem, size = 0x1000, scoped, tag = 'input window, operand 1, single buffered']
    #allocation3 [shape = 's32[2]{0}', space=sflag, size = 0x8, scoped, tag = 'scoped memory for netd_forward.5']
    %7 = vsyncpa [#allocation3], 0
    loop: start=0, step=1, limit=6
    $region2: #{netd_forward.5} parent=1 // loop_pre_header
      _
    $region3: #{netd_forward.5} parent=1 // loop_header
      %s9 = sphi 0, %s13
      %p10 = scmp.ge.s32.totalorder %s9, 6
      %s19 = sphi 0, %s21
      %s22 = sphi 0, %s19
      %s23 = sphi 0, %s22
      %s39 = sphi 0, %s23
      %s43 = sphi 0, %s43
      %s45 = sphi 0, %s43
      %s46 = sphi 0, %s45
      %s60 = sphi 0, %s46
      %s66 = sphi 0, %s68
      %s69 = sphi 0, %s66
      %s70 = sphi 0, %s69
      %s86 = sphi 0, %s70
    $region4: #{netd_forward.5} parent=1 // loop_header_branch
      %12 = sbr.rel (%p10) target = $region8
    $region5: #{netd_forward.5} parent=1 // loop_body
      %s14 = ssub.s32 %s9, 1
      %s15 = ssub.s32 %s9, 2
      %s16 = sadd.s32 %s9, 1
      %s17 = ssub.s32 %s9, %s16
      %p18 = scmp.eq.s32.totalorder %s17, 0
      %s20 = sadd.s32 %s19, 1
      %s21 = scalar_select %p18, %s19, %s20
      %p24 = pneg %p18
      %p25 = scmp.eq.s32.totalorder %s9, 3
      %p26 = por %p24, %p25
      %p27 = scmp.ne.s32.totalorder %s19, %s22
      %p28 = scmp.eq.s32.totalorder %s9, 0
      %p29 = por %p27, %p28
      %p30 = scmp.ne.s32.totalorder %s19, %s22
      %p31 = scmp.eq.s32.totalorder %s14, 3
      %p32 = por %p30, %p31
      %p33 = scmp.ne.s32.totalorder %s22, %s23
      %p34 = scmp.eq.s32.totalorder %s14, 0
      %p35 = por %p33, %p34
      %p36 = scmp.ne.s32.totalorder %s22, %s23
      %p37 = scmp.eq.s32.totalorder %s15, 3
      %p38 = por %p36, %p37
      %p40 = scmp.ne.s32.totalorder %s23, %s39
      %p41 = scmp.eq.s32.totalorder %s15, 0
      %p42 = por %p40, %p41
      %s44 = sadd.s32 %s43, 1
      %p47 = scmp.eq.s32.totalorder %s9, 3
      %p48 = scmp.ne.s32.totalorder %s43, %s45
      %p49 = scmp.eq.s32.totalorder %s9, 0
      %p50 = por %p48, %p49
      %p51 = scmp.ne.s32.totalorder %s43, %s45
      %p52 = scmp.eq.s32.totalorder %s14, 3
      %p53 = por %p51, %p52
      %p54 = scmp.ne.s32.totalorder %s45, %s46
      %p55 = scmp.eq.s32.totalorder %s14, 0
      %p56 = por %p54, %p55
      %p57 = scmp.ne.s32.totalorder %s45, %s46
      %p58 = scmp.eq.s32.totalorder %s15, 3
      %p59 = por %p57, %p58
      %p61 = scmp.ne.s32.totalorder %s46, %s60
      %p62 = scmp.eq.s32.totalorder %s15, 0
      %p63 = por %p61, %p62
      %s64 = ssub.s32 %s9, %s16
      %p65 = scmp.eq.s32.totalorder %s64, 0
      %s67 = sadd.s32 %s66, 1
      %s68 = scalar_select %p65, %s66, %s67
      %p71 = pneg %p65
      %p72 = scmp.eq.s32.totalorder %s9, 3
      %p73 = por %p71, %p72
      %p74 = scmp.ne.s32.totalorder %s66, %s69
      %p75 = scmp.eq.s32.totalorder %s9, 0
      %p76 = por %p74, %p75
      %p77 = scmp.ne.s32.totalorder %s66, %s69
      %p78 = scmp.eq.s32.totalorder %s14, 3
      %p79 = por %p77, %p78
      %p80 = scmp.ne.s32.totalorder %s69, %s70
      %p81 = scmp.eq.s32.totalorder %s14, 0
      %p82 = por %p80, %p81
      %p83 = scmp.ne.s32.totalorder %s69, %s70
      %p84 = scmp.eq.s32.totalorder %s15, 3
      %p85 = por %p83, %p84
      %p87 = scmp.ne.s32.totalorder %s70, %s86
      %p88 = scmp.eq.s32.totalorder %s15, 0
      %p89 = por %p87, %p88
      %p90 = scmp.le.s32.totalorder 1, %s9
      %p91 = scmp.lt.s32.totalorder %s9, 5
      %p92 = pnand %p90, %p91
      %p93 = pneg %p92
      // Predicated region
      $region9: #{netd_forward.5} parent=5 // pred_check
        _
      $region10: #{netd_forward.5} parent=5 // pred_check_branch
        %95 = sbr.rel (%p92) target = $region12
      $region11: #{netd_forward.5} parent=5 // pred_region
        %s96 = ssub.s32 %s9, 1
        // Predicated region
        $region13: #{netd_forward.5} parent=11 // pred_check
          %p97 = pneg %p56
        $region14: #{netd_forward.5} parent=11 // pred_check_branch
          %99 = sbr.rel (%p97) target = $region16
        $region15: #{netd_forward.5} parent=11 // pred_region
          %s101 = ssub.s32 128, 128
          %102 = vsyncadd [#allocation3], %s101
          %s103 = sshll.u32 [#allocation2], 4
          %s104 = int_to_ptr.vmem [resolvable:$true] %s103
          %109 = dma.hbm_to_vmem [thread:$0]  %s1, 128, %s104, [#allocation3], 64, 64, 4
        $region16: #{netd_forward.5} parent=11 // pred_fallthru
          _
      $region12: #{netd_forward.5} parent=5 // pred_fallthru
        _
      %p110 = scmp.lt.s32.totalorder %s9, 4
      // Predicated region
      $region17: #{netd_forward.5} parent=5 // pred_check
        %p111 = pneg %p110
      $region18: #{netd_forward.5} parent=5 // pred_check_branch
        %113 = sbr.rel (%p111) target = $region20
      $region19: #{netd_forward.5} parent=5 // pred_region
        // Predicated region
        $region21: #{netd_forward.5} parent=19 // pred_check
          %p114 = pneg %p29
        $region22: #{netd_forward.5} parent=19 // pred_check_branch
          %116 = sbr.rel (%p114) target = $region24
        $region23: #{netd_forward.5} parent=19 // pred_region
          %s117 = smul.u32 64, %s9
          %p118 = scmp.lt.s32.totalorder %s117, 255
          %s119 = scalar_select %p118, %s117, 255
          %s120 = smul.addr %s119, 4
          %s121 = scalar_lea.vmem %s0, %s120
          %s122 = smul.u32 64, %s9
        $region24: #{netd_forward.5} parent=19 // pred_fallthru
          _
      $region20: #{netd_forward.5} parent=5 // pred_fallthru
        _
      %p123 = scmp.le.s32.totalorder 1, %s9
      %p124 = scmp.lt.s32.totalorder %s9, 5
      %p125 = pnand %p123, %p124
      %p126 = pneg %p125
      // Predicated region
      $region25: #{netd_forward.5} parent=5 // pred_check
        _
      $region26: #{netd_forward.5} parent=5 // pred_check_branch
        %128 = sbr.rel (%p125) target = $region28
      $region27: #{netd_forward.5} parent=5 // pred_region
        %s129 = ssub.s32 %s9, 1
        // Predicated region
        $region29: #{netd_forward.5} parent=27 // pred_check
          %p130 = pneg %p56
        $region30: #{netd_forward.5} parent=27 // pred_check_branch
          %132 = sbr.rel (%p130) target = $region32
        $region31: #{netd_forward.5} parent=27 // pred_region
          %133 = dma.done [#allocation3], 128
        $region32: #{netd_forward.5} parent=27 // pred_fallthru
          _
        %s134 = smul.u32 64, %s14
        %p135 = scmp.lt.s32.totalorder %s134, 255
        %s136 = scalar_select %p135, %s134, 255
        %s137 = smul.addr %s136, 4
        %s138 = scalar_lea.vmem %s0, %s137
        %p139 = pneg %p35
        %p140 = pneg %p32
        %p141 = pneg %p56
        %p142 = pneg %p53
        %p143 = pneg %p82
        %p144 = pneg %p79
        %s145 = smul.u32 64, %s14
        %p146 = scmp.lt.s32.totalorder %s145, 255
        %s147 = scalar_select %p146, %s145, 255
        %s148 = smul.addr %s147, 4
        %s149 = scalar_lea.vmem %s2, %s148
        %s150 = smul.u32 64, %s14
        %p151 = scmp.lt.s32.totalorder %s150, 255
        %s152 = scalar_select %p151, %s150, 255
        %s153 = smul.addr %s152, 4
        %s154 = scalar_lea.vmem %s0, %s153
        %s155 = smul.u32 64, %s14
        %s156 = smul.u32 64, %s14
        %p157 = scmp.lt.s32.totalorder %s156, 255
        %s158 = scalar_select %p157, %s156, 255
        %s159 = smul.addr %s158, 4
        %s160 = scalar_lea.vmem %s2, %s159
        %s161 = smul.u32 64, %s14
        %v163 = vld [vmem:[%s154] sm:$0xf]
        %v164 = vld [vmem:[%s154 + $0x4] sm:$0xf]
        %v165 = vld [vmem:[%s154 + $0x8] sm:$0xf]
        %v166 = vld [vmem:[%s154 + $0xc] sm:$0xf]
        %v167 = vld [vmem:[%s154 + $0x10] sm:$0xf]
        %v168 = vld [vmem:[%s154 + $0x14] sm:$0xf]
        %v169 = vld [vmem:[%s154 + $0x18] sm:$0xf]
        %v170 = vld [vmem:[%s154 + $0x1c] sm:$0xf]
        %v171 = vld [vmem:[%s154 + $0x20] sm:$0xf]
        %v172 = vld [vmem:[%s154 + $0x24] sm:$0xf]
        %v173 = vld [vmem:[%s154 + $0x28] sm:$0xf]
        %v174 = vld [vmem:[%s154 + $0x2c] sm:$0xf]
        %v175 = vld [vmem:[%s154 + $0x30] sm:$0xf]
        %v176 = vld [vmem:[%s154 + $0x34] sm:$0xf]
        %v177 = vld [vmem:[%s154 + $0x38] sm:$0xf]
        %v178 = vld [vmem:[%s154 + $0x3c] sm:$0xf]
        %v179 = vld [vmem:[%s154 + $0x40] sm:$0xf]
        %v180 = vld [vmem:[%s154 + $0x44] sm:$0xf]
        %v181 = vld [vmem:[%s154 + $0x48] sm:$0xf]
        %v182 = vld [vmem:[%s154 + $0x4c] sm:$0xf]
        %v183 = vld [vmem:[%s154 + $0x50] sm:$0xf]
        %v184 = vld [vmem:[%s154 + $0x54] sm:$0xf]
        %v185 = vld [vmem:[%s154 + $0x58] sm:$0xf]
        %v186 = vld [vmem:[%s154 + $0x5c] sm:$0xf]
        %v187 = vld [vmem:[%s154 + $0x60] sm:$0xf]
        %v188 = vld [vmem:[%s154 + $0x64] sm:$0xf]
        %v189 = vld [vmem:[%s154 + $0x68] sm:$0xf]
        %v190 = vld [vmem:[%s154 + $0x6c] sm:$0xf]
        %v191 = vld [vmem:[%s154 + $0x70] sm:$0xf]
        %v192 = vld [vmem:[%s154 + $0x74] sm:$0xf]
        %v193 = vld [vmem:[%s154 + $0x78] sm:$0xf]
        %v194 = vld [vmem:[%s154 + $0x7c] sm:$0xf]
        %v195 = vld [vmem:[%s154 + $0x80] sm:$0xf]
        %v196 = vld [vmem:[%s154 + $0x84] sm:$0xf]
        %v197 = vld [vmem:[%s154 + $0x88] sm:$0xf]
        %v198 = vld [vmem:[%s154 + $0x8c] sm:$0xf]
        %v199 = vld [vmem:[%s154 + $0x90] sm:$0xf]
        %v200 = vld [vmem:[%s154 + $0x94] sm:$0xf]
        %v201 = vld [vmem:[%s154 + $0x98] sm:$0xf]
        %v202 = vld [vmem:[%s154 + $0x9c] sm:$0xf]
        %v203 = vld [vmem:[%s154 + $0xa0] sm:$0xf]
        %v204 = vld [vmem:[%s154 + $0xa4] sm:$0xf]
        %v205 = vld [vmem:[%s154 + $0xa8] sm:$0xf]
        %v206 = vld [vmem:[%s154 + $0xac] sm:$0xf]
        %v207 = vld [vmem:[%s154 + $0xb0] sm:$0xf]
        %v208 = vld [vmem:[%s154 + $0xb4] sm:$0xf]
        %v209 = vld [vmem:[%s154 + $0xb8] sm:$0xf]
        %v210 = vld [vmem:[%s154 + $0xbc] sm:$0xf]
        %v211 = vld [vmem:[%s154 + $0xc0] sm:$0xf]
        %v212 = vld [vmem:[%s154 + $0xc4] sm:$0xf]
        %v213 = vld [vmem:[%s154 + $0xc8] sm:$0xf]
        %v214 = vld [vmem:[%s154 + $0xcc] sm:$0xf]
        %v215 = vld [vmem:[%s154 + $0xd0] sm:$0xf]
        %v216 = vld [vmem:[%s154 + $0xd4] sm:$0xf]
        %v217 = vld [vmem:[%s154 + $0xd8] sm:$0xf]
        %v218 = vld [vmem:[%s154 + $0xdc] sm:$0xf]
        %v219 = vld [vmem:[%s154 + $0xe0] sm:$0xf]
        %v220 = vld [vmem:[%s154 + $0xe4] sm:$0xf]
        %v221 = vld [vmem:[%s154 + $0xe8] sm:$0xf]
        %v222 = vld [vmem:[%s154 + $0xec] sm:$0xf]
        %v223 = vld [vmem:[%s154 + $0xf0] sm:$0xf]
        %v224 = vld [vmem:[%s154 + $0xf4] sm:$0xf]
        %v225 = vld [vmem:[%s154 + $0xf8] sm:$0xf]
        %v226 = vld [vmem:[%s154 + $0xfc] sm:$0xf]
        %v227 = vld [vmem:[#allocation2] sm:$0xf]
        %v228 = vld [vmem:[#allocation2 + $0x4] sm:$0xf]
        %v293 = vunpack.c.l.b16 %v163
        %v294 = vunpack.c.l.b16 %v164
        %v295 = vunpack.c.l.b16 %v165
        %v296 = vunpack.c.l.b16 %v166
        %v297 = vunpack.c.l.b16 %v167
        %v298 = vunpack.c.l.b16 %v168
        %v299 = vunpack.c.l.b16 %v169
        %v300 = vunpack.c.l.b16 %v170
        %v301 = vunpack.c.l.b16 %v171
        %v302 = vunpack.c.l.b16 %v172
        %v303 = vunpack.c.l.b16 %v173
        %v304 = vunpack.c.l.b16 %v174
        %v305 = vunpack.c.l.b16 %v175
        %v306 = vunpack.c.l.b16 %v176
        %v307 = vunpack.c.l.b16 %v177
        %v308 = vunpack.c.l.b16 %v178
        %v309 = vunpack.c.l.b16 %v179
        %v310 = vunpack.c.l.b16 %v180
        %v311 = vunpack.c.l.b16 %v181
        %v312 = vunpack.c.l.b16 %v182
        %v313 = vunpack.c.l.b16 %v183
        %v314 = vunpack.c.l.b16 %v184
        %v315 = vunpack.c.l.b16 %v185
        %v316 = vunpack.c.l.b16 %v186
        %v317 = vunpack.c.l.b16 %v187
        %v318 = vunpack.c.l.b16 %v188
        %v319 = vunpack.c.l.b16 %v189
        %v320 = vunpack.c.l.b16 %v190
        %v321 = vunpack.c.l.b16 %v191
        %v322 = vunpack.c.l.b16 %v192
        %v323 = vunpack.c.l.b16 %v193
        %v324 = vunpack.c.l.b16 %v194
        %v325 = vunpack.c.l.b16 %v195
        %v326 = vunpack.c.l.b16 %v196
        %v327 = vunpack.c.l.b16 %v197
        %v328 = vunpack.c.l.b16 %v198
        %v329 = vunpack.c.l.b16 %v199
        %v330 = vunpack.c.l.b16 %v200
        %v331 = vunpack.c.l.b16 %v201
        %v332 = vunpack.c.l.b16 %v202
        %v333 = vunpack.c.l.b16 %v203
        %v334 = vunpack.c.l.b16 %v204
        %v335 = vunpack.c.l.b16 %v205
        %v336 = vunpack.c.l.b16 %v206
        %v337 = vunpack.c.l.b16 %v207
        %v338 = vunpack.c.l.b16 %v208
        %v339 = vunpack.c.l.b16 %v209
        %v340 = vunpack.c.l.b16 %v210
        %v341 = vunpack.c.l.b16 %v211
        %v342 = vunpack.c.l.b16 %v212
        %v343 = vunpack.c.l.b16 %v213
        %v344 = vunpack.c.l.b16 %v214
        %v345 = vunpack.c.l.b16 %v215
        %v346 = vunpack.c.l.b16 %v216
        %v347 = vunpack.c.l.b16 %v217
        %v348 = vunpack.c.l.b16 %v218
        %v349 = vunpack.c.l.b16 %v219
        %v350 = vunpack.c.l.b16 %v220
        %v351 = vunpack.c.l.b16 %v221
        %v352 = vunpack.c.l.b16 %v222
        %v353 = vunpack.c.l.b16 %v223
        %v354 = vunpack.c.l.b16 %v224
        %v355 = vunpack.c.l.b16 %v225
        %v356 = vunpack.c.l.b16 %v226
        %v357 = vpack.c.b16 %v294, %v293
        %v358 = vpack.c.b16 %v296, %v295
        %v359 = vpack.c.b16 %v298, %v297
        %v360 = vpack.c.b16 %v300, %v299
        %v361 = vpack.c.b16 %v302, %v301
        %v362 = vpack.c.b16 %v304, %v303
        %v363 = vpack.c.b16 %v306, %v305
        %v364 = vpack.c.b16 %v308, %v307
        %v365 = vpack.c.b16 %v310, %v309
        %v366 = vpack.c.b16 %v312, %v311
        %v367 = vpack.c.b16 %v314, %v313
        %v368 = vpack.c.b16 %v316, %v315
        %v369 = vpack.c.b16 %v318, %v317
        %v370 = vpack.c.b16 %v320, %v319
        %v371 = vpack.c.b16 %v322, %v321
        %v372 = vpack.c.b16 %v324, %v323
        %v373 = vpack.c.b16 %v326, %v325
        %v374 = vpack.c.b16 %v328, %v327
        %v375 = vpack.c.b16 %v330, %v329
        %v376 = vpack.c.b16 %v332, %v331
        %v377 = vpack.c.b16 %v334, %v333
        %v378 = vpack.c.b16 %v336, %v335
        %v379 = vpack.c.b16 %v338, %v337
        %v380 = vpack.c.b16 %v340, %v339
        %v381 = vpack.c.b16 %v342, %v341
        %v382 = vpack.c.b16 %v344, %v343
        %v383 = vpack.c.b16 %v346, %v345
        %v384 = vpack.c.b16 %v348, %v347
        %v385 = vpack.c.b16 %v350, %v349
        %v386 = vpack.c.b16 %v352, %v351
        %v387 = vpack.c.b16 %v354, %v353
        %v388 = vpack.c.b16 %v356, %v355
        %v391 = vunpack.c.l.b16 %v227
        %v392 = vunpack.c.l.b16 %v228
        %v393 = vpack.c.b16 %v392, %v391
        %vm395 = vcmask 130048
        %v397 = vsel %vm395, %v357, 0
        %v400 = vsel %vm395, %v358, 0
        %v403 = vsel %vm395, %v359, 0
        %v406 = vsel %vm395, %v360, 0
        %v409 = vsel %vm395, %v361, 0
        %v412 = vsel %vm395, %v362, 0
        %v415 = vsel %vm395, %v363, 0
        %v418 = vsel %vm395, %v364, 0
        %v421 = vsel %vm395, %v365, 0
        %v424 = vsel %vm395, %v366, 0
        %v427 = vsel %vm395, %v367, 0
        %v430 = vsel %vm395, %v368, 0
        %v433 = vsel %vm395, %v369, 0
        %v436 = vsel %vm395, %v370, 0
        %v439 = vsel %vm395, %v371, 0
        %v442 = vsel %vm395, %v372, 0
        %v445 = vsel %vm395, %v373, 0
        %v448 = vsel %vm395, %v374, 0
        %v451 = vsel %vm395, %v375, 0
        %v454 = vsel %vm395, %v376, 0
        %v457 = vsel %vm395, %v377, 0
        %v460 = vsel %vm395, %v378, 0
        %v463 = vsel %vm395, %v379, 0
        %v466 = vsel %vm395, %v380, 0
        %v469 = vsel %vm395, %v381, 0
        %v472 = vsel %vm395, %v382, 0
        %v475 = vsel %vm395, %v383, 0
        %v478 = vsel %vm395, %v384, 0
        %v481 = vsel %vm395, %v385, 0
        %v484 = vsel %vm395, %v386, 0
        %v487 = vsel %vm395, %v387, 0
        %v490 = vsel %vm395, %v388, 0
        %492 = vmatprep.subr.bf16.mxu0 0
        %493 = vmatpush1.bf16.msra.mxu0 0
        %494 = vmatprep.subr.bf16.mxu0 0
        %495 = vmatpush1.bf16.msra.mxu0 0
        %496 = vmatprep.subr.bf16.mxu0 0
        %497 = vmatpush1.bf16.msra.mxu0 0
        %498 = vmatprep.subr.bf16.mxu0 0
        %499 = vmatpush1.bf16.msra.mxu0 0
        %500 = vmatprep.subr.bf16.mxu0 0
        %501 = vmatpush1.bf16.msra.mxu0 0
        %502 = vmatprep.subr.bf16.mxu0 0
        %503 = vmatpush1.bf16.msra.mxu0 0
        %504 = vmatprep.subr.bf16.mxu0 0
        %505 = vmatpush1.bf16.msra.mxu0 0
        %506 = vmatprep.subr.bf16.mxu0 0
        %507 = vmatpush1.bf16.msra.mxu0 %v393
        %508 = vmatprep.subr.bf16.mxu0 0
        %509 = vmatpush2.bf16.msra.mxu0 0
        %510 = vmatprep.subr.bf16.mxu0 0
        %511 = vmatpush2.bf16.msra.mxu0 0
        %512 = vmatprep.subr.bf16.mxu0 0
        %513 = vmatpush2.bf16.msra.mxu0 0
        %514 = vmatprep.subr.bf16.mxu0 0
        %515 = vmatpush2.bf16.msra.mxu0 0
        %516 = vmatprep.subr.bf16.mxu0 0
        %517 = vmatpush2.bf16.msra.mxu0 0
        %518 = vmatprep.subr.bf16.mxu0 0
        %519 = vmatpush2.bf16.msra.mxu0 0
        %520 = vmatprep.subr.bf16.mxu0 0
        %521 = vmatpush2.bf16.msra.mxu0 0
        %522 = vmatprep.subr.bf16.mxu0 0
        %523 = vmatpush2.bf16.msra.mxu0 0
        %524 = vmatprep.mubr.bf16.mxu0 0
        %525 = vmatmul.mubr.bf16.gmra.mxu0 %v397
        %v526 = vpop.f32.mrf.mxu0
        %v527 = vadd.f32 0.0, %v526
        %v528 = vpop.f32.mrf.mxu0
        %v529 = vpop.f32.mrf.mxu0
        %v530 = vadd.f32 0.0, %v529
        %v531 = vpop.f32.mrf.mxu0
        %532 = vmatprep.mubr.bf16.mxu0 0
        %533 = vmatmul.mubr.bf16.gmra.mxu0 %v400
        %v534 = vpop.f32.mrf.mxu0
        %v535 = vadd.f32 0.0, %v534
        %v536 = vpop.f32.mrf.mxu0
        %v537 = vpop.f32.mrf.mxu0
        %v538 = vadd.f32 0.0, %v537
        %v539 = vpop.f32.mrf.mxu0
        %540 = vmatprep.mubr.bf16.mxu0 0
        %541 = vmatmul.mubr.bf16.gmra.mxu0 %v403
        %v542 = vpop.f32.mrf.mxu0
        %v543 = vadd.f32 0.0, %v542
        %v544 = vpop.f32.mrf.mxu0
        %v545 = vpop.f32.mrf.mxu0
        %v546 = vadd.f32 0.0, %v545
        %v547 = vpop.f32.mrf.mxu0
        %548 = vmatprep.mubr.bf16.mxu0 0
        %549 = vmatmul.mubr.bf16.gmra.mxu0 %v406
        %v550 = vpop.f32.mrf.mxu0
        %v551 = vadd.f32 0.0, %v550
        %v552 = vpop.f32.mrf.mxu0
        %v553 = vpop.f32.mrf.mxu0
        %v554 = vadd.f32 0.0, %v553
        %v555 = vpop.f32.mrf.mxu0
        %556 = vmatprep.mubr.bf16.mxu0 0
        %557 = vmatmul.mubr.bf16.gmra.mxu0 %v409
        %v558 = vpop.f32.mrf.mxu0
        %v559 = vadd.f32 0.0, %v558
        %v560 = vpop.f32.mrf.mxu0
        %v561 = vpop.f32.mrf.mxu0
        %v562 = vadd.f32 0.0, %v561
        %v563 = vpop.f32.mrf.mxu0
        %564 = vmatprep.mubr.bf16.mxu0 0
        %565 = vmatmul.mubr.bf16.gmra.mxu0 %v412
        %v566 = vpop.f32.mrf.mxu0
        %v567 = vadd.f32 0.0, %v566
        %v568 = vpop.f32.mrf.mxu0
        %v569 = vpop.f32.mrf.mxu0
        %v570 = vadd.f32 0.0, %v569
        %v571 = vpop.f32.mrf.mxu0
        %572 = vmatprep.mubr.bf16.mxu0 0
        %573 = vmatmul.mubr.bf16.gmra.mxu0 %v415
        %v574 = vpop.f32.mrf.mxu0
        %v575 = vadd.f32 0.0, %v574
        %v576 = vpop.f32.mrf.mxu0
        %v577 = vpop.f32.mrf.mxu0
        %v578 = vadd.f32 0.0, %v577
        %v579 = vpop.f32.mrf.mxu0
        %580 = vmatprep.mubr.bf16.mxu0 0
        %581 = vmatmul.mubr.bf16.gmra.mxu0 %v418
        %v582 = vpop.f32.mrf.mxu0
        %v583 = vadd.f32 0.0, %v582
        %v584 = vpop.f32.mrf.mxu0
        %v585 = vpop.f32.mrf.mxu0
        %v586 = vadd.f32 0.0, %v585
        %v587 = vpop.f32.mrf.mxu0
        %588 = vmatprep.mubr.bf16.mxu0 0
        %589 = vmatmul.mubr.bf16.gmra.mxu0 %v421
        %v590 = vpop.f32.mrf.mxu0
        %v591 = vadd.f32 0.0, %v590
        %v592 = vpop.f32.mrf.mxu0
        %v593 = vpop.f32.mrf.mxu0
        %v594 = vadd.f32 0.0, %v593
        %v595 = vpop.f32.mrf.mxu0
        %596 = vmatprep.mubr.bf16.mxu0 0
        %597 = vmatmul.mubr.bf16.gmra.mxu0 %v424
        %v598 = vpop.f32.mrf.mxu0
        %v599 = vadd.f32 0.0, %v598
        %v600 = vpop.f32.mrf.mxu0
        %v601 = vpop.f32.mrf.mxu0
        %v602 = vadd.f32 0.0, %v601
        %v603 = vpop.f32.mrf.mxu0
        %604 = vmatprep.mubr.bf16.mxu0 0
        %605 = vmatmul.mubr.bf16.gmra.mxu0 %v427
        %v606 = vpop.f32.mrf.mxu0
        %v607 = vadd.f32 0.0, %v606
        %v608 = vpop.f32.mrf.mxu0
        %v609 = vpop.f32.mrf.mxu0
        %v610 = vadd.f32 0.0, %v609
        %v611 = vpop.f32.mrf.mxu0
        %612 = vmatprep.mubr.bf16.mxu0 0
        %613 = vmatmul.mubr.bf16.gmra.mxu0 %v430
        %v614 = vpop.f32.mrf.mxu0
        %v615 = vadd.f32 0.0, %v614
        %v616 = vpop.f32.mrf.mxu0
        %v617 = vpop.f32.mrf.mxu0
        %v618 = vadd.f32 0.0, %v617
        %v619 = vpop.f32.mrf.mxu0
        %620 = vmatprep.mubr.bf16.mxu0 0
        %621 = vmatmul.mubr.bf16.gmra.mxu0 %v433
        %v622 = vpop.f32.mrf.mxu0
        %v623 = vadd.f32 0.0, %v622
        %v624 = vpop.f32.mrf.mxu0
        %v625 = vpop.f32.mrf.mxu0
        %v626 = vadd.f32 0.0, %v625
        %v627 = vpop.f32.mrf.mxu0
        %628 = vmatprep.mubr.bf16.mxu0 0
        %629 = vmatmul.mubr.bf16.gmra.mxu0 %v436
        %v630 = vpop.f32.mrf.mxu0
        %v631 = vadd.f32 0.0, %v630
        %v632 = vpop.f32.mrf.mxu0
        %v633 = vpop.f32.mrf.mxu0
        %v634 = vadd.f32 0.0, %v633
        %v635 = vpop.f32.mrf.mxu0
        %636 = vmatprep.mubr.bf16.mxu0 0
        %637 = vmatmul.mubr.bf16.gmra.mxu0 %v439
        %v638 = vpop.f32.mrf.mxu0
        %v639 = vadd.f32 0.0, %v638
        %v640 = vpop.f32.mrf.mxu0
        %v641 = vpop.f32.mrf.mxu0
        %v642 = vadd.f32 0.0, %v641
        %v643 = vpop.f32.mrf.mxu0
        %644 = vmatprep.mubr.bf16.mxu0 0
        %645 = vmatmul.mubr.bf16.gmra.mxu0 %v442
        %v646 = vpop.f32.mrf.mxu0
        %v647 = vadd.f32 0.0, %v646
        %v648 = vpop.f32.mrf.mxu0
        %v649 = vpop.f32.mrf.mxu0
        %v650 = vadd.f32 0.0, %v649
        %v651 = vpop.f32.mrf.mxu0
        %652 = vmatprep.mubr.bf16.mxu0 0
        %653 = vmatmul.mubr.bf16.gmra.mxu0 %v445
        %v654 = vpop.f32.mrf.mxu0
        %v655 = vadd.f32 0.0, %v654
        %v656 = vpop.f32.mrf.mxu0
        %v657 = vpop.f32.mrf.mxu0
        %v658 = vadd.f32 0.0, %v657
        %v659 = vpop.f32.mrf.mxu0
        %660 = vmatprep.mubr.bf16.mxu0 0
        %661 = vmatmul.mubr.bf16.gmra.mxu0 %v448
        %v662 = vpop.f32.mrf.mxu0
        %v663 = vadd.f32 0.0, %v662
        %v664 = vpop.f32.mrf.mxu0
        %v665 = vpop.f32.mrf.mxu0
        %v666 = vadd.f32 0.0, %v665
        %v667 = vpop.f32.mrf.mxu0
        %668 = vmatprep.mubr.bf16.mxu0 0
        %669 = vmatmul.mubr.bf16.gmra.mxu0 %v451
        %v670 = vpop.f32.mrf.mxu0
        %v671 = vadd.f32 0.0, %v670
        %v672 = vpop.f32.mrf.mxu0
        %v673 = vpop.f32.mrf.mxu0
        %v674 = vadd.f32 0.0, %v673
        %v675 = vpop.f32.mrf.mxu0
        %676 = vmatprep.mubr.bf16.mxu0 0
        %677 = vmatmul.mubr.bf16.gmra.mxu0 %v454
        %v678 = vpop.f32.mrf.mxu0
        %v679 = vadd.f32 0.0, %v678
        %v680 = vpop.f32.mrf.mxu0
        %v681 = vpop.f32.mrf.mxu0
        %v682 = vadd.f32 0.0, %v681
        %v683 = vpop.f32.mrf.mxu0
        %684 = vmatprep.mubr.bf16.mxu0 0
        %685 = vmatmul.mubr.bf16.gmra.mxu0 %v457
        %v686 = vpop.f32.mrf.mxu0
        %v687 = vadd.f32 0.0, %v686
        %v688 = vpop.f32.mrf.mxu0
        %v689 = vpop.f32.mrf.mxu0
        %v690 = vadd.f32 0.0, %v689
        %v691 = vpop.f32.mrf.mxu0
        %692 = vmatprep.mubr.bf16.mxu0 0
        %693 = vmatmul.mubr.bf16.gmra.mxu0 %v460
        %v694 = vpop.f32.mrf.mxu0
        %v695 = vadd.f32 0.0, %v694
        %v696 = vpop.f32.mrf.mxu0
        %v697 = vpop.f32.mrf.mxu0
        %v698 = vadd.f32 0.0, %v697
        %v699 = vpop.f32.mrf.mxu0
        %700 = vmatprep.mubr.bf16.mxu0 0
        %701 = vmatmul.mubr.bf16.gmra.mxu0 %v463
        %v702 = vpop.f32.mrf.mxu0
        %v703 = vadd.f32 0.0, %v702
        %v704 = vpop.f32.mrf.mxu0
        %v705 = vpop.f32.mrf.mxu0
        %v706 = vadd.f32 0.0, %v705
        %v707 = vpop.f32.mrf.mxu0
        %708 = vmatprep.mubr.bf16.mxu0 0
        %709 = vmatmul.mubr.bf16.gmra.mxu0 %v466
        %v710 = vpop.f32.mrf.mxu0
        %v711 = vadd.f32 0.0, %v710
        %v712 = vpop.f32.mrf.mxu0
        %v713 = vpop.f32.mrf.mxu0
        %v714 = vadd.f32 0.0, %v713
        %v715 = vpop.f32.mrf.mxu0
        %716 = vmatprep.mubr.bf16.mxu0 0
        %717 = vmatmul.mubr.bf16.gmra.mxu0 %v469
        %v718 = vpop.f32.mrf.mxu0
        %v719 = vadd.f32 0.0, %v718
        %v720 = vpop.f32.mrf.mxu0
        %v721 = vpop.f32.mrf.mxu0
        %v722 = vadd.f32 0.0, %v721
        %v723 = vpop.f32.mrf.mxu0
        %724 = vmatprep.mubr.bf16.mxu0 0
        %725 = vmatmul.mubr.bf16.gmra.mxu0 %v472
        %v726 = vpop.f32.mrf.mxu0
        %v727 = vadd.f32 0.0, %v726
        %v728 = vpop.f32.mrf.mxu0
        %v729 = vpop.f32.mrf.mxu0
        %v730 = vadd.f32 0.0, %v729
        %v731 = vpop.f32.mrf.mxu0
        %732 = vmatprep.mubr.bf16.mxu0 0
        %733 = vmatmul.mubr.bf16.gmra.mxu0 %v475
        %v734 = vpop.f32.mrf.mxu0
        %v735 = vadd.f32 0.0, %v734
        %v736 = vpop.f32.mrf.mxu0
        %v737 = vpop.f32.mrf.mxu0
        %v738 = vadd.f32 0.0, %v737
        %v739 = vpop.f32.mrf.mxu0
        %740 = vmatprep.mubr.bf16.mxu0 0
        %741 = vmatmul.mubr.bf16.gmra.mxu0 %v478
        %v742 = vpop.f32.mrf.mxu0
        %v743 = vadd.f32 0.0, %v742
        %v744 = vpop.f32.mrf.mxu0
        %v745 = vpop.f32.mrf.mxu0
        %v746 = vadd.f32 0.0, %v745
        %v747 = vpop.f32.mrf.mxu0
        %748 = vmatprep.mubr.bf16.mxu0 0
        %749 = vmatmul.mubr.bf16.gmra.mxu0 %v481
        %v750 = vpop.f32.mrf.mxu0
        %v751 = vadd.f32 0.0, %v750
        %v752 = vpop.f32.mrf.mxu0
        %v753 = vpop.f32.mrf.mxu0
        %v754 = vadd.f32 0.0, %v753
        %v755 = vpop.f32.mrf.mxu0
        %756 = vmatprep.mubr.bf16.mxu0 0
        %757 = vmatmul.mubr.bf16.gmra.mxu0 %v484
        %v758 = vpop.f32.mrf.mxu0
        %v759 = vadd.f32 0.0, %v758
        %v760 = vpop.f32.mrf.mxu0
        %v761 = vpop.f32.mrf.mxu0
        %v762 = vadd.f32 0.0, %v761
        %v763 = vpop.f32.mrf.mxu0
        %764 = vmatprep.mubr.bf16.mxu0 0
        %765 = vmatmul.mubr.bf16.gmra.mxu0 %v487
        %v766 = vpop.f32.mrf.mxu0
        %v767 = vadd.f32 0.0, %v766
        %v768 = vpop.f32.mrf.mxu0
        %v769 = vpop.f32.mrf.mxu0
        %v770 = vadd.f32 0.0, %v769
        %v771 = vpop.f32.mrf.mxu0
        %772 = vmatprep.mubr.bf16.mxu0 0
        %773 = vmatmul.mubr.bf16.gmra.mxu0 %v490
        %v774 = vpop.f32.mrf.mxu0
        %v775 = vadd.f32 0.0, %v774
        %v776 = vpop.f32.mrf.mxu0
        %v777 = vpop.f32.mrf.mxu0
        %v778 = vadd.f32 0.0, %v777
        %v779 = vpop.f32.mrf.mxu0
        %780 = vdwg.mxu0
        %vm781 = vcmp.gt.f32.partialorder %v527, 0.0
        %vm782 = vcmp.gt.f32.partialorder %v530, 0.0
        %vm783 = vcmp.gt.f32.partialorder %v535, 0.0
        %vm784 = vcmp.gt.f32.partialorder %v538, 0.0
        %vm785 = vcmp.gt.f32.partialorder %v543, 0.0
        %vm786 = vcmp.gt.f32.partialorder %v546, 0.0
        %vm787 = vcmp.gt.f32.partialorder %v551, 0.0
        %vm788 = vcmp.gt.f32.partialorder %v554, 0.0
        %vm789 = vcmp.gt.f32.partialorder %v559, 0.0
        %vm790 = vcmp.gt.f32.partialorder %v562, 0.0
        %vm791 = vcmp.gt.f32.partialorder %v567, 0.0
        %vm792 = vcmp.gt.f32.partialorder %v570, 0.0
        %vm793 = vcmp.gt.f32.partialorder %v575, 0.0
        %vm794 = vcmp.gt.f32.partialorder %v578, 0.0
        %vm795 = vcmp.gt.f32.partialorder %v583, 0.0
        %vm796 = vcmp.gt.f32.partialorder %v586, 0.0
        %vm797 = vcmp.gt.f32.partialorder %v591, 0.0
        %vm798 = vcmp.gt.f32.partialorder %v594, 0.0
        %vm799 = vcmp.gt.f32.partialorder %v599, 0.0
        %vm800 = vcmp.gt.f32.partialorder %v602, 0.0
        %vm801 = vcmp.gt.f32.partialorder %v607, 0.0
        %vm802 = vcmp.gt.f32.partialorder %v610, 0.0
        %vm803 = vcmp.gt.f32.partialorder %v615, 0.0
        %vm804 = vcmp.gt.f32.partialorder %v618, 0.0
        %vm805 = vcmp.gt.f32.partialorder %v623, 0.0
        %vm806 = vcmp.gt.f32.partialorder %v626, 0.0
        %vm807 = vcmp.gt.f32.partialorder %v631, 0.0
        %vm808 = vcmp.gt.f32.partialorder %v634, 0.0
        %vm809 = vcmp.gt.f32.partialorder %v639, 0.0
        %vm810 = vcmp.gt.f32.partialorder %v642, 0.0
        %vm811 = vcmp.gt.f32.partialorder %v647, 0.0
        %vm812 = vcmp.gt.f32.partialorder %v650, 0.0
        %vm813 = vcmp.gt.f32.partialorder %v655, 0.0
        %vm814 = vcmp.gt.f32.partialorder %v658, 0.0
        %vm815 = vcmp.gt.f32.partialorder %v663, 0.0
        %vm816 = vcmp.gt.f32.partialorder %v666, 0.0
        %vm817 = vcmp.gt.f32.partialorder %v671, 0.0
        %vm818 = vcmp.gt.f32.partialorder %v674, 0.0
        %vm819 = vcmp.gt.f32.partialorder %v679, 0.0
        %vm820 = vcmp.gt.f32.partialorder %v682, 0.0
        %vm821 = vcmp.gt.f32.partialorder %v687, 0.0
        %vm822 = vcmp.gt.f32.partialorder %v690, 0.0
        %vm823 = vcmp.gt.f32.partialorder %v695, 0.0
        %vm824 = vcmp.gt.f32.partialorder %v698, 0.0
        %vm825 = vcmp.gt.f32.partialorder %v703, 0.0
        %vm826 = vcmp.gt.f32.partialorder %v706, 0.0
        %vm827 = vcmp.gt.f32.partialorder %v711, 0.0
        %vm828 = vcmp.gt.f32.partialorder %v714, 0.0
        %vm829 = vcmp.gt.f32.partialorder %v719, 0.0
        %vm830 = vcmp.gt.f32.partialorder %v722, 0.0
        %vm831 = vcmp.gt.f32.partialorder %v727, 0.0
        %vm832 = vcmp.gt.f32.partialorder %v730, 0.0
        %vm833 = vcmp.gt.f32.partialorder %v735, 0.0
        %vm834 = vcmp.gt.f32.partialorder %v738, 0.0
        %vm835 = vcmp.gt.f32.partialorder %v743, 0.0
        %vm836 = vcmp.gt.f32.partialorder %v746, 0.0
        %vm837 = vcmp.gt.f32.partialorder %v751, 0.0
        %vm838 = vcmp.gt.f32.partialorder %v754, 0.0
        %vm839 = vcmp.gt.f32.partialorder %v759, 0.0
        %vm840 = vcmp.gt.f32.partialorder %v762, 0.0
        %vm841 = vcmp.gt.f32.partialorder %v767, 0.0
        %vm842 = vcmp.gt.f32.partialorder %v770, 0.0
        %vm843 = vcmp.gt.f32.partialorder %v775, 0.0
        %vm844 = vcmp.gt.f32.partialorder %v778, 0.0
        %v845 = vmul.f32 %v527, 0.2
        %v846 = vmul.f32 %v530, 0.2
        %v847 = vmul.f32 %v535, 0.2
        %v848 = vmul.f32 %v538, 0.2
        %v849 = vmul.f32 %v543, 0.2
        %v850 = vmul.f32 %v546, 0.2
        %v851 = vmul.f32 %v551, 0.2
        %v852 = vmul.f32 %v554, 0.2
        %v853 = vmul.f32 %v559, 0.2
        %v854 = vmul.f32 %v562, 0.2
        %v855 = vmul.f32 %v567, 0.2
        %v856 = vmul.f32 %v570, 0.2
        %v857 = vmul.f32 %v575, 0.2
        %v858 = vmul.f32 %v578, 0.2
        %v859 = vmul.f32 %v583, 0.2
        %v860 = vmul.f32 %v586, 0.2
        %v861 = vmul.f32 %v591, 0.2
        %v862 = vmul.f32 %v594, 0.2
        %v863 = vmul.f32 %v599, 0.2
        %v864 = vmul.f32 %v602, 0.2
        %v865 = vmul.f32 %v607, 0.2
        %v866 = vmul.f32 %v610, 0.2
        %v867 = vmul.f32 %v615, 0.2
        %v868 = vmul.f32 %v618, 0.2
        %v869 = vmul.f32 %v623, 0.2
        %v870 = vmul.f32 %v626, 0.2
        %v871 = vmul.f32 %v631, 0.2
        %v872 = vmul.f32 %v634, 0.2
        %v873 = vmul.f32 %v639, 0.2
        %v874 = vmul.f32 %v642, 0.2
        %v875 = vmul.f32 %v647, 0.2
        %v876 = vmul.f32 %v650, 0.2
        %v877 = vmul.f32 %v655, 0.2
        %v878 = vmul.f32 %v658, 0.2
        %v879 = vmul.f32 %v663, 0.2
        %v880 = vmul.f32 %v666, 0.2
        %v881 = vmul.f32 %v671, 0.2
        %v882 = vmul.f32 %v674, 0.2
        %v883 = vmul.f32 %v679, 0.2
        %v884 = vmul.f32 %v682, 0.2
        %v885 = vmul.f32 %v687, 0.2
        %v886 = vmul.f32 %v690, 0.2
        %v887 = vmul.f32 %v695, 0.2
        %v888 = vmul.f32 %v698, 0.2
        %v889 = vmul.f32 %v703, 0.2
        %v890 = vmul.f32 %v706, 0.2
        %v891 = vmul.f32 %v711, 0.2
        %v892 = vmul.f32 %v714, 0.2
        %v893 = vmul.f32 %v719, 0.2
        %v894 = vmul.f32 %v722, 0.2
        %v895 = vmul.f32 %v727, 0.2
        %v896 = vmul.f32 %v730, 0.2
        %v897 = vmul.f32 %v735, 0.2
        %v898 = vmul.f32 %v738, 0.2
        %v899 = vmul.f32 %v743, 0.2
        %v900 = vmul.f32 %v746, 0.2
        %v901 = vmul.f32 %v751, 0.2
        %v902 = vmul.f32 %v754, 0.2
        %v903 = vmul.f32 %v759, 0.2
        %v904 = vmul.f32 %v762, 0.2
        %v905 = vmul.f32 %v767, 0.2
        %v906 = vmul.f32 %v770, 0.2
        %v907 = vmul.f32 %v775, 0.2
        %v908 = vmul.f32 %v778, 0.2
        %v909 = vsel %vm781, %v527, %v845
        %v910 = vsel %vm782, %v530, %v846
        %v911 = vsel %vm783, %v535, %v847
        %v912 = vsel %vm784, %v538, %v848
        %v913 = vsel %vm785, %v543, %v849
        %v914 = vsel %vm786, %v546, %v850
        %v915 = vsel %vm787, %v551, %v851
        %v916 = vsel %vm788, %v554, %v852
        %v917 = vsel %vm789, %v559, %v853
        %v918 = vsel %vm790, %v562, %v854
        %v919 = vsel %vm791, %v567, %v855
        %v920 = vsel %vm792, %v570, %v856
        %v921 = vsel %vm793, %v575, %v857
        %v922 = vsel %vm794, %v578, %v858
        %v923 = vsel %vm795, %v583, %v859
        %v924 = vsel %vm796, %v586, %v860
        %v925 = vsel %vm797, %v591, %v861
        %v926 = vsel %vm798, %v594, %v862
        %v927 = vsel %vm799, %v599, %v863
        %v928 = vsel %vm800, %v602, %v864
        %v929 = vsel %vm801, %v607, %v865
        %v930 = vsel %vm802, %v610, %v866
        %v931 = vsel %vm803, %v615, %v867
        %v932 = vsel %vm804, %v618, %v868
        %v933 = vsel %vm805, %v623, %v869
        %v934 = vsel %vm806, %v626, %v870
        %v935 = vsel %vm807, %v631, %v871
        %v936 = vsel %vm808, %v634, %v872
        %v937 = vsel %vm809, %v639, %v873
        %v938 = vsel %vm810, %v642, %v874
        %v939 = vsel %vm811, %v647, %v875
        %v940 = vsel %vm812, %v650, %v876
        %v941 = vsel %vm813, %v655, %v877
        %v942 = vsel %vm814, %v658, %v878
        %v943 = vsel %vm815, %v663, %v879
        %v944 = vsel %vm816, %v666, %v880
        %v945 = vsel %vm817, %v671, %v881
        %v946 = vsel %vm818, %v674, %v882
        %v947 = vsel %vm819, %v679, %v883
        %v948 = vsel %vm820, %v682, %v884
        %v949 = vsel %vm821, %v687, %v885
        %v950 = vsel %vm822, %v690, %v886
        %v951 = vsel %vm823, %v695, %v887
        %v952 = vsel %vm824, %v698, %v888
        %v953 = vsel %vm825, %v703, %v889
        %v954 = vsel %vm826, %v706, %v890
        %v955 = vsel %vm827, %v711, %v891
        %v956 = vsel %vm828, %v714, %v892
        %v957 = vsel %vm829, %v719, %v893
        %v958 = vsel %vm830, %v722, %v894
        %v959 = vsel %vm831, %v727, %v895
        %v960 = vsel %vm832, %v730, %v896
        %v961 = vsel %vm833, %v735, %v897
        %v962 = vsel %vm834, %v738, %v898
        %v963 = vsel %vm835, %v743, %v899
        %v964 = vsel %vm836, %v746, %v900
        %v965 = vsel %vm837, %v751, %v901
        %v966 = vsel %vm838, %v754, %v902
        %v967 = vsel %vm839, %v759, %v903
        %v968 = vsel %vm840, %v762, %v904
        %v969 = vsel %vm841, %v767, %v905
        %v970 = vsel %vm842, %v770, %v906
        %v971 = vsel %vm843, %v775, %v907
        %v972 = vsel %vm844, %v778, %v908
        %v973 = vpack.c.bf16 %v910, %v909
        %v974 = vpack.c.bf16 %v912, %v911
        %v975 = vpack.c.bf16 %v914, %v913
        %v976 = vpack.c.bf16 %v916, %v915
        %v977 = vpack.c.bf16 %v918, %v917
        %v978 = vpack.c.bf16 %v920, %v919
        %v979 = vpack.c.bf16 %v922, %v921
        %v980 = vpack.c.bf16 %v924, %v923
        %v981 = vpack.c.bf16 %v926, %v925
        %v982 = vpack.c.bf16 %v928, %v927
        %v983 = vpack.c.bf16 %v930, %v929
        %v984 = vpack.c.bf16 %v932, %v931
        %v985 = vpack.c.bf16 %v934, %v933
        %v986 = vpack.c.bf16 %v936, %v935
        %v987 = vpack.c.bf16 %v938, %v937
        %v988 = vpack.c.bf16 %v940, %v939
        %v989 = vpack.c.bf16 %v942, %v941
        %v990 = vpack.c.bf16 %v944, %v943
        %v991 = vpack.c.bf16 %v946, %v945
        %v992 = vpack.c.bf16 %v948, %v947
        %v993 = vpack.c.bf16 %v950, %v949
        %v994 = vpack.c.bf16 %v952, %v951
        %v995 = vpack.c.bf16 %v954, %v953
        %v996 = vpack.c.bf16 %v956, %v955
        %v997 = vpack.c.bf16 %v958, %v957
        %v998 = vpack.c.bf16 %v960, %v959
        %v999 = vpack.c.bf16 %v962, %v961
        %v1000 = vpack.c.bf16 %v964, %v963
        %v1001 = vpack.c.bf16 %v966, %v965
        %v1002 = vpack.c.bf16 %v968, %v967
        %v1003 = vpack.c.bf16 %v970, %v969
        %v1004 = vpack.c.bf16 %v972, %v971
        %v1037 = vunpack.c.l.b16 %v973
        %v1038 = vunpack.c.h.b16 %v973
        %v1039 = vunpack.c.l.b16 %v974
        %v1040 = vunpack.c.h.b16 %v974
        %v1041 = vunpack.c.l.b16 %v975
        %v1042 = vunpack.c.h.b16 %v975
        %v1043 = vunpack.c.l.b16 %v976
        %v1044 = vunpack.c.h.b16 %v976
        %v1045 = vunpack.c.l.b16 %v977
        %v1046 = vunpack.c.h.b16 %v977
        %v1047 = vunpack.c.l.b16 %v978
        %v1048 = vunpack.c.h.b16 %v978
        %v1049 = vunpack.c.l.b16 %v979
        %v1050 = vunpack.c.h.b16 %v979
        %v1051 = vunpack.c.l.b16 %v980
        %v1052 = vunpack.c.h.b16 %v980
        %v1053 = vunpack.c.l.b16 %v981
        %v1054 = vunpack.c.h.b16 %v981
        %v1055 = vunpack.c.l.b16 %v982
        %v1056 = vunpack.c.h.b16 %v982
        %v1057 = vunpack.c.l.b16 %v983
        %v1058 = vunpack.c.h.b16 %v983
        %v1059 = vunpack.c.l.b16 %v984
        %v1060 = vunpack.c.h.b16 %v984
        %v1061 = vunpack.c.l.b16 %v985
        %v1062 = vunpack.c.h.b16 %v985
        %v1063 = vunpack.c.l.b16 %v986
        %v1064 = vunpack.c.h.b16 %v986
        %v1065 = vunpack.c.l.b16 %v987
        %v1066 = vunpack.c.h.b16 %v987
        %v1067 = vunpack.c.l.b16 %v988
        %v1068 = vunpack.c.h.b16 %v988
        %v1069 = vunpack.c.l.b16 %v989
        %v1070 = vunpack.c.h.b16 %v989
        %v1071 = vunpack.c.l.b16 %v990
        %v1072 = vunpack.c.h.b16 %v990
        %v1073 = vunpack.c.l.b16 %v991
        %v1074 = vunpack.c.h.b16 %v991
        %v1075 = vunpack.c.l.b16 %v992
        %v1076 = vunpack.c.h.b16 %v992
        %v1077 = vunpack.c.l.b16 %v993
        %v1078 = vunpack.c.h.b16 %v993
        %v1079 = vunpack.c.l.b16 %v994
        %v1080 = vunpack.c.h.b16 %v994
        %v1081 = vunpack.c.l.b16 %v995
        %v1082 = vunpack.c.h.b16 %v995
        %v1083 = vunpack.c.l.b16 %v996
        %v1084 = vunpack.c.h.b16 %v996
        %v1085 = vunpack.c.l.b16 %v997
        %v1086 = vunpack.c.h.b16 %v997
        %v1087 = vunpack.c.l.b16 %v998
        %v1088 = vunpack.c.h.b16 %v998
        %v1089 = vunpack.c.l.b16 %v999
        %v1090 = vunpack.c.h.b16 %v999
        %v1091 = vunpack.c.l.b16 %v1000
        %v1092 = vunpack.c.h.b16 %v1000
        %v1093 = vunpack.c.l.b16 %v1001
        %v1094 = vunpack.c.h.b16 %v1001
        %v1095 = vunpack.c.l.b16 %v1002
        %v1096 = vunpack.c.h.b16 %v1002
        %v1097 = vunpack.c.l.b16 %v1003
        %v1098 = vunpack.c.h.b16 %v1003
        %v1099 = vunpack.c.l.b16 %v1004
        %v1100 = vunpack.c.h.b16 %v1004
        %v1101 = vpack.c.b16 %v1037, %v1037
        %v1102 = vpack.c.b16 %v1038, %v1038
        %v1103 = vpack.c.b16 %v1039, %v1039
        %v1104 = vpack.c.b16 %v1040, %v1040
        %v1105 = vpack.c.b16 %v1041, %v1041
        %v1106 = vpack.c.b16 %v1042, %v1042
        %v1107 = vpack.c.b16 %v1043, %v1043
        %v1108 = vpack.c.b16 %v1044, %v1044
        %v1109 = vpack.c.b16 %v1045, %v1045
        %v1110 = vpack.c.b16 %v1046, %v1046
        %v1111 = vpack.c.b16 %v1047, %v1047
        %v1112 = vpack.c.b16 %v1048, %v1048
        %v1113 = vpack.c.b16 %v1049, %v1049
        %v1114 = vpack.c.b16 %v1050, %v1050
        %v1115 = vpack.c.b16 %v1051, %v1051
        %v1116 = vpack.c.b16 %v1052, %v1052
        %v1117 = vpack.c.b16 %v1053, %v1053
        %v1118 = vpack.c.b16 %v1054, %v1054
        %v1119 = vpack.c.b16 %v1055, %v1055
        %v1120 = vpack.c.b16 %v1056, %v1056
        %v1121 = vpack.c.b16 %v1057, %v1057
        %v1122 = vpack.c.b16 %v1058, %v1058
        %v1123 = vpack.c.b16 %v1059, %v1059
        %v1124 = vpack.c.b16 %v1060, %v1060
        %v1125 = vpack.c.b16 %v1061, %v1061
        %v1126 = vpack.c.b16 %v1062, %v1062
        %v1127 = vpack.c.b16 %v1063, %v1063
        %v1128 = vpack.c.b16 %v1064, %v1064
        %v1129 = vpack.c.b16 %v1065, %v1065
        %v1130 = vpack.c.b16 %v1066, %v1066
        %v1131 = vpack.c.b16 %v1067, %v1067
        %v1132 = vpack.c.b16 %v1068, %v1068
        %v1133 = vpack.c.b16 %v1069, %v1069
        %v1134 = vpack.c.b16 %v1070, %v1070
        %v1135 = vpack.c.b16 %v1071, %v1071
        %v1136 = vpack.c.b16 %v1072, %v1072
        %v1137 = vpack.c.b16 %v1073, %v1073
        %v1138 = vpack.c.b16 %v1074, %v1074
        %v1139 = vpack.c.b16 %v1075, %v1075
        %v1140 = vpack.c.b16 %v1076, %v1076
        %v1141 = vpack.c.b16 %v1077, %v1077
        %v1142 = vpack.c.b16 %v1078, %v1078
        %v1143 = vpack.c.b16 %v1079, %v1079
        %v1144 = vpack.c.b16 %v1080, %v1080
        %v1145 = vpack.c.b16 %v1081, %v1081
        %v1146 = vpack.c.b16 %v1082, %v1082
        %v1147 = vpack.c.b16 %v1083, %v1083
        %v1148 = vpack.c.b16 %v1084, %v1084
        %v1149 = vpack.c.b16 %v1085, %v1085
        %v1150 = vpack.c.b16 %v1086, %v1086
        %v1151 = vpack.c.b16 %v1087, %v1087
        %v1152 = vpack.c.b16 %v1088, %v1088
        %v1153 = vpack.c.b16 %v1089, %v1089
        %v1154 = vpack.c.b16 %v1090, %v1090
        %v1155 = vpack.c.b16 %v1091, %v1091
        %v1156 = vpack.c.b16 %v1092, %v1092
        %v1157 = vpack.c.b16 %v1093, %v1093
        %v1158 = vpack.c.b16 %v1094, %v1094
        %v1159 = vpack.c.b16 %v1095, %v1095
        %v1160 = vpack.c.b16 %v1096, %v1096
        %v1161 = vpack.c.b16 %v1097, %v1097
        %v1162 = vpack.c.b16 %v1098, %v1098
        %v1163 = vpack.c.b16 %v1099, %v1099
        %v1164 = vpack.c.b16 %v1100, %v1100
        %1229 = vst [vmem:[%s160] sm:$0xf] %v1101
        %1230 = vst [vmem:[%s160 + $0x4] sm:$0xf] %v1102
        %1231 = vst [vmem:[%s160 + $0x8] sm:$0xf] %v1103
        %1232 = vst [vmem:[%s160 + $0xc] sm:$0xf] %v1104
        %1233 = vst [vmem:[%s160 + $0x10] sm:$0xf] %v1105
        %1234 = vst [vmem:[%s160 + $0x14] sm:$0xf] %v1106
        %1235 = vst [vmem:[%s160 + $0x18] sm:$0xf] %v1107
        %1236 = vst [vmem:[%s160 + $0x1c] sm:$0xf] %v1108
        %1237 = vst [vmem:[%s160 + $0x20] sm:$0xf] %v1109
        %1238 = vst [vmem:[%s160 + $0x24] sm:$0xf] %v1110
        %1239 = vst [vmem:[%s160 + $0x28] sm:$0xf] %v1111
        %1240 = vst [vmem:[%s160 + $0x2c] sm:$0xf] %v1112
        %1241 = vst [vmem:[%s160 + $0x30] sm:$0xf] %v1113
        %1242 = vst [vmem:[%s160 + $0x34] sm:$0xf] %v1114
        %1243 = vst [vmem:[%s160 + $0x38] sm:$0xf] %v1115
        %1244 = vst [vmem:[%s160 + $0x3c] sm:$0xf] %v1116
        %1245 = vst [vmem:[%s160 + $0x40] sm:$0xf] %v1117
        %1246 = vst [vmem:[%s160 + $0x44] sm:$0xf] %v1118
        %1247 = vst [vmem:[%s160 + $0x48] sm:$0xf] %v1119
        %1248 = vst [vmem:[%s160 + $0x4c] sm:$0xf] %v1120
        %1249 = vst [vmem:[%s160 + $0x50] sm:$0xf] %v1121
        %1250 = vst [vmem:[%s160 + $0x54] sm:$0xf] %v1122
        %1251 = vst [vmem:[%s160 + $0x58] sm:$0xf] %v1123
        %1252 = vst [vmem:[%s160 + $0x5c] sm:$0xf] %v1124
        %1253 = vst [vmem:[%s160 + $0x60] sm:$0xf] %v1125
        %1254 = vst [vmem:[%s160 + $0x64] sm:$0xf] %v1126
        %1255 = vst [vmem:[%s160 + $0x68] sm:$0xf] %v1127
        %1256 = vst [vmem:[%s160 + $0x6c] sm:$0xf] %v1128
        %1257 = vst [vmem:[%s160 + $0x70] sm:$0xf] %v1129
        %1258 = vst [vmem:[%s160 + $0x74] sm:$0xf] %v1130
        %1259 = vst [vmem:[%s160 + $0x78] sm:$0xf] %v1131
        %1260 = vst [vmem:[%s160 + $0x7c] sm:$0xf] %v1132
        %1261 = vst [vmem:[%s160 + $0x80] sm:$0xf] %v1133
        %1262 = vst [vmem:[%s160 + $0x84] sm:$0xf] %v1134
        %1263 = vst [vmem:[%s160 + $0x88] sm:$0xf] %v1135
        %1264 = vst [vmem:[%s160 + $0x8c] sm:$0xf] %v1136
        %1265 = vst [vmem:[%s160 + $0x90] sm:$0xf] %v1137
        %1266 = vst [vmem:[%s160 + $0x94] sm:$0xf] %v1138
        %1267 = vst [vmem:[%s160 + $0x98] sm:$0xf] %v1139
        %1268 = vst [vmem:[%s160 + $0x9c] sm:$0xf] %v1140
        %1269 = vst [vmem:[%s160 + $0xa0] sm:$0xf] %v1141
        %1270 = vst [vmem:[%s160 + $0xa4] sm:$0xf] %v1142
        %1271 = vst [vmem:[%s160 + $0xa8] sm:$0xf] %v1143
        %1272 = vst [vmem:[%s160 + $0xac] sm:$0xf] %v1144
        %1273 = vst [vmem:[%s160 + $0xb0] sm:$0xf] %v1145
        %1274 = vst [vmem:[%s160 + $0xb4] sm:$0xf] %v1146
        %1275 = vst [vmem:[%s160 + $0xb8] sm:$0xf] %v1147
        %1276 = vst [vmem:[%s160 + $0xbc] sm:$0xf] %v1148
        %1277 = vst [vmem:[%s160 + $0xc0] sm:$0xf] %v1149
        %1278 = vst [vmem:[%s160 + $0xc4] sm:$0xf] %v1150
        %1279 = vst [vmem:[%s160 + $0xc8] sm:$0xf] %v1151
        %1280 = vst [vmem:[%s160 + $0xcc] sm:$0xf] %v1152
        %1281 = vst [vmem:[%s160 + $0xd0] sm:$0xf] %v1153
        %1282 = vst [vmem:[%s160 + $0xd4] sm:$0xf] %v1154
        %1283 = vst [vmem:[%s160 + $0xd8] sm:$0xf] %v1155
        %1284 = vst [vmem:[%s160 + $0xdc] sm:$0xf] %v1156
        %1285 = vst [vmem:[%s160 + $0xe0] sm:$0xf] %v1157
        %1286 = vst [vmem:[%s160 + $0xe4] sm:$0xf] %v1158
        %1287 = vst [vmem:[%s160 + $0xe8] sm:$0xf] %v1159
        %1288 = vst [vmem:[%s160 + $0xec] sm:$0xf] %v1160
        %1289 = vst [vmem:[%s160 + $0xf0] sm:$0xf] %v1161
        %1290 = vst [vmem:[%s160 + $0xf4] sm:$0xf] %v1162
        %1291 = vst [vmem:[%s160 + $0xf8] sm:$0xf] %v1163
        %1292 = vst [vmem:[%s160 + $0xfc] sm:$0xf] %v1164
        %s1293 = smul.u32 64, %s14
        %p1294 = scmp.lt.s32.totalorder %s1293, 255
        %s1295 = scalar_select %p1294, %s1293, 255
        %s1296 = smul.addr %s1295, 4
        %s1297 = scalar_lea.vmem %s2, %s1296
        // Predicated region
        $region33: #{netd_forward.5} parent=27 // pred_check
          %p1298 = pneg %p79
        $region34: #{netd_forward.5} parent=27 // pred_check_branch
          %1300 = sbr.rel (%p1298) target = $region36
        $region35: #{netd_forward.5} parent=27 // pred_region
          %s1301 = smul.u32 64, %s14
        $region36: #{netd_forward.5} parent=27 // pred_fallthru
          _
      $region28: #{netd_forward.5} parent=5 // pred_fallthru
        _
      %p1302 = scmp.le.s32.totalorder 2, %s9
      // Predicated region
      $region37: #{netd_forward.5} parent=5 // pred_check
        %p1303 = pneg %p1302
      $region38: #{netd_forward.5} parent=5 // pred_check_branch
        %1305 = sbr.rel (%p1303) target = $region40
      $region39: #{netd_forward.5} parent=5 // pred_region
        %s1306 = ssub.s32 %s9, 2
        // Predicated region
        $region41: #{netd_forward.5} parent=39 // pred_check
          %p1307 = pneg %p85
        $region42: #{netd_forward.5} parent=39 // pred_check_branch
          %1309 = sbr.rel (%p1307) target = $region44
        $region43: #{netd_forward.5} parent=39 // pred_region
          %s1310 = smul.u32 64, %s15
          %p1311 = scmp.lt.s32.totalorder %s1310, 255
          %s1312 = scalar_select %p1311, %s1310, 255
          %s1313 = smul.addr %s1312, 4
          %s1314 = scalar_lea.vmem %s2, %s1313
        $region44: #{netd_forward.5} parent=39 // pred_fallthru
          _
      $region40: #{netd_forward.5} parent=5 // pred_fallthru
        _
    $region6: #{netd_forward.5} parent=1 // loop_footer
      %s13 = sadd.s32 1, %s9
    $region7: #{netd_forward.5} parent=1 // loop_footer_branch
      %8 = sbr.rel target = $region3
    $region8: #{netd_forward.5} parent=1 // loop_exit
      _
    %1315 = vsyncpa [#allocation3], 1
    %s1316 = scalar_lea.sflag [#allocation3], 1
    %1317 = vsyncpa %s1316, 1

// kernel: netd_forward.6
$region0: #{netd_forward.6}
  #allocation0 [shape = 'u32[]', space=smem, size = 0x4, offset = 0x4, fixed_abs, tag = 'smem constant byte address 0x4 - core index']
  #allocation1 [shape = 'u32[144,128]{1,0:T(1,128)}', space=vmem, size = 0x12000, scoped, tag = 'internal scratch']
  %s0 = inlined_call_operand.vmem [shape: bf16[512,2048], index: 0, kind: input, shape index: {}]
  %s1 = inlined_call_operand.vmem [shape: bf16[2048,128], index: 1, kind: input, shape index: {}]
  %s2 = inlined_call_operand.vmem [shape: f32[1,128], index: 2, kind: input, shape index: {}]
  %s3 = inlined_call_operand.vmem [shape: f32[1,128], index: 3, kind: input, shape index: {}]
  %s4 = inlined_call_operand.vmem [shape: bf16[512,128], index: 4, kind: output, shape index: {}]
  %s5 = sld [smem:[#allocation0]]
  $region26: #{netd_forward.6} parent=0
    _
  %s7 = ssub.s32 1, %s5
  %s8 = scalar_select 0, %s7, %s5
  // Predicated region
  $region2: #{netd_forward.6} parent=0 // pred_check
    _
  $region3: #{netd_forward.6} parent=0 // pred_check_branch
    %10 = sbr.rel (0) target = $region5
  $region4: #{netd_forward.6} parent=0 // pred_region
    _
  $region5: #{netd_forward.6} parent=0 // pred_fallthru
    _
  // Predicated region
  $region6: #{netd_forward.6} parent=0 // pred_check
    _
  $region7: #{netd_forward.6} parent=0 // pred_check_branch
    %12 = sbr.rel (0) target = $region9
  $region8: #{netd_forward.6} parent=0 // pred_region
    _
  $region9: #{netd_forward.6} parent=0 // pred_fallthru
    _
  // Predicated region
  $region10: #{netd_forward.6} parent=0 // pred_check
    _
  $region11: #{netd_forward.6} parent=0 // pred_check_branch
    %14 = sbr.rel (0) target = $region13
  $region12: #{netd_forward.6} parent=0 // pred_region
    _
  $region13: #{netd_forward.6} parent=0 // pred_fallthru
    _
  // Predicated region
  $region14: #{netd_forward.6} parent=0 // pred_check
    _
  $region15: #{netd_forward.6} parent=0 // pred_check_branch
    %16 = sbr.rel (0) target = $region17
  $region16: #{netd_forward.6} parent=0 // pred_region
    _
  $region17: #{netd_forward.6} parent=0 // pred_fallthru
    _
  %v18 = vld [vmem:[%s0] sm:$0xff]
  %v19 = vld [vmem:[%s0 + $0x8] sm:$0xff]
  %v20 = vld [vmem:[%s0 + $0x10] sm:$0xff]
  %v21 = vld [vmem:[%s0 + $0x18] sm:$0xff]
  %v22 = vld [vmem:[%s0 + $0x20] sm:$0xff]
  %v23 = vld [vmem:[%s0 + $0x28] sm:$0xff]
  %v24 = vld [vmem:[%s0 + $0x30] sm:$0xff]
  %v25 = vld [vmem:[%s0 + $0x38] sm:$0xff]
  %v26 = vld [vmem:[%s0 + $0x40] sm:$0xff]
  %v27 = vld [vmem:[%s0 + $0x48] sm:$0xff]
  %v28 = vld [vmem:[%s0 + $0x50] sm:$0xff]
  %v29 = vld [vmem:[%s0 + $0x58] sm:$0xff]
  %v30 = vld [vmem:[%s0 + $0x60] sm:$0xff]
  %v31 = vld [vmem:[%s0 + $0x68] sm:$0xff]
  %v32 = vld [vmem:[%s0 + $0x70] sm:$0xff]
  %v33 = vld [vmem:[%s0 + $0x78] sm:$0xff]
  %v34 = vld [vmem:[%s0 + $0x80] sm:$0xff]
  %v35 = vld [vmem:[%s0 + $0x88] sm:$0xff]
  %v36 = vld [vmem:[%s0 + $0x90] sm:$0xff]
  %v37 = vld [vmem:[%s0 + $0x98] sm:$0xff]
  %v38 = vld [vmem:[%s0 + $0xa0] sm:$0xff]
  %v39 = vld [vmem:[%s0 + $0xa8] sm:$0xff]
  %v40 = vld [vmem:[%s0 + $0xb0] sm:$0xff]
  %v41 = vld [vmem:[%s0 + $0xb8] sm:$0xff]
  %v42 = vld [vmem:[%s0 + $0xc0] sm:$0xff]
  %v43 = vld [vmem:[%s0 + $0xc8] sm:$0xff]
  %v44 = vld [vmem:[%s0 + $0xd0] sm:$0xff]
  %v45 = vld [vmem:[%s0 + $0xd8] sm:$0xff]
  %v46 = vld [vmem:[%s0 + $0xe0] sm:$0xff]
  %v47 = vld [vmem:[%s0 + $0xe8] sm:$0xff]
  %v48 = vld [vmem:[%s0 + $0xf0] sm:$0xff]
  %v49 = vld [vmem:[%s0 + $0xf8] sm:$0xff]
  %v50 = vld [vmem:[%s0 + $0x100] sm:$0xff]
  %v51 = vld [vmem:[%s0 + $0x108] sm:$0xff]
  %v52 = vld [vmem:[%s0 + $0x110] sm:$0xff]
  %v53 = vld [vmem:[%s0 + $0x118] sm:$0xff]
  %v54 = vld [vmem:[%s0 + $0x120] sm:$0xff]
  %v55 = vld [vmem:[%s0 + $0x128] sm:$0xff]
  %v56 = vld [vmem:[%s0 + $0x130] sm:$0xff]
  %v57 = vld [vmem:[%s0 + $0x138] sm:$0xff]
  %v58 = vld [vmem:[%s0 + $0x140] sm:$0xff]
  %v59 = vld [vmem:[%s0 + $0x148] sm:$0xff]
  %v60 = vld [vmem:[%s0 + $0x150] sm:$0xff]
  %v61 = vld [vmem:[%s0 + $0x158] sm:$0xff]
  %v62 = vld [vmem:[%s0 + $0x160] sm:$0xff]
  %v63 = vld [vmem:[%s0 + $0x168] sm:$0xff]
  %v64 = vld [vmem:[%s0 + $0x170] sm:$0xff]
  %v65 = vld [vmem:[%s0 + $0x178] sm:$0xff]
  %v66 = vld [vmem:[%s0 + $0x180] sm:$0xff]
  %v67 = vld [vmem:[%s0 + $0x188] sm:$0xff]
  %v68 = vld [vmem:[%s0 + $0x190] sm:$0xff]
  %v69 = vld [vmem:[%s0 + $0x198] sm:$0xff]
  %v70 = vld [vmem:[%s0 + $0x1a0] sm:$0xff]
  %v71 = vld [vmem:[%s0 + $0x1a8] sm:$0xff]
  %v72 = vld [vmem:[%s0 + $0x1b0] sm:$0xff]
  %v73 = vld [vmem:[%s0 + $0x1b8] sm:$0xff]
  %v74 = vld [vmem:[%s0 + $0x1c0] sm:$0xff]
  %v75 = vld [vmem:[%s0 + $0x1c8] sm:$0xff]
  %v76 = vld [vmem:[%s0 + $0x1d0] sm:$0xff]
  %v77 = vld [vmem:[%s0 + $0x1d8] sm:$0xff]
  %v78 = vld [vmem:[%s0 + $0x1e0] sm:$0xff]
  %v79 = vld [vmem:[%s0 + $0x1e8] sm:$0xff]
  %v80 = vld [vmem:[%s0 + $0x1f0] sm:$0xff]
  %v81 = vld [vmem:[%s0 + $0x1f8] sm:$0xff]
  %v82 = vld [vmem:[%s0 + $0x200] sm:$0xff]
  %v83 = vld [vmem:[%s0 + $0x208] sm:$0xff]
  %v84 = vld [vmem:[%s0 + $0x210] sm:$0xff]
  %v85 = vld [vmem:[%s0 + $0x218] sm:$0xff]
  %v86 = vld [vmem:[%s0 + $0x220] sm:$0xff]
  %v87 = vld [vmem:[%s0 + $0x228] sm:$0xff]
  %v88 = vld [vmem:[%s0 + $0x230] sm:$0xff]
  %v89 = vld [vmem:[%s0 + $0x238] sm:$0xff]
  %v90 = vld [vmem:[%s0 + $0x240] sm:$0xff]
  %v91 = vld [vmem:[%s0 + $0x248] sm:$0xff]
  %v92 = vld [vmem:[%s0 + $0x250] sm:$0xff]
  %v93 = vld [vmem:[%s0 + $0x258] sm:$0xff]
  %v94 = vld [vmem:[%s0 + $0x260] sm:$0xff]
  %v95 = vld [vmem:[%s0 + $0x268] sm:$0xff]
  %v96 = vld [vmem:[%s0 + $0x270] sm:$0xff]
  %v97 = vld [vmem:[%s0 + $0x278] sm:$0xff]
  %v98 = vld [vmem:[%s0 + $0x280] sm:$0xff]
  %v99 = vld [vmem:[%s0 + $0x288] sm:$0xff]
  %v100 = vld [vmem:[%s0 + $0x290] sm:$0xff]
  %v101 = vld [vmem:[%s0 + $0x298] sm:$0xff]
  %v102 = vld [vmem:[%s0 + $0x2a0] sm:$0xff]
  %v103 = vld [vmem:[%s0 + $0x2a8] sm:$0xff]
  %v104 = vld [vmem:[%s0 + $0x2b0] sm:$0xff]
  %v105 = vld [vmem:[%s0 + $0x2b8] sm:$0xff]
  %v106 = vld [vmem:[%s0 + $0x2c0] sm:$0xff]
  %v107 = vld [vmem:[%s0 + $0x2c8] sm:$0xff]
  %v108 = vld [vmem:[%s0 + $0x2d0] sm:$0xff]
  %v109 = vld [vmem:[%s0 + $0x2d8] sm:$0xff]
  %v110 = vld [vmem:[%s0 + $0x2e0] sm:$0xff]
  %v111 = vld [vmem:[%s0 + $0x2e8] sm:$0xff]
  %v112 = vld [vmem:[%s0 + $0x2f0] sm:$0xff]
  %v113 = vld [vmem:[%s0 + $0x2f8] sm:$0xff]
  %v114 = vld [vmem:[%s0 + $0x300] sm:$0xff]
  %v115 = vld [vmem:[%s0 + $0x308] sm:$0xff]
  %v116 = vld [vmem:[%s0 + $0x310] sm:$0xff]
  %v117 = vld [vmem:[%s0 + $0x318] sm:$0xff]
  %v118 = vld [vmem:[%s0 + $0x320] sm:$0xff]
  %v119 = vld [vmem:[%s0 + $0x328] sm:$0xff]
  %v120 = vld [vmem:[%s0 + $0x330] sm:$0xff]
  %v121 = vld [vmem:[%s0 + $0x338] sm:$0xff]
  %v122 = vld [vmem:[%s0 + $0x340] sm:$0xff]
  %v123 = vld [vmem:[%s0 + $0x348] sm:$0xff]
  %v124 = vld [vmem:[%s0 + $0x350] sm:$0xff]
  %v125 = vld [vmem:[%s0 + $0x358] sm:$0xff]
  %v126 = vld [vmem:[%s0 + $0x360] sm:$0xff]
  %v127 = vld [vmem:[%s0 + $0x368] sm:$0xff]
  %v128 = vld [vmem:[%s0 + $0x370] sm:$0xff]
  %v129 = vld [vmem:[%s0 + $0x378] sm:$0xff]
  %v130 = vld [vmem:[%s0 + $0x380] sm:$0xff]
  %v131 = vld [vmem:[%s0 + $0x388] sm:$0xff]
  %v132 = vld [vmem:[%s0 + $0x390] sm:$0xff]
  %v133 = vld [vmem:[%s0 + $0x398] sm:$0xff]
  %v134 = vld [vmem:[%s0 + $0x3a0] sm:$0xff]
  %v135 = vld [vmem:[%s0 + $0x3a8] sm:$0xff]
  %v136 = vld [vmem:[%s0 + $0x3b0] sm:$0xff]
  %v137 = vld [vmem:[%s0 + $0x3b8] sm:$0xff]
  %v138 = vld [vmem:[%s0 + $0x3c0] sm:$0xff]
  %v139 = vld [vmem:[%s0 + $0x3c8] sm:$0xff]
  %v140 = vld [vmem:[%s0 + $0x3d0] sm:$0xff]
  %v141 = vld [vmem:[%s0 + $0x3d8] sm:$0xff]
  %v142 = vld [vmem:[%s0 + $0x3e0] sm:$0xff]
  %v143 = vld [vmem:[%s0 + $0x3e8] sm:$0xff]
  %v144 = vld [vmem:[%s0 + $0x3f0] sm:$0xff]
  %v145 = vld [vmem:[%s0 + $0x3f8] sm:$0xff]
  %v146 = vld [vmem:[%s0 + $0x400] sm:$0xff]
  %v147 = vld [vmem:[%s0 + $0x408] sm:$0xff]
  %v148 = vld [vmem:[%s0 + $0x410] sm:$0xff]
  %v149 = vld [vmem:[%s0 + $0x418] sm:$0xff]
  %v150 = vld [vmem:[%s0 + $0x420] sm:$0xff]
  %v151 = vld [vmem:[%s0 + $0x428] sm:$0xff]
  %v152 = vld [vmem:[%s0 + $0x430] sm:$0xff]
  %v153 = vld [vmem:[%s0 + $0x438] sm:$0xff]
  %v154 = vld [vmem:[%s0 + $0x440] sm:$0xff]
  %v155 = vld [vmem:[%s0 + $0x448] sm:$0xff]
  %v156 = vld [vmem:[%s0 + $0x450] sm:$0xff]
  %v157 = vld [vmem:[%s0 + $0x458] sm:$0xff]
  %v158 = vld [vmem:[%s0 + $0x460] sm:$0xff]
  %v159 = vld [vmem:[%s0 + $0x468] sm:$0xff]
  %v160 = vld [vmem:[%s0 + $0x470] sm:$0xff]
  %v161 = vld [vmem:[%s0 + $0x478] sm:$0xff]
  %v162 = vld [vmem:[%s0 + $0x480] sm:$0xff]
  %v163 = vld [vmem:[%s0 + $0x488] sm:$0xff]
  %v164 = vld [vmem:[%s0 + $0x490] sm:$0xff]
  %v165 = vld [vmem:[%s0 + $0x498] sm:$0xff]
  %v166 = vld [vmem:[%s0 + $0x4a0] sm:$0xff]
  %v167 = vld [vmem:[%s0 + $0x4a8] sm:$0xff]
  %v168 = vld [vmem:[%s0 + $0x4b0] sm:$0xff]
  %v169 = vld [vmem:[%s0 + $0x4b8] sm:$0xff]
  %v170 = vld [vmem:[%s0 + $0x4c0] sm:$0xff]
  %v171 = vld [vmem:[%s0 + $0x4c8] sm:$0xff]
  %v172 = vld [vmem:[%s0 + $0x4d0] sm:$0xff]
  %v173 = vld [vmem:[%s0 + $0x4d8] sm:$0xff]
  %v174 = vld [vmem:[%s0 + $0x4e0] sm:$0xff]
  %v175 = vld [vmem:[%s0 + $0x4e8] sm:$0xff]
  %v176 = vld [vmem:[%s0 + $0x4f0] sm:$0xff]
  %v177 = vld [vmem:[%s0 + $0x4f8] sm:$0xff]
  %v178 = vld [vmem:[%s0 + $0x500] sm:$0xff]
  %v179 = vld [vmem:[%s0 + $0x508] sm:$0xff]
  %v180 = vld [vmem:[%s0 + $0x510] sm:$0xff]
  %v181 = vld [vmem:[%s0 + $0x518] sm:$0xff]
  %v182 = vld [vmem:[%s0 + $0x520] sm:$0xff]
  %v183 = vld [vmem:[%s0 + $0x528] sm:$0xff]
  %v184 = vld [vmem:[%s0 + $0x530] sm:$0xff]
  %v185 = vld [vmem:[%s0 + $0x538] sm:$0xff]
  %v186 = vld [vmem:[%s0 + $0x540] sm:$0xff]
  %v187 = vld [vmem:[%s0 + $0x548] sm:$0xff]
  %v188 = vld [vmem:[%s0 + $0x550] sm:$0xff]
  %v189 = vld [vmem:[%s0 + $0x558] sm:$0xff]
  %v190 = vld [vmem:[%s0 + $0x560] sm:$0xff]
  %v191 = vld [vmem:[%s0 + $0x568] sm:$0xff]
  %v192 = vld [vmem:[%s0 + $0x570] sm:$0xff]
  %v193 = vld [vmem:[%s0 + $0x578] sm:$0xff]
  %v194 = vld [vmem:[%s0 + $0x580] sm:$0xff]
  %v195 = vld [vmem:[%s0 + $0x588] sm:$0xff]
  %v196 = vld [vmem:[%s0 + $0x590] sm:$0xff]
  %v197 = vld [vmem:[%s0 + $0x598] sm:$0xff]
  %v198 = vld [vmem:[%s0 + $0x5a0] sm:$0xff]
  %v199 = vld [vmem:[%s0 + $0x5a8] sm:$0xff]
  %v200 = vld [vmem:[%s0 + $0x5b0] sm:$0xff]
  %v201 = vld [vmem:[%s0 + $0x5b8] sm:$0xff]
  %v202 = vld [vmem:[%s0 + $0x5c0] sm:$0xff]
  %v203 = vld [vmem:[%s0 + $0x5c8] sm:$0xff]
  %v204 = vld [vmem:[%s0 + $0x5d0] sm:$0xff]
  %v205 = vld [vmem:[%s0 + $0x5d8] sm:$0xff]
  %v206 = vld [vmem:[%s0 + $0x5e0] sm:$0xff]
  %v207 = vld [vmem:[%s0 + $0x5e8] sm:$0xff]
  %v208 = vld [vmem:[%s0 + $0x5f0] sm:$0xff]
  %v209 = vld [vmem:[%s0 + $0x5f8] sm:$0xff]
  %v210 = vld [vmem:[%s0 + $0x600] sm:$0xff]
  %v211 = vld [vmem:[%s0 + $0x608] sm:$0xff]
  %v212 = vld [vmem:[%s0 + $0x610] sm:$0xff]
  %v213 = vld [vmem:[%s0 + $0x618] sm:$0xff]
  %v214 = vld [vmem:[%s0 + $0x620] sm:$0xff]
  %v215 = vld [vmem:[%s0 + $0x628] sm:$0xff]
  %v216 = vld [vmem:[%s0 + $0x630] sm:$0xff]
  %v217 = vld [vmem:[%s0 + $0x638] sm:$0xff]
  %v218 = vld [vmem:[%s0 + $0x640] sm:$0xff]
  %v219 = vld [vmem:[%s0 + $0x648] sm:$0xff]
  %v220 = vld [vmem:[%s0 + $0x650] sm:$0xff]
  %v221 = vld [vmem:[%s0 + $0x658] sm:$0xff]
  %v222 = vld [vmem:[%s0 + $0x660] sm:$0xff]
  %v223 = vld [vmem:[%s0 + $0x668] sm:$0xff]
  %v224 = vld [vmem:[%s0 + $0x670] sm:$0xff]
  %v225 = vld [vmem:[%s0 + $0x678] sm:$0xff]
  %v226 = vld [vmem:[%s0 + $0x680] sm:$0xff]
  %v227 = vld [vmem:[%s0 + $0x688] sm:$0xff]
  %v228 = vld [vmem:[%s0 + $0x690] sm:$0xff]
  %v229 = vld [vmem:[%s0 + $0x698] sm:$0xff]
  %v230 = vld [vmem:[%s0 + $0x6a0] sm:$0xff]
  %v231 = vld [vmem:[%s0 + $0x6a8] sm:$0xff]
  %v232 = vld [vmem:[%s0 + $0x6b0] sm:$0xff]
  %v233 = vld [vmem:[%s0 + $0x6b8] sm:$0xff]
  %v234 = vld [vmem:[%s0 + $0x6c0] sm:$0xff]
  %v235 = vld [vmem:[%s0 + $0x6c8] sm:$0xff]
  %v236 = vld [vmem:[%s0 + $0x6d0] sm:$0xff]
  %v237 = vld [vmem:[%s0 + $0x6d8] sm:$0xff]
  %v238 = vld [vmem:[%s0 + $0x6e0] sm:$0xff]
  %v239 = vld [vmem:[%s0 + $0x6e8] sm:$0xff]
  %v240 = vld [vmem:[%s0 + $0x6f0] sm:$0xff]
  %v241 = vld [vmem:[%s0 + $0x6f8] sm:$0xff]
  %v242 = vld [vmem:[%s0 + $0x700] sm:$0xff]
  %v243 = vld [vmem:[%s0 + $0x708] sm:$0xff]
  %v244 = vld [vmem:[%s0 + $0x710] sm:$0xff]
  %v245 = vld [vmem:[%s0 + $0x718] sm:$0xff]
  %v246 = vld [vmem:[%s0 + $0x720] sm:$0xff]
  %v247 = vld [vmem:[%s0 + $0x728] sm:$0xff]
  %v248 = vld [vmem:[%s0 + $0x730] sm:$0xff]
  %v249 = vld [vmem:[%s0 + $0x738] sm:$0xff]
  %v250 = vld [vmem:[%s0 + $0x740] sm:$0xff]
  %v251 = vld [vmem:[%s0 + $0x748] sm:$0xff]
  %v252 = vld [vmem:[%s0 + $0x750] sm:$0xff]
  %v253 = vld [vmem:[%s0 + $0x758] sm:$0xff]
  %v254 = vld [vmem:[%s0 + $0x760] sm:$0xff]
  %v255 = vld [vmem:[%s0 + $0x768] sm:$0xff]
  %v256 = vld [vmem:[%s0 + $0x770] sm:$0xff]
  %v257 = vld [vmem:[%s0 + $0x778] sm:$0xff]
  %v258 = vld [vmem:[%s0 + $0x780] sm:$0xff]
  %v259 = vld [vmem:[%s0 + $0x788] sm:$0xff]
  %v260 = vld [vmem:[%s0 + $0x790] sm:$0xff]
  %v261 = vld [vmem:[%s0 + $0x798] sm:$0xff]
  %v262 = vld [vmem:[%s0 + $0x7a0] sm:$0xff]
  %v263 = vld [vmem:[%s0 + $0x7a8] sm:$0xff]
  %v264 = vld [vmem:[%s0 + $0x7b0] sm:$0xff]
  %v265 = vld [vmem:[%s0 + $0x7b8] sm:$0xff]
  %v266 = vld [vmem:[%s0 + $0x7c0] sm:$0xff]
  %v267 = vld [vmem:[%s0 + $0x7c8] sm:$0xff]
  %v268 = vld [vmem:[%s0 + $0x7d0] sm:$0xff]
  %v269 = vld [vmem:[%s0 + $0x7d8] sm:$0xff]
  %v270 = vld [vmem:[%s0 + $0x7e0] sm:$0xff]
  %v271 = vld [vmem:[%s0 + $0x7e8] sm:$0xff]
  %v272 = vld [vmem:[%s0 + $0x7f0] sm:$0xff]
  %v273 = vld [vmem:[%s0 + $0x7f8] sm:$0xff]
  %v274 = vld [vmem:[%s0 + $0x800] sm:$0xff]
  %v275 = vld [vmem:[%s0 + $0x808] sm:$0xff]
  %v276 = vld [vmem:[%s0 + $0x810] sm:$0xff]
  %v277 = vld [vmem:[%s0 + $0x818] sm:$0xff]
  %v278 = vld [vmem:[%s0 + $0x820] sm:$0xff]
  %v279 = vld [vmem:[%s0 + $0x828] sm:$0xff]
  %v280 = vld [vmem:[%s0 + $0x830] sm:$0xff]
  %v281 = vld [vmem:[%s0 + $0x838] sm:$0xff]
  %v282 = vld [vmem:[%s0 + $0x840] sm:$0xff]
  %v283 = vld [vmem:[%s0 + $0x848] sm:$0xff]
  %v284 = vld [vmem:[%s0 + $0x850] sm:$0xff]
  %v285 = vld [vmem:[%s0 + $0x858] sm:$0xff]
  %v286 = vld [vmem:[%s0 + $0x860] sm:$0xff]
  %v287 = vld [vmem:[%s0 + $0x868] sm:$0xff]
  %v288 = vld [vmem:[%s0 + $0x870] sm:$0xff]
  %v289 = vld [vmem:[%s0 + $0x878] sm:$0xff]
  %v290 = vld [vmem:[%s0 + $0x880] sm:$0xff]
  %v291 = vld [vmem:[%s0 + $0x888] sm:$0xff]
  %v292 = vld [vmem:[%s0 + $0x890] sm:$0xff]
  %v293 = vld [vmem:[%s0 + $0x898] sm:$0xff]
  %v294 = vld [vmem:[%s0 + $0x8a0] sm:$0xff]
  %v295 = vld [vmem:[%s0 + $0x8a8] sm:$0xff]
  %v296 = vld [vmem:[%s0 + $0x8b0] sm:$0xff]
  %v297 = vld [vmem:[%s0 + $0x8b8] sm:$0xff]
  %v298 = vld [vmem:[%s0 + $0x8c0] sm:$0xff]
  %v299 = vld [vmem:[%s0 + $0x8c8] sm:$0xff]
  %v300 = vld [vmem:[%s0 + $0x8d0] sm:$0xff]
  %v301 = vld [vmem:[%s0 + $0x8d8] sm:$0xff]
  %v302 = vld [vmem:[%s0 + $0x8e0] sm:$0xff]
  %v303 = vld [vmem:[%s0 + $0x8e8] sm:$0xff]
  %v304 = vld [vmem:[%s0 + $0x8f0] sm:$0xff]
  %v305 = vld [vmem:[%s0 + $0x8f8] sm:$0xff]
  %v306 = vld [vmem:[%s0 + $0x900] sm:$0xff]
  %v307 = vld [vmem:[%s0 + $0x908] sm:$0xff]
  %v308 = vld [vmem:[%s0 + $0x910] sm:$0xff]
  %v309 = vld [vmem:[%s0 + $0x918] sm:$0xff]
  %v310 = vld [vmem:[%s0 + $0x920] sm:$0xff]
  %v311 = vld [vmem:[%s0 + $0x928] sm:$0xff]
  %v312 = vld [vmem:[%s0 + $0x930] sm:$0xff]
  %v313 = vld [vmem:[%s0 + $0x938] sm:$0xff]
  %v314 = vld [vmem:[%s0 + $0x940] sm:$0xff]
  %v315 = vld [vmem:[%s0 + $0x948] sm:$0xff]
  %v316 = vld [vmem:[%s0 + $0x950] sm:$0xff]
  %v317 = vld [vmem:[%s0 + $0x958] sm:$0xff]
  %v318 = vld [vmem:[%s0 + $0x960] sm:$0xff]
  %v319 = vld [vmem:[%s0 + $0x968] sm:$0xff]
  %v320 = vld [vmem:[%s0 + $0x970] sm:$0xff]
  %v321 = vld [vmem:[%s0 + $0x978] sm:$0xff]
  %v322 = vld [vmem:[%s0 + $0x980] sm:$0xff]
  %v323 = vld [vmem:[%s0 + $0x988] sm:$0xff]
  %v324 = vld [vmem:[%s0 + $0x990] sm:$0xff]
  %v325 = vld [vmem:[%s0 + $0x998] sm:$0xff]
  %v326 = vld [vmem:[%s0 + $0x9a0] sm:$0xff]
  %v327 = vld [vmem:[%s0 + $0x9a8] sm:$0xff]
  %v328 = vld [vmem:[%s0 + $0x9b0] sm:$0xff]
  %v329 = vld [vmem:[%s0 + $0x9b8] sm:$0xff]
  %v330 = vld [vmem:[%s0 + $0x9c0] sm:$0xff]
  %v331 = vld [vmem:[%s0 + $0x9c8] sm:$0xff]
  %v332 = vld [vmem:[%s0 + $0x9d0] sm:$0xff]
  %v333 = vld [vmem:[%s0 + $0x9d8] sm:$0xff]
  %v334 = vld [vmem:[%s0 + $0x9e0] sm:$0xff]
  %v335 = vld [vmem:[%s0 + $0x9e8] sm:$0xff]
  %v336 = vld [vmem:[%s0 + $0x9f0] sm:$0xff]
  %v337 = vld [vmem:[%s0 + $0x9f8] sm:$0xff]
  %v338 = vld [vmem:[%s0 + $0xa00] sm:$0xff]
  %v339 = vld [vmem:[%s0 + $0xa08] sm:$0xff]
  %v340 = vld [vmem:[%s0 + $0xa10] sm:$0xff]
  %v341 = vld [vmem:[%s0 + $0xa18] sm:$0xff]
  %v342 = vld [vmem:[%s0 + $0xa20] sm:$0xff]
  %v343 = vld [vmem:[%s0 + $0xa28] sm:$0xff]
  %v344 = vld [vmem:[%s0 + $0xa30] sm:$0xff]
  %v345 = vld [vmem:[%s0 + $0xa38] sm:$0xff]
  %v346 = vld [vmem:[%s0 + $0xa40] sm:$0xff]
  %v347 = vld [vmem:[%s0 + $0xa48] sm:$0xff]
  %v348 = vld [vmem:[%s0 + $0xa50] sm:$0xff]
  %v349 = vld [vmem:[%s0 + $0xa58] sm:$0xff]
  %v350 = vld [vmem:[%s0 + $0xa60] sm:$0xff]
  %v351 = vld [vmem:[%s0 + $0xa68] sm:$0xff]
  %v352 = vld [vmem:[%s0 + $0xa70] sm:$0xff]
  %v353 = vld [vmem:[%s0 + $0xa78] sm:$0xff]
  %v354 = vld [vmem:[%s0 + $0xa80] sm:$0xff]
  %v355 = vld [vmem:[%s0 + $0xa88] sm:$0xff]
  %v356 = vld [vmem:[%s0 + $0xa90] sm:$0xff]
  %v357 = vld [vmem:[%s0 + $0xa98] sm:$0xff]
  %v358 = vld [vmem:[%s0 + $0xaa0] sm:$0xff]
  %v359 = vld [vmem:[%s0 + $0xaa8] sm:$0xff]
  %v360 = vld [vmem:[%s0 + $0xab0] sm:$0xff]
  %v361 = vld [vmem:[%s0 + $0xab8] sm:$0xff]
  %v362 = vld [vmem:[%s0 + $0xac0] sm:$0xff]
  %v363 = vld [vmem:[%s0 + $0xac8] sm:$0xff]
  %v364 = vld [vmem:[%s0 + $0xad0] sm:$0xff]
  %v365 = vld [vmem:[%s0 + $0xad8] sm:$0xff]
  %v366 = vld [vmem:[%s0 + $0xae0] sm:$0xff]
  %v367 = vld [vmem:[%s0 + $0xae8] sm:$0xff]
  %v368 = vld [vmem:[%s0 + $0xaf0] sm:$0xff]
  %v369 = vld [vmem:[%s0 + $0xaf8] sm:$0xff]
  %v370 = vld [vmem:[%s0 + $0xb00] sm:$0xff]
  %v371 = vld [vmem:[%s0 + $0xb08] sm:$0xff]
  %v372 = vld [vmem:[%s0 + $0xb10] sm:$0xff]
  %v373 = vld [vmem:[%s0 + $0xb18] sm:$0xff]
  %v374 = vld [vmem:[%s0 + $0xb20] sm:$0xff]
  %v375 = vld [vmem:[%s0 + $0xb28] sm:$0xff]
  %v376 = vld [vmem:[%s0 + $0xb30] sm:$0xff]
  %v377 = vld [vmem:[%s0 + $0xb38] sm:$0xff]
  %v378 = vld [vmem:[%s0 + $0xb40] sm:$0xff]
  %v379 = vld [vmem:[%s0 + $0xb48] sm:$0xff]
  %v380 = vld [vmem:[%s0 + $0xb50] sm:$0xff]
  %v381 = vld [vmem:[%s0 + $0xb58] sm:$0xff]
  %v382 = vld [vmem:[%s0 + $0xb60] sm:$0xff]
  %v383 = vld [vmem:[%s0 + $0xb68] sm:$0xff]
  %v384 = vld [vmem:[%s0 + $0xb70] sm:$0xff]
  %v385 = vld [vmem:[%s0 + $0xb78] sm:$0xff]
  %v386 = vld [vmem:[%s0 + $0xb80] sm:$0xff]
  %v387 = vld [vmem:[%s0 + $0xb88] sm:$0xff]
  %v388 = vld [vmem:[%s0 + $0xb90] sm:$0xff]
  %v389 = vld [vmem:[%s0 + $0xb98] sm:$0xff]
  %v390 = vld [vmem:[%s0 + $0xba0] sm:$0xff]
  %v391 = vld [vmem:[%s0 + $0xba8] sm:$0xff]
  %v392 = vld [vmem:[%s0 + $0xbb0] sm:$0xff]
  %v393 = vld [vmem:[%s0 + $0xbb8] sm:$0xff]
  %v394 = vld [vmem:[%s0 + $0xbc0] sm:$0xff]
  %v395 = vld [vmem:[%s0 + $0xbc8] sm:$0xff]
  %v396 = vld [vmem:[%s0 + $0xbd0] sm:$0xff]
  %v397 = vld [vmem:[%s0 + $0xbd8] sm:$0xff]
  %v398 = vld [vmem:[%s0 + $0xbe0] sm:$0xff]
  %v399 = vld [vmem:[%s0 + $0xbe8] sm:$0xff]
  %v400 = vld [vmem:[%s0 + $0xbf0] sm:$0xff]
  %v401 = vld [vmem:[%s0 + $0xbf8] sm:$0xff]
  %v402 = vld [vmem:[%s0 + $0xc00] sm:$0xff]
  %v403 = vld [vmem:[%s0 + $0xc08] sm:$0xff]
  %v404 = vld [vmem:[%s0 + $0xc10] sm:$0xff]
  %v405 = vld [vmem:[%s0 + $0xc18] sm:$0xff]
  %v406 = vld [vmem:[%s0 + $0xc20] sm:$0xff]
  %v407 = vld [vmem:[%s0 + $0xc28] sm:$0xff]
  %v408 = vld [vmem:[%s0 + $0xc30] sm:$0xff]
  %v409 = vld [vmem:[%s0 + $0xc38] sm:$0xff]
  %v410 = vld [vmem:[%s0 + $0xc40] sm:$0xff]
  %v411 = vld [vmem:[%s0 + $0xc48] sm:$0xff]
  %v412 = vld [vmem:[%s0 + $0xc50] sm:$0xff]
  %v413 = vld [vmem:[%s0 + $0xc58] sm:$0xff]
  %v414 = vld [vmem:[%s0 + $0xc60] sm:$0xff]
  %v415 = vld [vmem:[%s0 + $0xc68] sm:$0xff]
  %v416 = vld [vmem:[%s0 + $0xc70] sm:$0xff]
  %v417 = vld [vmem:[%s0 + $0xc78] sm:$0xff]
  %v418 = vld [vmem:[%s0 + $0xc80] sm:$0xff]
  %v419 = vld [vmem:[%s0 + $0xc88] sm:$0xff]
  %v420 = vld [vmem:[%s0 + $0xc90] sm:$0xff]
  %v421 = vld [vmem:[%s0 + $0xc98] sm:$0xff]
  %v422 = vld [vmem:[%s0 + $0xca0] sm:$0xff]
  %v423 = vld [vmem:[%s0 + $0xca8] sm:$0xff]
  %v424 = vld [vmem:[%s0 + $0xcb0] sm:$0xff]
  %v425 = vld [vmem:[%s0 + $0xcb8] sm:$0xff]
  %v426 = vld [vmem:[%s0 + $0xcc0] sm:$0xff]
  %v427 = vld [vmem:[%s0 + $0xcc8] sm:$0xff]
  %v428 = vld [vmem:[%s0 + $0xcd0] sm:$0xff]
  %v429 = vld [vmem:[%s0 + $0xcd8] sm:$0xff]
  %v430 = vld [vmem:[%s0 + $0xce0] sm:$0xff]
  %v431 = vld [vmem:[%s0 + $0xce8] sm:$0xff]
  %v432 = vld [vmem:[%s0 + $0xcf0] sm:$0xff]
  %v433 = vld [vmem:[%s0 + $0xcf8] sm:$0xff]
  %v434 = vld [vmem:[%s0 + $0xd00] sm:$0xff]
  %v435 = vld [vmem:[%s0 + $0xd08] sm:$0xff]
  %v436 = vld [vmem:[%s0 + $0xd10] sm:$0xff]
  %v437 = vld [vmem:[%s0 + $0xd18] sm:$0xff]
  %v438 = vld [vmem:[%s0 + $0xd20] sm:$0xff]
  %v439 = vld [vmem:[%s0 + $0xd28] sm:$0xff]
  %v440 = vld [vmem:[%s0 + $0xd30] sm:$0xff]
  %v441 = vld [vmem:[%s0 + $0xd38] sm:$0xff]
  %v442 = vld [vmem:[%s0 + $0xd40] sm:$0xff]
  %v443 = vld [vmem:[%s0 + $0xd48] sm:$0xff]
  %v444 = vld [vmem:[%s0 + $0xd50] sm:$0xff]
  %v445 = vld [vmem:[%s0 + $0xd58] sm:$0xff]
  %v446 = vld [vmem:[%s0 + $0xd60] sm:$0xff]
  %v447 = vld [vmem:[%s0 + $0xd68] sm:$0xff]
  %v448 = vld [vmem:[%s0 + $0xd70] sm:$0xff]
  %v449 = vld [vmem:[%s0 + $0xd78] sm:$0xff]
  %v450 = vld [vmem:[%s0 + $0xd80] sm:$0xff]
  %v451 = vld [vmem:[%s0 + $0xd88] sm:$0xff]
  %v452 = vld [vmem:[%s0 + $0xd90] sm:$0xff]
  %v453 = vld [vmem:[%s0 + $0xd98] sm:$0xff]
  %v454 = vld [vmem:[%s0 + $0xda0] sm:$0xff]
  %v455 = vld [vmem:[%s0 + $0xda8] sm:$0xff]
  %v456 = vld [vmem:[%s0 + $0xdb0] sm:$0xff]
  %v457 = vld [vmem:[%s0 + $0xdb8] sm:$0xff]
  %v458 = vld [vmem:[%s0 + $0xdc0] sm:$0xff]
  %v459 = vld [vmem:[%s0 + $0xdc8] sm:$0xff]
  %v460 = vld [vmem:[%s0 + $0xdd0] sm:$0xff]
  %v461 = vld [vmem:[%s0 + $0xdd8] sm:$0xff]
  %v462 = vld [vmem:[%s0 + $0xde0] sm:$0xff]
  %v463 = vld [vmem:[%s0 + $0xde8] sm:$0xff]
  %v464 = vld [vmem:[%s0 + $0xdf0] sm:$0xff]
  %v465 = vld [vmem:[%s0 + $0xdf8] sm:$0xff]
  %v466 = vld [vmem:[%s0 + $0xe00] sm:$0xff]
  %v467 = vld [vmem:[%s0 + $0xe08] sm:$0xff]
  %v468 = vld [vmem:[%s0 + $0xe10] sm:$0xff]
  %v469 = vld [vmem:[%s0 + $0xe18] sm:$0xff]
  %v470 = vld [vmem:[%s0 + $0xe20] sm:$0xff]
  %v471 = vld [vmem:[%s0 + $0xe28] sm:$0xff]
  %v472 = vld [vmem:[%s0 + $0xe30] sm:$0xff]
  %v473 = vld [vmem:[%s0 + $0xe38] sm:$0xff]
  %v474 = vld [vmem:[%s0 + $0xe40] sm:$0xff]
  %v475 = vld [vmem:[%s0 + $0xe48] sm:$0xff]
  %v476 = vld [vmem:[%s0 + $0xe50] sm:$0xff]
  %v477 = vld [vmem:[%s0 + $0xe58] sm:$0xff]
  %v478 = vld [vmem:[%s0 + $0xe60] sm:$0xff]
  %v479 = vld [vmem:[%s0 + $0xe68] sm:$0xff]
  %v480 = vld [vmem:[%s0 + $0xe70] sm:$0xff]
  %v481 = vld [vmem:[%s0 + $0xe78] sm:$0xff]
  %v482 = vld [vmem:[%s0 + $0xe80] sm:$0xff]
  %v483 = vld [vmem:[%s0 + $0xe88] sm:$0xff]
  %v484 = vld [vmem:[%s0 + $0xe90] sm:$0xff]
  %v485 = vld [vmem:[%s0 + $0xe98] sm:$0xff]
  %v486 = vld [vmem:[%s0 + $0xea0] sm:$0xff]
  %v487 = vld [vmem:[%s0 + $0xea8] sm:$0xff]
  %v488 = vld [vmem:[%s0 + $0xeb0] sm:$0xff]
  %v489 = vld [vmem:[%s0 + $0xeb8] sm:$0xff]
  %v490 = vld [vmem:[%s0 + $0xec0] sm:$0xff]
  %v491 = vld [vmem:[%s0 + $0xec8] sm:$0xff]
  %v492 = vld [vmem:[%s0 + $0xed0] sm:$0xff]
  %v493 = vld [vmem:[%s0 + $0xed8] sm:$0xff]
  %v494 = vld [vmem:[%s0 + $0xee0] sm:$0xff]
  %v495 = vld [vmem:[%s0 + $0xee8] sm:$0xff]
  %v496 = vld [vmem:[%s0 + $0xef0] sm:$0xff]
  %v497 = vld [vmem:[%s0 + $0xef8] sm:$0xff]
  %v498 = vld [vmem:[%s0 + $0xf00] sm:$0xff]
  %v499 = vld [vmem:[%s0 + $0xf08] sm:$0xff]
  %v500 = vld [vmem:[%s0 + $0xf10] sm:$0xff]
  %v501 = vld [vmem:[%s0 + $0xf18] sm:$0xff]
  %v502 = vld [vmem:[%s0 + $0xf20] sm:$0xff]
  %v503 = vld [vmem:[%s0 + $0xf28] sm:$0xff]
  %v504 = vld [vmem:[%s0 + $0xf30] sm:$0xff]
  %v505 = vld [vmem:[%s0 + $0xf38] sm:$0xff]
  %v506 = vld [vmem:[%s0 + $0xf40] sm:$0xff]
  %v507 = vld [vmem:[%s0 + $0xf48] sm:$0xff]
  %v508 = vld [vmem:[%s0 + $0xf50] sm:$0xff]
  %v509 = vld [vmem:[%s0 + $0xf58] sm:$0xff]
  %v510 = vld [vmem:[%s0 + $0xf60] sm:$0xff]
  %v511 = vld [vmem:[%s0 + $0xf68] sm:$0xff]
  %v512 = vld [vmem:[%s0 + $0xf70] sm:$0xff]
  %v513 = vld [vmem:[%s0 + $0xf78] sm:$0xff]
  %v514 = vld [vmem:[%s0 + $0xf80] sm:$0xff]
  %v515 = vld [vmem:[%s0 + $0xf88] sm:$0xff]
  %v516 = vld [vmem:[%s0 + $0xf90] sm:$0xff]
  %v517 = vld [vmem:[%s0 + $0xf98] sm:$0xff]
  %v518 = vld [vmem:[%s0 + $0xfa0] sm:$0xff]
  %v519 = vld [vmem:[%s0 + $0xfa8] sm:$0xff]
  %v520 = vld [vmem:[%s0 + $0xfb0] sm:$0xff]
  %v521 = vld [vmem:[%s0 + $0xfb8] sm:$0xff]
  %v522 = vld [vmem:[%s0 + $0xfc0] sm:$0xff]
  %v523 = vld [vmem:[%s0 + $0xfc8] sm:$0xff]
  %v524 = vld [vmem:[%s0 + $0xfd0] sm:$0xff]
  %v525 = vld [vmem:[%s0 + $0xfd8] sm:$0xff]
  %v526 = vld [vmem:[%s0 + $0xfe0] sm:$0xff]
  %v527 = vld [vmem:[%s0 + $0xfe8] sm:$0xff]
  %v528 = vld [vmem:[%s0 + $0xff0] sm:$0xff]
  %v529 = vld [vmem:[%s0 + $0xff8] sm:$0xff]
  %v530 = vld [vmem:[%s1] sm:$0xf]
  %v531 = vld [vmem:[%s1 + $0x4] sm:$0xf]
  %v532 = vld [vmem:[%s1 + $0x8] sm:$0xf]
  %v533 = vld [vmem:[%s1 + $0xc] sm:$0xf]
  %v534 = vld [vmem:[%s1 + $0x10] sm:$0xf]
  %v535 = vld [vmem:[%s1 + $0x14] sm:$0xf]
  %v536 = vld [vmem:[%s1 + $0x18] sm:$0xf]
  %v537 = vld [vmem:[%s1 + $0x1c] sm:$0xf]
  %v538 = vld [vmem:[%s1 + $0x20] sm:$0xf]
  %v539 = vld [vmem:[%s1 + $0x24] sm:$0xf]
  %v540 = vld [vmem:[%s1 + $0x28] sm:$0xf]
  %v541 = vld [vmem:[%s1 + $0x2c] sm:$0xf]
  %v542 = vld [vmem:[%s1 + $0x30] sm:$0xf]
  %v543 = vld [vmem:[%s1 + $0x34] sm:$0xf]
  %v544 = vld [vmem:[%s1 + $0x38] sm:$0xf]
  %v545 = vld [vmem:[%s1 + $0x3c] sm:$0xf]
  %v546 = vld [vmem:[%s1 + $0x40] sm:$0xf]
  %v547 = vld [vmem:[%s1 + $0x44] sm:$0xf]
  %v548 = vld [vmem:[%s1 + $0x48] sm:$0xf]
  %v549 = vld [vmem:[%s1 + $0x4c] sm:$0xf]
  %v550 = vld [vmem:[%s1 + $0x50] sm:$0xf]
  %v551 = vld [vmem:[%s1 + $0x54] sm:$0xf]
  %v552 = vld [vmem:[%s1 + $0x58] sm:$0xf]
  %v553 = vld [vmem:[%s1 + $0x5c] sm:$0xf]
  %v554 = vld [vmem:[%s1 + $0x60] sm:$0xf]
  %v555 = vld [vmem:[%s1 + $0x64] sm:$0xf]
  %v556 = vld [vmem:[%s1 + $0x68] sm:$0xf]
  %v557 = vld [vmem:[%s1 + $0x6c] sm:$0xf]
  %v558 = vld [vmem:[%s1 + $0x70] sm:$0xf]
  %v559 = vld [vmem:[%s1 + $0x74] sm:$0xf]
  %v560 = vld [vmem:[%s1 + $0x78] sm:$0xf]
  %v561 = vld [vmem:[%s1 + $0x7c] sm:$0xf]
  %v562 = vld [vmem:[%s1 + $0x80] sm:$0xf]
  %v563 = vld [vmem:[%s1 + $0x84] sm:$0xf]
  %v564 = vld [vmem:[%s1 + $0x88] sm:$0xf]
  %v565 = vld [vmem:[%s1 + $0x8c] sm:$0xf]
  %v566 = vld [vmem:[%s1 + $0x90] sm:$0xf]
  %v567 = vld [vmem:[%s1 + $0x94] sm:$0xf]
  %v568 = vld [vmem:[%s1 + $0x98] sm:$0xf]
  %v569 = vld [vmem:[%s1 + $0x9c] sm:$0xf]
  %v570 = vld [vmem:[%s1 + $0xa0] sm:$0xf]
  %v571 = vld [vmem:[%s1 + $0xa4] sm:$0xf]
  %v572 = vld [vmem:[%s1 + $0xa8] sm:$0xf]
  %v573 = vld [vmem:[%s1 + $0xac] sm:$0xf]
  %v574 = vld [vmem:[%s1 + $0xb0] sm:$0xf]
  %v575 = vld [vmem:[%s1 + $0xb4] sm:$0xf]
  %v576 = vld [vmem:[%s1 + $0xb8] sm:$0xf]
  %v577 = vld [vmem:[%s1 + $0xbc] sm:$0xf]
  %v578 = vld [vmem:[%s1 + $0xc0] sm:$0xf]
  %v579 = vld [vmem:[%s1 + $0xc4] sm:$0xf]
  %v580 = vld [vmem:[%s1 + $0xc8] sm:$0xf]
  %v581 = vld [vmem:[%s1 + $0xcc] sm:$0xf]
  %v582 = vld [vmem:[%s1 + $0xd0] sm:$0xf]
  %v583 = vld [vmem:[%s1 + $0xd4] sm:$0xf]
  %v584 = vld [vmem:[%s1 + $0xd8] sm:$0xf]
  %v585 = vld [vmem:[%s1 + $0xdc] sm:$0xf]
  %v586 = vld [vmem:[%s1 + $0xe0] sm:$0xf]
  %v587 = vld [vmem:[%s1 + $0xe4] sm:$0xf]
  %v588 = vld [vmem:[%s1 + $0xe8] sm:$0xf]
  %v589 = vld [vmem:[%s1 + $0xec] sm:$0xf]
  %v590 = vld [vmem:[%s1 + $0xf0] sm:$0xf]
  %v591 = vld [vmem:[%s1 + $0xf4] sm:$0xf]
  %v592 = vld [vmem:[%s1 + $0xf8] sm:$0xf]
  %v593 = vld [vmem:[%s1 + $0xfc] sm:$0xf]
  %v594 = vld [vmem:[%s1 + $0x100] sm:$0xf]
  %v595 = vld [vmem:[%s1 + $0x104] sm:$0xf]
  %v596 = vld [vmem:[%s1 + $0x108] sm:$0xf]
  %v597 = vld [vmem:[%s1 + $0x10c] sm:$0xf]
  %v598 = vld [vmem:[%s1 + $0x110] sm:$0xf]
  %v599 = vld [vmem:[%s1 + $0x114] sm:$0xf]
  %v600 = vld [vmem:[%s1 + $0x118] sm:$0xf]
  %v601 = vld [vmem:[%s1 + $0x11c] sm:$0xf]
  %v602 = vld [vmem:[%s1 + $0x120] sm:$0xf]
  %v603 = vld [vmem:[%s1 + $0x124] sm:$0xf]
  %v604 = vld [vmem:[%s1 + $0x128] sm:$0xf]
  %v605 = vld [vmem:[%s1 + $0x12c] sm:$0xf]
  %v606 = vld [vmem:[%s1 + $0x130] sm:$0xf]
  %v607 = vld [vmem:[%s1 + $0x134] sm:$0xf]
  %v608 = vld [vmem:[%s1 + $0x138] sm:$0xf]
  %v609 = vld [vmem:[%s1 + $0x13c] sm:$0xf]
  %v610 = vld [vmem:[%s1 + $0x140] sm:$0xf]
  %v611 = vld [vmem:[%s1 + $0x144] sm:$0xf]
  %v612 = vld [vmem:[%s1 + $0x148] sm:$0xf]
  %v613 = vld [vmem:[%s1 + $0x14c] sm:$0xf]
  %v614 = vld [vmem:[%s1 + $0x150] sm:$0xf]
  %v615 = vld [vmem:[%s1 + $0x154] sm:$0xf]
  %v616 = vld [vmem:[%s1 + $0x158] sm:$0xf]
  %v617 = vld [vmem:[%s1 + $0x15c] sm:$0xf]
  %v618 = vld [vmem:[%s1 + $0x160] sm:$0xf]
  %v619 = vld [vmem:[%s1 + $0x164] sm:$0xf]
  %v620 = vld [vmem:[%s1 + $0x168] sm:$0xf]
  %v621 = vld [vmem:[%s1 + $0x16c] sm:$0xf]
  %v622 = vld [vmem:[%s1 + $0x170] sm:$0xf]
  %v623 = vld [vmem:[%s1 + $0x174] sm:$0xf]
  %v624 = vld [vmem:[%s1 + $0x178] sm:$0xf]
  %v625 = vld [vmem:[%s1 + $0x17c] sm:$0xf]
  %v626 = vld [vmem:[%s1 + $0x180] sm:$0xf]
  %v627 = vld [vmem:[%s1 + $0x184] sm:$0xf]
  %v628 = vld [vmem:[%s1 + $0x188] sm:$0xf]
  %v629 = vld [vmem:[%s1 + $0x18c] sm:$0xf]
  %v630 = vld [vmem:[%s1 + $0x190] sm:$0xf]
  %v631 = vld [vmem:[%s1 + $0x194] sm:$0xf]
  %v632 = vld [vmem:[%s1 + $0x198] sm:$0xf]
  %v633 = vld [vmem:[%s1 + $0x19c] sm:$0xf]
  %v634 = vld [vmem:[%s1 + $0x1a0] sm:$0xf]
  %v635 = vld [vmem:[%s1 + $0x1a4] sm:$0xf]
  %v636 = vld [vmem:[%s1 + $0x1a8] sm:$0xf]
  %v637 = vld [vmem:[%s1 + $0x1ac] sm:$0xf]
  %v638 = vld [vmem:[%s1 + $0x1b0] sm:$0xf]
  %v639 = vld [vmem:[%s1 + $0x1b4] sm:$0xf]
  %v640 = vld [vmem:[%s1 + $0x1b8] sm:$0xf]
  %v641 = vld [vmem:[%s1 + $0x1bc] sm:$0xf]
  %v642 = vld [vmem:[%s1 + $0x1c0] sm:$0xf]
  %v643 = vld [vmem:[%s1 + $0x1c4] sm:$0xf]
  %v644 = vld [vmem:[%s1 + $0x1c8] sm:$0xf]
  %v645 = vld [vmem:[%s1 + $0x1cc] sm:$0xf]
  %v646 = vld [vmem:[%s1 + $0x1d0] sm:$0xf]
  %v647 = vld [vmem:[%s1 + $0x1d4] sm:$0xf]
  %v648 = vld [vmem:[%s1 + $0x1d8] sm:$0xf]
  %v649 = vld [vmem:[%s1 + $0x1dc] sm:$0xf]
  %v650 = vld [vmem:[%s1 + $0x1e0] sm:$0xf]
  %v651 = vld [vmem:[%s1 + $0x1e4] sm:$0xf]
  %v652 = vld [vmem:[%s1 + $0x1e8] sm:$0xf]
  %v653 = vld [vmem:[%s1 + $0x1ec] sm:$0xf]
  %v654 = vld [vmem:[%s1 + $0x1f0] sm:$0xf]
  %v655 = vld [vmem:[%s1 + $0x1f4] sm:$0xf]
  %v656 = vld [vmem:[%s1 + $0x1f8] sm:$0xf]
  %v657 = vld [vmem:[%s1 + $0x1fc] sm:$0xf]
  %v658 = vld [vmem:[%s1 + $0x200] sm:$0xf]
  %v659 = vld [vmem:[%s1 + $0x204] sm:$0xf]
  %v660 = vld [vmem:[%s1 + $0x208] sm:$0xf]
  %v661 = vld [vmem:[%s1 + $0x20c] sm:$0xf]
  %v662 = vld [vmem:[%s1 + $0x210] sm:$0xf]
  %v663 = vld [vmem:[%s1 + $0x214] sm:$0xf]
  %v664 = vld [vmem:[%s1 + $0x218] sm:$0xf]
  %v665 = vld [vmem:[%s1 + $0x21c] sm:$0xf]
  %v666 = vld [vmem:[%s1 + $0x220] sm:$0xf]
  %v667 = vld [vmem:[%s1 + $0x224] sm:$0xf]
  %v668 = vld [vmem:[%s1 + $0x228] sm:$0xf]
  %v669 = vld [vmem:[%s1 + $0x22c] sm:$0xf]
  %v670 = vld [vmem:[%s1 + $0x230] sm:$0xf]
  %v671 = vld [vmem:[%s1 + $0x234] sm:$0xf]
  %v672 = vld [vmem:[%s1 + $0x238] sm:$0xf]
  %v673 = vld [vmem:[%s1 + $0x23c] sm:$0xf]
  %v674 = vld [vmem:[%s1 + $0x240] sm:$0xf]
  %v675 = vld [vmem:[%s1 + $0x244] sm:$0xf]
  %v676 = vld [vmem:[%s1 + $0x248] sm:$0xf]
  %v677 = vld [vmem:[%s1 + $0x24c] sm:$0xf]
  %v678 = vld [vmem:[%s1 + $0x250] sm:$0xf]
  %v679 = vld [vmem:[%s1 + $0x254] sm:$0xf]
  %v680 = vld [vmem:[%s1 + $0x258] sm:$0xf]
  %v681 = vld [vmem:[%s1 + $0x25c] sm:$0xf]
  %v682 = vld [vmem:[%s1 + $0x260] sm:$0xf]
  %v683 = vld [vmem:[%s1 + $0x264] sm:$0xf]
  %v684 = vld [vmem:[%s1 + $0x268] sm:$0xf]
  %v685 = vld [vmem:[%s1 + $0x26c] sm:$0xf]
  %v686 = vld [vmem:[%s1 + $0x270] sm:$0xf]
  %v687 = vld [vmem:[%s1 + $0x274] sm:$0xf]
  %v688 = vld [vmem:[%s1 + $0x278] sm:$0xf]
  %v689 = vld [vmem:[%s1 + $0x27c] sm:$0xf]
  %v690 = vld [vmem:[%s1 + $0x280] sm:$0xf]
  %v691 = vld [vmem:[%s1 + $0x284] sm:$0xf]
  %v692 = vld [vmem:[%s1 + $0x288] sm:$0xf]
  %v693 = vld [vmem:[%s1 + $0x28c] sm:$0xf]
  %v694 = vld [vmem:[%s1 + $0x290] sm:$0xf]
  %v695 = vld [vmem:[%s1 + $0x294] sm:$0xf]
  %v696 = vld [vmem:[%s1 + $0x298] sm:$0xf]
  %v697 = vld [vmem:[%s1 + $0x29c] sm:$0xf]
  %v698 = vld [vmem:[%s1 + $0x2a0] sm:$0xf]
  %v699 = vld [vmem:[%s1 + $0x2a4] sm:$0xf]
  %v700 = vld [vmem:[%s1 + $0x2a8] sm:$0xf]
  %v701 = vld [vmem:[%s1 + $0x2ac] sm:$0xf]
  %v702 = vld [vmem:[%s1 + $0x2b0] sm:$0xf]
  %v703 = vld [vmem:[%s1 + $0x2b4] sm:$0xf]
  %v704 = vld [vmem:[%s1 + $0x2b8] sm:$0xf]
  %v705 = vld [vmem:[%s1 + $0x2bc] sm:$0xf]
  %v706 = vld [vmem:[%s1 + $0x2c0] sm:$0xf]
  %v707 = vld [vmem:[%s1 + $0x2c4] sm:$0xf]
  %v708 = vld [vmem:[%s1 + $0x2c8] sm:$0xf]
  %v709 = vld [vmem:[%s1 + $0x2cc] sm:$0xf]
  %v710 = vld [vmem:[%s1 + $0x2d0] sm:$0xf]
  %v711 = vld [vmem:[%s1 + $0x2d4] sm:$0xf]
  %v712 = vld [vmem:[%s1 + $0x2d8] sm:$0xf]
  %v713 = vld [vmem:[%s1 + $0x2dc] sm:$0xf]
  %v714 = vld [vmem:[%s1 + $0x2e0] sm:$0xf]
  %v715 = vld [vmem:[%s1 + $0x2e4] sm:$0xf]
  %v716 = vld [vmem:[%s1 + $0x2e8] sm:$0xf]
  %v717 = vld [vmem:[%s1 + $0x2ec] sm:$0xf]
  %v718 = vld [vmem:[%s1 + $0x2f0] sm:$0xf]
  %v719 = vld [vmem:[%s1 + $0x2f4] sm:$0xf]
  %v720 = vld [vmem:[%s1 + $0x2f8] sm:$0xf]
  %v721 = vld [vmem:[%s1 + $0x2fc] sm:$0xf]
  %v722 = vld [vmem:[%s1 + $0x300] sm:$0xf]
  %v723 = vld [vmem:[%s1 + $0x304] sm:$0xf]
  %v724 = vld [vmem:[%s1 + $0x308] sm:$0xf]
  %v725 = vld [vmem:[%s1 + $0x30c] sm:$0xf]
  %v726 = vld [vmem:[%s1 + $0x310] sm:$0xf]
  %v727 = vld [vmem:[%s1 + $0x314] sm:$0xf]
  %v728 = vld [vmem:[%s1 + $0x318] sm:$0xf]
  %v729 = vld [vmem:[%s1 + $0x31c] sm:$0xf]
  %v730 = vld [vmem:[%s1 + $0x320] sm:$0xf]
  %v731 = vld [vmem:[%s1 + $0x324] sm:$0xf]
  %v732 = vld [vmem:[%s1 + $0x328] sm:$0xf]
  %v733 = vld [vmem:[%s1 + $0x32c] sm:$0xf]
  %v734 = vld [vmem:[%s1 + $0x330] sm:$0xf]
  %v735 = vld [vmem:[%s1 + $0x334] sm:$0xf]
  %v736 = vld [vmem:[%s1 + $0x338] sm:$0xf]
  %v737 = vld [vmem:[%s1 + $0x33c] sm:$0xf]
  %v738 = vld [vmem:[%s1 + $0x340] sm:$0xf]
  %v739 = vld [vmem:[%s1 + $0x344] sm:$0xf]
  %v740 = vld [vmem:[%s1 + $0x348] sm:$0xf]
  %v741 = vld [vmem:[%s1 + $0x34c] sm:$0xf]
  %v742 = vld [vmem:[%s1 + $0x350] sm:$0xf]
  %v743 = vld [vmem:[%s1 + $0x354] sm:$0xf]
  %v744 = vld [vmem:[%s1 + $0x358] sm:$0xf]
  %v745 = vld [vmem:[%s1 + $0x35c] sm:$0xf]
  %v746 = vld [vmem:[%s1 + $0x360] sm:$0xf]
  %v747 = vld [vmem:[%s1 + $0x364] sm:$0xf]
  %v748 = vld [vmem:[%s1 + $0x368] sm:$0xf]
  %v749 = vld [vmem:[%s1 + $0x36c] sm:$0xf]
  %v750 = vld [vmem:[%s1 + $0x370] sm:$0xf]
  %v751 = vld [vmem:[%s1 + $0x374] sm:$0xf]
  %v752 = vld [vmem:[%s1 + $0x378] sm:$0xf]
  %v753 = vld [vmem:[%s1 + $0x37c] sm:$0xf]
  %v754 = vld [vmem:[%s1 + $0x380] sm:$0xf]
  %v755 = vld [vmem:[%s1 + $0x384] sm:$0xf]
  %v756 = vld [vmem:[%s1 + $0x388] sm:$0xf]
  %v757 = vld [vmem:[%s1 + $0x38c] sm:$0xf]
  %v758 = vld [vmem:[%s1 + $0x390] sm:$0xf]
  %v759 = vld [vmem:[%s1 + $0x394] sm:$0xf]
  %v760 = vld [vmem:[%s1 + $0x398] sm:$0xf]
  %v761 = vld [vmem:[%s1 + $0x39c] sm:$0xf]
  %v762 = vld [vmem:[%s1 + $0x3a0] sm:$0xf]
  %v763 = vld [vmem:[%s1 + $0x3a4] sm:$0xf]
  %v764 = vld [vmem:[%s1 + $0x3a8] sm:$0xf]
  %v765 = vld [vmem:[%s1 + $0x3ac] sm:$0xf]
  %v766 = vld [vmem:[%s1 + $0x3b0] sm:$0xf]
  %v767 = vld [vmem:[%s1 + $0x3b4] sm:$0xf]
  %v768 = vld [vmem:[%s1 + $0x3b8] sm:$0xf]
  %v769 = vld [vmem:[%s1 + $0x3bc] sm:$0xf]
  %v770 = vld [vmem:[%s1 + $0x3c0] sm:$0xf]
  %v771 = vld [vmem:[%s1 + $0x3c4] sm:$0xf]
  %v772 = vld [vmem:[%s1 + $0x3c8] sm:$0xf]
  %v773 = vld [vmem:[%s1 + $0x3cc] sm:$0xf]
  %v774 = vld [vmem:[%s1 + $0x3d0] sm:$0xf]
  %v775 = vld [vmem:[%s1 + $0x3d4] sm:$0xf]
  %v776 = vld [vmem:[%s1 + $0x3d8] sm:$0xf]
  %v777 = vld [vmem:[%s1 + $0x3dc] sm:$0xf]
  %v778 = vld [vmem:[%s1 + $0x3e0] sm:$0xf]
  %v779 = vld [vmem:[%s1 + $0x3e4] sm:$0xf]
  %v780 = vld [vmem:[%s1 + $0x3e8] sm:$0xf]
  %v781 = vld [vmem:[%s1 + $0x3ec] sm:$0xf]
  %v782 = vld [vmem:[%s1 + $0x3f0] sm:$0xf]
  %v783 = vld [vmem:[%s1 + $0x3f4] sm:$0xf]
  %v784 = vld [vmem:[%s1 + $0x3f8] sm:$0xf]
  %v785 = vld [vmem:[%s1 + $0x3fc] sm:$0xf]
  %v1298 = vunpack.c.l.b16 %v18
  %v1299 = vunpack.c.h.b16 %v18
  %v1300 = vunpack.c.l.b16 %v19
  %v1301 = vunpack.c.h.b16 %v19
  %v1302 = vunpack.c.l.b16 %v20
  %v1303 = vunpack.c.h.b16 %v20
  %v1304 = vunpack.c.l.b16 %v21
  %v1305 = vunpack.c.h.b16 %v21
  %v1306 = vunpack.c.l.b16 %v22
  %v1307 = vunpack.c.h.b16 %v22
  %v1308 = vunpack.c.l.b16 %v23
  %v1309 = vunpack.c.h.b16 %v23
  %v1310 = vunpack.c.l.b16 %v24
  %v1311 = vunpack.c.h.b16 %v24
  %v1312 = vunpack.c.l.b16 %v25
  %v1313 = vunpack.c.h.b16 %v25
  %v1314 = vunpack.c.l.b16 %v26
  %v1315 = vunpack.c.h.b16 %v26
  %v1316 = vunpack.c.l.b16 %v27
  %v1317 = vunpack.c.h.b16 %v27
  %v1318 = vunpack.c.l.b16 %v28
  %v1319 = vunpack.c.h.b16 %v28
  %v1320 = vunpack.c.l.b16 %v29
  %v1321 = vunpack.c.h.b16 %v29
  %v1322 = vunpack.c.l.b16 %v30
  %v1323 = vunpack.c.h.b16 %v30
  %v1324 = vunpack.c.l.b16 %v31
  %v1325 = vunpack.c.h.b16 %v31
  %v1326 = vunpack.c.l.b16 %v32
  %v1327 = vunpack.c.h.b16 %v32
  %v1328 = vunpack.c.l.b16 %v33
  %v1329 = vunpack.c.h.b16 %v33
  %v1330 = vunpack.c.l.b16 %v34
  %v1331 = vunpack.c.h.b16 %v34
  %v1332 = vunpack.c.l.b16 %v35
  %v1333 = vunpack.c.h.b16 %v35
  %v1334 = vunpack.c.l.b16 %v36
  %v1335 = vunpack.c.h.b16 %v36
  %v1336 = vunpack.c.l.b16 %v37
  %v1337 = vunpack.c.h.b16 %v37
  %v1338 = vunpack.c.l.b16 %v38
  %v1339 = vunpack.c.h.b16 %v38
  %v1340 = vunpack.c.l.b16 %v39
  %v1341 = vunpack.c.h.b16 %v39
  %v1342 = vunpack.c.l.b16 %v40
  %v1343 = vunpack.c.h.b16 %v40
  %v1344 = vunpack.c.l.b16 %v41
  %v1345 = vunpack.c.h.b16 %v41
  %v1346 = vunpack.c.l.b16 %v42
  %v1347 = vunpack.c.h.b16 %v42
  %v1348 = vunpack.c.l.b16 %v43
  %v1349 = vunpack.c.h.b16 %v43
  %v1350 = vunpack.c.l.b16 %v44
  %v1351 = vunpack.c.h.b16 %v44
  %v1352 = vunpack.c.l.b16 %v45
  %v1353 = vunpack.c.h.b16 %v45
  %v1354 = vunpack.c.l.b16 %v46
  %v1355 = vunpack.c.h.b16 %v46
  %v1356 = vunpack.c.l.b16 %v47
  %v1357 = vunpack.c.h.b16 %v47
  %v1358 = vunpack.c.l.b16 %v48
  %v1359 = vunpack.c.h.b16 %v48
  %v1360 = vunpack.c.l.b16 %v49
  %v1361 = vunpack.c.h.b16 %v49
  %v1362 = vunpack.c.l.b16 %v50
  %v1363 = vunpack.c.h.b16 %v50
  %v1364 = vunpack.c.l.b16 %v51
  %v1365 = vunpack.c.h.b16 %v51
  %v1366 = vunpack.c.l.b16 %v52
  %v1367 = vunpack.c.h.b16 %v52
  %v1368 = vunpack.c.l.b16 %v53
  %v1369 = vunpack.c.h.b16 %v53
  %v1370 = vunpack.c.l.b16 %v54
  %v1371 = vunpack.c.h.b16 %v54
  %v1372 = vunpack.c.l.b16 %v55
  %v1373 = vunpack.c.h.b16 %v55
  %v1374 = vunpack.c.l.b16 %v56
  %v1375 = vunpack.c.h.b16 %v56
  %v1376 = vunpack.c.l.b16 %v57
  %v1377 = vunpack.c.h.b16 %v57
  %v1378 = vunpack.c.l.b16 %v58
  %v1379 = vunpack.c.h.b16 %v58
  %v1380 = vunpack.c.l.b16 %v59
  %v1381 = vunpack.c.h.b16 %v59
  %v1382 = vunpack.c.l.b16 %v60
  %v1383 = vunpack.c.h.b16 %v60
  %v1384 = vunpack.c.l.b16 %v61
  %v1385 = vunpack.c.h.b16 %v61
  %v1386 = vunpack.c.l.b16 %v62
  %v1387 = vunpack.c.h.b16 %v62
  %v1388 = vunpack.c.l.b16 %v63
  %v1389 = vunpack.c.h.b16 %v63
  %v1390 = vunpack.c.l.b16 %v64
  %v1391 = vunpack.c.h.b16 %v64
  %v1392 = vunpack.c.l.b16 %v65
  %v1393 = vunpack.c.h.b16 %v65
  %v1394 = vunpack.c.l.b16 %v66
  %v1395 = vunpack.c.h.b16 %v66
  %v1396 = vunpack.c.l.b16 %v67
  %v1397 = vunpack.c.h.b16 %v67
  %v1398 = vunpack.c.l.b16 %v68
  %v1399 = vunpack.c.h.b16 %v68
  %v1400 = vunpack.c.l.b16 %v69
  %v1401 = vunpack.c.h.b16 %v69
  %v1402 = vunpack.c.l.b16 %v70
  %v1403 = vunpack.c.h.b16 %v70
  %v1404 = vunpack.c.l.b16 %v71
  %v1405 = vunpack.c.h.b16 %v71
  %v1406 = vunpack.c.l.b16 %v72
  %v1407 = vunpack.c.h.b16 %v72
  %v1408 = vunpack.c.l.b16 %v73
  %v1409 = vunpack.c.h.b16 %v73
  %v1410 = vunpack.c.l.b16 %v74
  %v1411 = vunpack.c.h.b16 %v74
  %v1412 = vunpack.c.l.b16 %v75
  %v1413 = vunpack.c.h.b16 %v75
  %v1414 = vunpack.c.l.b16 %v76
  %v1415 = vunpack.c.h.b16 %v76
  %v1416 = vunpack.c.l.b16 %v77
  %v1417 = vunpack.c.h.b16 %v77
  %v1418 = vunpack.c.l.b16 %v78
  %v1419 = vunpack.c.h.b16 %v78
  %v1420 = vunpack.c.l.b16 %v79
  %v1421 = vunpack.c.h.b16 %v79
  %v1422 = vunpack.c.l.b16 %v80
  %v1423 = vunpack.c.h.b16 %v80
  %v1424 = vunpack.c.l.b16 %v81
  %v1425 = vunpack.c.h.b16 %v81
  %v1426 = vunpack.c.l.b16 %v82
  %v1427 = vunpack.c.h.b16 %v82
  %v1428 = vunpack.c.l.b16 %v83
  %v1429 = vunpack.c.h.b16 %v83
  %v1430 = vunpack.c.l.b16 %v84
  %v1431 = vunpack.c.h.b16 %v84
  %v1432 = vunpack.c.l.b16 %v85
  %v1433 = vunpack.c.h.b16 %v85
  %v1434 = vunpack.c.l.b16 %v86
  %v1435 = vunpack.c.h.b16 %v86
  %v1436 = vunpack.c.l.b16 %v87
  %v1437 = vunpack.c.h.b16 %v87
  %v1438 = vunpack.c.l.b16 %v88
  %v1439 = vunpack.c.h.b16 %v88
  %v1440 = vunpack.c.l.b16 %v89
  %v1441 = vunpack.c.h.b16 %v89
  %v1442 = vunpack.c.l.b16 %v90
  %v1443 = vunpack.c.h.b16 %v90
  %v1444 = vunpack.c.l.b16 %v91
  %v1445 = vunpack.c.h.b16 %v91
  %v1446 = vunpack.c.l.b16 %v92
  %v1447 = vunpack.c.h.b16 %v92
  %v1448 = vunpack.c.l.b16 %v93
  %v1449 = vunpack.c.h.b16 %v93
  %v1450 = vunpack.c.l.b16 %v94
  %v1451 = vunpack.c.h.b16 %v94
  %v1452 = vunpack.c.l.b16 %v95
  %v1453 = vunpack.c.h.b16 %v95
  %v1454 = vunpack.c.l.b16 %v96
  %v1455 = vunpack.c.h.b16 %v96
  %v1456 = vunpack.c.l.b16 %v97
  %v1457 = vunpack.c.h.b16 %v97
  %v1458 = vunpack.c.l.b16 %v98
  %v1459 = vunpack.c.h.b16 %v98
  %v1460 = vunpack.c.l.b16 %v99
  %v1461 = vunpack.c.h.b16 %v99
  %v1462 = vunpack.c.l.b16 %v100
  %v1463 = vunpack.c.h.b16 %v100
  %v1464 = vunpack.c.l.b16 %v101
  %v1465 = vunpack.c.h.b16 %v101
  %v1466 = vunpack.c.l.b16 %v102
  %v1467 = vunpack.c.h.b16 %v102
  %v1468 = vunpack.c.l.b16 %v103
  %v1469 = vunpack.c.h.b16 %v103
  %v1470 = vunpack.c.l.b16 %v104
  %v1471 = vunpack.c.h.b16 %v104
  %v1472 = vunpack.c.l.b16 %v105
  %v1473 = vunpack.c.h.b16 %v105
  %v1474 = vunpack.c.l.b16 %v106
  %v1475 = vunpack.c.h.b16 %v106
  %v1476 = vunpack.c.l.b16 %v107
  %v1477 = vunpack.c.h.b16 %v107
  %v1478 = vunpack.c.l.b16 %v108
  %v1479 = vunpack.c.h.b16 %v108
  %v1480 = vunpack.c.l.b16 %v109
  %v1481 = vunpack.c.h.b16 %v109
  %v1482 = vunpack.c.l.b16 %v110
  %v1483 = vunpack.c.h.b16 %v110
  %v1484 = vunpack.c.l.b16 %v111
  %v1485 = vunpack.c.h.b16 %v111
  %v1486 = vunpack.c.l.b16 %v112
  %v1487 = vunpack.c.h.b16 %v112
  %v1488 = vunpack.c.l.b16 %v113
  %v1489 = vunpack.c.h.b16 %v113
  %v1490 = vunpack.c.l.b16 %v114
  %v1491 = vunpack.c.h.b16 %v114
  %v1492 = vunpack.c.l.b16 %v115
  %v1493 = vunpack.c.h.b16 %v115
  %v1494 = vunpack.c.l.b16 %v116
  %v1495 = vunpack.c.h.b16 %v116
  %v1496 = vunpack.c.l.b16 %v117
  %v1497 = vunpack.c.h.b16 %v117
  %v1498 = vunpack.c.l.b16 %v118
  %v1499 = vunpack.c.h.b16 %v118
  %v1500 = vunpack.c.l.b16 %v119
  %v1501 = vunpack.c.h.b16 %v119
  %v1502 = vunpack.c.l.b16 %v120
  %v1503 = vunpack.c.h.b16 %v120
  %v1504 = vunpack.c.l.b16 %v121
  %v1505 = vunpack.c.h.b16 %v121
  %v1506 = vunpack.c.l.b16 %v122
  %v1507 = vunpack.c.h.b16 %v122
  %v1508 = vunpack.c.l.b16 %v123
  %v1509 = vunpack.c.h.b16 %v123
  %v1510 = vunpack.c.l.b16 %v124
  %v1511 = vunpack.c.h.b16 %v124
  %v1512 = vunpack.c.l.b16 %v125
  %v1513 = vunpack.c.h.b16 %v125
  %v1514 = vunpack.c.l.b16 %v126
  %v1515 = vunpack.c.h.b16 %v126
  %v1516 = vunpack.c.l.b16 %v127
  %v1517 = vunpack.c.h.b16 %v127
  %v1518 = vunpack.c.l.b16 %v128
  %v1519 = vunpack.c.h.b16 %v128
  %v1520 = vunpack.c.l.b16 %v129
  %v1521 = vunpack.c.h.b16 %v129
  %v1522 = vunpack.c.l.b16 %v130
  %v1523 = vunpack.c.h.b16 %v130
  %v1524 = vunpack.c.l.b16 %v131
  %v1525 = vunpack.c.h.b16 %v131
  %v1526 = vunpack.c.l.b16 %v132
  %v1527 = vunpack.c.h.b16 %v132
  %v1528 = vunpack.c.l.b16 %v133
  %v1529 = vunpack.c.h.b16 %v133
  %v1530 = vunpack.c.l.b16 %v134
  %v1531 = vunpack.c.h.b16 %v134
  %v1532 = vunpack.c.l.b16 %v135
  %v1533 = vunpack.c.h.b16 %v135
  %v1534 = vunpack.c.l.b16 %v136
  %v1535 = vunpack.c.h.b16 %v136
  %v1536 = vunpack.c.l.b16 %v137
  %v1537 = vunpack.c.h.b16 %v137
  %v1538 = vunpack.c.l.b16 %v138
  %v1539 = vunpack.c.h.b16 %v138
  %v1540 = vunpack.c.l.b16 %v139
  %v1541 = vunpack.c.h.b16 %v139
  %v1542 = vunpack.c.l.b16 %v140
  %v1543 = vunpack.c.h.b16 %v140
  %v1544 = vunpack.c.l.b16 %v141
  %v1545 = vunpack.c.h.b16 %v141
  %v1546 = vunpack.c.l.b16 %v142
  %v1547 = vunpack.c.h.b16 %v142
  %v1548 = vunpack.c.l.b16 %v143
  %v1549 = vunpack.c.h.b16 %v143
  %v1550 = vunpack.c.l.b16 %v144
  %v1551 = vunpack.c.h.b16 %v144
  %v1552 = vunpack.c.l.b16 %v145
  %v1553 = vunpack.c.h.b16 %v145
  %v1554 = vunpack.c.l.b16 %v146
  %v1555 = vunpack.c.h.b16 %v146
  %v1556 = vunpack.c.l.b16 %v147
  %v1557 = vunpack.c.h.b16 %v147
  %v1558 = vunpack.c.l.b16 %v148
  %v1559 = vunpack.c.h.b16 %v148
  %v1560 = vunpack.c.l.b16 %v149
  %v1561 = vunpack.c.h.b16 %v149
  %v1562 = vunpack.c.l.b16 %v150
  %v1563 = vunpack.c.h.b16 %v150
  %v1564 = vunpack.c.l.b16 %v151
  %v1565 = vunpack.c.h.b16 %v151
  %v1566 = vunpack.c.l.b16 %v152
  %v1567 = vunpack.c.h.b16 %v152
  %v1568 = vunpack.c.l.b16 %v153
  %v1569 = vunpack.c.h.b16 %v153
  %v1570 = vunpack.c.l.b16 %v154
  %v1571 = vunpack.c.h.b16 %v154
  %v1572 = vunpack.c.l.b16 %v155
  %v1573 = vunpack.c.h.b16 %v155
  %v1574 = vunpack.c.l.b16 %v156
  %v1575 = vunpack.c.h.b16 %v156
  %v1576 = vunpack.c.l.b16 %v157
  %v1577 = vunpack.c.h.b16 %v157
  %v1578 = vunpack.c.l.b16 %v158
  %v1579 = vunpack.c.h.b16 %v158
  %v1580 = vunpack.c.l.b16 %v159
  %v1581 = vunpack.c.h.b16 %v159
  %v1582 = vunpack.c.l.b16 %v160
  %v1583 = vunpack.c.h.b16 %v160
  %v1584 = vunpack.c.l.b16 %v161
  %v1585 = vunpack.c.h.b16 %v161
  %v1586 = vunpack.c.l.b16 %v162
  %v1587 = vunpack.c.h.b16 %v162
  %v1588 = vunpack.c.l.b16 %v163
  %v1589 = vunpack.c.h.b16 %v163
  %v1590 = vunpack.c.l.b16 %v164
  %v1591 = vunpack.c.h.b16 %v164
  %v1592 = vunpack.c.l.b16 %v165
  %v1593 = vunpack.c.h.b16 %v165
  %v1594 = vunpack.c.l.b16 %v166
  %v1595 = vunpack.c.h.b16 %v166
  %v1596 = vunpack.c.l.b16 %v167
  %v1597 = vunpack.c.h.b16 %v167
  %v1598 = vunpack.c.l.b16 %v168
  %v1599 = vunpack.c.h.b16 %v168
  %v1600 = vunpack.c.l.b16 %v169
  %v1601 = vunpack.c.h.b16 %v169
  %v1602 = vunpack.c.l.b16 %v170
  %v1603 = vunpack.c.h.b16 %v170
  %v1604 = vunpack.c.l.b16 %v171
  %v1605 = vunpack.c.h.b16 %v171
  %v1606 = vunpack.c.l.b16 %v172
  %v1607 = vunpack.c.h.b16 %v172
  %v1608 = vunpack.c.l.b16 %v173
  %v1609 = vunpack.c.h.b16 %v173
  %v1610 = vunpack.c.l.b16 %v174
  %v1611 = vunpack.c.h.b16 %v174
  %v1612 = vunpack.c.l.b16 %v175
  %v1613 = vunpack.c.h.b16 %v175
  %v1614 = vunpack.c.l.b16 %v176
  %v1615 = vunpack.c.h.b16 %v176
  %v1616 = vunpack.c.l.b16 %v177
  %v1617 = vunpack.c.h.b16 %v177
  %v1618 = vunpack.c.l.b16 %v178
  %v1619 = vunpack.c.h.b16 %v178
  %v1620 = vunpack.c.l.b16 %v179
  %v1621 = vunpack.c.h.b16 %v179
  %v1622 = vunpack.c.l.b16 %v180
  %v1623 = vunpack.c.h.b16 %v180
  %v1624 = vunpack.c.l.b16 %v181
  %v1625 = vunpack.c.h.b16 %v181
  %v1626 = vunpack.c.l.b16 %v182
  %v1627 = vunpack.c.h.b16 %v182
  %v1628 = vunpack.c.l.b16 %v183
  %v1629 = vunpack.c.h.b16 %v183
  %v1630 = vunpack.c.l.b16 %v184
  %v1631 = vunpack.c.h.b16 %v184
  %v1632 = vunpack.c.l.b16 %v185
  %v1633 = vunpack.c.h.b16 %v185
  %v1634 = vunpack.c.l.b16 %v186
  %v1635 = vunpack.c.h.b16 %v186
  %v1636 = vunpack.c.l.b16 %v187
  %v1637 = vunpack.c.h.b16 %v187
  %v1638 = vunpack.c.l.b16 %v188
  %v1639 = vunpack.c.h.b16 %v188
  %v1640 = vunpack.c.l.b16 %v189
  %v1641 = vunpack.c.h.b16 %v189
  %v1642 = vunpack.c.l.b16 %v190
  %v1643 = vunpack.c.h.b16 %v190
  %v1644 = vunpack.c.l.b16 %v191
  %v1645 = vunpack.c.h.b16 %v191
  %v1646 = vunpack.c.l.b16 %v192
  %v1647 = vunpack.c.h.b16 %v192
  %v1648 = vunpack.c.l.b16 %v193
  %v1649 = vunpack.c.h.b16 %v193
  %v1650 = vunpack.c.l.b16 %v194
  %v1651 = vunpack.c.h.b16 %v194
  %v1652 = vunpack.c.l.b16 %v195
  %v1653 = vunpack.c.h.b16 %v195
  %v1654 = vunpack.c.l.b16 %v196
  %v1655 = vunpack.c.h.b16 %v196
  %v1656 = vunpack.c.l.b16 %v197
  %v1657 = vunpack.c.h.b16 %v197
  %v1658 = vunpack.c.l.b16 %v198
  %v1659 = vunpack.c.h.b16 %v198
  %v1660 = vunpack.c.l.b16 %v199
  %v1661 = vunpack.c.h.b16 %v199
  %v1662 = vunpack.c.l.b16 %v200
  %v1663 = vunpack.c.h.b16 %v200
  %v1664 = vunpack.c.l.b16 %v201
  %v1665 = vunpack.c.h.b16 %v201
  %v1666 = vunpack.c.l.b16 %v202
  %v1667 = vunpack.c.h.b16 %v202
  %v1668 = vunpack.c.l.b16 %v203
  %v1669 = vunpack.c.h.b16 %v203
  %v1670 = vunpack.c.l.b16 %v204
  %v1671 = vunpack.c.h.b16 %v204
  %v1672 = vunpack.c.l.b16 %v205
  %v1673 = vunpack.c.h.b16 %v205
  %v1674 = vunpack.c.l.b16 %v206
  %v1675 = vunpack.c.h.b16 %v206
  %v1676 = vunpack.c.l.b16 %v207
  %v1677 = vunpack.c.h.b16 %v207
  %v1678 = vunpack.c.l.b16 %v208
  %v1679 = vunpack.c.h.b16 %v208
  %v1680 = vunpack.c.l.b16 %v209
  %v1681 = vunpack.c.h.b16 %v209
  %v1682 = vunpack.c.l.b16 %v210
  %v1683 = vunpack.c.h.b16 %v210
  %v1684 = vunpack.c.l.b16 %v211
  %v1685 = vunpack.c.h.b16 %v211
  %v1686 = vunpack.c.l.b16 %v212
  %v1687 = vunpack.c.h.b16 %v212
  %v1688 = vunpack.c.l.b16 %v213
  %v1689 = vunpack.c.h.b16 %v213
  %v1690 = vunpack.c.l.b16 %v214
  %v1691 = vunpack.c.h.b16 %v214
  %v1692 = vunpack.c.l.b16 %v215
  %v1693 = vunpack.c.h.b16 %v215
  %v1694 = vunpack.c.l.b16 %v216
  %v1695 = vunpack.c.h.b16 %v216
  %v1696 = vunpack.c.l.b16 %v217
  %v1697 = vunpack.c.h.b16 %v217
  %v1698 = vunpack.c.l.b16 %v218
  %v1699 = vunpack.c.h.b16 %v218
  %v1700 = vunpack.c.l.b16 %v219
  %v1701 = vunpack.c.h.b16 %v219
  %v1702 = vunpack.c.l.b16 %v220
  %v1703 = vunpack.c.h.b16 %v220
  %v1704 = vunpack.c.l.b16 %v221
  %v1705 = vunpack.c.h.b16 %v221
  %v1706 = vunpack.c.l.b16 %v222
  %v1707 = vunpack.c.h.b16 %v222
  %v1708 = vunpack.c.l.b16 %v223
  %v1709 = vunpack.c.h.b16 %v223
  %v1710 = vunpack.c.l.b16 %v224
  %v1711 = vunpack.c.h.b16 %v224
  %v1712 = vunpack.c.l.b16 %v225
  %v1713 = vunpack.c.h.b16 %v225
  %v1714 = vunpack.c.l.b16 %v226
  %v1715 = vunpack.c.h.b16 %v226
  %v1716 = vunpack.c.l.b16 %v227
  %v1717 = vunpack.c.h.b16 %v227
  %v1718 = vunpack.c.l.b16 %v228
  %v1719 = vunpack.c.h.b16 %v228
  %v1720 = vunpack.c.l.b16 %v229
  %v1721 = vunpack.c.h.b16 %v229
  %v1722 = vunpack.c.l.b16 %v230
  %v1723 = vunpack.c.h.b16 %v230
  %v1724 = vunpack.c.l.b16 %v231
  %v1725 = vunpack.c.h.b16 %v231
  %v1726 = vunpack.c.l.b16 %v232
  %v1727 = vunpack.c.h.b16 %v232
  %v1728 = vunpack.c.l.b16 %v233
  %v1729 = vunpack.c.h.b16 %v233
  %v1730 = vunpack.c.l.b16 %v234
  %v1731 = vunpack.c.h.b16 %v234
  %v1732 = vunpack.c.l.b16 %v235
  %v1733 = vunpack.c.h.b16 %v235
  %v1734 = vunpack.c.l.b16 %v236
  %v1735 = vunpack.c.h.b16 %v236
  %v1736 = vunpack.c.l.b16 %v237
  %v1737 = vunpack.c.h.b16 %v237
  %v1738 = vunpack.c.l.b16 %v238
  %v1739 = vunpack.c.h.b16 %v238
  %v1740 = vunpack.c.l.b16 %v239
  %v1741 = vunpack.c.h.b16 %v239
  %v1742 = vunpack.c.l.b16 %v240
  %v1743 = vunpack.c.h.b16 %v240
  %v1744 = vunpack.c.l.b16 %v241
  %v1745 = vunpack.c.h.b16 %v241
  %v1746 = vunpack.c.l.b16 %v242
  %v1747 = vunpack.c.h.b16 %v242
  %v1748 = vunpack.c.l.b16 %v243
  %v1749 = vunpack.c.h.b16 %v243
  %v1750 = vunpack.c.l.b16 %v244
  %v1751 = vunpack.c.h.b16 %v244
  %v1752 = vunpack.c.l.b16 %v245
  %v1753 = vunpack.c.h.b16 %v245
  %v1754 = vunpack.c.l.b16 %v246
  %v1755 = vunpack.c.h.b16 %v246
  %v1756 = vunpack.c.l.b16 %v247
  %v1757 = vunpack.c.h.b16 %v247
  %v1758 = vunpack.c.l.b16 %v248
  %v1759 = vunpack.c.h.b16 %v248
  %v1760 = vunpack.c.l.b16 %v249
  %v1761 = vunpack.c.h.b16 %v249
  %v1762 = vunpack.c.l.b16 %v250
  %v1763 = vunpack.c.h.b16 %v250
  %v1764 = vunpack.c.l.b16 %v251
  %v1765 = vunpack.c.h.b16 %v251
  %v1766 = vunpack.c.l.b16 %v252
  %v1767 = vunpack.c.h.b16 %v252
  %v1768 = vunpack.c.l.b16 %v253
  %v1769 = vunpack.c.h.b16 %v253
  %v1770 = vunpack.c.l.b16 %v254
  %v1771 = vunpack.c.h.b16 %v254
  %v1772 = vunpack.c.l.b16 %v255
  %v1773 = vunpack.c.h.b16 %v255
  %v1774 = vunpack.c.l.b16 %v256
  %v1775 = vunpack.c.h.b16 %v256
  %v1776 = vunpack.c.l.b16 %v257
  %v1777 = vunpack.c.h.b16 %v257
  %v1778 = vunpack.c.l.b16 %v258
  %v1779 = vunpack.c.h.b16 %v258
  %v1780 = vunpack.c.l.b16 %v259
  %v1781 = vunpack.c.h.b16 %v259
  %v1782 = vunpack.c.l.b16 %v260
  %v1783 = vunpack.c.h.b16 %v260
  %v1784 = vunpack.c.l.b16 %v261
  %v1785 = vunpack.c.h.b16 %v261
  %v1786 = vunpack.c.l.b16 %v262
  %v1787 = vunpack.c.h.b16 %v262
  %v1788 = vunpack.c.l.b16 %v263
  %v1789 = vunpack.c.h.b16 %v263
  %v1790 = vunpack.c.l.b16 %v264
  %v1791 = vunpack.c.h.b16 %v264
  %v1792 = vunpack.c.l.b16 %v265
  %v1793 = vunpack.c.h.b16 %v265
  %v1794 = vunpack.c.l.b16 %v266
  %v1795 = vunpack.c.h.b16 %v266
  %v1796 = vunpack.c.l.b16 %v267
  %v1797 = vunpack.c.h.b16 %v267
  %v1798 = vunpack.c.l.b16 %v268
  %v1799 = vunpack.c.h.b16 %v268
  %v1800 = vunpack.c.l.b16 %v269
  %v1801 = vunpack.c.h.b16 %v269
  %v1802 = vunpack.c.l.b16 %v270
  %v1803 = vunpack.c.h.b16 %v270
  %v1804 = vunpack.c.l.b16 %v271
  %v1805 = vunpack.c.h.b16 %v271
  %v1806 = vunpack.c.l.b16 %v272
  %v1807 = vunpack.c.h.b16 %v272
  %v1808 = vunpack.c.l.b16 %v273
  %v1809 = vunpack.c.h.b16 %v273
  %v1810 = vunpack.c.l.b16 %v274
  %v1811 = vunpack.c.h.b16 %v274
  %v1812 = vunpack.c.l.b16 %v275
  %v1813 = vunpack.c.h.b16 %v275
  %v1814 = vunpack.c.l.b16 %v276
  %v1815 = vunpack.c.h.b16 %v276
  %v1816 = vunpack.c.l.b16 %v277
  %v1817 = vunpack.c.h.b16 %v277
  %v1818 = vunpack.c.l.b16 %v278
  %v1819 = vunpack.c.h.b16 %v278
  %v1820 = vunpack.c.l.b16 %v279
  %v1821 = vunpack.c.h.b16 %v279
  %v1822 = vunpack.c.l.b16 %v280
  %v1823 = vunpack.c.h.b16 %v280
  %v1824 = vunpack.c.l.b16 %v281
  %v1825 = vunpack.c.h.b16 %v281
  %v1826 = vunpack.c.l.b16 %v282
  %v1827 = vunpack.c.h.b16 %v282
  %v1828 = vunpack.c.l.b16 %v283
  %v1829 = vunpack.c.h.b16 %v283
  %v1830 = vunpack.c.l.b16 %v284
  %v1831 = vunpack.c.h.b16 %v284
  %v1832 = vunpack.c.l.b16 %v285
  %v1833 = vunpack.c.h.b16 %v285
  %v1834 = vunpack.c.l.b16 %v286
  %v1835 = vunpack.c.h.b16 %v286
  %v1836 = vunpack.c.l.b16 %v287
  %v1837 = vunpack.c.h.b16 %v287
  %v1838 = vunpack.c.l.b16 %v288
  %v1839 = vunpack.c.h.b16 %v288
  %v1840 = vunpack.c.l.b16 %v289
  %v1841 = vunpack.c.h.b16 %v289
  %v1842 = vunpack.c.l.b16 %v290
  %v1843 = vunpack.c.h.b16 %v290
  %v1844 = vunpack.c.l.b16 %v291
  %v1845 = vunpack.c.h.b16 %v291
  %v1846 = vunpack.c.l.b16 %v292
  %v1847 = vunpack.c.h.b16 %v292
  %v1848 = vunpack.c.l.b16 %v293
  %v1849 = vunpack.c.h.b16 %v293
  %v1850 = vunpack.c.l.b16 %v294
  %v1851 = vunpack.c.h.b16 %v294
  %v1852 = vunpack.c.l.b16 %v295
  %v1853 = vunpack.c.h.b16 %v295
  %v1854 = vunpack.c.l.b16 %v296
  %v1855 = vunpack.c.h.b16 %v296
  %v1856 = vunpack.c.l.b16 %v297
  %v1857 = vunpack.c.h.b16 %v297
  %v1858 = vunpack.c.l.b16 %v298
  %v1859 = vunpack.c.h.b16 %v298
  %v1860 = vunpack.c.l.b16 %v299
  %v1861 = vunpack.c.h.b16 %v299
  %v1862 = vunpack.c.l.b16 %v300
  %v1863 = vunpack.c.h.b16 %v300
  %v1864 = vunpack.c.l.b16 %v301
  %v1865 = vunpack.c.h.b16 %v301
  %v1866 = vunpack.c.l.b16 %v302
  %v1867 = vunpack.c.h.b16 %v302
  %v1868 = vunpack.c.l.b16 %v303
  %v1869 = vunpack.c.h.b16 %v303
  %v1870 = vunpack.c.l.b16 %v304
  %v1871 = vunpack.c.h.b16 %v304
  %v1872 = vunpack.c.l.b16 %v305
  %v1873 = vunpack.c.h.b16 %v305
  %v1874 = vunpack.c.l.b16 %v306
  %v1875 = vunpack.c.h.b16 %v306
  %v1876 = vunpack.c.l.b16 %v307
  %v1877 = vunpack.c.h.b16 %v307
  %v1878 = vunpack.c.l.b16 %v308
  %v1879 = vunpack.c.h.b16 %v308
  %v1880 = vunpack.c.l.b16 %v309
  %v1881 = vunpack.c.h.b16 %v309
  %v1882 = vunpack.c.l.b16 %v310
  %v1883 = vunpack.c.h.b16 %v310
  %v1884 = vunpack.c.l.b16 %v311
  %v1885 = vunpack.c.h.b16 %v311
  %v1886 = vunpack.c.l.b16 %v312
  %v1887 = vunpack.c.h.b16 %v312
  %v1888 = vunpack.c.l.b16 %v313
  %v1889 = vunpack.c.h.b16 %v313
  %v1890 = vunpack.c.l.b16 %v314
  %v1891 = vunpack.c.h.b16 %v314
  %v1892 = vunpack.c.l.b16 %v315
  %v1893 = vunpack.c.h.b16 %v315
  %v1894 = vunpack.c.l.b16 %v316
  %v1895 = vunpack.c.h.b16 %v316
  %v1896 = vunpack.c.l.b16 %v317
  %v1897 = vunpack.c.h.b16 %v317
  %v1898 = vunpack.c.l.b16 %v318
  %v1899 = vunpack.c.h.b16 %v318
  %v1900 = vunpack.c.l.b16 %v319
  %v1901 = vunpack.c.h.b16 %v319
  %v1902 = vunpack.c.l.b16 %v320
  %v1903 = vunpack.c.h.b16 %v320
  %v1904 = vunpack.c.l.b16 %v321
  %v1905 = vunpack.c.h.b16 %v321
  %v1906 = vunpack.c.l.b16 %v322
  %v1907 = vunpack.c.h.b16 %v322
  %v1908 = vunpack.c.l.b16 %v323
  %v1909 = vunpack.c.h.b16 %v323
  %v1910 = vunpack.c.l.b16 %v324
  %v1911 = vunpack.c.h.b16 %v324
  %v1912 = vunpack.c.l.b16 %v325
  %v1913 = vunpack.c.h.b16 %v325
  %v1914 = vunpack.c.l.b16 %v326
  %v1915 = vunpack.c.h.b16 %v326
  %v1916 = vunpack.c.l.b16 %v327
  %v1917 = vunpack.c.h.b16 %v327
  %v1918 = vunpack.c.l.b16 %v328
  %v1919 = vunpack.c.h.b16 %v328
  %v1920 = vunpack.c.l.b16 %v329
  %v1921 = vunpack.c.h.b16 %v329
  %v1922 = vunpack.c.l.b16 %v330
  %v1923 = vunpack.c.h.b16 %v330
  %v1924 = vunpack.c.l.b16 %v331
  %v1925 = vunpack.c.h.b16 %v331
  %v1926 = vunpack.c.l.b16 %v332
  %v1927 = vunpack.c.h.b16 %v332
  %v1928 = vunpack.c.l.b16 %v333
  %v1929 = vunpack.c.h.b16 %v333
  %v1930 = vunpack.c.l.b16 %v334
  %v1931 = vunpack.c.h.b16 %v334
  %v1932 = vunpack.c.l.b16 %v335
  %v1933 = vunpack.c.h.b16 %v335
  %v1934 = vunpack.c.l.b16 %v336
  %v1935 = vunpack.c.h.b16 %v336
  %v1936 = vunpack.c.l.b16 %v337
  %v1937 = vunpack.c.h.b16 %v337
  %v1938 = vunpack.c.l.b16 %v338
  %v1939 = vunpack.c.h.b16 %v338
  %v1940 = vunpack.c.l.b16 %v339
  %v1941 = vunpack.c.h.b16 %v339
  %v1942 = vunpack.c.l.b16 %v340
  %v1943 = vunpack.c.h.b16 %v340
  %v1944 = vunpack.c.l.b16 %v341
  %v1945 = vunpack.c.h.b16 %v341
  %v1946 = vunpack.c.l.b16 %v342
  %v1947 = vunpack.c.h.b16 %v342
  %v1948 = vunpack.c.l.b16 %v343
  %v1949 = vunpack.c.h.b16 %v343
  %v1950 = vunpack.c.l.b16 %v344
  %v1951 = vunpack.c.h.b16 %v344
  %v1952 = vunpack.c.l.b16 %v345
  %v1953 = vunpack.c.h.b16 %v345
  %v1954 = vunpack.c.l.b16 %v346
  %v1955 = vunpack.c.h.b16 %v346
  %v1956 = vunpack.c.l.b16 %v347
  %v1957 = vunpack.c.h.b16 %v347
  %v1958 = vunpack.c.l.b16 %v348
  %v1959 = vunpack.c.h.b16 %v348
  %v1960 = vunpack.c.l.b16 %v349
  %v1961 = vunpack.c.h.b16 %v349
  %v1962 = vunpack.c.l.b16 %v350
  %v1963 = vunpack.c.h.b16 %v350
  %v1964 = vunpack.c.l.b16 %v351
  %v1965 = vunpack.c.h.b16 %v351
  %v1966 = vunpack.c.l.b16 %v352
  %v1967 = vunpack.c.h.b16 %v352
  %v1968 = vunpack.c.l.b16 %v353
  %v1969 = vunpack.c.h.b16 %v353
  %v1970 = vunpack.c.l.b16 %v354
  %v1971 = vunpack.c.h.b16 %v354
  %v1972 = vunpack.c.l.b16 %v355
  %v1973 = vunpack.c.h.b16 %v355
  %v1974 = vunpack.c.l.b16 %v356
  %v1975 = vunpack.c.h.b16 %v356
  %v1976 = vunpack.c.l.b16 %v357
  %v1977 = vunpack.c.h.b16 %v357
  %v1978 = vunpack.c.l.b16 %v358
  %v1979 = vunpack.c.h.b16 %v358
  %v1980 = vunpack.c.l.b16 %v359
  %v1981 = vunpack.c.h.b16 %v359
  %v1982 = vunpack.c.l.b16 %v360
  %v1983 = vunpack.c.h.b16 %v360
  %v1984 = vunpack.c.l.b16 %v361
  %v1985 = vunpack.c.h.b16 %v361
  %v1986 = vunpack.c.l.b16 %v362
  %v1987 = vunpack.c.h.b16 %v362
  %v1988 = vunpack.c.l.b16 %v363
  %v1989 = vunpack.c.h.b16 %v363
  %v1990 = vunpack.c.l.b16 %v364
  %v1991 = vunpack.c.h.b16 %v364
  %v1992 = vunpack.c.l.b16 %v365
  %v1993 = vunpack.c.h.b16 %v365
  %v1994 = vunpack.c.l.b16 %v366
  %v1995 = vunpack.c.h.b16 %v366
  %v1996 = vunpack.c.l.b16 %v367
  %v1997 = vunpack.c.h.b16 %v367
  %v1998 = vunpack.c.l.b16 %v368
  %v1999 = vunpack.c.h.b16 %v368
  %v2000 = vunpack.c.l.b16 %v369
  %v2001 = vunpack.c.h.b16 %v369
  %v2002 = vunpack.c.l.b16 %v370
  %v2003 = vunpack.c.h.b16 %v370
  %v2004 = vunpack.c.l.b16 %v371
  %v2005 = vunpack.c.h.b16 %v371
  %v2006 = vunpack.c.l.b16 %v372
  %v2007 = vunpack.c.h.b16 %v372
  %v2008 = vunpack.c.l.b16 %v373
  %v2009 = vunpack.c.h.b16 %v373
  %v2010 = vunpack.c.l.b16 %v374
  %v2011 = vunpack.c.h.b16 %v374
  %v2012 = vunpack.c.l.b16 %v375
  %v2013 = vunpack.c.h.b16 %v375
  %v2014 = vunpack.c.l.b16 %v376
  %v2015 = vunpack.c.h.b16 %v376
  %v2016 = vunpack.c.l.b16 %v377
  %v2017 = vunpack.c.h.b16 %v377
  %v2018 = vunpack.c.l.b16 %v378
  %v2019 = vunpack.c.h.b16 %v378
  %v2020 = vunpack.c.l.b16 %v379
  %v2021 = vunpack.c.h.b16 %v379
  %v2022 = vunpack.c.l.b16 %v380
  %v2023 = vunpack.c.h.b16 %v380
  %v2024 = vunpack.c.l.b16 %v381
  %v2025 = vunpack.c.h.b16 %v381
  %v2026 = vunpack.c.l.b16 %v382
  %v2027 = vunpack.c.h.b16 %v382
  %v2028 = vunpack.c.l.b16 %v383
  %v2029 = vunpack.c.h.b16 %v383
  %v2030 = vunpack.c.l.b16 %v384
  %v2031 = vunpack.c.h.b16 %v384
  %v2032 = vunpack.c.l.b16 %v385
  %v2033 = vunpack.c.h.b16 %v385
  %v2034 = vunpack.c.l.b16 %v386
  %v2035 = vunpack.c.h.b16 %v386
  %v2036 = vunpack.c.l.b16 %v387
  %v2037 = vunpack.c.h.b16 %v387
  %v2038 = vunpack.c.l.b16 %v388
  %v2039 = vunpack.c.h.b16 %v388
  %v2040 = vunpack.c.l.b16 %v389
  %v2041 = vunpack.c.h.b16 %v389
  %v2042 = vunpack.c.l.b16 %v390
  %v2043 = vunpack.c.h.b16 %v390
  %v2044 = vunpack.c.l.b16 %v391
  %v2045 = vunpack.c.h.b16 %v391
  %v2046 = vunpack.c.l.b16 %v392
  %v2047 = vunpack.c.h.b16 %v392
  %v2048 = vunpack.c.l.b16 %v393
  %v2049 = vunpack.c.h.b16 %v393
  %v2050 = vunpack.c.l.b16 %v394
  %v2051 = vunpack.c.h.b16 %v394
  %v2052 = vunpack.c.l.b16 %v395
  %v2053 = vunpack.c.h.b16 %v395
  %v2054 = vunpack.c.l.b16 %v396
  %v2055 = vunpack.c.h.b16 %v396
  %v2056 = vunpack.c.l.b16 %v397
  %v2057 = vunpack.c.h.b16 %v397
  %v2058 = vunpack.c.l.b16 %v398
  %v2059 = vunpack.c.h.b16 %v398
  %v2060 = vunpack.c.l.b16 %v399
  %v2061 = vunpack.c.h.b16 %v399
  %v2062 = vunpack.c.l.b16 %v400
  %v2063 = vunpack.c.h.b16 %v400
  %v2064 = vunpack.c.l.b16 %v401
  %v2065 = vunpack.c.h.b16 %v401
  %v2066 = vunpack.c.l.b16 %v402
  %v2067 = vunpack.c.h.b16 %v402
  %v2068 = vunpack.c.l.b16 %v403
  %v2069 = vunpack.c.h.b16 %v403
  %v2070 = vunpack.c.l.b16 %v404
  %v2071 = vunpack.c.h.b16 %v404
  %v2072 = vunpack.c.l.b16 %v405
  %v2073 = vunpack.c.h.b16 %v405
  %v2074 = vunpack.c.l.b16 %v406
  %v2075 = vunpack.c.h.b16 %v406
  %v2076 = vunpack.c.l.b16 %v407
  %v2077 = vunpack.c.h.b16 %v407
  %v2078 = vunpack.c.l.b16 %v408
  %v2079 = vunpack.c.h.b16 %v408
  %v2080 = vunpack.c.l.b16 %v409
  %v2081 = vunpack.c.h.b16 %v409
  %v2082 = vunpack.c.l.b16 %v410
  %v2083 = vunpack.c.h.b16 %v410
  %v2084 = vunpack.c.l.b16 %v411
  %v2085 = vunpack.c.h.b16 %v411
  %v2086 = vunpack.c.l.b16 %v412
  %v2087 = vunpack.c.h.b16 %v412
  %v2088 = vunpack.c.l.b16 %v413
  %v2089 = vunpack.c.h.b16 %v413
  %v2090 = vunpack.c.l.b16 %v414
  %v2091 = vunpack.c.h.b16 %v414
  %v2092 = vunpack.c.l.b16 %v415
  %v2093 = vunpack.c.h.b16 %v415
  %v2094 = vunpack.c.l.b16 %v416
  %v2095 = vunpack.c.h.b16 %v416
  %v2096 = vunpack.c.l.b16 %v417
  %v2097 = vunpack.c.h.b16 %v417
  %v2098 = vunpack.c.l.b16 %v418
  %v2099 = vunpack.c.h.b16 %v418
  %v2100 = vunpack.c.l.b16 %v419
  %v2101 = vunpack.c.h.b16 %v419
  %v2102 = vunpack.c.l.b16 %v420
  %v2103 = vunpack.c.h.b16 %v420
  %v2104 = vunpack.c.l.b16 %v421
  %v2105 = vunpack.c.h.b16 %v421
  %v2106 = vunpack.c.l.b16 %v422
  %v2107 = vunpack.c.h.b16 %v422
  %v2108 = vunpack.c.l.b16 %v423
  %v2109 = vunpack.c.h.b16 %v423
  %v2110 = vunpack.c.l.b16 %v424
  %v2111 = vunpack.c.h.b16 %v424
  %v2112 = vunpack.c.l.b16 %v425
  %v2113 = vunpack.c.h.b16 %v425
  %v2114 = vunpack.c.l.b16 %v426
  %v2115 = vunpack.c.h.b16 %v426
  %v2116 = vunpack.c.l.b16 %v427
  %v2117 = vunpack.c.h.b16 %v427
  %v2118 = vunpack.c.l.b16 %v428
  %v2119 = vunpack.c.h.b16 %v428
  %v2120 = vunpack.c.l.b16 %v429
  %v2121 = vunpack.c.h.b16 %v429
  %v2122 = vunpack.c.l.b16 %v430
  %v2123 = vunpack.c.h.b16 %v430
  %v2124 = vunpack.c.l.b16 %v431
  %v2125 = vunpack.c.h.b16 %v431
  %v2126 = vunpack.c.l.b16 %v432
  %v2127 = vunpack.c.h.b16 %v432
  %v2128 = vunpack.c.l.b16 %v433
  %v2129 = vunpack.c.h.b16 %v433
  %v2130 = vunpack.c.l.b16 %v434
  %v2131 = vunpack.c.h.b16 %v434
  %v2132 = vunpack.c.l.b16 %v435
  %v2133 = vunpack.c.h.b16 %v435
  %v2134 = vunpack.c.l.b16 %v436
  %v2135 = vunpack.c.h.b16 %v436
  %v2136 = vunpack.c.l.b16 %v437
  %v2137 = vunpack.c.h.b16 %v437
  %v2138 = vunpack.c.l.b16 %v438
  %v2139 = vunpack.c.h.b16 %v438
  %v2140 = vunpack.c.l.b16 %v439
  %v2141 = vunpack.c.h.b16 %v439
  %v2142 = vunpack.c.l.b16 %v440
  %v2143 = vunpack.c.h.b16 %v440
  %v2144 = vunpack.c.l.b16 %v441
  %v2145 = vunpack.c.h.b16 %v441
  %v2146 = vunpack.c.l.b16 %v442
  %v2147 = vunpack.c.h.b16 %v442
  %v2148 = vunpack.c.l.b16 %v443
  %v2149 = vunpack.c.h.b16 %v443
  %v2150 = vunpack.c.l.b16 %v444
  %v2151 = vunpack.c.h.b16 %v444
  %v2152 = vunpack.c.l.b16 %v445
  %v2153 = vunpack.c.h.b16 %v445
  %v2154 = vunpack.c.l.b16 %v446
  %v2155 = vunpack.c.h.b16 %v446
  %v2156 = vunpack.c.l.b16 %v447
  %v2157 = vunpack.c.h.b16 %v447
  %v2158 = vunpack.c.l.b16 %v448
  %v2159 = vunpack.c.h.b16 %v448
  %v2160 = vunpack.c.l.b16 %v449
  %v2161 = vunpack.c.h.b16 %v449
  %v2162 = vunpack.c.l.b16 %v450
  %v2163 = vunpack.c.h.b16 %v450
  %v2164 = vunpack.c.l.b16 %v451
  %v2165 = vunpack.c.h.b16 %v451
  %v2166 = vunpack.c.l.b16 %v452
  %v2167 = vunpack.c.h.b16 %v452
  %v2168 = vunpack.c.l.b16 %v453
  %v2169 = vunpack.c.h.b16 %v453
  %v2170 = vunpack.c.l.b16 %v454
  %v2171 = vunpack.c.h.b16 %v454
  %v2172 = vunpack.c.l.b16 %v455
  %v2173 = vunpack.c.h.b16 %v455
  %v2174 = vunpack.c.l.b16 %v456
  %v2175 = vunpack.c.h.b16 %v456
  %v2176 = vunpack.c.l.b16 %v457
  %v2177 = vunpack.c.h.b16 %v457
  %v2178 = vunpack.c.l.b16 %v458
  %v2179 = vunpack.c.h.b16 %v458
  %v2180 = vunpack.c.l.b16 %v459
  %v2181 = vunpack.c.h.b16 %v459
  %v2182 = vunpack.c.l.b16 %v460
  %v2183 = vunpack.c.h.b16 %v460
  %v2184 = vunpack.c.l.b16 %v461
  %v2185 = vunpack.c.h.b16 %v461
  %v2186 = vunpack.c.l.b16 %v462
  %v2187 = vunpack.c.h.b16 %v462
  %v2188 = vunpack.c.l.b16 %v463
  %v2189 = vunpack.c.h.b16 %v463
  %v2190 = vunpack.c.l.b16 %v464
  %v2191 = vunpack.c.h.b16 %v464
  %v2192 = vunpack.c.l.b16 %v465
  %v2193 = vunpack.c.h.b16 %v465
  %v2194 = vunpack.c.l.b16 %v466
  %v2195 = vunpack.c.h.b16 %v466
  %v2196 = vunpack.c.l.b16 %v467
  %v2197 = vunpack.c.h.b16 %v467
  %v2198 = vunpack.c.l.b16 %v468
  %v2199 = vunpack.c.h.b16 %v468
  %v2200 = vunpack.c.l.b16 %v469
  %v2201 = vunpack.c.h.b16 %v469
  %v2202 = vunpack.c.l.b16 %v470
  %v2203 = vunpack.c.h.b16 %v470
  %v2204 = vunpack.c.l.b16 %v471
  %v2205 = vunpack.c.h.b16 %v471
  %v2206 = vunpack.c.l.b16 %v472
  %v2207 = vunpack.c.h.b16 %v472
  %v2208 = vunpack.c.l.b16 %v473
  %v2209 = vunpack.c.h.b16 %v473
  %v2210 = vunpack.c.l.b16 %v474
  %v2211 = vunpack.c.h.b16 %v474
  %v2212 = vunpack.c.l.b16 %v475
  %v2213 = vunpack.c.h.b16 %v475
  %v2214 = vunpack.c.l.b16 %v476
  %v2215 = vunpack.c.h.b16 %v476
  %v2216 = vunpack.c.l.b16 %v477
  %v2217 = vunpack.c.h.b16 %v477
  %v2218 = vunpack.c.l.b16 %v478
  %v2219 = vunpack.c.h.b16 %v478
  %v2220 = vunpack.c.l.b16 %v479
  %v2221 = vunpack.c.h.b16 %v479
  %v2222 = vunpack.c.l.b16 %v480
  %v2223 = vunpack.c.h.b16 %v480
  %v2224 = vunpack.c.l.b16 %v481
  %v2225 = vunpack.c.h.b16 %v481
  %v2226 = vunpack.c.l.b16 %v482
  %v2227 = vunpack.c.h.b16 %v482
  %v2228 = vunpack.c.l.b16 %v483
  %v2229 = vunpack.c.h.b16 %v483
  %v2230 = vunpack.c.l.b16 %v484
  %v2231 = vunpack.c.h.b16 %v484
  %v2232 = vunpack.c.l.b16 %v485
  %v2233 = vunpack.c.h.b16 %v485
  %v2234 = vunpack.c.l.b16 %v486
  %v2235 = vunpack.c.h.b16 %v486
  %v2236 = vunpack.c.l.b16 %v487
  %v2237 = vunpack.c.h.b16 %v487
  %v2238 = vunpack.c.l.b16 %v488
  %v2239 = vunpack.c.h.b16 %v488
  %v2240 = vunpack.c.l.b16 %v489
  %v2241 = vunpack.c.h.b16 %v489
  %v2242 = vunpack.c.l.b16 %v490
  %v2243 = vunpack.c.h.b16 %v490
  %v2244 = vunpack.c.l.b16 %v491
  %v2245 = vunpack.c.h.b16 %v491
  %v2246 = vunpack.c.l.b16 %v492
  %v2247 = vunpack.c.h.b16 %v492
  %v2248 = vunpack.c.l.b16 %v493
  %v2249 = vunpack.c.h.b16 %v493
  %v2250 = vunpack.c.l.b16 %v494
  %v2251 = vunpack.c.h.b16 %v494
  %v2252 = vunpack.c.l.b16 %v495
  %v2253 = vunpack.c.h.b16 %v495
  %v2254 = vunpack.c.l.b16 %v496
  %v2255 = vunpack.c.h.b16 %v496
  %v2256 = vunpack.c.l.b16 %v497
  %v2257 = vunpack.c.h.b16 %v497
  %v2258 = vunpack.c.l.b16 %v498
  %v2259 = vunpack.c.h.b16 %v498
  %v2260 = vunpack.c.l.b16 %v499
  %v2261 = vunpack.c.h.b16 %v499
  %v2262 = vunpack.c.l.b16 %v500
  %v2263 = vunpack.c.h.b16 %v500
  %v2264 = vunpack.c.l.b16 %v501
  %v2265 = vunpack.c.h.b16 %v501
  %v2266 = vunpack.c.l.b16 %v502
  %v2267 = vunpack.c.h.b16 %v502
  %v2268 = vunpack.c.l.b16 %v503
  %v2269 = vunpack.c.h.b16 %v503
  %v2270 = vunpack.c.l.b16 %v504
  %v2271 = vunpack.c.h.b16 %v504
  %v2272 = vunpack.c.l.b16 %v505
  %v2273 = vunpack.c.h.b16 %v505
  %v2274 = vunpack.c.l.b16 %v506
  %v2275 = vunpack.c.h.b16 %v506
  %v2276 = vunpack.c.l.b16 %v507
  %v2277 = vunpack.c.h.b16 %v507
  %v2278 = vunpack.c.l.b16 %v508
  %v2279 = vunpack.c.h.b16 %v508
  %v2280 = vunpack.c.l.b16 %v509
  %v2281 = vunpack.c.h.b16 %v509
  %v2282 = vunpack.c.l.b16 %v510
  %v2283 = vunpack.c.h.b16 %v510
  %v2284 = vunpack.c.l.b16 %v511
  %v2285 = vunpack.c.h.b16 %v511
  %v2286 = vunpack.c.l.b16 %v512
  %v2287 = vunpack.c.h.b16 %v512
  %v2288 = vunpack.c.l.b16 %v513
  %v2289 = vunpack.c.h.b16 %v513
  %v2290 = vunpack.c.l.b16 %v514
  %v2291 = vunpack.c.h.b16 %v514
  %v2292 = vunpack.c.l.b16 %v515
  %v2293 = vunpack.c.h.b16 %v515
  %v2294 = vunpack.c.l.b16 %v516
  %v2295 = vunpack.c.h.b16 %v516
  %v2296 = vunpack.c.l.b16 %v517
  %v2297 = vunpack.c.h.b16 %v517
  %v2298 = vunpack.c.l.b16 %v518
  %v2299 = vunpack.c.h.b16 %v518
  %v2300 = vunpack.c.l.b16 %v519
  %v2301 = vunpack.c.h.b16 %v519
  %v2302 = vunpack.c.l.b16 %v520
  %v2303 = vunpack.c.h.b16 %v520
  %v2304 = vunpack.c.l.b16 %v521
  %v2305 = vunpack.c.h.b16 %v521
  %v2306 = vunpack.c.l.b16 %v522
  %v2307 = vunpack.c.h.b16 %v522
  %v2308 = vunpack.c.l.b16 %v523
  %v2309 = vunpack.c.h.b16 %v523
  %v2310 = vunpack.c.l.b16 %v524
  %v2311 = vunpack.c.h.b16 %v524
  %v2312 = vunpack.c.l.b16 %v525
  %v2313 = vunpack.c.h.b16 %v525
  %v2314 = vunpack.c.l.b16 %v526
  %v2315 = vunpack.c.h.b16 %v526
  %v2316 = vunpack.c.l.b16 %v527
  %v2317 = vunpack.c.h.b16 %v527
  %v2318 = vunpack.c.l.b16 %v528
  %v2319 = vunpack.c.h.b16 %v528
  %v2320 = vunpack.c.l.b16 %v529
  %v2321 = vunpack.c.h.b16 %v529
  %v2322 = vpack.c.b16 %v1314, %v1298
  %v2323 = vpack.c.b16 %v1315, %v1299
  %v2324 = vpack.c.b16 %v1316, %v1300
  %v2325 = vpack.c.b16 %v1317, %v1301
  %v2326 = vpack.c.b16 %v1318, %v1302
  %v2327 = vpack.c.b16 %v1319, %v1303
  %v2328 = vpack.c.b16 %v1320, %v1304
  %v2329 = vpack.c.b16 %v1321, %v1305
  %v2330 = vpack.c.b16 %v1322, %v1306
  %v2331 = vpack.c.b16 %v1323, %v1307
  %v2332 = vpack.c.b16 %v1324, %v1308
  %v2333 = vpack.c.b16 %v1325, %v1309
  %v2334 = vpack.c.b16 %v1326, %v1310
  %v2335 = vpack.c.b16 %v1327, %v1311
  %v2336 = vpack.c.b16 %v1328, %v1312
  %v2337 = vpack.c.b16 %v1329, %v1313
  %v2338 = vpack.c.b16 %v1346, %v1330
  %v2339 = vpack.c.b16 %v1347, %v1331
  %v2340 = vpack.c.b16 %v1348, %v1332
  %v2341 = vpack.c.b16 %v1349, %v1333
  %v2342 = vpack.c.b16 %v1350, %v1334
  %v2343 = vpack.c.b16 %v1351, %v1335
  %v2344 = vpack.c.b16 %v1352, %v1336
  %v2345 = vpack.c.b16 %v1353, %v1337
  %v2346 = vpack.c.b16 %v1354, %v1338
  %v2347 = vpack.c.b16 %v1355, %v1339
  %v2348 = vpack.c.b16 %v1356, %v1340
  %v2349 = vpack.c.b16 %v1357, %v1341
  %v2350 = vpack.c.b16 %v1358, %v1342
  %v2351 = vpack.c.b16 %v1359, %v1343
  %v2352 = vpack.c.b16 %v1360, %v1344
  %v2353 = vpack.c.b16 %v1361, %v1345
  %v2354 = vpack.c.b16 %v1378, %v1362
  %v2355 = vpack.c.b16 %v1379, %v1363
  %v2356 = vpack.c.b16 %v1380, %v1364
  %v2357 = vpack.c.b16 %v1381, %v1365
  %v2358 = vpack.c.b16 %v1382, %v1366
  %v2359 = vpack.c.b16 %v1383, %v1367
  %v2360 = vpack.c.b16 %v1384, %v1368
  %v2361 = vpack.c.b16 %v1385, %v1369
  %v2362 = vpack.c.b16 %v1386, %v1370
  %v2363 = vpack.c.b16 %v1387, %v1371
  %v2364 = vpack.c.b16 %v1388, %v1372
  %v2365 = vpack.c.b16 %v1389, %v1373
  %v2366 = vpack.c.b16 %v1390, %v1374
  %v2367 = vpack.c.b16 %v1391, %v1375
  %v2368 = vpack.c.b16 %v1392, %v1376
  %v2369 = vpack.c.b16 %v1393, %v1377
  %v2370 = vpack.c.b16 %v1410, %v1394
  %v2371 = vpack.c.b16 %v1411, %v1395
  %v2372 = vpack.c.b16 %v1412, %v1396
  %v2373 = vpack.c.b16 %v1413, %v1397
  %v2374 = vpack.c.b16 %v1414, %v1398
  %v2375 = vpack.c.b16 %v1415, %v1399
  %v2376 = vpack.c.b16 %v1416, %v1400
  %v2377 = vpack.c.b16 %v1417, %v1401
  %v2378 = vpack.c.b16 %v1418, %v1402
  %v2379 = vpack.c.b16 %v1419, %v1403
  %v2380 = vpack.c.b16 %v1420, %v1404
  %v2381 = vpack.c.b16 %v1421, %v1405
  %v2382 = vpack.c.b16 %v1422, %v1406
  %v2383 = vpack.c.b16 %v1423, %v1407
  %v2384 = vpack.c.b16 %v1424, %v1408
  %v2385 = vpack.c.b16 %v1425, %v1409
  %v2386 = vpack.c.b16 %v1442, %v1426
  %v2387 = vpack.c.b16 %v1443, %v1427
  %v2388 = vpack.c.b16 %v1444, %v1428
  %v2389 = vpack.c.b16 %v1445, %v1429
  %v2390 = vpack.c.b16 %v1446, %v1430
  %v2391 = vpack.c.b16 %v1447, %v1431
  %v2392 = vpack.c.b16 %v1448, %v1432
  %v2393 = vpack.c.b16 %v1449, %v1433
  %v2394 = vpack.c.b16 %v1450, %v1434
  %v2395 = vpack.c.b16 %v1451, %v1435
  %v2396 = vpack.c.b16 %v1452, %v1436
  %v2397 = vpack.c.b16 %v1453, %v1437
  %v2398 = vpack.c.b16 %v1454, %v1438
  %v2399 = vpack.c.b16 %v1455, %v1439
  %v2400 = vpack.c.b16 %v1456, %v1440
  %v2401 = vpack.c.b16 %v1457, %v1441
  %v2402 = vpack.c.b16 %v1474, %v1458
  %v2403 = vpack.c.b16 %v1475, %v1459
  %v2404 = vpack.c.b16 %v1476, %v1460
  %v2405 = vpack.c.b16 %v1477, %v1461
  %v2406 = vpack.c.b16 %v1478, %v1462
  %v2407 = vpack.c.b16 %v1479, %v1463
  %v2408 = vpack.c.b16 %v1480, %v1464
  %v2409 = vpack.c.b16 %v1481, %v1465
  %v2410 = vpack.c.b16 %v1482, %v1466
  %v2411 = vpack.c.b16 %v1483, %v1467
  %v2412 = vpack.c.b16 %v1484, %v1468
  %v2413 = vpack.c.b16 %v1485, %v1469
  %v2414 = vpack.c.b16 %v1486, %v1470
  %v2415 = vpack.c.b16 %v1487, %v1471
  %v2416 = vpack.c.b16 %v1488, %v1472
  %v2417 = vpack.c.b16 %v1489, %v1473
  %v2418 = vpack.c.b16 %v1506, %v1490
  %v2419 = vpack.c.b16 %v1507, %v1491
  %v2420 = vpack.c.b16 %v1508, %v1492
  %v2421 = vpack.c.b16 %v1509, %v1493
  %v2422 = vpack.c.b16 %v1510, %v1494
  %v2423 = vpack.c.b16 %v1511, %v1495
  %v2424 = vpack.c.b16 %v1512, %v1496
  %v2425 = vpack.c.b16 %v1513, %v1497
  %v2426 = vpack.c.b16 %v1514, %v1498
  %v2427 = vpack.c.b16 %v1515, %v1499
  %v2428 = vpack.c.b16 %v1516, %v1500
  %v2429 = vpack.c.b16 %v1517, %v1501
  %v2430 = vpack.c.b16 %v1518, %v1502
  %v2431 = vpack.c.b16 %v1519, %v1503
  %v2432 = vpack.c.b16 %v1520, %v1504
  %v2433 = vpack.c.b16 %v1521, %v1505
  %v2434 = vpack.c.b16 %v1538, %v1522
  %v2435 = vpack.c.b16 %v1539, %v1523
  %v2436 = vpack.c.b16 %v1540, %v1524
  %v2437 = vpack.c.b16 %v1541, %v1525
  %v2438 = vpack.c.b16 %v1542, %v1526
  %v2439 = vpack.c.b16 %v1543, %v1527
  %v2440 = vpack.c.b16 %v1544, %v1528
  %v2441 = vpack.c.b16 %v1545, %v1529
  %v2442 = vpack.c.b16 %v1546, %v1530
  %v2443 = vpack.c.b16 %v1547, %v1531
  %v2444 = vpack.c.b16 %v1548, %v1532
  %v2445 = vpack.c.b16 %v1549, %v1533
  %v2446 = vpack.c.b16 %v1550, %v1534
  %v2447 = vpack.c.b16 %v1551, %v1535
  %v2448 = vpack.c.b16 %v1552, %v1536
  %v2449 = vpack.c.b16 %v1553, %v1537
  %v2450 = vpack.c.b16 %v1570, %v1554
  %v2451 = vpack.c.b16 %v1571, %v1555
  %v2452 = vpack.c.b16 %v1572, %v1556
  %v2453 = vpack.c.b16 %v1573, %v1557
  %v2454 = vpack.c.b16 %v1574, %v1558
  %v2455 = vpack.c.b16 %v1575, %v1559
  %v2456 = vpack.c.b16 %v1576, %v1560
  %v2457 = vpack.c.b16 %v1577, %v1561
  %v2458 = vpack.c.b16 %v1578, %v1562
  %v2459 = vpack.c.b16 %v1579, %v1563
  %v2460 = vpack.c.b16 %v1580, %v1564
  %v2461 = vpack.c.b16 %v1581, %v1565
  %v2462 = vpack.c.b16 %v1582, %v1566
  %v2463 = vpack.c.b16 %v1583, %v1567
  %v2464 = vpack.c.b16 %v1584, %v1568
  %v2465 = vpack.c.b16 %v1585, %v1569
  %v2466 = vpack.c.b16 %v1602, %v1586
  %v2467 = vpack.c.b16 %v1603, %v1587
  %v2468 = vpack.c.b16 %v1604, %v1588
  %v2469 = vpack.c.b16 %v1605, %v1589
  %v2470 = vpack.c.b16 %v1606, %v1590
  %v2471 = vpack.c.b16 %v1607, %v1591
  %v2472 = vpack.c.b16 %v1608, %v1592
  %v2473 = vpack.c.b16 %v1609, %v1593
  %v2474 = vpack.c.b16 %v1610, %v1594
  %v2475 = vpack.c.b16 %v1611, %v1595
  %v2476 = vpack.c.b16 %v1612, %v1596
  %v2477 = vpack.c.b16 %v1613, %v1597
  %v2478 = vpack.c.b16 %v1614, %v1598
  %v2479 = vpack.c.b16 %v1615, %v1599
  %v2480 = vpack.c.b16 %v1616, %v1600
  %v2481 = vpack.c.b16 %v1617, %v1601
  %v2482 = vpack.c.b16 %v1634, %v1618
  %v2483 = vpack.c.b16 %v1635, %v1619
  %v2484 = vpack.c.b16 %v1636, %v1620
  %v2485 = vpack.c.b16 %v1637, %v1621
  %v2486 = vpack.c.b16 %v1638, %v1622
  %v2487 = vpack.c.b16 %v1639, %v1623
  %v2488 = vpack.c.b16 %v1640, %v1624
  %v2489 = vpack.c.b16 %v1641, %v1625
  %v2490 = vpack.c.b16 %v1642, %v1626
  %v2491 = vpack.c.b16 %v1643, %v1627
  %v2492 = vpack.c.b16 %v1644, %v1628
  %v2493 = vpack.c.b16 %v1645, %v1629
  %v2494 = vpack.c.b16 %v1646, %v1630
  %v2495 = vpack.c.b16 %v1647, %v1631
  %v2496 = vpack.c.b16 %v1648, %v1632
  %v2497 = vpack.c.b16 %v1649, %v1633
  %v2498 = vpack.c.b16 %v1666, %v1650
  %v2499 = vpack.c.b16 %v1667, %v1651
  %v2500 = vpack.c.b16 %v1668, %v1652
  %v2501 = vpack.c.b16 %v1669, %v1653
  %v2502 = vpack.c.b16 %v1670, %v1654
  %v2503 = vpack.c.b16 %v1671, %v1655
  %v2504 = vpack.c.b16 %v1672, %v1656
  %v2505 = vpack.c.b16 %v1673, %v1657
  %v2506 = vpack.c.b16 %v1674, %v1658
  %v2507 = vpack.c.b16 %v1675, %v1659
  %v2508 = vpack.c.b16 %v1676, %v1660
  %v2509 = vpack.c.b16 %v1677, %v1661
  %v2510 = vpack.c.b16 %v1678, %v1662
  %v2511 = vpack.c.b16 %v1679, %v1663
  %v2512 = vpack.c.b16 %v1680, %v1664
  %v2513 = vpack.c.b16 %v1681, %v1665
  %v2514 = vpack.c.b16 %v1698, %v1682
  %v2515 = vpack.c.b16 %v1699, %v1683
  %v2516 = vpack.c.b16 %v1700, %v1684
  %v2517 = vpack.c.b16 %v1701, %v1685
  %v2518 = vpack.c.b16 %v1702, %v1686
  %v2519 = vpack.c.b16 %v1703, %v1687
  %v2520 = vpack.c.b16 %v1704, %v1688
  %v2521 = vpack.c.b16 %v1705, %v1689
  %v2522 = vpack.c.b16 %v1706, %v1690
  %v2523 = vpack.c.b16 %v1707, %v1691
  %v2524 = vpack.c.b16 %v1708, %v1692
  %v2525 = vpack.c.b16 %v1709, %v1693
  %v2526 = vpack.c.b16 %v1710, %v1694
  %v2527 = vpack.c.b16 %v1711, %v1695
  %v2528 = vpack.c.b16 %v1712, %v1696
  %v2529 = vpack.c.b16 %v1713, %v1697
  %v2530 = vpack.c.b16 %v1730, %v1714
  %v2531 = vpack.c.b16 %v1731, %v1715
  %v2532 = vpack.c.b16 %v1732, %v1716
  %v2533 = vpack.c.b16 %v1733, %v1717
  %v2534 = vpack.c.b16 %v1734, %v1718
  %v2535 = vpack.c.b16 %v1735, %v1719
  %v2536 = vpack.c.b16 %v1736, %v1720
  %v2537 = vpack.c.b16 %v1737, %v1721
  %v2538 = vpack.c.b16 %v1738, %v1722
  %v2539 = vpack.c.b16 %v1739, %v1723
  %v2540 = vpack.c.b16 %v1740, %v1724
  %v2541 = vpack.c.b16 %v1741, %v1725
  %v2542 = vpack.c.b16 %v1742, %v1726
  %v2543 = vpack.c.b16 %v1743, %v1727
  %v2544 = vpack.c.b16 %v1744, %v1728
  %v2545 = vpack.c.b16 %v1745, %v1729
  %v2546 = vpack.c.b16 %v1762, %v1746
  %v2547 = vpack.c.b16 %v1763, %v1747
  %v2548 = vpack.c.b16 %v1764, %v1748
  %v2549 = vpack.c.b16 %v1765, %v1749
  %v2550 = vpack.c.b16 %v1766, %v1750
  %v2551 = vpack.c.b16 %v1767, %v1751
  %v2552 = vpack.c.b16 %v1768, %v1752
  %v2553 = vpack.c.b16 %v1769, %v1753
  %v2554 = vpack.c.b16 %v1770, %v1754
  %v2555 = vpack.c.b16 %v1771, %v1755
  %v2556 = vpack.c.b16 %v1772, %v1756
  %v2557 = vpack.c.b16 %v1773, %v1757
  %v2558 = vpack.c.b16 %v1774, %v1758
  %v2559 = vpack.c.b16 %v1775, %v1759
  %v2560 = vpack.c.b16 %v1776, %v1760
  %v2561 = vpack.c.b16 %v1777, %v1761
  %v2562 = vpack.c.b16 %v1794, %v1778
  %v2563 = vpack.c.b16 %v1795, %v1779
  %v2564 = vpack.c.b16 %v1796, %v1780
  %v2565 = vpack.c.b16 %v1797, %v1781
  %v2566 = vpack.c.b16 %v1798, %v1782
  %v2567 = vpack.c.b16 %v1799, %v1783
  %v2568 = vpack.c.b16 %v1800, %v1784
  %v2569 = vpack.c.b16 %v1801, %v1785
  %v2570 = vpack.c.b16 %v1802, %v1786
  %v2571 = vpack.c.b16 %v1803, %v1787
  %v2572 = vpack.c.b16 %v1804, %v1788
  %v2573 = vpack.c.b16 %v1805, %v1789
  %v2574 = vpack.c.b16 %v1806, %v1790
  %v2575 = vpack.c.b16 %v1807, %v1791
  %v2576 = vpack.c.b16 %v1808, %v1792
  %v2577 = vpack.c.b16 %v1809, %v1793
  %v2578 = vpack.c.b16 %v1826, %v1810
  %v2579 = vpack.c.b16 %v1827, %v1811
  %v2580 = vpack.c.b16 %v1828, %v1812
  %v2581 = vpack.c.b16 %v1829, %v1813
  %v2582 = vpack.c.b16 %v1830, %v1814
  %v2583 = vpack.c.b16 %v1831, %v1815
  %v2584 = vpack.c.b16 %v1832, %v1816
  %v2585 = vpack.c.b16 %v1833, %v1817
  %v2586 = vpack.c.b16 %v1834, %v1818
  %v2587 = vpack.c.b16 %v1835, %v1819
  %v2588 = vpack.c.b16 %v1836, %v1820
  %v2589 = vpack.c.b16 %v1837, %v1821
  %v2590 = vpack.c.b16 %v1838, %v1822
  %v2591 = vpack.c.b16 %v1839, %v1823
  %v2592 = vpack.c.b16 %v1840, %v1824
  %v2593 = vpack.c.b16 %v1841, %v1825
  %v2594 = vpack.c.b16 %v1858, %v1842
  %v2595 = vpack.c.b16 %v1859, %v1843
  %v2596 = vpack.c.b16 %v1860, %v1844
  %v2597 = vpack.c.b16 %v1861, %v1845
  %v2598 = vpack.c.b16 %v1862, %v1846
  %v2599 = vpack.c.b16 %v1863, %v1847
  %v2600 = vpack.c.b16 %v1864, %v1848
  %v2601 = vpack.c.b16 %v1865, %v1849
  %v2602 = vpack.c.b16 %v1866, %v1850
  %v2603 = vpack.c.b16 %v1867, %v1851
  %v2604 = vpack.c.b16 %v1868, %v1852
  %v2605 = vpack.c.b16 %v1869, %v1853
  %v2606 = vpack.c.b16 %v1870, %v1854
  %v2607 = vpack.c.b16 %v1871, %v1855
  %v2608 = vpack.c.b16 %v1872, %v1856
  %v2609 = vpack.c.b16 %v1873, %v1857
  %v2610 = vpack.c.b16 %v1890, %v1874
  %v2611 = vpack.c.b16 %v1891, %v1875
  %v2612 = vpack.c.b16 %v1892, %v1876
  %v2613 = vpack.c.b16 %v1893, %v1877
  %v2614 = vpack.c.b16 %v1894, %v1878
  %v2615 = vpack.c.b16 %v1895, %v1879
  %v2616 = vpack.c.b16 %v1896, %v1880
  %v2617 = vpack.c.b16 %v1897, %v1881
  %v2618 = vpack.c.b16 %v1898, %v1882
  %v2619 = vpack.c.b16 %v1899, %v1883
  %v2620 = vpack.c.b16 %v1900, %v1884
  %v2621 = vpack.c.b16 %v1901, %v1885
  %v2622 = vpack.c.b16 %v1902, %v1886
  %v2623 = vpack.c.b16 %v1903, %v1887
  %v2624 = vpack.c.b16 %v1904, %v1888
  %v2625 = vpack.c.b16 %v1905, %v1889
  %v2626 = vpack.c.b16 %v1922, %v1906
  %v2627 = vpack.c.b16 %v1923, %v1907
  %v2628 = vpack.c.b16 %v1924, %v1908
  %v2629 = vpack.c.b16 %v1925, %v1909
  %v2630 = vpack.c.b16 %v1926, %v1910
  %v2631 = vpack.c.b16 %v1927, %v1911
  %v2632 = vpack.c.b16 %v1928, %v1912
  %v2633 = vpack.c.b16 %v1929, %v1913
  %v2634 = vpack.c.b16 %v1930, %v1914
  %v2635 = vpack.c.b16 %v1931, %v1915
  %v2636 = vpack.c.b16 %v1932, %v1916
  %v2637 = vpack.c.b16 %v1933, %v1917
  %v2638 = vpack.c.b16 %v1934, %v1918
  %v2639 = vpack.c.b16 %v1935, %v1919
  %v2640 = vpack.c.b16 %v1936, %v1920
  %v2641 = vpack.c.b16 %v1937, %v1921
  %v2642 = vpack.c.b16 %v1954, %v1938
  %v2643 = vpack.c.b16 %v1955, %v1939
  %v2644 = vpack.c.b16 %v1956, %v1940
  %v2645 = vpack.c.b16 %v1957, %v1941
  %v2646 = vpack.c.b16 %v1958, %v1942
  %v2647 = vpack.c.b16 %v1959, %v1943
  %v2648 = vpack.c.b16 %v1960, %v1944
  %v2649 = vpack.c.b16 %v1961, %v1945
  %v2650 = vpack.c.b16 %v1962, %v1946
  %v2651 = vpack.c.b16 %v1963, %v1947
  %v2652 = vpack.c.b16 %v1964, %v1948
  %v2653 = vpack.c.b16 %v1965, %v1949
  %v2654 = vpack.c.b16 %v1966, %v1950
  %v2655 = vpack.c.b16 %v1967, %v1951
  %v2656 = vpack.c.b16 %v1968, %v1952
  %v2657 = vpack.c.b16 %v1969, %v1953
  %v2658 = vpack.c.b16 %v1986, %v1970
  %v2659 = vpack.c.b16 %v1987, %v1971
  %v2660 = vpack.c.b16 %v1988, %v1972
  %v2661 = vpack.c.b16 %v1989, %v1973
  %v2662 = vpack.c.b16 %v1990, %v1974
  %v2663 = vpack.c.b16 %v1991, %v1975
  %v2664 = vpack.c.b16 %v1992, %v1976
  %v2665 = vpack.c.b16 %v1993, %v1977
  %v2666 = vpack.c.b16 %v1994, %v1978
  %v2667 = vpack.c.b16 %v1995, %v1979
  %v2668 = vpack.c.b16 %v1996, %v1980
  %v2669 = vpack.c.b16 %v1997, %v1981
  %v2670 = vpack.c.b16 %v1998, %v1982
  %v2671 = vpack.c.b16 %v1999, %v1983
  %v2672 = vpack.c.b16 %v2000, %v1984
  %v2673 = vpack.c.b16 %v2001, %v1985
  %v2674 = vpack.c.b16 %v2018, %v2002
  %v2675 = vpack.c.b16 %v2019, %v2003
  %v2676 = vpack.c.b16 %v2020, %v2004
  %v2677 = vpack.c.b16 %v2021, %v2005
  %v2678 = vpack.c.b16 %v2022, %v2006
  %v2679 = vpack.c.b16 %v2023, %v2007
  %v2680 = vpack.c.b16 %v2024, %v2008
  %v2681 = vpack.c.b16 %v2025, %v2009
  %v2682 = vpack.c.b16 %v2026, %v2010
  %v2683 = vpack.c.b16 %v2027, %v2011
  %v2684 = vpack.c.b16 %v2028, %v2012
  %v2685 = vpack.c.b16 %v2029, %v2013
  %v2686 = vpack.c.b16 %v2030, %v2014
  %v2687 = vpack.c.b16 %v2031, %v2015
  %v2688 = vpack.c.b16 %v2032, %v2016
  %v2689 = vpack.c.b16 %v2033, %v2017
  %v2690 = vpack.c.b16 %v2050, %v2034
  %v2691 = vpack.c.b16 %v2051, %v2035
  %v2692 = vpack.c.b16 %v2052, %v2036
  %v2693 = vpack.c.b16 %v2053, %v2037
  %v2694 = vpack.c.b16 %v2054, %v2038
  %v2695 = vpack.c.b16 %v2055, %v2039
  %v2696 = vpack.c.b16 %v2056, %v2040
  %v2697 = vpack.c.b16 %v2057, %v2041
  %v2698 = vpack.c.b16 %v2058, %v2042
  %v2699 = vpack.c.b16 %v2059, %v2043
  %v2700 = vpack.c.b16 %v2060, %v2044
  %v2701 = vpack.c.b16 %v2061, %v2045
  %v2702 = vpack.c.b16 %v2062, %v2046
  %v2703 = vpack.c.b16 %v2063, %v2047
  %v2704 = vpack.c.b16 %v2064, %v2048
  %v2705 = vpack.c.b16 %v2065, %v2049
  %v2706 = vpack.c.b16 %v2082, %v2066
  %v2707 = vpack.c.b16 %v2083, %v2067
  %v2708 = vpack.c.b16 %v2084, %v2068
  %v2709 = vpack.c.b16 %v2085, %v2069
  %v2710 = vpack.c.b16 %v2086, %v2070
  %v2711 = vpack.c.b16 %v2087, %v2071
  %v2712 = vpack.c.b16 %v2088, %v2072
  %v2713 = vpack.c.b16 %v2089, %v2073
  %v2714 = vpack.c.b16 %v2090, %v2074
  %v2715 = vpack.c.b16 %v2091, %v2075
  %v2716 = vpack.c.b16 %v2092, %v2076
  %v2717 = vpack.c.b16 %v2093, %v2077
  %v2718 = vpack.c.b16 %v2094, %v2078
  %v2719 = vpack.c.b16 %v2095, %v2079
  %v2720 = vpack.c.b16 %v2096, %v2080
  %v2721 = vpack.c.b16 %v2097, %v2081
  %v2722 = vpack.c.b16 %v2114, %v2098
  %v2723 = vpack.c.b16 %v2115, %v2099
  %v2724 = vpack.c.b16 %v2116, %v2100
  %v2725 = vpack.c.b16 %v2117, %v2101
  %v2726 = vpack.c.b16 %v2118, %v2102
  %v2727 = vpack.c.b16 %v2119, %v2103
  %v2728 = vpack.c.b16 %v2120, %v2104
  %v2729 = vpack.c.b16 %v2121, %v2105
  %v2730 = vpack.c.b16 %v2122, %v2106
  %v2731 = vpack.c.b16 %v2123, %v2107
  %v2732 = vpack.c.b16 %v2124, %v2108
  %v2733 = vpack.c.b16 %v2125, %v2109
  %v2734 = vpack.c.b16 %v2126, %v2110
  %v2735 = vpack.c.b16 %v2127, %v2111
  %v2736 = vpack.c.b16 %v2128, %v2112
  %v2737 = vpack.c.b16 %v2129, %v2113
  %v2738 = vpack.c.b16 %v2146, %v2130
  %v2739 = vpack.c.b16 %v2147, %v2131
  %v2740 = vpack.c.b16 %v2148, %v2132
  %v2741 = vpack.c.b16 %v2149, %v2133
  %v2742 = vpack.c.b16 %v2150, %v2134
  %v2743 = vpack.c.b16 %v2151, %v2135
  %v2744 = vpack.c.b16 %v2152, %v2136
  %v2745 = vpack.c.b16 %v2153, %v2137
  %v2746 = vpack.c.b16 %v2154, %v2138
  %v2747 = vpack.c.b16 %v2155, %v2139
  %v2748 = vpack.c.b16 %v2156, %v2140
  %v2749 = vpack.c.b16 %v2157, %v2141
  %v2750 = vpack.c.b16 %v2158, %v2142
  %v2751 = vpack.c.b16 %v2159, %v2143
  %v2752 = vpack.c.b16 %v2160, %v2144
  %v2753 = vpack.c.b16 %v2161, %v2145
  %v2754 = vpack.c.b16 %v2178, %v2162
  %v2755 = vpack.c.b16 %v2179, %v2163
  %v2756 = vpack.c.b16 %v2180, %v2164
  %v2757 = vpack.c.b16 %v2181, %v2165
  %v2758 = vpack.c.b16 %v2182, %v2166
  %v2759 = vpack.c.b16 %v2183, %v2167
  %v2760 = vpack.c.b16 %v2184, %v2168
  %v2761 = vpack.c.b16 %v2185, %v2169
  %v2762 = vpack.c.b16 %v2186, %v2170
  %v2763 = vpack.c.b16 %v2187, %v2171
  %v2764 = vpack.c.b16 %v2188, %v2172
  %v2765 = vpack.c.b16 %v2189, %v2173
  %v2766 = vpack.c.b16 %v2190, %v2174
  %v2767 = vpack.c.b16 %v2191, %v2175
  %v2768 = vpack.c.b16 %v2192, %v2176
  %v2769 = vpack.c.b16 %v2193, %v2177
  %v2770 = vpack.c.b16 %v2210, %v2194
  %v2771 = vpack.c.b16 %v2211, %v2195
  %v2772 = vpack.c.b16 %v2212, %v2196
  %v2773 = vpack.c.b16 %v2213, %v2197
  %v2774 = vpack.c.b16 %v2214, %v2198
  %v2775 = vpack.c.b16 %v2215, %v2199
  %v2776 = vpack.c.b16 %v2216, %v2200
  %v2777 = vpack.c.b16 %v2217, %v2201
  %v2778 = vpack.c.b16 %v2218, %v2202
  %v2779 = vpack.c.b16 %v2219, %v2203
  %v2780 = vpack.c.b16 %v2220, %v2204
  %v2781 = vpack.c.b16 %v2221, %v2205
  %v2782 = vpack.c.b16 %v2222, %v2206
  %v2783 = vpack.c.b16 %v2223, %v2207
  %v2784 = vpack.c.b16 %v2224, %v2208
  %v2785 = vpack.c.b16 %v2225, %v2209
  %v2786 = vpack.c.b16 %v2242, %v2226
  %v2787 = vpack.c.b16 %v2243, %v2227
  %v2788 = vpack.c.b16 %v2244, %v2228
  %v2789 = vpack.c.b16 %v2245, %v2229
  %v2790 = vpack.c.b16 %v2246, %v2230
  %v2791 = vpack.c.b16 %v2247, %v2231
  %v2792 = vpack.c.b16 %v2248, %v2232
  %v2793 = vpack.c.b16 %v2249, %v2233
  %v2794 = vpack.c.b16 %v2250, %v2234
  %v2795 = vpack.c.b16 %v2251, %v2235
  %v2796 = vpack.c.b16 %v2252, %v2236
  %v2797 = vpack.c.b16 %v2253, %v2237
  %v2798 = vpack.c.b16 %v2254, %v2238
  %v2799 = vpack.c.b16 %v2255, %v2239
  %v2800 = vpack.c.b16 %v2256, %v2240
  %v2801 = vpack.c.b16 %v2257, %v2241
  %v2802 = vpack.c.b16 %v2274, %v2258
  %v2803 = vpack.c.b16 %v2275, %v2259
  %v2804 = vpack.c.b16 %v2276, %v2260
  %v2805 = vpack.c.b16 %v2277, %v2261
  %v2806 = vpack.c.b16 %v2278, %v2262
  %v2807 = vpack.c.b16 %v2279, %v2263
  %v2808 = vpack.c.b16 %v2280, %v2264
  %v2809 = vpack.c.b16 %v2281, %v2265
  %v2810 = vpack.c.b16 %v2282, %v2266
  %v2811 = vpack.c.b16 %v2283, %v2267
  %v2812 = vpack.c.b16 %v2284, %v2268
  %v2813 = vpack.c.b16 %v2285, %v2269
  %v2814 = vpack.c.b16 %v2286, %v2270
  %v2815 = vpack.c.b16 %v2287, %v2271
  %v2816 = vpack.c.b16 %v2288, %v2272
  %v2817 = vpack.c.b16 %v2289, %v2273
  %v2818 = vpack.c.b16 %v2306, %v2290
  %v2819 = vpack.c.b16 %v2307, %v2291
  %v2820 = vpack.c.b16 %v2308, %v2292
  %v2821 = vpack.c.b16 %v2309, %v2293
  %v2822 = vpack.c.b16 %v2310, %v2294
  %v2823 = vpack.c.b16 %v2311, %v2295
  %v2824 = vpack.c.b16 %v2312, %v2296
  %v2825 = vpack.c.b16 %v2313, %v2297
  %v2826 = vpack.c.b16 %v2314, %v2298
  %v2827 = vpack.c.b16 %v2315, %v2299
  %v2828 = vpack.c.b16 %v2316, %v2300
  %v2829 = vpack.c.b16 %v2317, %v2301
  %v2830 = vpack.c.b16 %v2318, %v2302
  %v2831 = vpack.c.b16 %v2319, %v2303
  %v2832 = vpack.c.b16 %v2320, %v2304
  %v2833 = vpack.c.b16 %v2321, %v2305
  %v3602 = vunpack.c.l.b16 %v530
  %v3603 = vunpack.c.l.b16 %v531
  %v3604 = vunpack.c.l.b16 %v532
  %v3605 = vunpack.c.l.b16 %v533
  %v3606 = vunpack.c.l.b16 %v534
  %v3607 = vunpack.c.l.b16 %v535
  %v3608 = vunpack.c.l.b16 %v536
  %v3609 = vunpack.c.l.b16 %v537
  %v3610 = vunpack.c.l.b16 %v538
  %v3611 = vunpack.c.l.b16 %v539
  %v3612 = vunpack.c.l.b16 %v540
  %v3613 = vunpack.c.l.b16 %v541
  %v3614 = vunpack.c.l.b16 %v542
  %v3615 = vunpack.c.l.b16 %v543
  %v3616 = vunpack.c.l.b16 %v544
  %v3617 = vunpack.c.l.b16 %v545
  %v3618 = vunpack.c.l.b16 %v546
  %v3619 = vunpack.c.l.b16 %v547
  %v3620 = vunpack.c.l.b16 %v548
  %v3621 = vunpack.c.l.b16 %v549
  %v3622 = vunpack.c.l.b16 %v550
  %v3623 = vunpack.c.l.b16 %v551
  %v3624 = vunpack.c.l.b16 %v552
  %v3625 = vunpack.c.l.b16 %v553
  %v3626 = vunpack.c.l.b16 %v554
  %v3627 = vunpack.c.l.b16 %v555
  %v3628 = vunpack.c.l.b16 %v556
  %v3629 = vunpack.c.l.b16 %v557
  %v3630 = vunpack.c.l.b16 %v558
  %v3631 = vunpack.c.l.b16 %v559
  %v3632 = vunpack.c.l.b16 %v560
  %v3633 = vunpack.c.l.b16 %v561
  %v3634 = vunpack.c.l.b16 %v562
  %v3635 = vunpack.c.l.b16 %v563
  %v3636 = vunpack.c.l.b16 %v564
  %v3637 = vunpack.c.l.b16 %v565
  %v3638 = vunpack.c.l.b16 %v566
  %v3639 = vunpack.c.l.b16 %v567
  %v3640 = vunpack.c.l.b16 %v568
  %v3641 = vunpack.c.l.b16 %v569
  %v3642 = vunpack.c.l.b16 %v570
  %v3643 = vunpack.c.l.b16 %v571
  %v3644 = vunpack.c.l.b16 %v572
  %v3645 = vunpack.c.l.b16 %v573
  %v3646 = vunpack.c.l.b16 %v574
  %v3647 = vunpack.c.l.b16 %v575
  %v3648 = vunpack.c.l.b16 %v576
  %v3649 = vunpack.c.l.b16 %v577
  %v3650 = vunpack.c.l.b16 %v578
  %v3651 = vunpack.c.l.b16 %v579
  %v3652 = vunpack.c.l.b16 %v580
  %v3653 = vunpack.c.l.b16 %v581
  %v3654 = vunpack.c.l.b16 %v582
  %v3655 = vunpack.c.l.b16 %v583
  %v3656 = vunpack.c.l.b16 %v584
  %v3657 = vunpack.c.l.b16 %v585
  %v3658 = vunpack.c.l.b16 %v586
  %v3659 = vunpack.c.l.b16 %v587
  %v3660 = vunpack.c.l.b16 %v588
  %v3661 = vunpack.c.l.b16 %v589
  %v3662 = vunpack.c.l.b16 %v590
  %v3663 = vunpack.c.l.b16 %v591
  %v3664 = vunpack.c.l.b16 %v592
  %v3665 = vunpack.c.l.b16 %v593
  %v3666 = vunpack.c.l.b16 %v594
  %v3667 = vunpack.c.l.b16 %v595
  %v3668 = vunpack.c.l.b16 %v596
  %v3669 = vunpack.c.l.b16 %v597
  %v3670 = vunpack.c.l.b16 %v598
  %v3671 = vunpack.c.l.b16 %v599
  %v3672 = vunpack.c.l.b16 %v600
  %v3673 = vunpack.c.l.b16 %v601
  %v3674 = vunpack.c.l.b16 %v602
  %v3675 = vunpack.c.l.b16 %v603
  %v3676 = vunpack.c.l.b16 %v604
  %v3677 = vunpack.c.l.b16 %v605
  %v3678 = vunpack.c.l.b16 %v606
  %v3679 = vunpack.c.l.b16 %v607
  %v3680 = vunpack.c.l.b16 %v608
  %v3681 = vunpack.c.l.b16 %v609
  %v3682 = vunpack.c.l.b16 %v610
  %v3683 = vunpack.c.l.b16 %v611
  %v3684 = vunpack.c.l.b16 %v612
  %v3685 = vunpack.c.l.b16 %v613
  %v3686 = vunpack.c.l.b16 %v614
  %v3687 = vunpack.c.l.b16 %v615
  %v3688 = vunpack.c.l.b16 %v616
  %v3689 = vunpack.c.l.b16 %v617
  %v3690 = vunpack.c.l.b16 %v618
  %v3691 = vunpack.c.l.b16 %v619
  %v3692 = vunpack.c.l.b16 %v620
  %v3693 = vunpack.c.l.b16 %v621
  %v3694 = vunpack.c.l.b16 %v622
  %v3695 = vunpack.c.l.b16 %v623
  %v3696 = vunpack.c.l.b16 %v624
  %v3697 = vunpack.c.l.b16 %v625
  %v3698 = vunpack.c.l.b16 %v626
  %v3699 = vunpack.c.l.b16 %v627
  %v3700 = vunpack.c.l.b16 %v628
  %v3701 = vunpack.c.l.b16 %v629
  %v3702 = vunpack.c.l.b16 %v630
  %v3703 = vunpack.c.l.b16 %v631
  %v3704 = vunpack.c.l.b16 %v632
  %v3705 = vunpack.c.l.b16 %v633
  %v3706 = vunpack.c.l.b16 %v634
  %v3707 = vunpack.c.l.b16 %v635
  %v3708 = vunpack.c.l.b16 %v636
  %v3709 = vunpack.c.l.b16 %v637
  %v3710 = vunpack.c.l.b16 %v638
  %v3711 = vunpack.c.l.b16 %v639
  %v3712 = vunpack.c.l.b16 %v640
  %v3713 = vunpack.c.l.b16 %v641
  %v3714 = vunpack.c.l.b16 %v642
  %v3715 = vunpack.c.l.b16 %v643
  %v3716 = vunpack.c.l.b16 %v644
  %v3717 = vunpack.c.l.b16 %v645
  %v3718 = vunpack.c.l.b16 %v646
  %v3719 = vunpack.c.l.b16 %v647
  %v3720 = vunpack.c.l.b16 %v648
  %v3721 = vunpack.c.l.b16 %v649
  %v3722 = vunpack.c.l.b16 %v650
  %v3723 = vunpack.c.l.b16 %v651
  %v3724 = vunpack.c.l.b16 %v652
  %v3725 = vunpack.c.l.b16 %v653
  %v3726 = vunpack.c.l.b16 %v654
  %v3727 = vunpack.c.l.b16 %v655
  %v3728 = vunpack.c.l.b16 %v656
  %v3729 = vunpack.c.l.b16 %v657
  %v3730 = vunpack.c.l.b16 %v658
  %v3731 = vunpack.c.l.b16 %v659
  %v3732 = vunpack.c.l.b16 %v660
  %v3733 = vunpack.c.l.b16 %v661
  %v3734 = vunpack.c.l.b16 %v662
  %v3735 = vunpack.c.l.b16 %v663
  %v3736 = vunpack.c.l.b16 %v664
  %v3737 = vunpack.c.l.b16 %v665
  %v3738 = vunpack.c.l.b16 %v666
  %v3739 = vunpack.c.l.b16 %v667
  %v3740 = vunpack.c.l.b16 %v668
  %v3741 = vunpack.c.l.b16 %v669
  %v3742 = vunpack.c.l.b16 %v670
  %v3743 = vunpack.c.l.b16 %v671
  %v3744 = vunpack.c.l.b16 %v672
  %v3745 = vunpack.c.l.b16 %v673
  %v3746 = vunpack.c.l.b16 %v674
  %v3747 = vunpack.c.l.b16 %v675
  %v3748 = vunpack.c.l.b16 %v676
  %v3749 = vunpack.c.l.b16 %v677
  %v3750 = vunpack.c.l.b16 %v678
  %v3751 = vunpack.c.l.b16 %v679
  %v3752 = vunpack.c.l.b16 %v680
  %v3753 = vunpack.c.l.b16 %v681
  %v3754 = vunpack.c.l.b16 %v682
  %v3755 = vunpack.c.l.b16 %v683
  %v3756 = vunpack.c.l.b16 %v684
  %v3757 = vunpack.c.l.b16 %v685
  %v3758 = vunpack.c.l.b16 %v686
  %v3759 = vunpack.c.l.b16 %v687
  %v3760 = vunpack.c.l.b16 %v688
  %v3761 = vunpack.c.l.b16 %v689
  %v3762 = vunpack.c.l.b16 %v690
  %v3763 = vunpack.c.l.b16 %v691
  %v3764 = vunpack.c.l.b16 %v692
  %v3765 = vunpack.c.l.b16 %v693
  %v3766 = vunpack.c.l.b16 %v694
  %v3767 = vunpack.c.l.b16 %v695
  %v3768 = vunpack.c.l.b16 %v696
  %v3769 = vunpack.c.l.b16 %v697
  %v3770 = vunpack.c.l.b16 %v698
  %v3771 = vunpack.c.l.b16 %v699
  %v3772 = vunpack.c.l.b16 %v700
  %v3773 = vunpack.c.l.b16 %v701
  %v3774 = vunpack.c.l.b16 %v702
  %v3775 = vunpack.c.l.b16 %v703
  %v3776 = vunpack.c.l.b16 %v704
  %v3777 = vunpack.c.l.b16 %v705
  %v3778 = vunpack.c.l.b16 %v706
  %v3779 = vunpack.c.l.b16 %v707
  %v3780 = vunpack.c.l.b16 %v708
  %v3781 = vunpack.c.l.b16 %v709
  %v3782 = vunpack.c.l.b16 %v710
  %v3783 = vunpack.c.l.b16 %v711
  %v3784 = vunpack.c.l.b16 %v712
  %v3785 = vunpack.c.l.b16 %v713
  %v3786 = vunpack.c.l.b16 %v714
  %v3787 = vunpack.c.l.b16 %v715
  %v3788 = vunpack.c.l.b16 %v716
  %v3789 = vunpack.c.l.b16 %v717
  %v3790 = vunpack.c.l.b16 %v718
  %v3791 = vunpack.c.l.b16 %v719
  %v3792 = vunpack.c.l.b16 %v720
  %v3793 = vunpack.c.l.b16 %v721
  %v3794 = vunpack.c.l.b16 %v722
  %v3795 = vunpack.c.l.b16 %v723
  %v3796 = vunpack.c.l.b16 %v724
  %v3797 = vunpack.c.l.b16 %v725
  %v3798 = vunpack.c.l.b16 %v726
  %v3799 = vunpack.c.l.b16 %v727
  %v3800 = vunpack.c.l.b16 %v728
  %v3801 = vunpack.c.l.b16 %v729
  %v3802 = vunpack.c.l.b16 %v730
  %v3803 = vunpack.c.l.b16 %v731
  %v3804 = vunpack.c.l.b16 %v732
  %v3805 = vunpack.c.l.b16 %v733
  %v3806 = vunpack.c.l.b16 %v734
  %v3807 = vunpack.c.l.b16 %v735
  %v3808 = vunpack.c.l.b16 %v736
  %v3809 = vunpack.c.l.b16 %v737
  %v3810 = vunpack.c.l.b16 %v738
  %v3811 = vunpack.c.l.b16 %v739
  %v3812 = vunpack.c.l.b16 %v740
  %v3813 = vunpack.c.l.b16 %v741
  %v3814 = vunpack.c.l.b16 %v742
  %v3815 = vunpack.c.l.b16 %v743
  %v3816 = vunpack.c.l.b16 %v744
  %v3817 = vunpack.c.l.b16 %v745
  %v3818 = vunpack.c.l.b16 %v746
  %v3819 = vunpack.c.l.b16 %v747
  %v3820 = vunpack.c.l.b16 %v748
  %v3821 = vunpack.c.l.b16 %v749
  %v3822 = vunpack.c.l.b16 %v750
  %v3823 = vunpack.c.l.b16 %v751
  %v3824 = vunpack.c.l.b16 %v752
  %v3825 = vunpack.c.l.b16 %v753
  %v3826 = vunpack.c.l.b16 %v754
  %v3827 = vunpack.c.l.b16 %v755
  %v3828 = vunpack.c.l.b16 %v756
  %v3829 = vunpack.c.l.b16 %v757
  %v3830 = vunpack.c.l.b16 %v758
  %v3831 = vunpack.c.l.b16 %v759
  %v3832 = vunpack.c.l.b16 %v760
  %v3833 = vunpack.c.l.b16 %v761
  %v3834 = vunpack.c.l.b16 %v762
  %v3835 = vunpack.c.l.b16 %v763
  %v3836 = vunpack.c.l.b16 %v764
  %v3837 = vunpack.c.l.b16 %v765
  %v3838 = vunpack.c.l.b16 %v766
  %v3839 = vunpack.c.l.b16 %v767
  %v3840 = vunpack.c.l.b16 %v768
  %v3841 = vunpack.c.l.b16 %v769
  %v3842 = vunpack.c.l.b16 %v770
  %v3843 = vunpack.c.l.b16 %v771
  %v3844 = vunpack.c.l.b16 %v772
  %v3845 = vunpack.c.l.b16 %v773
  %v3846 = vunpack.c.l.b16 %v774
  %v3847 = vunpack.c.l.b16 %v775
  %v3848 = vunpack.c.l.b16 %v776
  %v3849 = vunpack.c.l.b16 %v777
  %v3850 = vunpack.c.l.b16 %v778
  %v3851 = vunpack.c.l.b16 %v779
  %v3852 = vunpack.c.l.b16 %v780
  %v3853 = vunpack.c.l.b16 %v781
  %v3854 = vunpack.c.l.b16 %v782
  %v3855 = vunpack.c.l.b16 %v783
  %v3856 = vunpack.c.l.b16 %v784
  %v3857 = vunpack.c.l.b16 %v785
  %v3858 = vpack.c.b16 %v3603, %v3602
  %v3859 = vpack.c.b16 %v3605, %v3604
  %v3860 = vpack.c.b16 %v3607, %v3606
  %v3861 = vpack.c.b16 %v3609, %v3608
  %v3862 = vpack.c.b16 %v3611, %v3610
  %v3863 = vpack.c.b16 %v3613, %v3612
  %v3864 = vpack.c.b16 %v3615, %v3614
  %v3865 = vpack.c.b16 %v3617, %v3616
  %v3866 = vpack.c.b16 %v3619, %v3618
  %v3867 = vpack.c.b16 %v3621, %v3620
  %v3868 = vpack.c.b16 %v3623, %v3622
  %v3869 = vpack.c.b16 %v3625, %v3624
  %v3870 = vpack.c.b16 %v3627, %v3626
  %v3871 = vpack.c.b16 %v3629, %v3628
  %v3872 = vpack.c.b16 %v3631, %v3630
  %v3873 = vpack.c.b16 %v3633, %v3632
  %v3874 = vpack.c.b16 %v3635, %v3634
  %v3875 = vpack.c.b16 %v3637, %v3636
  %v3876 = vpack.c.b16 %v3639, %v3638
  %v3877 = vpack.c.b16 %v3641, %v3640
  %v3878 = vpack.c.b16 %v3643, %v3642
  %v3879 = vpack.c.b16 %v3645, %v3644
  %v3880 = vpack.c.b16 %v3647, %v3646
  %v3881 = vpack.c.b16 %v3649, %v3648
  %v3882 = vpack.c.b16 %v3651, %v3650
  %v3883 = vpack.c.b16 %v3653, %v3652
  %v3884 = vpack.c.b16 %v3655, %v3654
  %v3885 = vpack.c.b16 %v3657, %v3656
  %v3886 = vpack.c.b16 %v3659, %v3658
  %v3887 = vpack.c.b16 %v3661, %v3660
  %v3888 = vpack.c.b16 %v3663, %v3662
  %v3889 = vpack.c.b16 %v3665, %v3664
  %v3890 = vpack.c.b16 %v3667, %v3666
  %v3891 = vpack.c.b16 %v3669, %v3668
  %v3892 = vpack.c.b16 %v3671, %v3670
  %v3893 = vpack.c.b16 %v3673, %v3672
  %v3894 = vpack.c.b16 %v3675, %v3674
  %v3895 = vpack.c.b16 %v3677, %v3676
  %v3896 = vpack.c.b16 %v3679, %v3678
  %v3897 = vpack.c.b16 %v3681, %v3680
  %v3898 = vpack.c.b16 %v3683, %v3682
  %v3899 = vpack.c.b16 %v3685, %v3684
  %v3900 = vpack.c.b16 %v3687, %v3686
  %v3901 = vpack.c.b16 %v3689, %v3688
  %v3902 = vpack.c.b16 %v3691, %v3690
  %v3903 = vpack.c.b16 %v3693, %v3692
  %v3904 = vpack.c.b16 %v3695, %v3694
  %v3905 = vpack.c.b16 %v3697, %v3696
  %v3906 = vpack.c.b16 %v3699, %v3698
  %v3907 = vpack.c.b16 %v3701, %v3700
  %v3908 = vpack.c.b16 %v3703, %v3702
  %v3909 = vpack.c.b16 %v3705, %v3704
  %v3910 = vpack.c.b16 %v3707, %v3706
  %v3911 = vpack.c.b16 %v3709, %v3708
  %v3912 = vpack.c.b16 %v3711, %v3710
  %v3913 = vpack.c.b16 %v3713, %v3712
  %v3914 = vpack.c.b16 %v3715, %v3714
  %v3915 = vpack.c.b16 %v3717, %v3716
  %v3916 = vpack.c.b16 %v3719, %v3718
  %v3917 = vpack.c.b16 %v3721, %v3720
  %v3918 = vpack.c.b16 %v3723, %v3722
  %v3919 = vpack.c.b16 %v3725, %v3724
  %v3920 = vpack.c.b16 %v3727, %v3726
  %v3921 = vpack.c.b16 %v3729, %v3728
  %v3922 = vpack.c.b16 %v3731, %v3730
  %v3923 = vpack.c.b16 %v3733, %v3732
  %v3924 = vpack.c.b16 %v3735, %v3734
  %v3925 = vpack.c.b16 %v3737, %v3736
  %v3926 = vpack.c.b16 %v3739, %v3738
  %v3927 = vpack.c.b16 %v3741, %v3740
  %v3928 = vpack.c.b16 %v3743, %v3742
  %v3929 = vpack.c.b16 %v3745, %v3744
  %v3930 = vpack.c.b16 %v3747, %v3746
  %v3931 = vpack.c.b16 %v3749, %v3748
  %v3932 = vpack.c.b16 %v3751, %v3750
  %v3933 = vpack.c.b16 %v3753, %v3752
  %v3934 = vpack.c.b16 %v3755, %v3754
  %v3935 = vpack.c.b16 %v3757, %v3756
  %v3936 = vpack.c.b16 %v3759, %v3758
  %v3937 = vpack.c.b16 %v3761, %v3760
  %v3938 = vpack.c.b16 %v3763, %v3762
  %v3939 = vpack.c.b16 %v3765, %v3764
  %v3940 = vpack.c.b16 %v3767, %v3766
  %v3941 = vpack.c.b16 %v3769, %v3768
  %v3942 = vpack.c.b16 %v3771, %v3770
  %v3943 = vpack.c.b16 %v3773, %v3772
  %v3944 = vpack.c.b16 %v3775, %v3774
  %v3945 = vpack.c.b16 %v3777, %v3776
  %v3946 = vpack.c.b16 %v3779, %v3778
  %v3947 = vpack.c.b16 %v3781, %v3780
  %v3948 = vpack.c.b16 %v3783, %v3782
  %v3949 = vpack.c.b16 %v3785, %v3784
  %v3950 = vpack.c.b16 %v3787, %v3786
  %v3951 = vpack.c.b16 %v3789, %v3788
  %v3952 = vpack.c.b16 %v3791, %v3790
  %v3953 = vpack.c.b16 %v3793, %v3792
  %v3954 = vpack.c.b16 %v3795, %v3794
  %v3955 = vpack.c.b16 %v3797, %v3796
  %v3956 = vpack.c.b16 %v3799, %v3798
  %v3957 = vpack.c.b16 %v3801, %v3800
  %v3958 = vpack.c.b16 %v3803, %v3802
  %v3959 = vpack.c.b16 %v3805, %v3804
  %v3960 = vpack.c.b16 %v3807, %v3806
  %v3961 = vpack.c.b16 %v3809, %v3808
  %v3962 = vpack.c.b16 %v3811, %v3810
  %v3963 = vpack.c.b16 %v3813, %v3812
  %v3964 = vpack.c.b16 %v3815, %v3814
  %v3965 = vpack.c.b16 %v3817, %v3816
  %v3966 = vpack.c.b16 %v3819, %v3818
  %v3967 = vpack.c.b16 %v3821, %v3820
  %v3968 = vpack.c.b16 %v3823, %v3822
  %v3969 = vpack.c.b16 %v3825, %v3824
  %v3970 = vpack.c.b16 %v3827, %v3826
  %v3971 = vpack.c.b16 %v3829, %v3828
  %v3972 = vpack.c.b16 %v3831, %v3830
  %v3973 = vpack.c.b16 %v3833, %v3832
  %v3974 = vpack.c.b16 %v3835, %v3834
  %v3975 = vpack.c.b16 %v3837, %v3836
  %v3976 = vpack.c.b16 %v3839, %v3838
  %v3977 = vpack.c.b16 %v3841, %v3840
  %v3978 = vpack.c.b16 %v3843, %v3842
  %v3979 = vpack.c.b16 %v3845, %v3844
  %v3980 = vpack.c.b16 %v3847, %v3846
  %v3981 = vpack.c.b16 %v3849, %v3848
  %v3982 = vpack.c.b16 %v3851, %v3850
  %v3983 = vpack.c.b16 %v3853, %v3852
  %v3984 = vpack.c.b16 %v3855, %v3854
  %v3985 = vpack.c.b16 %v3857, %v3856
  %4114 = vmatprep.subr.bf16.mxu0 0
  %4115 = vmatpush1.bf16.msra.mxu0 %v3865
  %4116 = vmatprep.subr.bf16.mxu0 0
  %4117 = vmatpush1.bf16.msra.mxu0 %v3864
  %4118 = vmatprep.subr.bf16.mxu0 0
  %4119 = vmatpush1.bf16.msra.mxu0 %v3863
  %4120 = vmatprep.subr.bf16.mxu0 0
  %4121 = vmatpush1.bf16.msra.mxu0 %v3862
  %4122 = vmatprep.subr.bf16.mxu0 0
  %4123 = vmatpush1.bf16.msra.mxu0 %v3861
  %4124 = vmatprep.subr.bf16.mxu0 0
  %4125 = vmatpush1.bf16.msra.mxu0 %v3860
  %4126 = vmatprep.subr.bf16.mxu0 0
  %4127 = vmatpush1.bf16.msra.mxu0 %v3859
  %4128 = vmatprep.subr.bf16.mxu0 0
  %4129 = vmatpush1.bf16.msra.mxu0 %v3858
  %4130 = vmatprep.subr.bf16.mxu0 0
  %4131 = vmatpush2.bf16.msra.mxu0 %v3873
  %4132 = vmatprep.subr.bf16.mxu0 0
  %4133 = vmatpush2.bf16.msra.mxu0 %v3872
  %4134 = vmatprep.subr.bf16.mxu0 0
  %4135 = vmatpush2.bf16.msra.mxu0 %v3871
  %4136 = vmatprep.subr.bf16.mxu0 0
  %4137 = vmatpush2.bf16.msra.mxu0 %v3870
  %4138 = vmatprep.subr.bf16.mxu0 0
  %4139 = vmatpush2.bf16.msra.mxu0 %v3869
  %4140 = vmatprep.subr.bf16.mxu0 0
  %4141 = vmatpush2.bf16.msra.mxu0 %v3868
  %4142 = vmatprep.subr.bf16.mxu0 0
  %4143 = vmatpush2.bf16.msra.mxu0 %v3867
  %4144 = vmatprep.subr.bf16.mxu0 0
  %4145 = vmatpush2.bf16.msra.mxu0 %v3866
  %4146 = vmatprep.mubr.bf16.mxu0 %v2323
  %4147 = vmatmul.mubr.bf16.gmra.mxu0 %v2322
  %v4148 = vpop.f32.mrf.mxu0
  %v4149 = vadd.f32 0.0, %v4148
  %v4150 = vpop.f32.mrf.mxu0
  %v4151 = vpop.f32.mrf.mxu0
  %v4152 = vadd.f32 0.0, %v4151
  %v4153 = vpop.f32.mrf.mxu0
  %4154 = vmatprep.mubr.bf16.mxu0 %v2339
  %4155 = vmatmul.mubr.bf16.gmra.mxu0 %v2338
  %v4156 = vpop.f32.mrf.mxu0
  %v4157 = vadd.f32 0.0, %v4156
  %v4158 = vpop.f32.mrf.mxu0
  %v4159 = vpop.f32.mrf.mxu0
  %v4160 = vadd.f32 0.0, %v4159
  %v4161 = vpop.f32.mrf.mxu0
  %4162 = vmatprep.mubr.bf16.mxu0 %v2355
  %4163 = vmatmul.mubr.bf16.gmra.mxu0 %v2354
  %v4164 = vpop.f32.mrf.mxu0
  %v4165 = vadd.f32 0.0, %v4164
  %v4166 = vpop.f32.mrf.mxu0
  %v4167 = vpop.f32.mrf.mxu0
  %v4168 = vadd.f32 0.0, %v4167
  %v4169 = vpop.f32.mrf.mxu0
  %4170 = vmatprep.mubr.bf16.mxu0 %v2371
  %4171 = vmatmul.mubr.bf16.gmra.mxu0 %v2370
  %v4172 = vpop.f32.mrf.mxu0
  %v4173 = vadd.f32 0.0, %v4172
  %v4174 = vpop.f32.mrf.mxu0
  %v4175 = vpop.f32.mrf.mxu0
  %v4176 = vadd.f32 0.0, %v4175
  %v4177 = vpop.f32.mrf.mxu0
  %4178 = vmatprep.mubr.bf16.mxu0 %v2387
  %4179 = vmatmul.mubr.bf16.gmra.mxu0 %v2386
  %v4180 = vpop.f32.mrf.mxu0
  %v4181 = vadd.f32 0.0, %v4180
  %v4182 = vpop.f32.mrf.mxu0
  %v4183 = vpop.f32.mrf.mxu0
  %v4184 = vadd.f32 0.0, %v4183
  %v4185 = vpop.f32.mrf.mxu0
  %4186 = vmatprep.mubr.bf16.mxu0 %v2403
  %4187 = vmatmul.mubr.bf16.gmra.mxu0 %v2402
  %v4188 = vpop.f32.mrf.mxu0
  %v4189 = vadd.f32 0.0, %v4188
  %v4190 = vpop.f32.mrf.mxu0
  %v4191 = vpop.f32.mrf.mxu0
  %v4192 = vadd.f32 0.0, %v4191
  %v4193 = vpop.f32.mrf.mxu0
  %4194 = vmatprep.mubr.bf16.mxu0 %v2419
  %4195 = vmatmul.mubr.bf16.gmra.mxu0 %v2418
  %v4196 = vpop.f32.mrf.mxu0
  %v4197 = vadd.f32 0.0, %v4196
  %v4198 = vpop.f32.mrf.mxu0
  %v4199 = vpop.f32.mrf.mxu0
  %v4200 = vadd.f32 0.0, %v4199
  %v4201 = vpop.f32.mrf.mxu0
  %4202 = vmatprep.mubr.bf16.mxu0 %v2435
  %4203 = vmatmul.mubr.bf16.gmra.mxu0 %v2434
  %v4204 = vpop.f32.mrf.mxu0
  %v4205 = vadd.f32 0.0, %v4204
  %v4206 = vpop.f32.mrf.mxu0
  %v4207 = vpop.f32.mrf.mxu0
  %v4208 = vadd.f32 0.0, %v4207
  %v4209 = vpop.f32.mrf.mxu0
  %4210 = vmatprep.mubr.bf16.mxu0 %v2451
  %4211 = vmatmul.mubr.bf16.gmra.mxu0 %v2450
  %v4212 = vpop.f32.mrf.mxu0
  %v4213 = vadd.f32 0.0, %v4212
  %v4214 = vpop.f32.mrf.mxu0
  %v4215 = vpop.f32.mrf.mxu0
  %v4216 = vadd.f32 0.0, %v4215
  %v4217 = vpop.f32.mrf.mxu0
  %4218 = vmatprep.mubr.bf16.mxu0 %v2467
  %4219 = vmatmul.mubr.bf16.gmra.mxu0 %v2466
  %v4220 = vpop.f32.mrf.mxu0
  %v4221 = vadd.f32 0.0, %v4220
  %v4222 = vpop.f32.mrf.mxu0
  %v4223 = vpop.f32.mrf.mxu0
  %v4224 = vadd.f32 0.0, %v4223
  %v4225 = vpop.f32.mrf.mxu0
  %4226 = vmatprep.mubr.bf16.mxu0 %v2483
  %4227 = vmatmul.mubr.bf16.gmra.mxu0 %v2482
  %v4228 = vpop.f32.mrf.mxu0
  %v4229 = vadd.f32 0.0, %v4228
  %v4230 = vpop.f32.mrf.mxu0
  %v4231 = vpop.f32.mrf.mxu0
  %v4232 = vadd.f32 0.0, %v4231
  %v4233 = vpop.f32.mrf.mxu0
  %4234 = vmatprep.mubr.bf16.mxu0 %v2499
  %4235 = vmatmul.mubr.bf16.gmra.mxu0 %v2498
  %v4236 = vpop.f32.mrf.mxu0
  %v4237 = vadd.f32 0.0, %v4236
  %v4238 = vpop.f32.mrf.mxu0
  %v4239 = vpop.f32.mrf.mxu0
  %v4240 = vadd.f32 0.0, %v4239
  %v4241 = vpop.f32.mrf.mxu0
  %4242 = vmatprep.mubr.bf16.mxu0 %v2515
  %4243 = vmatmul.mubr.bf16.gmra.mxu0 %v2514
  %v4244 = vpop.f32.mrf.mxu0
  %v4245 = vadd.f32 0.0, %v4244
  %v4246 = vpop.f32.mrf.mxu0
  %v4247 = vpop.f32.mrf.mxu0
  %v4248 = vadd.f32 0.0, %v4247
  %v4249 = vpop.f32.mrf.mxu0
  %4250 = vmatprep.mubr.bf16.mxu0 %v2531
  %4251 = vmatmul.mubr.bf16.gmra.mxu0 %v2530
  %v4252 = vpop.f32.mrf.mxu0
  %v4253 = vadd.f32 0.0, %v4252
  %v4254 = vpop.f32.mrf.mxu0
  %v4255 = vpop.f32.mrf.mxu0
  %v4256 = vadd.f32 0.0, %v4255
  %v4257 = vpop.f32.mrf.mxu0
  %4258 = vmatprep.mubr.bf16.mxu0 %v2547
  %4259 = vmatmul.mubr.bf16.gmra.mxu0 %v2546
  %v4260 = vpop.f32.mrf.mxu0
  %v4261 = vadd.f32 0.0, %v4260
  %v4262 = vpop.f32.mrf.mxu0
  %v4263 = vpop.f32.mrf.mxu0
  %v4264 = vadd.f32 0.0, %v4263
  %v4265 = vpop.f32.mrf.mxu0
  %4266 = vmatprep.mubr.bf16.mxu0 %v2563
  %4267 = vmatmul.mubr.bf16.gmra.mxu0 %v2562
  %v4268 = vpop.f32.mrf.mxu0
  %v4269 = vadd.f32 0.0, %v4268
  %v4270 = vpop.f32.mrf.mxu0
  %v4271 = vpop.f32.mrf.mxu0
  %v4272 = vadd.f32 0.0, %v4271
  %v4273 = vpop.f32.mrf.mxu0
  %4274 = vmatprep.mubr.bf16.mxu0 %v2579
  %4275 = vmatmul.mubr.bf16.gmra.mxu0 %v2578
  %v4276 = vpop.f32.mrf.mxu0
  %v4277 = vadd.f32 0.0, %v4276
  %v4278 = vpop.f32.mrf.mxu0
  %v4279 = vpop.f32.mrf.mxu0
  %v4280 = vadd.f32 0.0, %v4279
  %v4281 = vpop.f32.mrf.mxu0
  %4282 = vmatprep.mubr.bf16.mxu0 %v2595
  %4283 = vmatmul.mubr.bf16.gmra.mxu0 %v2594
  %v4284 = vpop.f32.mrf.mxu0
  %v4285 = vadd.f32 0.0, %v4284
  %v4286 = vpop.f32.mrf.mxu0
  %v4287 = vpop.f32.mrf.mxu0
  %v4288 = vadd.f32 0.0, %v4287
  %v4289 = vpop.f32.mrf.mxu0
  %4290 = vmatprep.mubr.bf16.mxu0 %v2611
  %4291 = vmatmul.mubr.bf16.gmra.mxu0 %v2610
  %v4292 = vpop.f32.mrf.mxu0
  %v4293 = vadd.f32 0.0, %v4292
  %v4294 = vpop.f32.mrf.mxu0
  %v4295 = vpop.f32.mrf.mxu0
  %v4296 = vadd.f32 0.0, %v4295
  %v4297 = vpop.f32.mrf.mxu0
  %4298 = vmatprep.mubr.bf16.mxu0 %v2627
  %4299 = vmatmul.mubr.bf16.gmra.mxu0 %v2626
  %v4300 = vpop.f32.mrf.mxu0
  %v4301 = vadd.f32 0.0, %v4300
  %v4302 = vpop.f32.mrf.mxu0
  %v4303 = vpop.f32.mrf.mxu0
  %v4304 = vadd.f32 0.0, %v4303
  %v4305 = vpop.f32.mrf.mxu0
  %4306 = vmatprep.mubr.bf16.mxu0 %v2643
  %4307 = vmatmul.mubr.bf16.gmra.mxu0 %v2642
  %v4308 = vpop.f32.mrf.mxu0
  %v4309 = vadd.f32 0.0, %v4308
  %v4310 = vpop.f32.mrf.mxu0
  %v4311 = vpop.f32.mrf.mxu0
  %v4312 = vadd.f32 0.0, %v4311
  %v4313 = vpop.f32.mrf.mxu0
  %4314 = vmatprep.mubr.bf16.mxu0 %v2659
  %4315 = vmatmul.mubr.bf16.gmra.mxu0 %v2658
  %v4316 = vpop.f32.mrf.mxu0
  %v4317 = vadd.f32 0.0, %v4316
  %v4318 = vpop.f32.mrf.mxu0
  %v4319 = vpop.f32.mrf.mxu0
  %v4320 = vadd.f32 0.0, %v4319
  %v4321 = vpop.f32.mrf.mxu0
  %4322 = vmatprep.mubr.bf16.mxu0 %v2675
  %4323 = vmatmul.mubr.bf16.gmra.mxu0 %v2674
  %v4324 = vpop.f32.mrf.mxu0
  %v4325 = vadd.f32 0.0, %v4324
  %v4326 = vpop.f32.mrf.mxu0
  %v4327 = vpop.f32.mrf.mxu0
  %v4328 = vadd.f32 0.0, %v4327
  %v4329 = vpop.f32.mrf.mxu0
  %4330 = vmatprep.mubr.bf16.mxu0 %v2691
  %4331 = vmatmul.mubr.bf16.gmra.mxu0 %v2690
  %v4332 = vpop.f32.mrf.mxu0
  %v4333 = vadd.f32 0.0, %v4332
  %v4334 = vpop.f32.mrf.mxu0
  %v4335 = vpop.f32.mrf.mxu0
  %v4336 = vadd.f32 0.0, %v4335
  %v4337 = vpop.f32.mrf.mxu0
  %4338 = vmatprep.mubr.bf16.mxu0 %v2707
  %4339 = vmatmul.mubr.bf16.gmra.mxu0 %v2706
  %v4340 = vpop.f32.mrf.mxu0
  %v4341 = vadd.f32 0.0, %v4340
  %v4342 = vpop.f32.mrf.mxu0
  %v4343 = vpop.f32.mrf.mxu0
  %v4344 = vadd.f32 0.0, %v4343
  %v4345 = vpop.f32.mrf.mxu0
  %4346 = vmatprep.mubr.bf16.mxu0 %v2723
  %4347 = vmatmul.mubr.bf16.gmra.mxu0 %v2722
  %v4348 = vpop.f32.mrf.mxu0
  %v4349 = vadd.f32 0.0, %v4348
  %v4350 = vpop.f32.mrf.mxu0
  %v4351 = vpop.f32.mrf.mxu0
  %v4352 = vadd.f32 0.0, %v4351
  %v4353 = vpop.f32.mrf.mxu0
  %4354 = vmatprep.mubr.bf16.mxu0 %v2739
  %4355 = vmatmul.mubr.bf16.gmra.mxu0 %v2738
  %v4356 = vpop.f32.mrf.mxu0
  %v4357 = vadd.f32 0.0, %v4356
  %v4358 = vpop.f32.mrf.mxu0
  %v4359 = vpop.f32.mrf.mxu0
  %v4360 = vadd.f32 0.0, %v4359
  %v4361 = vpop.f32.mrf.mxu0
  %4362 = vmatprep.mubr.bf16.mxu0 %v2755
  %4363 = vmatmul.mubr.bf16.gmra.mxu0 %v2754
  %v4364 = vpop.f32.mrf.mxu0
  %v4365 = vadd.f32 0.0, %v4364
  %v4366 = vpop.f32.mrf.mxu0
  %v4367 = vpop.f32.mrf.mxu0
  %v4368 = vadd.f32 0.0, %v4367
  %v4369 = vpop.f32.mrf.mxu0
  %4370 = vmatprep.mubr.bf16.mxu0 %v2771
  %4371 = vmatmul.mubr.bf16.gmra.mxu0 %v2770
  %v4372 = vpop.f32.mrf.mxu0
  %v4373 = vadd.f32 0.0, %v4372
  %v4374 = vpop.f32.mrf.mxu0
  %v4375 = vpop.f32.mrf.mxu0
  %v4376 = vadd.f32 0.0, %v4375
  %v4377 = vpop.f32.mrf.mxu0
  %4378 = vmatprep.mubr.bf16.mxu0 %v2787
  %4379 = vmatmul.mubr.bf16.gmra.mxu0 %v2786
  %v4380 = vpop.f32.mrf.mxu0
  %v4381 = vadd.f32 0.0, %v4380
  %v4382 = vpop.f32.mrf.mxu0
  %v4383 = vpop.f32.mrf.mxu0
  %v4384 = vadd.f32 0.0, %v4383
  %v4385 = vpop.f32.mrf.mxu0
  %4386 = vmatprep.mubr.bf16.mxu0 %v2803
  %4387 = vmatmul.mubr.bf16.gmra.mxu0 %v2802
  %v4388 = vpop.f32.mrf.mxu0
  %v4389 = vadd.f32 0.0, %v4388
  %v4390 = vpop.f32.mrf.mxu0
  %v4391 = vpop.f32.mrf.mxu0
  %v4392 = vadd.f32 0.0, %v4391
  %v4393 = vpop.f32.mrf.mxu0
  %4394 = vmatprep.mubr.bf16.mxu0 %v2819
  %4395 = vmatmul.mubr.bf16.gmra.mxu0 %v2818
  %v4396 = vpop.f32.mrf.mxu0
  %v4397 = vadd.f32 0.0, %v4396
  %v4398 = vpop.f32.mrf.mxu0
  %v4399 = vpop.f32.mrf.mxu0
  %v4400 = vadd.f32 0.0, %v4399
  %v4401 = vpop.f32.mrf.mxu0
  %4402 = vdwg.mxu0
  %4403 = vmatprep.subr.bf16.mxu0 0
  %4404 = vmatpush1.bf16.msra.mxu0 %v3881
  %4405 = vmatprep.subr.bf16.mxu0 0
  %4406 = vmatpush1.bf16.msra.mxu0 %v3880
  %4407 = vmatprep.subr.bf16.mxu0 0
  %4408 = vmatpush1.bf16.msra.mxu0 %v3879
  %4409 = vmatprep.subr.bf16.mxu0 0
  %4410 = vmatpush1.bf16.msra.mxu0 %v3878
  %4411 = vmatprep.subr.bf16.mxu0 0
  %4412 = vmatpush1.bf16.msra.mxu0 %v3877
  %4413 = vmatprep.subr.bf16.mxu0 0
  %4414 = vmatpush1.bf16.msra.mxu0 %v3876
  %4415 = vmatprep.subr.bf16.mxu0 0
  %4416 = vmatpush1.bf16.msra.mxu0 %v3875
  %4417 = vmatprep.subr.bf16.mxu0 0
  %4418 = vmatpush1.bf16.msra.mxu0 %v3874
  %4419 = vmatprep.subr.bf16.mxu0 0
  %4420 = vmatpush2.bf16.msra.mxu0 %v3889
  %4421 = vmatprep.subr.bf16.mxu0 0
  %4422 = vmatpush2.bf16.msra.mxu0 %v3888
  %4423 = vmatprep.subr.bf16.mxu0 0
  %4424 = vmatpush2.bf16.msra.mxu0 %v3887
  %4425 = vmatprep.subr.bf16.mxu0 0
  %4426 = vmatpush2.bf16.msra.mxu0 %v3886
  %4427 = vmatprep.subr.bf16.mxu0 0
  %4428 = vmatpush2.bf16.msra.mxu0 %v3885
  %4429 = vmatprep.subr.bf16.mxu0 0
  %4430 = vmatpush2.bf16.msra.mxu0 %v3884
  %4431 = vmatprep.subr.bf16.mxu0 0
  %4432 = vmatpush2.bf16.msra.mxu0 %v3883
  %4433 = vmatprep.subr.bf16.mxu0 0
  %4434 = vmatpush2.bf16.msra.mxu0 %v3882
  %4435 = vmatprep.mubr.bf16.mxu0 %v2325
  %4436 = vmatmul.mubr.bf16.gmra.mxu0 %v2324
  %v4437 = vpop.f32.mrf.mxu0
  %v4438 = vadd.f32 %v4149, %v4437
  %v4439 = vpop.f32.mrf.mxu0
  %v4440 = vpop.f32.mrf.mxu0
  %v4441 = vadd.f32 %v4152, %v4440
  %v4442 = vpop.f32.mrf.mxu0
  %4443 = vmatprep.mubr.bf16.mxu0 %v2341
  %4444 = vmatmul.mubr.bf16.gmra.mxu0 %v2340
  %v4445 = vpop.f32.mrf.mxu0
  %v4446 = vadd.f32 %v4157, %v4445
  %v4447 = vpop.f32.mrf.mxu0
  %v4448 = vpop.f32.mrf.mxu0
  %v4449 = vadd.f32 %v4160, %v4448
  %v4450 = vpop.f32.mrf.mxu0
  %4451 = vmatprep.mubr.bf16.mxu0 %v2357
  %4452 = vmatmul.mubr.bf16.gmra.mxu0 %v2356
  %v4453 = vpop.f32.mrf.mxu0
  %v4454 = vadd.f32 %v4165, %v4453
  %v4455 = vpop.f32.mrf.mxu0
  %v4456 = vpop.f32.mrf.mxu0
  %v4457 = vadd.f32 %v4168, %v4456
  %v4458 = vpop.f32.mrf.mxu0
  %4459 = vmatprep.mubr.bf16.mxu0 %v2373
  %4460 = vmatmul.mubr.bf16.gmra.mxu0 %v2372
  %v4461 = vpop.f32.mrf.mxu0
  %v4462 = vadd.f32 %v4173, %v4461
  %v4463 = vpop.f32.mrf.mxu0
  %v4464 = vpop.f32.mrf.mxu0
  %v4465 = vadd.f32 %v4176, %v4464
  %v4466 = vpop.f32.mrf.mxu0
  %4467 = vmatprep.mubr.bf16.mxu0 %v2389
  %4468 = vmatmul.mubr.bf16.gmra.mxu0 %v2388
  %v4469 = vpop.f32.mrf.mxu0
  %v4470 = vadd.f32 %v4181, %v4469
  %v4471 = vpop.f32.mrf.mxu0
  %v4472 = vpop.f32.mrf.mxu0
  %v4473 = vadd.f32 %v4184, %v4472
  %v4474 = vpop.f32.mrf.mxu0
  %4475 = vmatprep.mubr.bf16.mxu0 %v2405
  %4476 = vmatmul.mubr.bf16.gmra.mxu0 %v2404
  %v4477 = vpop.f32.mrf.mxu0
  %v4478 = vadd.f32 %v4189, %v4477
  %v4479 = vpop.f32.mrf.mxu0
  %v4480 = vpop.f32.mrf.mxu0
  %v4481 = vadd.f32 %v4192, %v4480
  %v4482 = vpop.f32.mrf.mxu0
  %4483 = vmatprep.mubr.bf16.mxu0 %v2421
  %4484 = vmatmul.mubr.bf16.gmra.mxu0 %v2420
  %v4485 = vpop.f32.mrf.mxu0
  %v4486 = vadd.f32 %v4197, %v4485
  %v4487 = vpop.f32.mrf.mxu0
  %v4488 = vpop.f32.mrf.mxu0
  %v4489 = vadd.f32 %v4200, %v4488
  %v4490 = vpop.f32.mrf.mxu0
  %4491 = vmatprep.mubr.bf16.mxu0 %v2437
  %4492 = vmatmul.mubr.bf16.gmra.mxu0 %v2436
  %v4493 = vpop.f32.mrf.mxu0
  %v4494 = vadd.f32 %v4205, %v4493
  %v4495 = vpop.f32.mrf.mxu0
  %v4496 = vpop.f32.mrf.mxu0
  %v4497 = vadd.f32 %v4208, %v4496
  %v4498 = vpop.f32.mrf.mxu0
  %4499 = vmatprep.mubr.bf16.mxu0 %v2453
  %4500 = vmatmul.mubr.bf16.gmra.mxu0 %v2452
  %v4501 = vpop.f32.mrf.mxu0
  %v4502 = vadd.f32 %v4213, %v4501
  %v4503 = vpop.f32.mrf.mxu0
  %v4504 = vpop.f32.mrf.mxu0
  %v4505 = vadd.f32 %v4216, %v4504
  %v4506 = vpop.f32.mrf.mxu0
  %4507 = vmatprep.mubr.bf16.mxu0 %v2469
  %4508 = vmatmul.mubr.bf16.gmra.mxu0 %v2468
  %v4509 = vpop.f32.mrf.mxu0
  %v4510 = vadd.f32 %v4221, %v4509
  %v4511 = vpop.f32.mrf.mxu0
  %v4512 = vpop.f32.mrf.mxu0
  %v4513 = vadd.f32 %v4224, %v4512
  %v4514 = vpop.f32.mrf.mxu0
  %4515 = vmatprep.mubr.bf16.mxu0 %v2485
  %4516 = vmatmul.mubr.bf16.gmra.mxu0 %v2484
  %v4517 = vpop.f32.mrf.mxu0
  %v4518 = vadd.f32 %v4229, %v4517
  %v4519 = vpop.f32.mrf.mxu0
  %v4520 = vpop.f32.mrf.mxu0
  %v4521 = vadd.f32 %v4232, %v4520
  %v4522 = vpop.f32.mrf.mxu0
  %4523 = vmatprep.mubr.bf16.mxu0 %v2501
  %4524 = vmatmul.mubr.bf16.gmra.mxu0 %v2500
  %v4525 = vpop.f32.mrf.mxu0
  %v4526 = vadd.f32 %v4237, %v4525
  %v4527 = vpop.f32.mrf.mxu0
  %v4528 = vpop.f32.mrf.mxu0
  %v4529 = vadd.f32 %v4240, %v4528
  %v4530 = vpop.f32.mrf.mxu0
  %4531 = vmatprep.mubr.bf16.mxu0 %v2517
  %4532 = vmatmul.mubr.bf16.gmra.mxu0 %v2516
  %v4533 = vpop.f32.mrf.mxu0
  %v4534 = vadd.f32 %v4245, %v4533
  %v4535 = vpop.f32.mrf.mxu0
  %v4536 = vpop.f32.mrf.mxu0
  %v4537 = vadd.f32 %v4248, %v4536
  %v4538 = vpop.f32.mrf.mxu0
  %4539 = vmatprep.mubr.bf16.mxu0 %v2533
  %4540 = vmatmul.mubr.bf16.gmra.mxu0 %v2532
  %v4541 = vpop.f32.mrf.mxu0
  %v4542 = vadd.f32 %v4253, %v4541
  %v4543 = vpop.f32.mrf.mxu0
  %v4544 = vpop.f32.mrf.mxu0
  %v4545 = vadd.f32 %v4256, %v4544
  %v4546 = vpop.f32.mrf.mxu0
  %4547 = vmatprep.mubr.bf16.mxu0 %v2549
  %4548 = vmatmul.mubr.bf16.gmra.mxu0 %v2548
  %v4549 = vpop.f32.mrf.mxu0
  %v4550 = vadd.f32 %v4261, %v4549
  %v4551 = vpop.f32.mrf.mxu0
  %v4552 = vpop.f32.mrf.mxu0
  %v4553 = vadd.f32 %v4264, %v4552
  %v4554 = vpop.f32.mrf.mxu0
  %4555 = vmatprep.mubr.bf16.mxu0 %v2565
  %4556 = vmatmul.mubr.bf16.gmra.mxu0 %v2564
  %v4557 = vpop.f32.mrf.mxu0
  %v4558 = vadd.f32 %v4269, %v4557
  %v4559 = vpop.f32.mrf.mxu0
  %v4560 = vpop.f32.mrf.mxu0
  %v4561 = vadd.f32 %v4272, %v4560
  %v4562 = vpop.f32.mrf.mxu0
  %4563 = vmatprep.mubr.bf16.mxu0 %v2581
  %4564 = vmatmul.mubr.bf16.gmra.mxu0 %v2580
  %v4565 = vpop.f32.mrf.mxu0
  %v4566 = vadd.f32 %v4277, %v4565
  %v4567 = vpop.f32.mrf.mxu0
  %v4568 = vpop.f32.mrf.mxu0
  %v4569 = vadd.f32 %v4280, %v4568
  %v4570 = vpop.f32.mrf.mxu0
  %4571 = vmatprep.mubr.bf16.mxu0 %v2597
  %4572 = vmatmul.mubr.bf16.gmra.mxu0 %v2596
  %v4573 = vpop.f32.mrf.mxu0
  %v4574 = vadd.f32 %v4285, %v4573
  %v4575 = vpop.f32.mrf.mxu0
  %v4576 = vpop.f32.mrf.mxu0
  %v4577 = vadd.f32 %v4288, %v4576
  %v4578 = vpop.f32.mrf.mxu0
  %4579 = vmatprep.mubr.bf16.mxu0 %v2613
  %4580 = vmatmul.mubr.bf16.gmra.mxu0 %v2612
  %v4581 = vpop.f32.mrf.mxu0
  %v4582 = vadd.f32 %v4293, %v4581
  %v4583 = vpop.f32.mrf.mxu0
  %v4584 = vpop.f32.mrf.mxu0
  %v4585 = vadd.f32 %v4296, %v4584
  %v4586 = vpop.f32.mrf.mxu0
  %4587 = vmatprep.mubr.bf16.mxu0 %v2629
  %4588 = vmatmul.mubr.bf16.gmra.mxu0 %v2628
  %v4589 = vpop.f32.mrf.mxu0
  %v4590 = vadd.f32 %v4301, %v4589
  %v4591 = vpop.f32.mrf.mxu0
  %v4592 = vpop.f32.mrf.mxu0
  %v4593 = vadd.f32 %v4304, %v4592
  %v4594 = vpop.f32.mrf.mxu0
  %4595 = vmatprep.mubr.bf16.mxu0 %v2645
  %4596 = vmatmul.mubr.bf16.gmra.mxu0 %v2644
  %v4597 = vpop.f32.mrf.mxu0
  %v4598 = vadd.f32 %v4309, %v4597
  %v4599 = vpop.f32.mrf.mxu0
  %v4600 = vpop.f32.mrf.mxu0
  %v4601 = vadd.f32 %v4312, %v4600
  %v4602 = vpop.f32.mrf.mxu0
  %4603 = vmatprep.mubr.bf16.mxu0 %v2661
  %4604 = vmatmul.mubr.bf16.gmra.mxu0 %v2660
  %v4605 = vpop.f32.mrf.mxu0
  %v4606 = vadd.f32 %v4317, %v4605
  %v4607 = vpop.f32.mrf.mxu0
  %v4608 = vpop.f32.mrf.mxu0
  %v4609 = vadd.f32 %v4320, %v4608
  %v4610 = vpop.f32.mrf.mxu0
  %4611 = vmatprep.mubr.bf16.mxu0 %v2677
  %4612 = vmatmul.mubr.bf16.gmra.mxu0 %v2676
  %v4613 = vpop.f32.mrf.mxu0
  %v4614 = vadd.f32 %v4325, %v4613
  %v4615 = vpop.f32.mrf.mxu0
  %v4616 = vpop.f32.mrf.mxu0
  %v4617 = vadd.f32 %v4328, %v4616
  %v4618 = vpop.f32.mrf.mxu0
  %4619 = vmatprep.mubr.bf16.mxu0 %v2693
  %4620 = vmatmul.mubr.bf16.gmra.mxu0 %v2692
  %v4621 = vpop.f32.mrf.mxu0
  %v4622 = vadd.f32 %v4333, %v4621
  %v4623 = vpop.f32.mrf.mxu0
  %v4624 = vpop.f32.mrf.mxu0
  %v4625 = vadd.f32 %v4336, %v4624
  %v4626 = vpop.f32.mrf.mxu0
  %4627 = vmatprep.mubr.bf16.mxu0 %v2709
  %4628 = vmatmul.mubr.bf16.gmra.mxu0 %v2708
  %v4629 = vpop.f32.mrf.mxu0
  %v4630 = vadd.f32 %v4341, %v4629
  %v4631 = vpop.f32.mrf.mxu0
  %v4632 = vpop.f32.mrf.mxu0
  %v4633 = vadd.f32 %v4344, %v4632
  %v4634 = vpop.f32.mrf.mxu0
  %4635 = vmatprep.mubr.bf16.mxu0 %v2725
  %4636 = vmatmul.mubr.bf16.gmra.mxu0 %v2724
  %v4637 = vpop.f32.mrf.mxu0
  %v4638 = vadd.f32 %v4349, %v4637
  %v4639 = vpop.f32.mrf.mxu0
  %v4640 = vpop.f32.mrf.mxu0
  %v4641 = vadd.f32 %v4352, %v4640
  %v4642 = vpop.f32.mrf.mxu0
  %4643 = vmatprep.mubr.bf16.mxu0 %v2741
  %4644 = vmatmul.mubr.bf16.gmra.mxu0 %v2740
  %v4645 = vpop.f32.mrf.mxu0
  %v4646 = vadd.f32 %v4357, %v4645
  %v4647 = vpop.f32.mrf.mxu0
  %v4648 = vpop.f32.mrf.mxu0
  %v4649 = vadd.f32 %v4360, %v4648
  %v4650 = vpop.f32.mrf.mxu0
  %4651 = vmatprep.mubr.bf16.mxu0 %v2757
  %4652 = vmatmul.mubr.bf16.gmra.mxu0 %v2756
  %v4653 = vpop.f32.mrf.mxu0
  %v4654 = vadd.f32 %v4365, %v4653
  %v4655 = vpop.f32.mrf.mxu0
  %v4656 = vpop.f32.mrf.mxu0
  %v4657 = vadd.f32 %v4368, %v4656
  %v4658 = vpop.f32.mrf.mxu0
  %4659 = vmatprep.mubr.bf16.mxu0 %v2773
  %4660 = vmatmul.mubr.bf16.gmra.mxu0 %v2772
  %v4661 = vpop.f32.mrf.mxu0
  %v4662 = vadd.f32 %v4373, %v4661
  %v4663 = vpop.f32.mrf.mxu0
  %v4664 = vpop.f32.mrf.mxu0
  %v4665 = vadd.f32 %v4376, %v4664
  %v4666 = vpop.f32.mrf.mxu0
  %4667 = vmatprep.mubr.bf16.mxu0 %v2789
  %4668 = vmatmul.mubr.bf16.gmra.mxu0 %v2788
  %v4669 = vpop.f32.mrf.mxu0
  %v4670 = vadd.f32 %v4381, %v4669
  %v4671 = vpop.f32.mrf.mxu0
  %v4672 = vpop.f32.mrf.mxu0
  %v4673 = vadd.f32 %v4384, %v4672
  %v4674 = vpop.f32.mrf.mxu0
  %4675 = vmatprep.mubr.bf16.mxu0 %v2805
  %4676 = vmatmul.mubr.bf16.gmra.mxu0 %v2804
  %v4677 = vpop.f32.mrf.mxu0
  %v4678 = vadd.f32 %v4389, %v4677
  %v4679 = vpop.f32.mrf.mxu0
  %v4680 = vpop.f32.mrf.mxu0
  %v4681 = vadd.f32 %v4392, %v4680
  %v4682 = vpop.f32.mrf.mxu0
  %4683 = vmatprep.mubr.bf16.mxu0 %v2821
  %4684 = vmatmul.mubr.bf16.gmra.mxu0 %v2820
  %v4685 = vpop.f32.mrf.mxu0
  %v4686 = vadd.f32 %v4397, %v4685
  %v4687 = vpop.f32.mrf.mxu0
  %v4688 = vpop.f32.mrf.mxu0
  %v4689 = vadd.f32 %v4400, %v4688
  %v4690 = vpop.f32.mrf.mxu0
  %4691 = vdwg.mxu0
  %4692 = vmatprep.subr.bf16.mxu0 0
  %4693 = vmatpush1.bf16.msra.mxu0 %v3897
  %4694 = vmatprep.subr.bf16.mxu0 0
  %4695 = vmatpush1.bf16.msra.mxu0 %v3896
  %4696 = vmatprep.subr.bf16.mxu0 0
  %4697 = vmatpush1.bf16.msra.mxu0 %v3895
  %4698 = vmatprep.subr.bf16.mxu0 0
  %4699 = vmatpush1.bf16.msra.mxu0 %v3894
  %4700 = vmatprep.subr.bf16.mxu0 0
  %4701 = vmatpush1.bf16.msra.mxu0 %v3893
  %4702 = vmatprep.subr.bf16.mxu0 0
  %4703 = vmatpush1.bf16.msra.mxu0 %v3892
  %4704 = vmatprep.subr.bf16.mxu0 0
  %4705 = vmatpush1.bf16.msra.mxu0 %v3891
  %4706 = vmatprep.subr.bf16.mxu0 0
  %4707 = vmatpush1.bf16.msra.mxu0 %v3890
  %4708 = vmatprep.subr.bf16.mxu0 0
  %4709 = vmatpush2.bf16.msra.mxu0 %v3905
  %4710 = vmatprep.subr.bf16.mxu0 0
  %4711 = vmatpush2.bf16.msra.mxu0 %v3904
  %4712 = vmatprep.subr.bf16.mxu0 0
  %4713 = vmatpush2.bf16.msra.mxu0 %v3903
  %4714 = vmatprep.subr.bf16.mxu0 0
  %4715 = vmatpush2.bf16.msra.mxu0 %v3902
  %4716 = vmatprep.subr.bf16.mxu0 0
  %4717 = vmatpush2.bf16.msra.mxu0 %v3901
  %4718 = vmatprep.subr.bf16.mxu0 0
  %4719 = vmatpush2.bf16.msra.mxu0 %v3900
  %4720 = vmatprep.subr.bf16.mxu0 0
  %4721 = vmatpush2.bf16.msra.mxu0 %v3899
  %4722 = vmatprep.subr.bf16.mxu0 0
  %4723 = vmatpush2.bf16.msra.mxu0 %v3898
  %4724 = vmatprep.mubr.bf16.mxu0 %v2327
  %4725 = vmatmul.mubr.bf16.gmra.mxu0 %v2326
  %v4726 = vpop.f32.mrf.mxu0
  %v4727 = vadd.f32 %v4438, %v4726
  %v4728 = vpop.f32.mrf.mxu0
  %v4729 = vpop.f32.mrf.mxu0
  %v4730 = vadd.f32 %v4441, %v4729
  %v4731 = vpop.f32.mrf.mxu0
  %4732 = vmatprep.mubr.bf16.mxu0 %v2343
  %4733 = vmatmul.mubr.bf16.gmra.mxu0 %v2342
  %v4734 = vpop.f32.mrf.mxu0
  %v4735 = vadd.f32 %v4446, %v4734
  %v4736 = vpop.f32.mrf.mxu0
  %v4737 = vpop.f32.mrf.mxu0
  %v4738 = vadd.f32 %v4449, %v4737
  %v4739 = vpop.f32.mrf.mxu0
  %4740 = vmatprep.mubr.bf16.mxu0 %v2359
  %4741 = vmatmul.mubr.bf16.gmra.mxu0 %v2358
  %v4742 = vpop.f32.mrf.mxu0
  %v4743 = vadd.f32 %v4454, %v4742
  %v4744 = vpop.f32.mrf.mxu0
  %v4745 = vpop.f32.mrf.mxu0
  %v4746 = vadd.f32 %v4457, %v4745
  %v4747 = vpop.f32.mrf.mxu0
  %4748 = vmatprep.mubr.bf16.mxu0 %v2375
  %4749 = vmatmul.mubr.bf16.gmra.mxu0 %v2374
  %v4750 = vpop.f32.mrf.mxu0
  %v4751 = vadd.f32 %v4462, %v4750
  %v4752 = vpop.f32.mrf.mxu0
  %v4753 = vpop.f32.mrf.mxu0
  %v4754 = vadd.f32 %v4465, %v4753
  %v4755 = vpop.f32.mrf.mxu0
  %4756 = vmatprep.mubr.bf16.mxu0 %v2391
  %4757 = vmatmul.mubr.bf16.gmra.mxu0 %v2390
  %v4758 = vpop.f32.mrf.mxu0
  %v4759 = vadd.f32 %v4470, %v4758
  %v4760 = vpop.f32.mrf.mxu0
  %v4761 = vpop.f32.mrf.mxu0
  %v4762 = vadd.f32 %v4473, %v4761
  %v4763 = vpop.f32.mrf.mxu0
  %4764 = vmatprep.mubr.bf16.mxu0 %v2407
  %4765 = vmatmul.mubr.bf16.gmra.mxu0 %v2406
  %v4766 = vpop.f32.mrf.mxu0
  %v4767 = vadd.f32 %v4478, %v4766
  %v4768 = vpop.f32.mrf.mxu0
  %v4769 = vpop.f32.mrf.mxu0
  %v4770 = vadd.f32 %v4481, %v4769
  %v4771 = vpop.f32.mrf.mxu0
  %4772 = vmatprep.mubr.bf16.mxu0 %v2423
  %4773 = vmatmul.mubr.bf16.gmra.mxu0 %v2422
  %v4774 = vpop.f32.mrf.mxu0
  %v4775 = vadd.f32 %v4486, %v4774
  %v4776 = vpop.f32.mrf.mxu0
  %v4777 = vpop.f32.mrf.mxu0
  %v4778 = vadd.f32 %v4489, %v4777
  %v4779 = vpop.f32.mrf.mxu0
  %4780 = vmatprep.mubr.bf16.mxu0 %v2439
  %4781 = vmatmul.mubr.bf16.gmra.mxu0 %v2438
  %v4782 = vpop.f32.mrf.mxu0
  %v4783 = vadd.f32 %v4494, %v4782
  %v4784 = vpop.f32.mrf.mxu0
  %v4785 = vpop.f32.mrf.mxu0
  %v4786 = vadd.f32 %v4497, %v4785
  %v4787 = vpop.f32.mrf.mxu0
  %4788 = vmatprep.mubr.bf16.mxu0 %v2455
  %4789 = vmatmul.mubr.bf16.gmra.mxu0 %v2454
  %v4790 = vpop.f32.mrf.mxu0
  %v4791 = vadd.f32 %v4502, %v4790
  %v4792 = vpop.f32.mrf.mxu0
  %v4793 = vpop.f32.mrf.mxu0
  %v4794 = vadd.f32 %v4505, %v4793
  %v4795 = vpop.f32.mrf.mxu0
  %4796 = vmatprep.mubr.bf16.mxu0 %v2471
  %4797 = vmatmul.mubr.bf16.gmra.mxu0 %v2470
  %v4798 = vpop.f32.mrf.mxu0
  %v4799 = vadd.f32 %v4510, %v4798
  %v4800 = vpop.f32.mrf.mxu0
  %v4801 = vpop.f32.mrf.mxu0
  %v4802 = vadd.f32 %v4513, %v4801
  %v4803 = vpop.f32.mrf.mxu0
  %4804 = vmatprep.mubr.bf16.mxu0 %v2487
  %4805 = vmatmul.mubr.bf16.gmra.mxu0 %v2486
  %v4806 = vpop.f32.mrf.mxu0
  %v4807 = vadd.f32 %v4518, %v4806
  %v4808 = vpop.f32.mrf.mxu0
  %v4809 = vpop.f32.mrf.mxu0
  %v4810 = vadd.f32 %v4521, %v4809
  %v4811 = vpop.f32.mrf.mxu0
  %4812 = vmatprep.mubr.bf16.mxu0 %v2503
  %4813 = vmatmul.mubr.bf16.gmra.mxu0 %v2502
  %v4814 = vpop.f32.mrf.mxu0
  %v4815 = vadd.f32 %v4526, %v4814
  %v4816 = vpop.f32.mrf.mxu0
  %v4817 = vpop.f32.mrf.mxu0
  %v4818 = vadd.f32 %v4529, %v4817
  %v4819 = vpop.f32.mrf.mxu0
  %4820 = vmatprep.mubr.bf16.mxu0 %v2519
  %4821 = vmatmul.mubr.bf16.gmra.mxu0 %v2518
  %v4822 = vpop.f32.mrf.mxu0
  %v4823 = vadd.f32 %v4534, %v4822
  %v4824 = vpop.f32.mrf.mxu0
  %v4825 = vpop.f32.mrf.mxu0
  %v4826 = vadd.f32 %v4537, %v4825
  %v4827 = vpop.f32.mrf.mxu0
  %4828 = vmatprep.mubr.bf16.mxu0 %v2535
  %4829 = vmatmul.mubr.bf16.gmra.mxu0 %v2534
  %v4830 = vpop.f32.mrf.mxu0
  %v4831 = vadd.f32 %v4542, %v4830
  %v4832 = vpop.f32.mrf.mxu0
  %v4833 = vpop.f32.mrf.mxu0
  %v4834 = vadd.f32 %v4545, %v4833
  %v4835 = vpop.f32.mrf.mxu0
  %4836 = vmatprep.mubr.bf16.mxu0 %v2551
  %4837 = vmatmul.mubr.bf16.gmra.mxu0 %v2550
  %v4838 = vpop.f32.mrf.mxu0
  %v4839 = vadd.f32 %v4550, %v4838
  %v4840 = vpop.f32.mrf.mxu0
  %v4841 = vpop.f32.mrf.mxu0
  %v4842 = vadd.f32 %v4553, %v4841
  %v4843 = vpop.f32.mrf.mxu0
  %4844 = vmatprep.mubr.bf16.mxu0 %v2567
  %4845 = vmatmul.mubr.bf16.gmra.mxu0 %v2566
  %v4846 = vpop.f32.mrf.mxu0
  %v4847 = vadd.f32 %v4558, %v4846
  %v4848 = vpop.f32.mrf.mxu0
  %v4849 = vpop.f32.mrf.mxu0
  %v4850 = vadd.f32 %v4561, %v4849
  %v4851 = vpop.f32.mrf.mxu0
  %4852 = vmatprep.mubr.bf16.mxu0 %v2583
  %4853 = vmatmul.mubr.bf16.gmra.mxu0 %v2582
  %v4854 = vpop.f32.mrf.mxu0
  %v4855 = vadd.f32 %v4566, %v4854
  %v4856 = vpop.f32.mrf.mxu0
  %v4857 = vpop.f32.mrf.mxu0
  %v4858 = vadd.f32 %v4569, %v4857
  %v4859 = vpop.f32.mrf.mxu0
  %4860 = vmatprep.mubr.bf16.mxu0 %v2599
  %4861 = vmatmul.mubr.bf16.gmra.mxu0 %v2598
  %v4862 = vpop.f32.mrf.mxu0
  %v4863 = vadd.f32 %v4574, %v4862
  %v4864 = vpop.f32.mrf.mxu0
  %v4865 = vpop.f32.mrf.mxu0
  %v4866 = vadd.f32 %v4577, %v4865
  %v4867 = vpop.f32.mrf.mxu0
  %4868 = vmatprep.mubr.bf16.mxu0 %v2615
  %4869 = vmatmul.mubr.bf16.gmra.mxu0 %v2614
  %v4870 = vpop.f32.mrf.mxu0
  %v4871 = vadd.f32 %v4582, %v4870
  %v4872 = vpop.f32.mrf.mxu0
  %v4873 = vpop.f32.mrf.mxu0
  %v4874 = vadd.f32 %v4585, %v4873
  %v4875 = vpop.f32.mrf.mxu0
  %4876 = vmatprep.mubr.bf16.mxu0 %v2631
  %4877 = vmatmul.mubr.bf16.gmra.mxu0 %v2630
  %v4878 = vpop.f32.mrf.mxu0
  %v4879 = vadd.f32 %v4590, %v4878
  %v4880 = vpop.f32.mrf.mxu0
  %v4881 = vpop.f32.mrf.mxu0
  %v4882 = vadd.f32 %v4593, %v4881
  %v4883 = vpop.f32.mrf.mxu0
  %4884 = vmatprep.mubr.bf16.mxu0 %v2647
  %4885 = vmatmul.mubr.bf16.gmra.mxu0 %v2646
  %v4886 = vpop.f32.mrf.mxu0
  %v4887 = vadd.f32 %v4598, %v4886
  %v4888 = vpop.f32.mrf.mxu0
  %v4889 = vpop.f32.mrf.mxu0
  %v4890 = vadd.f32 %v4601, %v4889
  %v4891 = vpop.f32.mrf.mxu0
  %4892 = vmatprep.mubr.bf16.mxu0 %v2663
  %4893 = vmatmul.mubr.bf16.gmra.mxu0 %v2662
  %v4894 = vpop.f32.mrf.mxu0
  %v4895 = vadd.f32 %v4606, %v4894
  %v4896 = vpop.f32.mrf.mxu0
  %v4897 = vpop.f32.mrf.mxu0
  %v4898 = vadd.f32 %v4609, %v4897
  %v4899 = vpop.f32.mrf.mxu0
  %4900 = vmatprep.mubr.bf16.mxu0 %v2679
  %4901 = vmatmul.mubr.bf16.gmra.mxu0 %v2678
  %v4902 = vpop.f32.mrf.mxu0
  %v4903 = vadd.f32 %v4614, %v4902
  %v4904 = vpop.f32.mrf.mxu0
  %v4905 = vpop.f32.mrf.mxu0
  %v4906 = vadd.f32 %v4617, %v4905
  %v4907 = vpop.f32.mrf.mxu0
  %4908 = vmatprep.mubr.bf16.mxu0 %v2695
  %4909 = vmatmul.mubr.bf16.gmra.mxu0 %v2694
  %v4910 = vpop.f32.mrf.mxu0
  %v4911 = vadd.f32 %v4622, %v4910
  %v4912 = vpop.f32.mrf.mxu0
  %v4913 = vpop.f32.mrf.mxu0
  %v4914 = vadd.f32 %v4625, %v4913
  %v4915 = vpop.f32.mrf.mxu0
  %4916 = vmatprep.mubr.bf16.mxu0 %v2711
  %4917 = vmatmul.mubr.bf16.gmra.mxu0 %v2710
  %v4918 = vpop.f32.mrf.mxu0
  %v4919 = vadd.f32 %v4630, %v4918
  %v4920 = vpop.f32.mrf.mxu0
  %v4921 = vpop.f32.mrf.mxu0
  %v4922 = vadd.f32 %v4633, %v4921
  %v4923 = vpop.f32.mrf.mxu0
  %4924 = vmatprep.mubr.bf16.mxu0 %v2727
  %4925 = vmatmul.mubr.bf16.gmra.mxu0 %v2726
  %v4926 = vpop.f32.mrf.mxu0
  %v4927 = vadd.f32 %v4638, %v4926
  %v4928 = vpop.f32.mrf.mxu0
  %v4929 = vpop.f32.mrf.mxu0
  %v4930 = vadd.f32 %v4641, %v4929
  %v4931 = vpop.f32.mrf.mxu0
  %4932 = vmatprep.mubr.bf16.mxu0 %v2743
  %4933 = vmatmul.mubr.bf16.gmra.mxu0 %v2742
  %v4934 = vpop.f32.mrf.mxu0
  %v4935 = vadd.f32 %v4646, %v4934
  %v4936 = vpop.f32.mrf.mxu0
  %v4937 = vpop.f32.mrf.mxu0
  %v4938 = vadd.f32 %v4649, %v4937
  %v4939 = vpop.f32.mrf.mxu0
  %4940 = vmatprep.mubr.bf16.mxu0 %v2759
  %4941 = vmatmul.mubr.bf16.gmra.mxu0 %v2758
  %v4942 = vpop.f32.mrf.mxu0
  %v4943 = vadd.f32 %v4654, %v4942
  %v4944 = vpop.f32.mrf.mxu0
  %v4945 = vpop.f32.mrf.mxu0
  %v4946 = vadd.f32 %v4657, %v4945
  %v4947 = vpop.f32.mrf.mxu0
  %4948 = vmatprep.mubr.bf16.mxu0 %v2775
  %4949 = vmatmul.mubr.bf16.gmra.mxu0 %v2774
  %v4950 = vpop.f32.mrf.mxu0
  %v4951 = vadd.f32 %v4662, %v4950
  %v4952 = vpop.f32.mrf.mxu0
  %v4953 = vpop.f32.mrf.mxu0
  %v4954 = vadd.f32 %v4665, %v4953
  %v4955 = vpop.f32.mrf.mxu0
  %4956 = vmatprep.mubr.bf16.mxu0 %v2791
  %4957 = vmatmul.mubr.bf16.gmra.mxu0 %v2790
  %v4958 = vpop.f32.mrf.mxu0
  %v4959 = vadd.f32 %v4670, %v4958
  %v4960 = vpop.f32.mrf.mxu0
  %v4961 = vpop.f32.mrf.mxu0
  %v4962 = vadd.f32 %v4673, %v4961
  %v4963 = vpop.f32.mrf.mxu0
  %4964 = vmatprep.mubr.bf16.mxu0 %v2807
  %4965 = vmatmul.mubr.bf16.gmra.mxu0 %v2806
  %v4966 = vpop.f32.mrf.mxu0
  %v4967 = vadd.f32 %v4678, %v4966
  %v4968 = vpop.f32.mrf.mxu0
  %v4969 = vpop.f32.mrf.mxu0
  %v4970 = vadd.f32 %v4681, %v4969
  %v4971 = vpop.f32.mrf.mxu0
  %4972 = vmatprep.mubr.bf16.mxu0 %v2823
  %4973 = vmatmul.mubr.bf16.gmra.mxu0 %v2822
  %v4974 = vpop.f32.mrf.mxu0
  %v4975 = vadd.f32 %v4686, %v4974
  %v4976 = vpop.f32.mrf.mxu0
  %v4977 = vpop.f32.mrf.mxu0
  %v4978 = vadd.f32 %v4689, %v4977
  %v4979 = vpop.f32.mrf.mxu0
  %4980 = vdwg.mxu0
  %4981 = vmatprep.subr.bf16.mxu0 0
  %4982 = vmatpush1.bf16.msra.mxu0 %v3913
  %4983 = vmatprep.subr.bf16.mxu0 0
  %4984 = vmatpush1.bf16.msra.mxu0 %v3912
  %4985 = vmatprep.subr.bf16.mxu0 0
  %4986 = vmatpush1.bf16.msra.mxu0 %v3911
  %4987 = vmatprep.subr.bf16.mxu0 0
  %4988 = vmatpush1.bf16.msra.mxu0 %v3910
  %4989 = vmatprep.subr.bf16.mxu0 0
  %4990 = vmatpush1.bf16.msra.mxu0 %v3909
  %4991 = vmatprep.subr.bf16.mxu0 0
  %4992 = vmatpush1.bf16.msra.mxu0 %v3908
  %4993 = vmatprep.subr.bf16.mxu0 0
  %4994 = vmatpush1.bf16.msra.mxu0 %v3907
  %4995 = vmatprep.subr.bf16.mxu0 0
  %4996 = vmatpush1.bf16.msra.mxu0 %v3906
  %4997 = vmatprep.subr.bf16.mxu0 0
  %4998 = vmatpush2.bf16.msra.mxu0 %v3921
  %4999 = vmatprep.subr.bf16.mxu0 0
  %5000 = vmatpush2.bf16.msra.mxu0 %v3920
  %5001 = vmatprep.subr.bf16.mxu0 0
  %5002 = vmatpush2.bf16.msra.mxu0 %v3919
  %5003 = vmatprep.subr.bf16.mxu0 0
  %5004 = vmatpush2.bf16.msra.mxu0 %v3918
  %5005 = vmatprep.subr.bf16.mxu0 0
  %5006 = vmatpush2.bf16.msra.mxu0 %v3917
  %5007 = vmatprep.subr.bf16.mxu0 0
  %5008 = vmatpush2.bf16.msra.mxu0 %v3916
  %5009 = vmatprep.subr.bf16.mxu0 0
  %5010 = vmatpush2.bf16.msra.mxu0 %v3915
  %5011 = vmatprep.subr.bf16.mxu0 0
  %5012 = vmatpush2.bf16.msra.mxu0 %v3914
  %5013 = vmatprep.mubr.bf16.mxu0 %v2329
  %5014 = vmatmul.mubr.bf16.gmra.mxu0 %v2328
  %v5015 = vpop.f32.mrf.mxu0
  %v5016 = vadd.f32 %v4727, %v5015
  %v5017 = vpop.f32.mrf.mxu0
  %v5018 = vpop.f32.mrf.mxu0
  %v5019 = vadd.f32 %v4730, %v5018
  %v5020 = vpop.f32.mrf.mxu0
  %5021 = vmatprep.mubr.bf16.mxu0 %v2345
  %5022 = vmatmul.mubr.bf16.gmra.mxu0 %v2344
  %v5023 = vpop.f32.mrf.mxu0
  %v5024 = vadd.f32 %v4735, %v5023
  %v5025 = vpop.f32.mrf.mxu0
  %v5026 = vpop.f32.mrf.mxu0
  %v5027 = vadd.f32 %v4738, %v5026
  %v5028 = vpop.f32.mrf.mxu0
  %5029 = vmatprep.mubr.bf16.mxu0 %v2361
  %5030 = vmatmul.mubr.bf16.gmra.mxu0 %v2360
  %v5031 = vpop.f32.mrf.mxu0
  %v5032 = vadd.f32 %v4743, %v5031
  %v5033 = vpop.f32.mrf.mxu0
  %v5034 = vpop.f32.mrf.mxu0
  %v5035 = vadd.f32 %v4746, %v5034
  %v5036 = vpop.f32.mrf.mxu0
  %5037 = vmatprep.mubr.bf16.mxu0 %v2377
  %5038 = vmatmul.mubr.bf16.gmra.mxu0 %v2376
  %v5039 = vpop.f32.mrf.mxu0
  %v5040 = vadd.f32 %v4751, %v5039
  %v5041 = vpop.f32.mrf.mxu0
  %v5042 = vpop.f32.mrf.mxu0
  %v5043 = vadd.f32 %v4754, %v5042
  %v5044 = vpop.f32.mrf.mxu0
  %5045 = vmatprep.mubr.bf16.mxu0 %v2393
  %5046 = vmatmul.mubr.bf16.gmra.mxu0 %v2392
  %v5047 = vpop.f32.mrf.mxu0
  %v5048 = vadd.f32 %v4759, %v5047
  %v5049 = vpop.f32.mrf.mxu0
  %v5050 = vpop.f32.mrf.mxu0
  %v5051 = vadd.f32 %v4762, %v5050
  %v5052 = vpop.f32.mrf.mxu0
  %5053 = vmatprep.mubr.bf16.mxu0 %v2409
  %5054 = vmatmul.mubr.bf16.gmra.mxu0 %v2408
  %v5055 = vpop.f32.mrf.mxu0
  %v5056 = vadd.f32 %v4767, %v5055
  %v5057 = vpop.f32.mrf.mxu0
  %v5058 = vpop.f32.mrf.mxu0
  %v5059 = vadd.f32 %v4770, %v5058
  %v5060 = vpop.f32.mrf.mxu0
  %5061 = vmatprep.mubr.bf16.mxu0 %v2425
  %5062 = vmatmul.mubr.bf16.gmra.mxu0 %v2424
  %v5063 = vpop.f32.mrf.mxu0
  %v5064 = vadd.f32 %v4775, %v5063
  %v5065 = vpop.f32.mrf.mxu0
  %v5066 = vpop.f32.mrf.mxu0
  %v5067 = vadd.f32 %v4778, %v5066
  %v5068 = vpop.f32.mrf.mxu0
  %5069 = vmatprep.mubr.bf16.mxu0 %v2441
  %5070 = vmatmul.mubr.bf16.gmra.mxu0 %v2440
  %v5071 = vpop.f32.mrf.mxu0
  %v5072 = vadd.f32 %v4783, %v5071
  %v5073 = vpop.f32.mrf.mxu0
  %v5074 = vpop.f32.mrf.mxu0
  %v5075 = vadd.f32 %v4786, %v5074
  %v5076 = vpop.f32.mrf.mxu0
  %5077 = vmatprep.mubr.bf16.mxu0 %v2457
  %5078 = vmatmul.mubr.bf16.gmra.mxu0 %v2456
  %v5079 = vpop.f32.mrf.mxu0
  %v5080 = vadd.f32 %v4791, %v5079
  %v5081 = vpop.f32.mrf.mxu0
  %v5082 = vpop.f32.mrf.mxu0
  %v5083 = vadd.f32 %v4794, %v5082
  %v5084 = vpop.f32.mrf.mxu0
  %5085 = vmatprep.mubr.bf16.mxu0 %v2473
  %5086 = vmatmul.mubr.bf16.gmra.mxu0 %v2472
  %v5087 = vpop.f32.mrf.mxu0
  %v5088 = vadd.f32 %v4799, %v5087
  %v5089 = vpop.f32.mrf.mxu0
  %v5090 = vpop.f32.mrf.mxu0
  %v5091 = vadd.f32 %v4802, %v5090
  %v5092 = vpop.f32.mrf.mxu0
  %5093 = vmatprep.mubr.bf16.mxu0 %v2489
  %5094 = vmatmul.mubr.bf16.gmra.mxu0 %v2488
  %v5095 = vpop.f32.mrf.mxu0
  %v5096 = vadd.f32 %v4807, %v5095
  %v5097 = vpop.f32.mrf.mxu0
  %v5098 = vpop.f32.mrf.mxu0
  %v5099 = vadd.f32 %v4810, %v5098
  %v5100 = vpop.f32.mrf.mxu0
  %5101 = vmatprep.mubr.bf16.mxu0 %v2505
  %5102 = vmatmul.mubr.bf16.gmra.mxu0 %v2504
  %v5103 = vpop.f32.mrf.mxu0
  %v5104 = vadd.f32 %v4815, %v5103
  %v5105 = vpop.f32.mrf.mxu0
  %v5106 = vpop.f32.mrf.mxu0
  %v5107 = vadd.f32 %v4818, %v5106
  %v5108 = vpop.f32.mrf.mxu0
  %5109 = vmatprep.mubr.bf16.mxu0 %v2521
  %5110 = vmatmul.mubr.bf16.gmra.mxu0 %v2520
  %v5111 = vpop.f32.mrf.mxu0
  %v5112 = vadd.f32 %v4823, %v5111
  %v5113 = vpop.f32.mrf.mxu0
  %v5114 = vpop.f32.mrf.mxu0
  %v5115 = vadd.f32 %v4826, %v5114
  %v5116 = vpop.f32.mrf.mxu0
  %5117 = vmatprep.mubr.bf16.mxu0 %v2537
  %5118 = vmatmul.mubr.bf16.gmra.mxu0 %v2536
  %v5119 = vpop.f32.mrf.mxu0
  %v5120 = vadd.f32 %v4831, %v5119
  %v5121 = vpop.f32.mrf.mxu0
  %v5122 = vpop.f32.mrf.mxu0
  %v5123 = vadd.f32 %v4834, %v5122
  %v5124 = vpop.f32.mrf.mxu0
  %5125 = vmatprep.mubr.bf16.mxu0 %v2553
  %5126 = vmatmul.mubr.bf16.gmra.mxu0 %v2552
  %v5127 = vpop.f32.mrf.mxu0
  %v5128 = vadd.f32 %v4839, %v5127
  %v5129 = vpop.f32.mrf.mxu0
  %v5130 = vpop.f32.mrf.mxu0
  %v5131 = vadd.f32 %v4842, %v5130
  %v5132 = vpop.f32.mrf.mxu0
  %5133 = vmatprep.mubr.bf16.mxu0 %v2569
  %5134 = vmatmul.mubr.bf16.gmra.mxu0 %v2568
  %v5135 = vpop.f32.mrf.mxu0
  %v5136 = vadd.f32 %v4847, %v5135
  %v5137 = vpop.f32.mrf.mxu0
  %v5138 = vpop.f32.mrf.mxu0
  %v5139 = vadd.f32 %v4850, %v5138
  %v5140 = vpop.f32.mrf.mxu0
  %5141 = vmatprep.mubr.bf16.mxu0 %v2585
  %5142 = vmatmul.mubr.bf16.gmra.mxu0 %v2584
  %v5143 = vpop.f32.mrf.mxu0
  %v5144 = vadd.f32 %v4855, %v5143
  %v5145 = vpop.f32.mrf.mxu0
  %v5146 = vpop.f32.mrf.mxu0
  %v5147 = vadd.f32 %v4858, %v5146
  %v5148 = vpop.f32.mrf.mxu0
  %5149 = vmatprep.mubr.bf16.mxu0 %v2601
  %5150 = vmatmul.mubr.bf16.gmra.mxu0 %v2600
  %v5151 = vpop.f32.mrf.mxu0
  %v5152 = vadd.f32 %v4863, %v5151
  %v5153 = vpop.f32.mrf.mxu0
  %v5154 = vpop.f32.mrf.mxu0
  %v5155 = vadd.f32 %v4866, %v5154
  %v5156 = vpop.f32.mrf.mxu0
  %5157 = vmatprep.mubr.bf16.mxu0 %v2617
  %5158 = vmatmul.mubr.bf16.gmra.mxu0 %v2616
  %v5159 = vpop.f32.mrf.mxu0
  %v5160 = vadd.f32 %v4871, %v5159
  %v5161 = vpop.f32.mrf.mxu0
  %v5162 = vpop.f32.mrf.mxu0
  %v5163 = vadd.f32 %v4874, %v5162
  %v5164 = vpop.f32.mrf.mxu0
  %5165 = vmatprep.mubr.bf16.mxu0 %v2633
  %5166 = vmatmul.mubr.bf16.gmra.mxu0 %v2632
  %v5167 = vpop.f32.mrf.mxu0
  %v5168 = vadd.f32 %v4879, %v5167
  %v5169 = vpop.f32.mrf.mxu0
  %v5170 = vpop.f32.mrf.mxu0
  %v5171 = vadd.f32 %v4882, %v5170
  %v5172 = vpop.f32.mrf.mxu0
  %5173 = vmatprep.mubr.bf16.mxu0 %v2649
  %5174 = vmatmul.mubr.bf16.gmra.mxu0 %v2648
  %v5175 = vpop.f32.mrf.mxu0
  %v5176 = vadd.f32 %v4887, %v5175
  %v5177 = vpop.f32.mrf.mxu0
  %v5178 = vpop.f32.mrf.mxu0
  %v5179 = vadd.f32 %v4890, %v5178
  %v5180 = vpop.f32.mrf.mxu0
  %5181 = vmatprep.mubr.bf16.mxu0 %v2665
  %5182 = vmatmul.mubr.bf16.gmra.mxu0 %v2664
  %v5183 = vpop.f32.mrf.mxu0
  %v5184 = vadd.f32 %v4895, %v5183
  %v5185 = vpop.f32.mrf.mxu0
  %v5186 = vpop.f32.mrf.mxu0
  %v5187 = vadd.f32 %v4898, %v5186
  %v5188 = vpop.f32.mrf.mxu0
  %5189 = vmatprep.mubr.bf16.mxu0 %v2681
  %5190 = vmatmul.mubr.bf16.gmra.mxu0 %v2680
  %v5191 = vpop.f32.mrf.mxu0
  %v5192 = vadd.f32 %v4903, %v5191
  %v5193 = vpop.f32.mrf.mxu0
  %v5194 = vpop.f32.mrf.mxu0
  %v5195 = vadd.f32 %v4906, %v5194
  %v5196 = vpop.f32.mrf.mxu0
  %5197 = vmatprep.mubr.bf16.mxu0 %v2697
  %5198 = vmatmul.mubr.bf16.gmra.mxu0 %v2696
  %v5199 = vpop.f32.mrf.mxu0
  %v5200 = vadd.f32 %v4911, %v5199
  %v5201 = vpop.f32.mrf.mxu0
  %v5202 = vpop.f32.mrf.mxu0
  %v5203 = vadd.f32 %v4914, %v5202
  %v5204 = vpop.f32.mrf.mxu0
  %5205 = vmatprep.mubr.bf16.mxu0 %v2713
  %5206 = vmatmul.mubr.bf16.gmra.mxu0 %v2712
  %v5207 = vpop.f32.mrf.mxu0
  %v5208 = vadd.f32 %v4919, %v5207
  %v5209 = vpop.f32.mrf.mxu0
  %v5210 = vpop.f32.mrf.mxu0
  %v5211 = vadd.f32 %v4922, %v5210
  %v5212 = vpop.f32.mrf.mxu0
  %5213 = vmatprep.mubr.bf16.mxu0 %v2729
  %5214 = vmatmul.mubr.bf16.gmra.mxu0 %v2728
  %v5215 = vpop.f32.mrf.mxu0
  %v5216 = vadd.f32 %v4927, %v5215
  %v5217 = vpop.f32.mrf.mxu0
  %v5218 = vpop.f32.mrf.mxu0
  %v5219 = vadd.f32 %v4930, %v5218
  %v5220 = vpop.f32.mrf.mxu0
  %5221 = vmatprep.mubr.bf16.mxu0 %v2745
  %5222 = vmatmul.mubr.bf16.gmra.mxu0 %v2744
  %v5223 = vpop.f32.mrf.mxu0
  %v5224 = vadd.f32 %v4935, %v5223
  %v5225 = vpop.f32.mrf.mxu0
  %v5226 = vpop.f32.mrf.mxu0
  %v5227 = vadd.f32 %v4938, %v5226
  %v5228 = vpop.f32.mrf.mxu0
  %5229 = vmatprep.mubr.bf16.mxu0 %v2761
  %5230 = vmatmul.mubr.bf16.gmra.mxu0 %v2760
  %v5231 = vpop.f32.mrf.mxu0
  %v5232 = vadd.f32 %v4943, %v5231
  %v5233 = vpop.f32.mrf.mxu0
  %v5234 = vpop.f32.mrf.mxu0
  %v5235 = vadd.f32 %v4946, %v5234
  %v5236 = vpop.f32.mrf.mxu0
  %5237 = vmatprep.mubr.bf16.mxu0 %v2777
  %5238 = vmatmul.mubr.bf16.gmra.mxu0 %v2776
  %v5239 = vpop.f32.mrf.mxu0
  %v5240 = vadd.f32 %v4951, %v5239
  %v5241 = vpop.f32.mrf.mxu0
  %v5242 = vpop.f32.mrf.mxu0
  %v5243 = vadd.f32 %v4954, %v5242
  %v5244 = vpop.f32.mrf.mxu0
  %5245 = vmatprep.mubr.bf16.mxu0 %v2793
  %5246 = vmatmul.mubr.bf16.gmra.mxu0 %v2792
  %v5247 = vpop.f32.mrf.mxu0
  %v5248 = vadd.f32 %v4959, %v5247
  %v5249 = vpop.f32.mrf.mxu0
  %v5250 = vpop.f32.mrf.mxu0
  %v5251 = vadd.f32 %v4962, %v5250
  %v5252 = vpop.f32.mrf.mxu0
  %5253 = vmatprep.mubr.bf16.mxu0 %v2809
  %5254 = vmatmul.mubr.bf16.gmra.mxu0 %v2808
  %v5255 = vpop.f32.mrf.mxu0
  %v5256 = vadd.f32 %v4967, %v5255
  %v5257 = vpop.f32.mrf.mxu0
  %v5258 = vpop.f32.mrf.mxu0
  %v5259 = vadd.f32 %v4970, %v5258
  %v5260 = vpop.f32.mrf.mxu0
  %5261 = vmatprep.mubr.bf16.mxu0 %v2825
  %5262 = vmatmul.mubr.bf16.gmra.mxu0 %v2824
  %v5263 = vpop.f32.mrf.mxu0
  %v5264 = vadd.f32 %v4975, %v5263
  %v5265 = vpop.f32.mrf.mxu0
  %v5266 = vpop.f32.mrf.mxu0
  %v5267 = vadd.f32 %v4978, %v5266
  %v5268 = vpop.f32.mrf.mxu0
  %5269 = vdwg.mxu0
  %5270 = vmatprep.subr.bf16.mxu0 0
  %5271 = vmatpush1.bf16.msra.mxu0 %v3929
  %5272 = vmatprep.subr.bf16.mxu0 0
  %5273 = vmatpush1.bf16.msra.mxu0 %v3928
  %5274 = vmatprep.subr.bf16.mxu0 0
  %5275 = vmatpush1.bf16.msra.mxu0 %v3927
  %5276 = vmatprep.subr.bf16.mxu0 0
  %5277 = vmatpush1.bf16.msra.mxu0 %v3926
  %5278 = vmatprep.subr.bf16.mxu0 0
  %5279 = vmatpush1.bf16.msra.mxu0 %v3925
  %5280 = vmatprep.subr.bf16.mxu0 0
  %5281 = vmatpush1.bf16.msra.mxu0 %v3924
  %5282 = vmatprep.subr.bf16.mxu0 0
  %5283 = vmatpush1.bf16.msra.mxu0 %v3923
  %5284 = vmatprep.subr.bf16.mxu0 0
  %5285 = vmatpush1.bf16.msra.mxu0 %v3922
  %5286 = vmatprep.subr.bf16.mxu0 0
  %5287 = vmatpush2.bf16.msra.mxu0 %v3937
  %5288 = vmatprep.subr.bf16.mxu0 0
  %5289 = vmatpush2.bf16.msra.mxu0 %v3936
  %5290 = vmatprep.subr.bf16.mxu0 0
  %5291 = vmatpush2.bf16.msra.mxu0 %v3935
  %5292 = vmatprep.subr.bf16.mxu0 0
  %5293 = vmatpush2.bf16.msra.mxu0 %v3934
  %5294 = vmatprep.subr.bf16.mxu0 0
  %5295 = vmatpush2.bf16.msra.mxu0 %v3933
  %5296 = vmatprep.subr.bf16.mxu0 0
  %5297 = vmatpush2.bf16.msra.mxu0 %v3932
  %5298 = vmatprep.subr.bf16.mxu0 0
  %5299 = vmatpush2.bf16.msra.mxu0 %v3931
  %5300 = vmatprep.subr.bf16.mxu0 0
  %5301 = vmatpush2.bf16.msra.mxu0 %v3930
  %5302 = vmatprep.mubr.bf16.mxu0 %v2331
  %5303 = vmatmul.mubr.bf16.gmra.mxu0 %v2330
  %v5304 = vpop.f32.mrf.mxu0
  %v5305 = vadd.f32 %v5016, %v5304
  %v5306 = vpop.f32.mrf.mxu0
  %v5307 = vpop.f32.mrf.mxu0
  %v5308 = vadd.f32 %v5019, %v5307
  %v5309 = vpop.f32.mrf.mxu0
  %5310 = vmatprep.mubr.bf16.mxu0 %v2347
  %5311 = vmatmul.mubr.bf16.gmra.mxu0 %v2346
  %v5312 = vpop.f32.mrf.mxu0
  %v5313 = vadd.f32 %v5024, %v5312
  %v5314 = vpop.f32.mrf.mxu0
  %v5315 = vpop.f32.mrf.mxu0
  %v5316 = vadd.f32 %v5027, %v5315
  %v5317 = vpop.f32.mrf.mxu0
  %5318 = vmatprep.mubr.bf16.mxu0 %v2363
  %5319 = vmatmul.mubr.bf16.gmra.mxu0 %v2362
  %v5320 = vpop.f32.mrf.mxu0
  %v5321 = vadd.f32 %v5032, %v5320
  %v5322 = vpop.f32.mrf.mxu0
  %v5323 = vpop.f32.mrf.mxu0
  %v5324 = vadd.f32 %v5035, %v5323
  %v5325 = vpop.f32.mrf.mxu0
  %5326 = vmatprep.mubr.bf16.mxu0 %v2379
  %5327 = vmatmul.mubr.bf16.gmra.mxu0 %v2378
  %v5328 = vpop.f32.mrf.mxu0
  %v5329 = vadd.f32 %v5040, %v5328
  %v5330 = vpop.f32.mrf.mxu0
  %v5331 = vpop.f32.mrf.mxu0
  %v5332 = vadd.f32 %v5043, %v5331
  %v5333 = vpop.f32.mrf.mxu0
  %5334 = vmatprep.mubr.bf16.mxu0 %v2395
  %5335 = vmatmul.mubr.bf16.gmra.mxu0 %v2394
  %v5336 = vpop.f32.mrf.mxu0
  %v5337 = vadd.f32 %v5048, %v5336
  %v5338 = vpop.f32.mrf.mxu0
  %v5339 = vpop.f32.mrf.mxu0
  %v5340 = vadd.f32 %v5051, %v5339
  %v5341 = vpop.f32.mrf.mxu0
  %5342 = vmatprep.mubr.bf16.mxu0 %v2411
  %5343 = vmatmul.mubr.bf16.gmra.mxu0 %v2410
  %v5344 = vpop.f32.mrf.mxu0
  %v5345 = vadd.f32 %v5056, %v5344
  %v5346 = vpop.f32.mrf.mxu0
  %v5347 = vpop.f32.mrf.mxu0
  %v5348 = vadd.f32 %v5059, %v5347
  %v5349 = vpop.f32.mrf.mxu0
  %5350 = vmatprep.mubr.bf16.mxu0 %v2427
  %5351 = vmatmul.mubr.bf16.gmra.mxu0 %v2426
  %v5352 = vpop.f32.mrf.mxu0
  %v5353 = vadd.f32 %v5064, %v5352
  %v5354 = vpop.f32.mrf.mxu0
  %v5355 = vpop.f32.mrf.mxu0
  %v5356 = vadd.f32 %v5067, %v5355
  %v5357 = vpop.f32.mrf.mxu0
  %5358 = vmatprep.mubr.bf16.mxu0 %v2443
  %5359 = vmatmul.mubr.bf16.gmra.mxu0 %v2442
  %v5360 = vpop.f32.mrf.mxu0
  %v5361 = vadd.f32 %v5072, %v5360
  %v5362 = vpop.f32.mrf.mxu0
  %v5363 = vpop.f32.mrf.mxu0
  %v5364 = vadd.f32 %v5075, %v5363
  %v5365 = vpop.f32.mrf.mxu0
  %5366 = vmatprep.mubr.bf16.mxu0 %v2459
  %5367 = vmatmul.mubr.bf16.gmra.mxu0 %v2458
  %v5368 = vpop.f32.mrf.mxu0
  %v5369 = vadd.f32 %v5080, %v5368
  %v5370 = vpop.f32.mrf.mxu0
  %v5371 = vpop.f32.mrf.mxu0
  %v5372 = vadd.f32 %v5083, %v5371
  %v5373 = vpop.f32.mrf.mxu0
  %5374 = vmatprep.mubr.bf16.mxu0 %v2475
  %5375 = vmatmul.mubr.bf16.gmra.mxu0 %v2474
  %v5376 = vpop.f32.mrf.mxu0
  %v5377 = vadd.f32 %v5088, %v5376
  %v5378 = vpop.f32.mrf.mxu0
  %v5379 = vpop.f32.mrf.mxu0
  %v5380 = vadd.f32 %v5091, %v5379
  %v5381 = vpop.f32.mrf.mxu0
  %5382 = vmatprep.mubr.bf16.mxu0 %v2491
  %5383 = vmatmul.mubr.bf16.gmra.mxu0 %v2490
  %v5384 = vpop.f32.mrf.mxu0
  %v5385 = vadd.f32 %v5096, %v5384
  %v5386 = vpop.f32.mrf.mxu0
  %v5387 = vpop.f32.mrf.mxu0
  %v5388 = vadd.f32 %v5099, %v5387
  %v5389 = vpop.f32.mrf.mxu0
  %5390 = vmatprep.mubr.bf16.mxu0 %v2507
  %5391 = vmatmul.mubr.bf16.gmra.mxu0 %v2506
  %v5392 = vpop.f32.mrf.mxu0
  %v5393 = vadd.f32 %v5104, %v5392
  %v5394 = vpop.f32.mrf.mxu0
  %v5395 = vpop.f32.mrf.mxu0
  %v5396 = vadd.f32 %v5107, %v5395
  %v5397 = vpop.f32.mrf.mxu0
  %5398 = vmatprep.mubr.bf16.mxu0 %v2523
  %5399 = vmatmul.mubr.bf16.gmra.mxu0 %v2522
  %v5400 = vpop.f32.mrf.mxu0
  %v5401 = vadd.f32 %v5112, %v5400
  %v5402 = vpop.f32.mrf.mxu0
  %v5403 = vpop.f32.mrf.mxu0
  %v5404 = vadd.f32 %v5115, %v5403
  %v5405 = vpop.f32.mrf.mxu0
  %5406 = vmatprep.mubr.bf16.mxu0 %v2539
  %5407 = vmatmul.mubr.bf16.gmra.mxu0 %v2538
  %v5408 = vpop.f32.mrf.mxu0
  %v5409 = vadd.f32 %v5120, %v5408
  %v5410 = vpop.f32.mrf.mxu0
  %v5411 = vpop.f32.mrf.mxu0
  %v5412 = vadd.f32 %v5123, %v5411
  %v5413 = vpop.f32.mrf.mxu0
  %5414 = vmatprep.mubr.bf16.mxu0 %v2555
  %5415 = vmatmul.mubr.bf16.gmra.mxu0 %v2554
  %v5416 = vpop.f32.mrf.mxu0
  %v5417 = vadd.f32 %v5128, %v5416
  %v5418 = vpop.f32.mrf.mxu0
  %v5419 = vpop.f32.mrf.mxu0
  %v5420 = vadd.f32 %v5131, %v5419
  %v5421 = vpop.f32.mrf.mxu0
  %5422 = vmatprep.mubr.bf16.mxu0 %v2571
  %5423 = vmatmul.mubr.bf16.gmra.mxu0 %v2570
  %v5424 = vpop.f32.mrf.mxu0
  %v5425 = vadd.f32 %v5136, %v5424
  %v5426 = vpop.f32.mrf.mxu0
  %v5427 = vpop.f32.mrf.mxu0
  %v5428 = vadd.f32 %v5139, %v5427
  %v5429 = vpop.f32.mrf.mxu0
  %5430 = vmatprep.mubr.bf16.mxu0 %v2587
  %5431 = vmatmul.mubr.bf16.gmra.mxu0 %v2586
  %v5432 = vpop.f32.mrf.mxu0
  %v5433 = vadd.f32 %v5144, %v5432
  %v5434 = vpop.f32.mrf.mxu0
  %v5435 = vpop.f32.mrf.mxu0
  %v5436 = vadd.f32 %v5147, %v5435
  %v5437 = vpop.f32.mrf.mxu0
  %5438 = vmatprep.mubr.bf16.mxu0 %v2603
  %5439 = vmatmul.mubr.bf16.gmra.mxu0 %v2602
  %v5440 = vpop.f32.mrf.mxu0
  %v5441 = vadd.f32 %v5152, %v5440
  %v5442 = vpop.f32.mrf.mxu0
  %v5443 = vpop.f32.mrf.mxu0
  %v5444 = vadd.f32 %v5155, %v5443
  %v5445 = vpop.f32.mrf.mxu0
  %5446 = vmatprep.mubr.bf16.mxu0 %v2619
  %5447 = vmatmul.mubr.bf16.gmra.mxu0 %v2618
  %v5448 = vpop.f32.mrf.mxu0
  %v5449 = vadd.f32 %v5160, %v5448
  %v5450 = vpop.f32.mrf.mxu0
  %v5451 = vpop.f32.mrf.mxu0
  %v5452 = vadd.f32 %v5163, %v5451
  %v5453 = vpop.f32.mrf.mxu0
  %5454 = vmatprep.mubr.bf16.mxu0 %v2635
  %5455 = vmatmul.mubr.bf16.gmra.mxu0 %v2634
  %v5456 = vpop.f32.mrf.mxu0
  %v5457 = vadd.f32 %v5168, %v5456
  %v5458 = vpop.f32.mrf.mxu0
  %v5459 = vpop.f32.mrf.mxu0
  %v5460 = vadd.f32 %v5171, %v5459
  %v5461 = vpop.f32.mrf.mxu0
  %5462 = vmatprep.mubr.bf16.mxu0 %v2651
  %5463 = vmatmul.mubr.bf16.gmra.mxu0 %v2650
  %v5464 = vpop.f32.mrf.mxu0
  %v5465 = vadd.f32 %v5176, %v5464
  %v5466 = vpop.f32.mrf.mxu0
  %v5467 = vpop.f32.mrf.mxu0
  %v5468 = vadd.f32 %v5179, %v5467
  %v5469 = vpop.f32.mrf.mxu0
  %5470 = vmatprep.mubr.bf16.mxu0 %v2667
  %5471 = vmatmul.mubr.bf16.gmra.mxu0 %v2666
  %v5472 = vpop.f32.mrf.mxu0
  %v5473 = vadd.f32 %v5184, %v5472
  %v5474 = vpop.f32.mrf.mxu0
  %v5475 = vpop.f32.mrf.mxu0
  %v5476 = vadd.f32 %v5187, %v5475
  %v5477 = vpop.f32.mrf.mxu0
  %5478 = vmatprep.mubr.bf16.mxu0 %v2683
  %5479 = vmatmul.mubr.bf16.gmra.mxu0 %v2682
  %v5480 = vpop.f32.mrf.mxu0
  %v5481 = vadd.f32 %v5192, %v5480
  %v5482 = vpop.f32.mrf.mxu0
  %v5483 = vpop.f32.mrf.mxu0
  %v5484 = vadd.f32 %v5195, %v5483
  %v5485 = vpop.f32.mrf.mxu0
  %5486 = vmatprep.mubr.bf16.mxu0 %v2699
  %5487 = vmatmul.mubr.bf16.gmra.mxu0 %v2698
  %v5488 = vpop.f32.mrf.mxu0
  %v5489 = vadd.f32 %v5200, %v5488
  %v5490 = vpop.f32.mrf.mxu0
  %v5491 = vpop.f32.mrf.mxu0
  %v5492 = vadd.f32 %v5203, %v5491
  %v5493 = vpop.f32.mrf.mxu0
  %5494 = vmatprep.mubr.bf16.mxu0 %v2715
  %5495 = vmatmul.mubr.bf16.gmra.mxu0 %v2714
  %v5496 = vpop.f32.mrf.mxu0
  %v5497 = vadd.f32 %v5208, %v5496
  %v5498 = vpop.f32.mrf.mxu0
  %v5499 = vpop.f32.mrf.mxu0
  %v5500 = vadd.f32 %v5211, %v5499
  %v5501 = vpop.f32.mrf.mxu0
  %5502 = vmatprep.mubr.bf16.mxu0 %v2731
  %5503 = vmatmul.mubr.bf16.gmra.mxu0 %v2730
  %v5504 = vpop.f32.mrf.mxu0
  %v5505 = vadd.f32 %v5216, %v5504
  %v5506 = vpop.f32.mrf.mxu0
  %v5507 = vpop.f32.mrf.mxu0
  %v5508 = vadd.f32 %v5219, %v5507
  %v5509 = vpop.f32.mrf.mxu0
  %5510 = vmatprep.mubr.bf16.mxu0 %v2747
  %5511 = vmatmul.mubr.bf16.gmra.mxu0 %v2746
  %v5512 = vpop.f32.mrf.mxu0
  %v5513 = vadd.f32 %v5224, %v5512
  %v5514 = vpop.f32.mrf.mxu0
  %v5515 = vpop.f32.mrf.mxu0
  %v5516 = vadd.f32 %v5227, %v5515
  %v5517 = vpop.f32.mrf.mxu0
  %5518 = vmatprep.mubr.bf16.mxu0 %v2763
  %5519 = vmatmul.mubr.bf16.gmra.mxu0 %v2762
  %v5520 = vpop.f32.mrf.mxu0
  %v5521 = vadd.f32 %v5232, %v5520
  %v5522 = vpop.f32.mrf.mxu0
  %v5523 = vpop.f32.mrf.mxu0
  %v5524 = vadd.f32 %v5235, %v5523
  %v5525 = vpop.f32.mrf.mxu0
  %5526 = vmatprep.mubr.bf16.mxu0 %v2779
  %5527 = vmatmul.mubr.bf16.gmra.mxu0 %v2778
  %v5528 = vpop.f32.mrf.mxu0
  %v5529 = vadd.f32 %v5240, %v5528
  %v5530 = vpop.f32.mrf.mxu0
  %v5531 = vpop.f32.mrf.mxu0
  %v5532 = vadd.f32 %v5243, %v5531
  %v5533 = vpop.f32.mrf.mxu0
  %5534 = vmatprep.mubr.bf16.mxu0 %v2795
  %5535 = vmatmul.mubr.bf16.gmra.mxu0 %v2794
  %v5536 = vpop.f32.mrf.mxu0
  %v5537 = vadd.f32 %v5248, %v5536
  %v5538 = vpop.f32.mrf.mxu0
  %v5539 = vpop.f32.mrf.mxu0
  %v5540 = vadd.f32 %v5251, %v5539
  %v5541 = vpop.f32.mrf.mxu0
  %5542 = vmatprep.mubr.bf16.mxu0 %v2811
  %5543 = vmatmul.mubr.bf16.gmra.mxu0 %v2810
  %v5544 = vpop.f32.mrf.mxu0
  %v5545 = vadd.f32 %v5256, %v5544
  %v5546 = vpop.f32.mrf.mxu0
  %v5547 = vpop.f32.mrf.mxu0
  %v5548 = vadd.f32 %v5259, %v5547
  %v5549 = vpop.f32.mrf.mxu0
  %5550 = vmatprep.mubr.bf16.mxu0 %v2827
  %5551 = vmatmul.mubr.bf16.gmra.mxu0 %v2826
  %v5552 = vpop.f32.mrf.mxu0
  %v5553 = vadd.f32 %v5264, %v5552
  %v5554 = vpop.f32.mrf.mxu0
  %v5555 = vpop.f32.mrf.mxu0
  %v5556 = vadd.f32 %v5267, %v5555
  %v5557 = vpop.f32.mrf.mxu0
  %5558 = vdwg.mxu0
  %5559 = vmatprep.subr.bf16.mxu0 0
  %5560 = vmatpush1.bf16.msra.mxu0 %v3945
  %5561 = vmatprep.subr.bf16.mxu0 0
  %5562 = vmatpush1.bf16.msra.mxu0 %v3944
  %5563 = vmatprep.subr.bf16.mxu0 0
  %5564 = vmatpush1.bf16.msra.mxu0 %v3943
  %5565 = vmatprep.subr.bf16.mxu0 0
  %5566 = vmatpush1.bf16.msra.mxu0 %v3942
  %5567 = vmatprep.subr.bf16.mxu0 0
  %5568 = vmatpush1.bf16.msra.mxu0 %v3941
  %5569 = vmatprep.subr.bf16.mxu0 0
  %5570 = vmatpush1.bf16.msra.mxu0 %v3940
  %5571 = vmatprep.subr.bf16.mxu0 0
  %5572 = vmatpush1.bf16.msra.mxu0 %v3939
  %5573 = vmatprep.subr.bf16.mxu0 0
  %5574 = vmatpush1.bf16.msra.mxu0 %v3938
  %5575 = vmatprep.subr.bf16.mxu0 0
  %5576 = vmatpush2.bf16.msra.mxu0 %v3953
  %5577 = vmatprep.subr.bf16.mxu0 0
  %5578 = vmatpush2.bf16.msra.mxu0 %v3952
  %5579 = vmatprep.subr.bf16.mxu0 0
  %5580 = vmatpush2.bf16.msra.mxu0 %v3951
  %5581 = vmatprep.subr.bf16.mxu0 0
  %5582 = vmatpush2.bf16.msra.mxu0 %v3950
  %5583 = vmatprep.subr.bf16.mxu0 0
  %5584 = vmatpush2.bf16.msra.mxu0 %v3949
  %5585 = vmatprep.subr.bf16.mxu0 0
  %5586 = vmatpush2.bf16.msra.mxu0 %v3948
  %5587 = vmatprep.subr.bf16.mxu0 0
  %5588 = vmatpush2.bf16.msra.mxu0 %v3947
  %5589 = vmatprep.subr.bf16.mxu0 0
  %5590 = vmatpush2.bf16.msra.mxu0 %v3946
  %5591 = vmatprep.mubr.bf16.mxu0 %v2333
  %5592 = vmatmul.mubr.bf16.gmra.mxu0 %v2332
  %v5593 = vpop.f32.mrf.mxu0
  %v5594 = vadd.f32 %v5305, %v5593
  %v5595 = vpop.f32.mrf.mxu0
  %v5596 = vpop.f32.mrf.mxu0
  %v5597 = vadd.f32 %v5308, %v5596
  %v5598 = vpop.f32.mrf.mxu0
  %5599 = vmatprep.mubr.bf16.mxu0 %v2349
  %5600 = vmatmul.mubr.bf16.gmra.mxu0 %v2348
  %v5601 = vpop.f32.mrf.mxu0
  %v5602 = vadd.f32 %v5313, %v5601
  %v5603 = vpop.f32.mrf.mxu0
  %v5604 = vpop.f32.mrf.mxu0
  %v5605 = vadd.f32 %v5316, %v5604
  %v5606 = vpop.f32.mrf.mxu0
  %5607 = vmatprep.mubr.bf16.mxu0 %v2365
  %5608 = vmatmul.mubr.bf16.gmra.mxu0 %v2364
  %v5609 = vpop.f32.mrf.mxu0
  %v5610 = vadd.f32 %v5321, %v5609
  %v5611 = vpop.f32.mrf.mxu0
  %v5612 = vpop.f32.mrf.mxu0
  %v5613 = vadd.f32 %v5324, %v5612
  %v5614 = vpop.f32.mrf.mxu0
  %5615 = vmatprep.mubr.bf16.mxu0 %v2381
  %5616 = vmatmul.mubr.bf16.gmra.mxu0 %v2380
  %v5617 = vpop.f32.mrf.mxu0
  %v5618 = vadd.f32 %v5329, %v5617
  %v5619 = vpop.f32.mrf.mxu0
  %v5620 = vpop.f32.mrf.mxu0
  %v5621 = vadd.f32 %v5332, %v5620
  %v5622 = vpop.f32.mrf.mxu0
  %5623 = vmatprep.mubr.bf16.mxu0 %v2397
  %5624 = vmatmul.mubr.bf16.gmra.mxu0 %v2396
  %v5625 = vpop.f32.mrf.mxu0
  %v5626 = vadd.f32 %v5337, %v5625
  %v5627 = vpop.f32.mrf.mxu0
  %v5628 = vpop.f32.mrf.mxu0
  %v5629 = vadd.f32 %v5340, %v5628
  %v5630 = vpop.f32.mrf.mxu0
  %5631 = vmatprep.mubr.bf16.mxu0 %v2413
  %5632 = vmatmul.mubr.bf16.gmra.mxu0 %v2412
  %v5633 = vpop.f32.mrf.mxu0
  %v5634 = vadd.f32 %v5345, %v5633
  %v5635 = vpop.f32.mrf.mxu0
  %v5636 = vpop.f32.mrf.mxu0
  %v5637 = vadd.f32 %v5348, %v5636
  %v5638 = vpop.f32.mrf.mxu0
  %5639 = vmatprep.mubr.bf16.mxu0 %v2429
  %5640 = vmatmul.mubr.bf16.gmra.mxu0 %v2428
  %v5641 = vpop.f32.mrf.mxu0
  %v5642 = vadd.f32 %v5353, %v5641
  %v5643 = vpop.f32.mrf.mxu0
  %v5644 = vpop.f32.mrf.mxu0
  %v5645 = vadd.f32 %v5356, %v5644
  %v5646 = vpop.f32.mrf.mxu0
  %5647 = vmatprep.mubr.bf16.mxu0 %v2445
  %5648 = vmatmul.mubr.bf16.gmra.mxu0 %v2444
  %v5649 = vpop.f32.mrf.mxu0
  %v5650 = vadd.f32 %v5361, %v5649
  %v5651 = vpop.f32.mrf.mxu0
  %v5652 = vpop.f32.mrf.mxu0
  %v5653 = vadd.f32 %v5364, %v5652
  %v5654 = vpop.f32.mrf.mxu0
  %5655 = vmatprep.mubr.bf16.mxu0 %v2461
  %5656 = vmatmul.mubr.bf16.gmra.mxu0 %v2460
  %v5657 = vpop.f32.mrf.mxu0
  %v5658 = vadd.f32 %v5369, %v5657
  %v5659 = vpop.f32.mrf.mxu0
  %v5660 = vpop.f32.mrf.mxu0
  %v5661 = vadd.f32 %v5372, %v5660
  %v5662 = vpop.f32.mrf.mxu0
  %5663 = vmatprep.mubr.bf16.mxu0 %v2477
  %5664 = vmatmul.mubr.bf16.gmra.mxu0 %v2476
  %v5665 = vpop.f32.mrf.mxu0
  %v5666 = vadd.f32 %v5377, %v5665
  %v5667 = vpop.f32.mrf.mxu0
  %v5668 = vpop.f32.mrf.mxu0
  %v5669 = vadd.f32 %v5380, %v5668
  %v5670 = vpop.f32.mrf.mxu0
  %5671 = vmatprep.mubr.bf16.mxu0 %v2493
  %5672 = vmatmul.mubr.bf16.gmra.mxu0 %v2492
  %v5673 = vpop.f32.mrf.mxu0
  %v5674 = vadd.f32 %v5385, %v5673
  %v5675 = vpop.f32.mrf.mxu0
  %v5676 = vpop.f32.mrf.mxu0
  %v5677 = vadd.f32 %v5388, %v5676
  %v5678 = vpop.f32.mrf.mxu0
  %5679 = vmatprep.mubr.bf16.mxu0 %v2509
  %5680 = vmatmul.mubr.bf16.gmra.mxu0 %v2508
  %v5681 = vpop.f32.mrf.mxu0
  %v5682 = vadd.f32 %v5393, %v5681
  %v5683 = vpop.f32.mrf.mxu0
  %v5684 = vpop.f32.mrf.mxu0
  %v5685 = vadd.f32 %v5396, %v5684
  %v5686 = vpop.f32.mrf.mxu0
  %5687 = vmatprep.mubr.bf16.mxu0 %v2525
  %5688 = vmatmul.mubr.bf16.gmra.mxu0 %v2524
  %v5689 = vpop.f32.mrf.mxu0
  %v5690 = vadd.f32 %v5401, %v5689
  %v5691 = vpop.f32.mrf.mxu0
  %v5692 = vpop.f32.mrf.mxu0
  %v5693 = vadd.f32 %v5404, %v5692
  %v5694 = vpop.f32.mrf.mxu0
  %5695 = vmatprep.mubr.bf16.mxu0 %v2541
  %5696 = vmatmul.mubr.bf16.gmra.mxu0 %v2540
  %v5697 = vpop.f32.mrf.mxu0
  %v5698 = vadd.f32 %v5409, %v5697
  %v5699 = vpop.f32.mrf.mxu0
  %v5700 = vpop.f32.mrf.mxu0
  %v5701 = vadd.f32 %v5412, %v5700
  %v5702 = vpop.f32.mrf.mxu0
  %5703 = vmatprep.mubr.bf16.mxu0 %v2557
  %5704 = vmatmul.mubr.bf16.gmra.mxu0 %v2556
  %v5705 = vpop.f32.mrf.mxu0
  %v5706 = vadd.f32 %v5417, %v5705
  %v5707 = vpop.f32.mrf.mxu0
  %v5708 = vpop.f32.mrf.mxu0
  %v5709 = vadd.f32 %v5420, %v5708
  %v5710 = vpop.f32.mrf.mxu0
  %5711 = vmatprep.mubr.bf16.mxu0 %v2573
  %5712 = vmatmul.mubr.bf16.gmra.mxu0 %v2572
  %v5713 = vpop.f32.mrf.mxu0
  %v5714 = vadd.f32 %v5425, %v5713
  %v5715 = vpop.f32.mrf.mxu0
  %v5716 = vpop.f32.mrf.mxu0
  %v5717 = vadd.f32 %v5428, %v5716
  %v5718 = vpop.f32.mrf.mxu0
  %5719 = vmatprep.mubr.bf16.mxu0 %v2589
  %5720 = vmatmul.mubr.bf16.gmra.mxu0 %v2588
  %v5721 = vpop.f32.mrf.mxu0
  %v5722 = vadd.f32 %v5433, %v5721
  %v5723 = vpop.f32.mrf.mxu0
  %v5724 = vpop.f32.mrf.mxu0
  %v5725 = vadd.f32 %v5436, %v5724
  %v5726 = vpop.f32.mrf.mxu0
  %5727 = vmatprep.mubr.bf16.mxu0 %v2605
  %5728 = vmatmul.mubr.bf16.gmra.mxu0 %v2604
  %v5729 = vpop.f32.mrf.mxu0
  %v5730 = vadd.f32 %v5441, %v5729
  %v5731 = vpop.f32.mrf.mxu0
  %v5732 = vpop.f32.mrf.mxu0
  %v5733 = vadd.f32 %v5444, %v5732
  %v5734 = vpop.f32.mrf.mxu0
  %5735 = vmatprep.mubr.bf16.mxu0 %v2621
  %5736 = vmatmul.mubr.bf16.gmra.mxu0 %v2620
  %v5737 = vpop.f32.mrf.mxu0
  %v5738 = vadd.f32 %v5449, %v5737
  %v5739 = vpop.f32.mrf.mxu0
  %v5740 = vpop.f32.mrf.mxu0
  %v5741 = vadd.f32 %v5452, %v5740
  %v5742 = vpop.f32.mrf.mxu0
  %5743 = vmatprep.mubr.bf16.mxu0 %v2637
  %5744 = vmatmul.mubr.bf16.gmra.mxu0 %v2636
  %v5745 = vpop.f32.mrf.mxu0
  %v5746 = vadd.f32 %v5457, %v5745
  %v5747 = vpop.f32.mrf.mxu0
  %v5748 = vpop.f32.mrf.mxu0
  %v5749 = vadd.f32 %v5460, %v5748
  %v5750 = vpop.f32.mrf.mxu0
  %5751 = vmatprep.mubr.bf16.mxu0 %v2653
  %5752 = vmatmul.mubr.bf16.gmra.mxu0 %v2652
  %v5753 = vpop.f32.mrf.mxu0
  %v5754 = vadd.f32 %v5465, %v5753
  %v5755 = vpop.f32.mrf.mxu0
  %v5756 = vpop.f32.mrf.mxu0
  %v5757 = vadd.f32 %v5468, %v5756
  %v5758 = vpop.f32.mrf.mxu0
  %5759 = vmatprep.mubr.bf16.mxu0 %v2669
  %5760 = vmatmul.mubr.bf16.gmra.mxu0 %v2668
  %v5761 = vpop.f32.mrf.mxu0
  %v5762 = vadd.f32 %v5473, %v5761
  %v5763 = vpop.f32.mrf.mxu0
  %v5764 = vpop.f32.mrf.mxu0
  %v5765 = vadd.f32 %v5476, %v5764
  %v5766 = vpop.f32.mrf.mxu0
  %5767 = vmatprep.mubr.bf16.mxu0 %v2685
  %5768 = vmatmul.mubr.bf16.gmra.mxu0 %v2684
  %v5769 = vpop.f32.mrf.mxu0
  %v5770 = vadd.f32 %v5481, %v5769
  %v5771 = vpop.f32.mrf.mxu0
  %v5772 = vpop.f32.mrf.mxu0
  %v5773 = vadd.f32 %v5484, %v5772
  %v5774 = vpop.f32.mrf.mxu0
  %5775 = vmatprep.mubr.bf16.mxu0 %v2701
  %5776 = vmatmul.mubr.bf16.gmra.mxu0 %v2700
  %v5777 = vpop.f32.mrf.mxu0
  %v5778 = vadd.f32 %v5489, %v5777
  %v5779 = vpop.f32.mrf.mxu0
  %v5780 = vpop.f32.mrf.mxu0
  %v5781 = vadd.f32 %v5492, %v5780
  %v5782 = vpop.f32.mrf.mxu0
  %5783 = vmatprep.mubr.bf16.mxu0 %v2717
  %5784 = vmatmul.mubr.bf16.gmra.mxu0 %v2716
  %v5785 = vpop.f32.mrf.mxu0
  %v5786 = vadd.f32 %v5497, %v5785
  %v5787 = vpop.f32.mrf.mxu0
  %v5788 = vpop.f32.mrf.mxu0
  %v5789 = vadd.f32 %v5500, %v5788
  %v5790 = vpop.f32.mrf.mxu0
  %5791 = vmatprep.mubr.bf16.mxu0 %v2733
  %5792 = vmatmul.mubr.bf16.gmra.mxu0 %v2732
  %v5793 = vpop.f32.mrf.mxu0
  %v5794 = vadd.f32 %v5505, %v5793
  %v5795 = vpop.f32.mrf.mxu0
  %v5796 = vpop.f32.mrf.mxu0
  %v5797 = vadd.f32 %v5508, %v5796
  %v5798 = vpop.f32.mrf.mxu0
  %5799 = vmatprep.mubr.bf16.mxu0 %v2749
  %5800 = vmatmul.mubr.bf16.gmra.mxu0 %v2748
  %v5801 = vpop.f32.mrf.mxu0
  %v5802 = vadd.f32 %v5513, %v5801
  %v5803 = vpop.f32.mrf.mxu0
  %v5804 = vpop.f32.mrf.mxu0
  %v5805 = vadd.f32 %v5516, %v5804
  %v5806 = vpop.f32.mrf.mxu0
  %5807 = vmatprep.mubr.bf16.mxu0 %v2765
  %5808 = vmatmul.mubr.bf16.gmra.mxu0 %v2764
  %v5809 = vpop.f32.mrf.mxu0
  %v5810 = vadd.f32 %v5521, %v5809
  %v5811 = vpop.f32.mrf.mxu0
  %v5812 = vpop.f32.mrf.mxu0
  %v5813 = vadd.f32 %v5524, %v5812
  %v5814 = vpop.f32.mrf.mxu0
  %5815 = vmatprep.mubr.bf16.mxu0 %v2781
  %5816 = vmatmul.mubr.bf16.gmra.mxu0 %v2780
  %v5817 = vpop.f32.mrf.mxu0
  %v5818 = vadd.f32 %v5529, %v5817
  %v5819 = vpop.f32.mrf.mxu0
  %v5820 = vpop.f32.mrf.mxu0
  %v5821 = vadd.f32 %v5532, %v5820
  %v5822 = vpop.f32.mrf.mxu0
  %5823 = vmatprep.mubr.bf16.mxu0 %v2797
  %5824 = vmatmul.mubr.bf16.gmra.mxu0 %v2796
  %v5825 = vpop.f32.mrf.mxu0
  %v5826 = vadd.f32 %v5537, %v5825
  %v5827 = vpop.f32.mrf.mxu0
  %v5828 = vpop.f32.mrf.mxu0
  %v5829 = vadd.f32 %v5540, %v5828
  %v5830 = vpop.f32.mrf.mxu0
  %5831 = vmatprep.mubr.bf16.mxu0 %v2813
  %5832 = vmatmul.mubr.bf16.gmra.mxu0 %v2812
  %v5833 = vpop.f32.mrf.mxu0
  %v5834 = vadd.f32 %v5545, %v5833
  %v5835 = vpop.f32.mrf.mxu0
  %v5836 = vpop.f32.mrf.mxu0
  %v5837 = vadd.f32 %v5548, %v5836
  %v5838 = vpop.f32.mrf.mxu0
  %5839 = vmatprep.mubr.bf16.mxu0 %v2829
  %5840 = vmatmul.mubr.bf16.gmra.mxu0 %v2828
  %v5841 = vpop.f32.mrf.mxu0
  %v5842 = vadd.f32 %v5553, %v5841
  %v5843 = vpop.f32.mrf.mxu0
  %v5844 = vpop.f32.mrf.mxu0
  %v5845 = vadd.f32 %v5556, %v5844
  %v5846 = vpop.f32.mrf.mxu0
  %5847 = vdwg.mxu0
  %5848 = vmatprep.subr.bf16.mxu0 0
  %5849 = vmatpush1.bf16.msra.mxu0 %v3961
  %5850 = vmatprep.subr.bf16.mxu0 0
  %5851 = vmatpush1.bf16.msra.mxu0 %v3960
  %5852 = vmatprep.subr.bf16.mxu0 0
  %5853 = vmatpush1.bf16.msra.mxu0 %v3959
  %5854 = vmatprep.subr.bf16.mxu0 0
  %5855 = vmatpush1.bf16.msra.mxu0 %v3958
  %5856 = vmatprep.subr.bf16.mxu0 0
  %5857 = vmatpush1.bf16.msra.mxu0 %v3957
  %5858 = vmatprep.subr.bf16.mxu0 0
  %5859 = vmatpush1.bf16.msra.mxu0 %v3956
  %5860 = vmatprep.subr.bf16.mxu0 0
  %5861 = vmatpush1.bf16.msra.mxu0 %v3955
  %5862 = vmatprep.subr.bf16.mxu0 0
  %5863 = vmatpush1.bf16.msra.mxu0 %v3954
  %5864 = vmatprep.subr.bf16.mxu0 0
  %5865 = vmatpush2.bf16.msra.mxu0 %v3969
  %5866 = vmatprep.subr.bf16.mxu0 0
  %5867 = vmatpush2.bf16.msra.mxu0 %v3968
  %5868 = vmatprep.subr.bf16.mxu0 0
  %5869 = vmatpush2.bf16.msra.mxu0 %v3967
  %5870 = vmatprep.subr.bf16.mxu0 0
  %5871 = vmatpush2.bf16.msra.mxu0 %v3966
  %5872 = vmatprep.subr.bf16.mxu0 0
  %5873 = vmatpush2.bf16.msra.mxu0 %v3965
  %5874 = vmatprep.subr.bf16.mxu0 0
  %5875 = vmatpush2.bf16.msra.mxu0 %v3964
  %5876 = vmatprep.subr.bf16.mxu0 0
  %5877 = vmatpush2.bf16.msra.mxu0 %v3963
  %5878 = vmatprep.subr.bf16.mxu0 0
  %5879 = vmatpush2.bf16.msra.mxu0 %v3962
  %5880 = vmatprep.mubr.bf16.mxu0 %v2335
  %5881 = vmatmul.mubr.bf16.gmra.mxu0 %v2334
  %v5882 = vpop.f32.mrf.mxu0
  %v5883 = vadd.f32 %v5594, %v5882
  %v5884 = vpop.f32.mrf.mxu0
  %v5885 = vpop.f32.mrf.mxu0
  %v5886 = vadd.f32 %v5597, %v5885
  %v5887 = vpop.f32.mrf.mxu0
  %5888 = vmatprep.mubr.bf16.mxu0 %v2351
  %5889 = vmatmul.mubr.bf16.gmra.mxu0 %v2350
  %v5890 = vpop.f32.mrf.mxu0
  %v5891 = vadd.f32 %v5602, %v5890
  %v5892 = vpop.f32.mrf.mxu0
  %v5893 = vpop.f32.mrf.mxu0
  %v5894 = vadd.f32 %v5605, %v5893
  %v5895 = vpop.f32.mrf.mxu0
  %5896 = vmatprep.mubr.bf16.mxu0 %v2367
  %5897 = vmatmul.mubr.bf16.gmra.mxu0 %v2366
  %v5898 = vpop.f32.mrf.mxu0
  %v5899 = vadd.f32 %v5610, %v5898
  %v5900 = vpop.f32.mrf.mxu0
  %v5901 = vpop.f32.mrf.mxu0
  %v5902 = vadd.f32 %v5613, %v5901
  %v5903 = vpop.f32.mrf.mxu0
  %5904 = vmatprep.mubr.bf16.mxu0 %v2383
  %5905 = vmatmul.mubr.bf16.gmra.mxu0 %v2382
  %v5906 = vpop.f32.mrf.mxu0
  %v5907 = vadd.f32 %v5618, %v5906
  %v5908 = vpop.f32.mrf.mxu0
  %v5909 = vpop.f32.mrf.mxu0
  %v5910 = vadd.f32 %v5621, %v5909
  %v5911 = vpop.f32.mrf.mxu0
  %5912 = vmatprep.mubr.bf16.mxu0 %v2399
  %5913 = vmatmul.mubr.bf16.gmra.mxu0 %v2398
  %v5914 = vpop.f32.mrf.mxu0
  %v5915 = vadd.f32 %v5626, %v5914
  %v5916 = vpop.f32.mrf.mxu0
  %v5917 = vpop.f32.mrf.mxu0
  %v5918 = vadd.f32 %v5629, %v5917
  %v5919 = vpop.f32.mrf.mxu0
  %5920 = vmatprep.mubr.bf16.mxu0 %v2415
  %5921 = vmatmul.mubr.bf16.gmra.mxu0 %v2414
  %v5922 = vpop.f32.mrf.mxu0
  %v5923 = vadd.f32 %v5634, %v5922
  %v5924 = vpop.f32.mrf.mxu0
  %v5925 = vpop.f32.mrf.mxu0
  %v5926 = vadd.f32 %v5637, %v5925
  %v5927 = vpop.f32.mrf.mxu0
  %5928 = vmatprep.mubr.bf16.mxu0 %v2431
  %5929 = vmatmul.mubr.bf16.gmra.mxu0 %v2430
  %v5930 = vpop.f32.mrf.mxu0
  %v5931 = vadd.f32 %v5642, %v5930
  %v5932 = vpop.f32.mrf.mxu0
  %v5933 = vpop.f32.mrf.mxu0
  %v5934 = vadd.f32 %v5645, %v5933
  %v5935 = vpop.f32.mrf.mxu0
  %5936 = vmatprep.mubr.bf16.mxu0 %v2447
  %5937 = vmatmul.mubr.bf16.gmra.mxu0 %v2446
  %v5938 = vpop.f32.mrf.mxu0
  %v5939 = vadd.f32 %v5650, %v5938
  %v5940 = vpop.f32.mrf.mxu0
  %v5941 = vpop.f32.mrf.mxu0
  %v5942 = vadd.f32 %v5653, %v5941
  %v5943 = vpop.f32.mrf.mxu0
  %5944 = vmatprep.mubr.bf16.mxu0 %v2463
  %5945 = vmatmul.mubr.bf16.gmra.mxu0 %v2462
  %v5946 = vpop.f32.mrf.mxu0
  %v5947 = vadd.f32 %v5658, %v5946
  %v5948 = vpop.f32.mrf.mxu0
  %v5949 = vpop.f32.mrf.mxu0
  %v5950 = vadd.f32 %v5661, %v5949
  %v5951 = vpop.f32.mrf.mxu0
  %5952 = vmatprep.mubr.bf16.mxu0 %v2479
  %5953 = vmatmul.mubr.bf16.gmra.mxu0 %v2478
  %v5954 = vpop.f32.mrf.mxu0
  %v5955 = vadd.f32 %v5666, %v5954
  %v5956 = vpop.f32.mrf.mxu0
  %v5957 = vpop.f32.mrf.mxu0
  %v5958 = vadd.f32 %v5669, %v5957
  %v5959 = vpop.f32.mrf.mxu0
  %5960 = vmatprep.mubr.bf16.mxu0 %v2495
  %5961 = vmatmul.mubr.bf16.gmra.mxu0 %v2494
  %v5962 = vpop.f32.mrf.mxu0
  %v5963 = vadd.f32 %v5674, %v5962
  %v5964 = vpop.f32.mrf.mxu0
  %v5965 = vpop.f32.mrf.mxu0
  %v5966 = vadd.f32 %v5677, %v5965
  %v5967 = vpop.f32.mrf.mxu0
  %5968 = vmatprep.mubr.bf16.mxu0 %v2511
  %5969 = vmatmul.mubr.bf16.gmra.mxu0 %v2510
  %v5970 = vpop.f32.mrf.mxu0
  %v5971 = vadd.f32 %v5682, %v5970
  %v5972 = vpop.f32.mrf.mxu0
  %v5973 = vpop.f32.mrf.mxu0
  %v5974 = vadd.f32 %v5685, %v5973
  %v5975 = vpop.f32.mrf.mxu0
  %5976 = vmatprep.mubr.bf16.mxu0 %v2527
  %5977 = vmatmul.mubr.bf16.gmra.mxu0 %v2526
  %v5978 = vpop.f32.mrf.mxu0
  %v5979 = vadd.f32 %v5690, %v5978
  %v5980 = vpop.f32.mrf.mxu0
  %v5981 = vpop.f32.mrf.mxu0
  %v5982 = vadd.f32 %v5693, %v5981
  %v5983 = vpop.f32.mrf.mxu0
  %5984 = vmatprep.mubr.bf16.mxu0 %v2543
  %5985 = vmatmul.mubr.bf16.gmra.mxu0 %v2542
  %v5986 = vpop.f32.mrf.mxu0
  %v5987 = vadd.f32 %v5698, %v5986
  %v5988 = vpop.f32.mrf.mxu0
  %v5989 = vpop.f32.mrf.mxu0
  %v5990 = vadd.f32 %v5701, %v5989
  %v5991 = vpop.f32.mrf.mxu0
  %5992 = vmatprep.mubr.bf16.mxu0 %v2559
  %5993 = vmatmul.mubr.bf16.gmra.mxu0 %v2558
  %v5994 = vpop.f32.mrf.mxu0
  %v5995 = vadd.f32 %v5706, %v5994
  %v5996 = vpop.f32.mrf.mxu0
  %v5997 = vpop.f32.mrf.mxu0
  %v5998 = vadd.f32 %v5709, %v5997
  %v5999 = vpop.f32.mrf.mxu0
  %6000 = vmatprep.mubr.bf16.mxu0 %v2575
  %6001 = vmatmul.mubr.bf16.gmra.mxu0 %v2574
  %v6002 = vpop.f32.mrf.mxu0
  %v6003 = vadd.f32 %v5714, %v6002
  %v6004 = vpop.f32.mrf.mxu0
  %v6005 = vpop.f32.mrf.mxu0
  %v6006 = vadd.f32 %v5717, %v6005
  %v6007 = vpop.f32.mrf.mxu0
  %6008 = vmatprep.mubr.bf16.mxu0 %v2591
  %6009 = vmatmul.mubr.bf16.gmra.mxu0 %v2590
  %v6010 = vpop.f32.mrf.mxu0
  %v6011 = vadd.f32 %v5722, %v6010
  %v6012 = vpop.f32.mrf.mxu0
  %v6013 = vpop.f32.mrf.mxu0
  %v6014 = vadd.f32 %v5725, %v6013
  %v6015 = vpop.f32.mrf.mxu0
  %6016 = vmatprep.mubr.bf16.mxu0 %v2607
  %6017 = vmatmul.mubr.bf16.gmra.mxu0 %v2606
  %v6018 = vpop.f32.mrf.mxu0
  %v6019 = vadd.f32 %v5730, %v6018
  %v6020 = vpop.f32.mrf.mxu0
  %v6021 = vpop.f32.mrf.mxu0
  %v6022 = vadd.f32 %v5733, %v6021
  %v6023 = vpop.f32.mrf.mxu0
  %6024 = vmatprep.mubr.bf16.mxu0 %v2623
  %6025 = vmatmul.mubr.bf16.gmra.mxu0 %v2622
  %v6026 = vpop.f32.mrf.mxu0
  %v6027 = vadd.f32 %v5738, %v6026
  %v6028 = vpop.f32.mrf.mxu0
  %v6029 = vpop.f32.mrf.mxu0
  %v6030 = vadd.f32 %v5741, %v6029
  %v6031 = vpop.f32.mrf.mxu0
  %6032 = vmatprep.mubr.bf16.mxu0 %v2639
  %6033 = vmatmul.mubr.bf16.gmra.mxu0 %v2638
  %v6034 = vpop.f32.mrf.mxu0
  %v6035 = vadd.f32 %v5746, %v6034
  %v6036 = vpop.f32.mrf.mxu0
  %v6037 = vpop.f32.mrf.mxu0
  %v6038 = vadd.f32 %v5749, %v6037
  %v6039 = vpop.f32.mrf.mxu0
  %6040 = vmatprep.mubr.bf16.mxu0 %v2655
  %6041 = vmatmul.mubr.bf16.gmra.mxu0 %v2654
  %v6042 = vpop.f32.mrf.mxu0
  %v6043 = vadd.f32 %v5754, %v6042
  %v6044 = vpop.f32.mrf.mxu0
  %v6045 = vpop.f32.mrf.mxu0
  %v6046 = vadd.f32 %v5757, %v6045
  %v6047 = vpop.f32.mrf.mxu0
  %6048 = vmatprep.mubr.bf16.mxu0 %v2671
  %6049 = vmatmul.mubr.bf16.gmra.mxu0 %v2670
  %v6050 = vpop.f32.mrf.mxu0
  %v6051 = vadd.f32 %v5762, %v6050
  %v6052 = vpop.f32.mrf.mxu0
  %v6053 = vpop.f32.mrf.mxu0
  %v6054 = vadd.f32 %v5765, %v6053
  %v6055 = vpop.f32.mrf.mxu0
  %6056 = vmatprep.mubr.bf16.mxu0 %v2687
  %6057 = vmatmul.mubr.bf16.gmra.mxu0 %v2686
  %v6058 = vpop.f32.mrf.mxu0
  %v6059 = vadd.f32 %v5770, %v6058
  %v6060 = vpop.f32.mrf.mxu0
  %v6061 = vpop.f32.mrf.mxu0
  %v6062 = vadd.f32 %v5773, %v6061
  %v6063 = vpop.f32.mrf.mxu0
  %6064 = vmatprep.mubr.bf16.mxu0 %v2703
  %6065 = vmatmul.mubr.bf16.gmra.mxu0 %v2702
  %v6066 = vpop.f32.mrf.mxu0
  %v6067 = vadd.f32 %v5778, %v6066
  %v6068 = vpop.f32.mrf.mxu0
  %v6069 = vpop.f32.mrf.mxu0
  %v6070 = vadd.f32 %v5781, %v6069
  %v6071 = vpop.f32.mrf.mxu0
  %6072 = vmatprep.mubr.bf16.mxu0 %v2719
  %6073 = vmatmul.mubr.bf16.gmra.mxu0 %v2718
  %v6074 = vpop.f32.mrf.mxu0
  %v6075 = vadd.f32 %v5786, %v6074
  %v6076 = vpop.f32.mrf.mxu0
  %v6077 = vpop.f32.mrf.mxu0
  %v6078 = vadd.f32 %v5789, %v6077
  %v6079 = vpop.f32.mrf.mxu0
  %6080 = vmatprep.mubr.bf16.mxu0 %v2735
  %6081 = vmatmul.mubr.bf16.gmra.mxu0 %v2734
  %v6082 = vpop.f32.mrf.mxu0
  %v6083 = vadd.f32 %v5794, %v6082
  %v6084 = vpop.f32.mrf.mxu0
  %v6085 = vpop.f32.mrf.mxu0
  %v6086 = vadd.f32 %v5797, %v6085
  %v6087 = vpop.f32.mrf.mxu0
  %6088 = vmatprep.mubr.bf16.mxu0 %v2751
  %6089 = vmatmul.mubr.bf16.gmra.mxu0 %v2750
  %v6090 = vpop.f32.mrf.mxu0
  %v6091 = vadd.f32 %v5802, %v6090
  %v6092 = vpop.f32.mrf.mxu0
  %v6093 = vpop.f32.mrf.mxu0
  %v6094 = vadd.f32 %v5805, %v6093
  %v6095 = vpop.f32.mrf.mxu0
  %6096 = vmatprep.mubr.bf16.mxu0 %v2767
  %6097 = vmatmul.mubr.bf16.gmra.mxu0 %v2766
  %v6098 = vpop.f32.mrf.mxu0
  %v6099 = vadd.f32 %v5810, %v6098
  %v6100 = vpop.f32.mrf.mxu0
  %v6101 = vpop.f32.mrf.mxu0
  %v6102 = vadd.f32 %v5813, %v6101
  %v6103 = vpop.f32.mrf.mxu0
  %6104 = vmatprep.mubr.bf16.mxu0 %v2783
  %6105 = vmatmul.mubr.bf16.gmra.mxu0 %v2782
  %v6106 = vpop.f32.mrf.mxu0
  %v6107 = vadd.f32 %v5818, %v6106
  %v6108 = vpop.f32.mrf.mxu0
  %v6109 = vpop.f32.mrf.mxu0
  %v6110 = vadd.f32 %v5821, %v6109
  %v6111 = vpop.f32.mrf.mxu0
  %6112 = vmatprep.mubr.bf16.mxu0 %v2799
  %6113 = vmatmul.mubr.bf16.gmra.mxu0 %v2798
  %v6114 = vpop.f32.mrf.mxu0
  %v6115 = vadd.f32 %v5826, %v6114
  %v6116 = vpop.f32.mrf.mxu0
  %v6117 = vpop.f32.mrf.mxu0
  %v6118 = vadd.f32 %v5829, %v6117
  %v6119 = vpop.f32.mrf.mxu0
  %6120 = vmatprep.mubr.bf16.mxu0 %v2815
  %6121 = vmatmul.mubr.bf16.gmra.mxu0 %v2814
  %v6122 = vpop.f32.mrf.mxu0
  %v6123 = vadd.f32 %v5834, %v6122
  %v6124 = vpop.f32.mrf.mxu0
  %v6125 = vpop.f32.mrf.mxu0
  %v6126 = vadd.f32 %v5837, %v6125
  %v6127 = vpop.f32.mrf.mxu0
  %6128 = vmatprep.mubr.bf16.mxu0 %v2831
  %6129 = vmatmul.mubr.bf16.gmra.mxu0 %v2830
  %v6130 = vpop.f32.mrf.mxu0
  %v6131 = vadd.f32 %v5842, %v6130
  %v6132 = vpop.f32.mrf.mxu0
  %v6133 = vpop.f32.mrf.mxu0
  %v6134 = vadd.f32 %v5845, %v6133
  %v6135 = vpop.f32.mrf.mxu0
  %6136 = vdwg.mxu0
  %6137 = vmatprep.subr.bf16.mxu0 0
  %6138 = vmatpush1.bf16.msra.mxu0 %v3977
  %6139 = vmatprep.subr.bf16.mxu0 0
  %6140 = vmatpush1.bf16.msra.mxu0 %v3976
  %6141 = vmatprep.subr.bf16.mxu0 0
  %6142 = vmatpush1.bf16.msra.mxu0 %v3975
  %6143 = vmatprep.subr.bf16.mxu0 0
  %6144 = vmatpush1.bf16.msra.mxu0 %v3974
  %6145 = vmatprep.subr.bf16.mxu0 0
  %6146 = vmatpush1.bf16.msra.mxu0 %v3973
  %6147 = vmatprep.subr.bf16.mxu0 0
  %6148 = vmatpush1.bf16.msra.mxu0 %v3972
  %6149 = vmatprep.subr.bf16.mxu0 0
  %6150 = vmatpush1.bf16.msra.mxu0 %v3971
  %6151 = vmatprep.subr.bf16.mxu0 0
  %6152 = vmatpush1.bf16.msra.mxu0 %v3970
  %6153 = vmatprep.subr.bf16.mxu0 0
  %6154 = vmatpush2.bf16.msra.mxu0 %v3985
  %6155 = vmatprep.subr.bf16.mxu0 0
  %6156 = vmatpush2.bf16.msra.mxu0 %v3984
  %6157 = vmatprep.subr.bf16.mxu0 0
  %6158 = vmatpush2.bf16.msra.mxu0 %v3983
  %6159 = vmatprep.subr.bf16.mxu0 0
  %6160 = vmatpush2.bf16.msra.mxu0 %v3982
  %6161 = vmatprep.subr.bf16.mxu0 0
  %6162 = vmatpush2.bf16.msra.mxu0 %v3981
  %6163 = vmatprep.subr.bf16.mxu0 0
  %6164 = vmatpush2.bf16.msra.mxu0 %v3980
  %6165 = vmatprep.subr.bf16.mxu0 0
  %6166 = vmatpush2.bf16.msra.mxu0 %v3979
  %6167 = vmatprep.subr.bf16.mxu0 0
  %6168 = vmatpush2.bf16.msra.mxu0 %v3978
  %6169 = vmatprep.mubr.bf16.mxu0 %v2337
  %6170 = vmatmul.mubr.bf16.gmra.mxu0 %v2336
  %v6171 = vpop.f32.mrf.mxu0
  %v6172 = vadd.f32 %v5883, %v6171
  %v6173 = vpop.f32.mrf.mxu0
  %v6174 = vpop.f32.mrf.mxu0
  %v6175 = vadd.f32 %v5886, %v6174
  %v6176 = vpop.f32.mrf.mxu0
  %6177 = vmatprep.mubr.bf16.mxu0 %v2353
  %6178 = vmatmul.mubr.bf16.gmra.mxu0 %v2352
  %v6179 = vpop.f32.mrf.mxu0
  %v6180 = vadd.f32 %v5891, %v6179
  %v6181 = vpop.f32.mrf.mxu0
  %v6182 = vpop.f32.mrf.mxu0
  %v6183 = vadd.f32 %v5894, %v6182
  %v6184 = vpop.f32.mrf.mxu0
  %6185 = vmatprep.mubr.bf16.mxu0 %v2369
  %6186 = vmatmul.mubr.bf16.gmra.mxu0 %v2368
  %v6187 = vpop.f32.mrf.mxu0
  %v6188 = vadd.f32 %v5899, %v6187
  %v6189 = vpop.f32.mrf.mxu0
  %v6190 = vpop.f32.mrf.mxu0
  %v6191 = vadd.f32 %v5902, %v6190
  %v6192 = vpop.f32.mrf.mxu0
  %6193 = vmatprep.mubr.bf16.mxu0 %v2385
  %6194 = vmatmul.mubr.bf16.gmra.mxu0 %v2384
  %v6195 = vpop.f32.mrf.mxu0
  %v6196 = vadd.f32 %v5907, %v6195
  %v6197 = vpop.f32.mrf.mxu0
  %v6198 = vpop.f32.mrf.mxu0
  %v6199 = vadd.f32 %v5910, %v6198
  %v6200 = vpop.f32.mrf.mxu0
  %6201 = vmatprep.mubr.bf16.mxu0 %v2401
  %6202 = vmatmul.mubr.bf16.gmra.mxu0 %v2400
  %v6203 = vpop.f32.mrf.mxu0
  %v6204 = vadd.f32 %v5915, %v6203
  %v6205 = vpop.f32.mrf.mxu0
  %v6206 = vpop.f32.mrf.mxu0
  %v6207 = vadd.f32 %v5918, %v6206
  %v6208 = vpop.f32.mrf.mxu0
  %6209 = vmatprep.mubr.bf16.mxu0 %v2417
  %6210 = vmatmul.mubr.bf16.gmra.mxu0 %v2416
  %v6211 = vpop.f32.mrf.mxu0
  %v6212 = vadd.f32 %v5923, %v6211
  %v6213 = vpop.f32.mrf.mxu0
  %v6214 = vpop.f32.mrf.mxu0
  %v6215 = vadd.f32 %v5926, %v6214
  %v6216 = vpop.f32.mrf.mxu0
  %6217 = vmatprep.mubr.bf16.mxu0 %v2433
  %6218 = vmatmul.mubr.bf16.gmra.mxu0 %v2432
  %v6219 = vpop.f32.mrf.mxu0
  %v6220 = vadd.f32 %v5931, %v6219
  %v6221 = vpop.f32.mrf.mxu0
  %v6222 = vpop.f32.mrf.mxu0
  %v6223 = vadd.f32 %v5934, %v6222
  %v6224 = vpop.f32.mrf.mxu0
  %6225 = vmatprep.mubr.bf16.mxu0 %v2449
  %6226 = vmatmul.mubr.bf16.gmra.mxu0 %v2448
  %v6227 = vpop.f32.mrf.mxu0
  %v6228 = vadd.f32 %v5939, %v6227
  %v6229 = vpop.f32.mrf.mxu0
  %v6230 = vpop.f32.mrf.mxu0
  %v6231 = vadd.f32 %v5942, %v6230
  %v6232 = vpop.f32.mrf.mxu0
  %6233 = vmatprep.mubr.bf16.mxu0 %v2465
  %6234 = vmatmul.mubr.bf16.gmra.mxu0 %v2464
  %v6235 = vpop.f32.mrf.mxu0
  %v6236 = vadd.f32 %v5947, %v6235
  %v6237 = vpop.f32.mrf.mxu0
  %v6238 = vpop.f32.mrf.mxu0
  %v6239 = vadd.f32 %v5950, %v6238
  %v6240 = vpop.f32.mrf.mxu0
  %6241 = vmatprep.mubr.bf16.mxu0 %v2481
  %6242 = vmatmul.mubr.bf16.gmra.mxu0 %v2480
  %v6243 = vpop.f32.mrf.mxu0
  %v6244 = vadd.f32 %v5955, %v6243
  %v6245 = vpop.f32.mrf.mxu0
  %v6246 = vpop.f32.mrf.mxu0
  %v6247 = vadd.f32 %v5958, %v6246
  %v6248 = vpop.f32.mrf.mxu0
  %6249 = vmatprep.mubr.bf16.mxu0 %v2497
  %6250 = vmatmul.mubr.bf16.gmra.mxu0 %v2496
  %v6251 = vpop.f32.mrf.mxu0
  %v6252 = vadd.f32 %v5963, %v6251
  %v6253 = vpop.f32.mrf.mxu0
  %v6254 = vpop.f32.mrf.mxu0
  %v6255 = vadd.f32 %v5966, %v6254
  %v6256 = vpop.f32.mrf.mxu0
  %6257 = vmatprep.mubr.bf16.mxu0 %v2513
  %6258 = vmatmul.mubr.bf16.gmra.mxu0 %v2512
  %v6259 = vpop.f32.mrf.mxu0
  %v6260 = vadd.f32 %v5971, %v6259
  %v6261 = vpop.f32.mrf.mxu0
  %v6262 = vpop.f32.mrf.mxu0
  %v6263 = vadd.f32 %v5974, %v6262
  %v6264 = vpop.f32.mrf.mxu0
  %6265 = vmatprep.mubr.bf16.mxu0 %v2529
  %6266 = vmatmul.mubr.bf16.gmra.mxu0 %v2528
  %v6267 = vpop.f32.mrf.mxu0
  %v6268 = vadd.f32 %v5979, %v6267
  %v6269 = vpop.f32.mrf.mxu0
  %v6270 = vpop.f32.mrf.mxu0
  %v6271 = vadd.f32 %v5982, %v6270
  %v6272 = vpop.f32.mrf.mxu0
  %6273 = vmatprep.mubr.bf16.mxu0 %v2545
  %6274 = vmatmul.mubr.bf16.gmra.mxu0 %v2544
  %v6275 = vpop.f32.mrf.mxu0
  %v6276 = vadd.f32 %v5987, %v6275
  %v6277 = vpop.f32.mrf.mxu0
  %v6278 = vpop.f32.mrf.mxu0
  %v6279 = vadd.f32 %v5990, %v6278
  %v6280 = vpop.f32.mrf.mxu0
  %6281 = vmatprep.mubr.bf16.mxu0 %v2561
  %6282 = vmatmul.mubr.bf16.gmra.mxu0 %v2560
  %v6283 = vpop.f32.mrf.mxu0
  %v6284 = vadd.f32 %v5995, %v6283
  %v6285 = vpop.f32.mrf.mxu0
  %v6286 = vpop.f32.mrf.mxu0
  %v6287 = vadd.f32 %v5998, %v6286
  %v6288 = vpop.f32.mrf.mxu0
  %6289 = vmatprep.mubr.bf16.mxu0 %v2577
  %6290 = vmatmul.mubr.bf16.gmra.mxu0 %v2576
  %v6291 = vpop.f32.mrf.mxu0
  %v6292 = vadd.f32 %v6003, %v6291
  %v6293 = vpop.f32.mrf.mxu0
  %v6294 = vpop.f32.mrf.mxu0
  %v6295 = vadd.f32 %v6006, %v6294
  %v6296 = vpop.f32.mrf.mxu0
  %6297 = vmatprep.mubr.bf16.mxu0 %v2593
  %6298 = vmatmul.mubr.bf16.gmra.mxu0 %v2592
  %v6299 = vpop.f32.mrf.mxu0
  %v6300 = vadd.f32 %v6011, %v6299
  %v6301 = vpop.f32.mrf.mxu0
  %v6302 = vpop.f32.mrf.mxu0
  %v6303 = vadd.f32 %v6014, %v6302
  %v6304 = vpop.f32.mrf.mxu0
  %6305 = vmatprep.mubr.bf16.mxu0 %v2609
  %6306 = vmatmul.mubr.bf16.gmra.mxu0 %v2608
  %v6307 = vpop.f32.mrf.mxu0
  %v6308 = vadd.f32 %v6019, %v6307
  %v6309 = vpop.f32.mrf.mxu0
  %v6310 = vpop.f32.mrf.mxu0
  %v6311 = vadd.f32 %v6022, %v6310
  %v6312 = vpop.f32.mrf.mxu0
  %6313 = vmatprep.mubr.bf16.mxu0 %v2625
  %6314 = vmatmul.mubr.bf16.gmra.mxu0 %v2624
  %v6315 = vpop.f32.mrf.mxu0
  %v6316 = vadd.f32 %v6027, %v6315
  %v6317 = vpop.f32.mrf.mxu0
  %v6318 = vpop.f32.mrf.mxu0
  %v6319 = vadd.f32 %v6030, %v6318
  %v6320 = vpop.f32.mrf.mxu0
  %6321 = vmatprep.mubr.bf16.mxu0 %v2641
  %6322 = vmatmul.mubr.bf16.gmra.mxu0 %v2640
  %v6323 = vpop.f32.mrf.mxu0
  %v6324 = vadd.f32 %v6035, %v6323
  %v6325 = vpop.f32.mrf.mxu0
  %v6326 = vpop.f32.mrf.mxu0
  %v6327 = vadd.f32 %v6038, %v6326
  %v6328 = vpop.f32.mrf.mxu0
  %6329 = vmatprep.mubr.bf16.mxu0 %v2657
  %6330 = vmatmul.mubr.bf16.gmra.mxu0 %v2656
  %v6331 = vpop.f32.mrf.mxu0
  %v6332 = vadd.f32 %v6043, %v6331
  %v6333 = vpop.f32.mrf.mxu0
  %v6334 = vpop.f32.mrf.mxu0
  %v6335 = vadd.f32 %v6046, %v6334
  %v6336 = vpop.f32.mrf.mxu0
  %6337 = vmatprep.mubr.bf16.mxu0 %v2673
  %6338 = vmatmul.mubr.bf16.gmra.mxu0 %v2672
  %v6339 = vpop.f32.mrf.mxu0
  %v6340 = vadd.f32 %v6051, %v6339
  %v6341 = vpop.f32.mrf.mxu0
  %v6342 = vpop.f32.mrf.mxu0
  %v6343 = vadd.f32 %v6054, %v6342
  %v6344 = vpop.f32.mrf.mxu0
  %6345 = vmatprep.mubr.bf16.mxu0 %v2689
  %6346 = vmatmul.mubr.bf16.gmra.mxu0 %v2688
  %v6347 = vpop.f32.mrf.mxu0
  %v6348 = vadd.f32 %v6059, %v6347
  %v6349 = vpop.f32.mrf.mxu0
  %v6350 = vpop.f32.mrf.mxu0
  %v6351 = vadd.f32 %v6062, %v6350
  %v6352 = vpop.f32.mrf.mxu0
  %6353 = vmatprep.mubr.bf16.mxu0 %v2705
  %6354 = vmatmul.mubr.bf16.gmra.mxu0 %v2704
  %v6355 = vpop.f32.mrf.mxu0
  %v6356 = vadd.f32 %v6067, %v6355
  %v6357 = vpop.f32.mrf.mxu0
  %v6358 = vpop.f32.mrf.mxu0
  %v6359 = vadd.f32 %v6070, %v6358
  %v6360 = vpop.f32.mrf.mxu0
  %6361 = vmatprep.mubr.bf16.mxu0 %v2721
  %6362 = vmatmul.mubr.bf16.gmra.mxu0 %v2720
  %v6363 = vpop.f32.mrf.mxu0
  %v6364 = vadd.f32 %v6075, %v6363
  %v6365 = vpop.f32.mrf.mxu0
  %v6366 = vpop.f32.mrf.mxu0
  %v6367 = vadd.f32 %v6078, %v6366
  %v6368 = vpop.f32.mrf.mxu0
  %6369 = vmatprep.mubr.bf16.mxu0 %v2737
  %6370 = vmatmul.mubr.bf16.gmra.mxu0 %v2736
  %v6371 = vpop.f32.mrf.mxu0
  %v6372 = vadd.f32 %v6083, %v6371
  %v6373 = vpop.f32.mrf.mxu0
  %v6374 = vpop.f32.mrf.mxu0
  %v6375 = vadd.f32 %v6086, %v6374
  %v6376 = vpop.f32.mrf.mxu0
  %6377 = vmatprep.mubr.bf16.mxu0 %v2753
  %6378 = vmatmul.mubr.bf16.gmra.mxu0 %v2752
  %v6379 = vpop.f32.mrf.mxu0
  %v6380 = vadd.f32 %v6091, %v6379
  %v6381 = vpop.f32.mrf.mxu0
  %v6382 = vpop.f32.mrf.mxu0
  %v6383 = vadd.f32 %v6094, %v6382
  %v6384 = vpop.f32.mrf.mxu0
  %6385 = vmatprep.mubr.bf16.mxu0 %v2769
  %6386 = vmatmul.mubr.bf16.gmra.mxu0 %v2768
  %v6387 = vpop.f32.mrf.mxu0
  %v6388 = vadd.f32 %v6099, %v6387
  %v6389 = vpop.f32.mrf.mxu0
  %v6390 = vpop.f32.mrf.mxu0
  %v6391 = vadd.f32 %v6102, %v6390
  %v6392 = vpop.f32.mrf.mxu0
  %6393 = vmatprep.mubr.bf16.mxu0 %v2785
  %6394 = vmatmul.mubr.bf16.gmra.mxu0 %v2784
  %v6395 = vpop.f32.mrf.mxu0
  %v6396 = vadd.f32 %v6107, %v6395
  %v6397 = vpop.f32.mrf.mxu0
  %v6398 = vpop.f32.mrf.mxu0
  %v6399 = vadd.f32 %v6110, %v6398
  %v6400 = vpop.f32.mrf.mxu0
  %6401 = vmatprep.mubr.bf16.mxu0 %v2801
  %6402 = vmatmul.mubr.bf16.gmra.mxu0 %v2800
  %v6403 = vpop.f32.mrf.mxu0
  %v6404 = vadd.f32 %v6115, %v6403
  %v6405 = vpop.f32.mrf.mxu0
  %v6406 = vpop.f32.mrf.mxu0
  %v6407 = vadd.f32 %v6118, %v6406
  %v6408 = vpop.f32.mrf.mxu0
  %6409 = vmatprep.mubr.bf16.mxu0 %v2817
  %6410 = vmatmul.mubr.bf16.gmra.mxu0 %v2816
  %v6411 = vpop.f32.mrf.mxu0
  %v6412 = vadd.f32 %v6123, %v6411
  %v6413 = vpop.f32.mrf.mxu0
  %v6414 = vpop.f32.mrf.mxu0
  %v6415 = vadd.f32 %v6126, %v6414
  %v6416 = vpop.f32.mrf.mxu0
  %6417 = vmatprep.mubr.bf16.mxu0 %v2833
  %6418 = vmatmul.mubr.bf16.gmra.mxu0 %v2832
  %v6419 = vpop.f32.mrf.mxu0
  %v6420 = vadd.f32 %v6131, %v6419
  %v6421 = vpop.f32.mrf.mxu0
  %v6422 = vpop.f32.mrf.mxu0
  %v6423 = vadd.f32 %v6134, %v6422
  %v6424 = vpop.f32.mrf.mxu0
  %6425 = vdwg.mxu0
  %v6426 = vadd.f32 %v6172, %v6175
  %v6427 = vadd.f32 %v6426, %v6180
  %v6428 = vadd.f32 %v6427, %v6183
  %v6429 = vadd.f32 %v6428, %v6188
  %v6430 = vadd.f32 %v6429, %v6191
  %v6431 = vadd.f32 %v6430, %v6196
  %v6432 = vadd.f32 %v6431, %v6199
  %v6433 = vadd.f32 %v6432, %v6204
  %v6434 = vadd.f32 %v6433, %v6207
  %v6435 = vadd.f32 %v6434, %v6212
  %v6436 = vadd.f32 %v6435, %v6215
  %v6437 = vadd.f32 %v6436, %v6220
  %v6438 = vadd.f32 %v6437, %v6223
  %v6439 = vadd.f32 %v6438, %v6228
  %v6440 = vadd.f32 %v6439, %v6231
  %v6441 = vadd.f32 %v6440, %v6236
  %v6442 = vadd.f32 %v6441, %v6239
  %v6443 = vadd.f32 %v6442, %v6244
  %v6444 = vadd.f32 %v6443, %v6247
  %v6445 = vadd.f32 %v6444, %v6252
  %v6446 = vadd.f32 %v6445, %v6255
  %v6447 = vadd.f32 %v6446, %v6260
  %v6448 = vadd.f32 %v6447, %v6263
  %v6449 = vadd.f32 %v6448, %v6268
  %v6450 = vadd.f32 %v6449, %v6271
  %v6451 = vadd.f32 %v6450, %v6276
  %v6452 = vadd.f32 %v6451, %v6279
  %v6453 = vadd.f32 %v6452, %v6284
  %v6454 = vadd.f32 %v6453, %v6287
  %v6455 = vadd.f32 %v6454, %v6292
  %v6456 = vadd.f32 %v6455, %v6295
  %v6457 = vadd.f32 %v6456, %v6300
  %v6458 = vadd.f32 %v6457, %v6303
  %v6459 = vadd.f32 %v6458, %v6308
  %v6460 = vadd.f32 %v6459, %v6311
  %v6461 = vadd.f32 %v6460, %v6316
  %v6462 = vadd.f32 %v6461, %v6319
  %v6463 = vadd.f32 %v6462, %v6324
  %v6464 = vadd.f32 %v6463, %v6327
  %v6465 = vadd.f32 %v6464, %v6332
  %v6466 = vadd.f32 %v6465, %v6335
  %v6467 = vadd.f32 %v6466, %v6340
  %v6468 = vadd.f32 %v6467, %v6343
  %v6469 = vadd.f32 %v6468, %v6348
  %v6470 = vadd.f32 %v6469, %v6351
  %v6471 = vadd.f32 %v6470, %v6356
  %v6472 = vadd.f32 %v6471, %v6359
  %v6473 = vadd.f32 %v6472, %v6364
  %v6474 = vadd.f32 %v6473, %v6367
  %v6475 = vadd.f32 %v6474, %v6372
  %v6476 = vadd.f32 %v6475, %v6375
  %v6477 = vadd.f32 %v6476, %v6380
  %v6478 = vadd.f32 %v6477, %v6383
  %v6479 = vadd.f32 %v6478, %v6388
  %v6480 = vadd.f32 %v6479, %v6391
  %v6481 = vadd.f32 %v6480, %v6396
  %v6482 = vadd.f32 %v6481, %v6399
  %v6483 = vadd.f32 %v6482, %v6404
  %v6484 = vadd.f32 %v6483, %v6407
  %v6485 = vadd.f32 %v6484, %v6412
  %v6486 = vadd.f32 %v6485, %v6415
  %v6487 = vadd.f32 %v6486, %v6420
  %v6488 = vadd.f32 %v6487, %v6423
  %v6489 = vrot.slane %v6488, 4
  %v6490 = vadd.f32 %v6488, %v6489
  %v6491 = vrot.slane %v6490, 2
  %v6492 = vadd.f32 %v6490, %v6491
  %v6493 = vrot.slane %v6492, 1
  %v6494 = vadd.f32 %v6492, %v6493
  %v6495 = vrcp.pop 512.0
  %v6496 = vmul.f32 %v6494, %v6495
  %v6497 = vsub.f32 %v6172, %v6496
  %v6498 = vsub.f32 %v6175, %v6496
  %v6499 = vsub.f32 %v6180, %v6496
  %v6500 = vsub.f32 %v6183, %v6496
  %v6501 = vsub.f32 %v6188, %v6496
  %v6502 = vsub.f32 %v6191, %v6496
  %v6503 = vsub.f32 %v6196, %v6496
  %v6504 = vsub.f32 %v6199, %v6496
  %v6505 = vsub.f32 %v6204, %v6496
  %v6506 = vsub.f32 %v6207, %v6496
  %v6507 = vsub.f32 %v6212, %v6496
  %v6508 = vsub.f32 %v6215, %v6496
  %v6509 = vsub.f32 %v6220, %v6496
  %v6510 = vsub.f32 %v6223, %v6496
  %v6511 = vsub.f32 %v6228, %v6496
  %v6512 = vsub.f32 %v6231, %v6496
  %v6513 = vsub.f32 %v6236, %v6496
  %v6514 = vsub.f32 %v6239, %v6496
  %v6515 = vsub.f32 %v6244, %v6496
  %v6516 = vsub.f32 %v6247, %v6496
  %v6517 = vsub.f32 %v6252, %v6496
  %v6518 = vsub.f32 %v6255, %v6496
  %v6519 = vsub.f32 %v6260, %v6496
  %v6520 = vsub.f32 %v6263, %v6496
  %v6521 = vsub.f32 %v6268, %v6496
  %v6522 = vsub.f32 %v6271, %v6496
  %v6523 = vsub.f32 %v6276, %v6496
  %v6524 = vsub.f32 %v6279, %v6496
  %v6525 = vsub.f32 %v6284, %v6496
  %v6526 = vsub.f32 %v6287, %v6496
  %v6527 = vsub.f32 %v6292, %v6496
  %v6528 = vsub.f32 %v6295, %v6496
  %v6529 = vsub.f32 %v6300, %v6496
  %v6530 = vsub.f32 %v6303, %v6496
  %v6531 = vsub.f32 %v6308, %v6496
  %v6532 = vsub.f32 %v6311, %v6496
  %v6533 = vsub.f32 %v6316, %v6496
  %v6534 = vsub.f32 %v6319, %v6496
  %v6535 = vsub.f32 %v6324, %v6496
  %v6536 = vsub.f32 %v6327, %v6496
  %v6537 = vsub.f32 %v6332, %v6496
  %v6538 = vsub.f32 %v6335, %v6496
  %v6539 = vsub.f32 %v6340, %v6496
  %v6540 = vsub.f32 %v6343, %v6496
  %v6541 = vsub.f32 %v6348, %v6496
  %v6542 = vsub.f32 %v6351, %v6496
  %v6543 = vsub.f32 %v6356, %v6496
  %v6544 = vsub.f32 %v6359, %v6496
  %v6545 = vsub.f32 %v6364, %v6496
  %v6546 = vsub.f32 %v6367, %v6496
  %v6547 = vsub.f32 %v6372, %v6496
  %v6548 = vsub.f32 %v6375, %v6496
  %v6549 = vsub.f32 %v6380, %v6496
  %v6550 = vsub.f32 %v6383, %v6496
  %v6551 = vsub.f32 %v6388, %v6496
  %v6552 = vsub.f32 %v6391, %v6496
  %v6553 = vsub.f32 %v6396, %v6496
  %v6554 = vsub.f32 %v6399, %v6496
  %v6555 = vsub.f32 %v6404, %v6496
  %v6556 = vsub.f32 %v6407, %v6496
  %v6557 = vsub.f32 %v6412, %v6496
  %v6558 = vsub.f32 %v6415, %v6496
  %v6559 = vsub.f32 %v6420, %v6496
  %v6560 = vsub.f32 %v6423, %v6496
  %v6561 = vmul.f32 %v6497, %v6497
  %v6562 = vmul.f32 %v6498, %v6498
  %v6563 = vmul.f32 %v6499, %v6499
  %v6564 = vmul.f32 %v6500, %v6500
  %v6565 = vmul.f32 %v6501, %v6501
  %v6566 = vmul.f32 %v6502, %v6502
  %v6567 = vmul.f32 %v6503, %v6503
  %v6568 = vmul.f32 %v6504, %v6504
  %v6569 = vmul.f32 %v6505, %v6505
  %v6570 = vmul.f32 %v6506, %v6506
  %v6571 = vmul.f32 %v6507, %v6507
  %v6572 = vmul.f32 %v6508, %v6508
  %v6573 = vmul.f32 %v6509, %v6509
  %v6574 = vmul.f32 %v6510, %v6510
  %v6575 = vmul.f32 %v6511, %v6511
  %v6576 = vmul.f32 %v6512, %v6512
  %v6577 = vmul.f32 %v6513, %v6513
  %v6578 = vmul.f32 %v6514, %v6514
  %v6579 = vmul.f32 %v6515, %v6515
  %v6580 = vmul.f32 %v6516, %v6516
  %v6581 = vmul.f32 %v6517, %v6517
  %v6582 = vmul.f32 %v6518, %v6518
  %v6583 = vmul.f32 %v6519, %v6519
  %v6584 = vmul.f32 %v6520, %v6520
  %v6585 = vmul.f32 %v6521, %v6521
  %v6586 = vmul.f32 %v6522, %v6522
  %v6587 = vmul.f32 %v6523, %v6523
  %v6588 = vmul.f32 %v6524, %v6524
  %v6589 = vmul.f32 %v6525, %v6525
  %v6590 = vmul.f32 %v6526, %v6526
  %v6591 = vmul.f32 %v6527, %v6527
  %v6592 = vmul.f32 %v6528, %v6528
  %v6593 = vmul.f32 %v6529, %v6529
  %v6594 = vmul.f32 %v6530, %v6530
  %v6595 = vmul.f32 %v6531, %v6531
  %v6596 = vmul.f32 %v6532, %v6532
  %v6597 = vmul.f32 %v6533, %v6533
  %v6598 = vmul.f32 %v6534, %v6534
  %v6599 = vmul.f32 %v6535, %v6535
  %v6600 = vmul.f32 %v6536, %v6536
  %v6601 = vmul.f32 %v6537, %v6537
  %v6602 = vmul.f32 %v6538, %v6538
  %v6603 = vmul.f32 %v6539, %v6539
  %v6604 = vmul.f32 %v6540, %v6540
  %v6605 = vmul.f32 %v6541, %v6541
  %v6606 = vmul.f32 %v6542, %v6542
  %v6607 = vmul.f32 %v6543, %v6543
  %v6608 = vmul.f32 %v6544, %v6544
  %v6609 = vmul.f32 %v6545, %v6545
  %v6610 = vmul.f32 %v6546, %v6546
  %v6611 = vmul.f32 %v6547, %v6547
  %v6612 = vmul.f32 %v6548, %v6548
  %v6613 = vmul.f32 %v6549, %v6549
  %v6614 = vmul.f32 %v6550, %v6550
  %v6615 = vmul.f32 %v6551, %v6551
  %v6616 = vmul.f32 %v6552, %v6552
  %v6617 = vmul.f32 %v6553, %v6553
  %v6618 = vmul.f32 %v6554, %v6554
  %v6619 = vmul.f32 %v6555, %v6555
  %v6620 = vmul.f32 %v6556, %v6556
  %v6621 = vmul.f32 %v6557, %v6557
  %v6622 = vmul.f32 %v6558, %v6558
  %v6623 = vmul.f32 %v6559, %v6559
  %v6624 = vmul.f32 %v6560, %v6560
  %v6625 = vadd.f32 %v6561, %v6562
  %v6626 = vadd.f32 %v6625, %v6563
  %v6627 = vadd.f32 %v6626, %v6564
  %v6628 = vadd.f32 %v6627, %v6565
  %v6629 = vadd.f32 %v6628, %v6566
  %v6630 = vadd.f32 %v6629, %v6567
  %v6631 = vadd.f32 %v6630, %v6568
  %v6632 = vadd.f32 %v6631, %v6569
  %v6633 = vadd.f32 %v6632, %v6570
  %v6634 = vadd.f32 %v6633, %v6571
  %v6635 = vadd.f32 %v6634, %v6572
  %v6636 = vadd.f32 %v6635, %v6573
  %v6637 = vadd.f32 %v6636, %v6574
  %v6638 = vadd.f32 %v6637, %v6575
  %v6639 = vadd.f32 %v6638, %v6576
  %v6640 = vadd.f32 %v6639, %v6577
  %v6641 = vadd.f32 %v6640, %v6578
  %v6642 = vadd.f32 %v6641, %v6579
  %v6643 = vadd.f32 %v6642, %v6580
  %v6644 = vadd.f32 %v6643, %v6581
  %v6645 = vadd.f32 %v6644, %v6582
  %v6646 = vadd.f32 %v6645, %v6583
  %v6647 = vadd.f32 %v6646, %v6584
  %v6648 = vadd.f32 %v6647, %v6585
  %v6649 = vadd.f32 %v6648, %v6586
  %v6650 = vadd.f32 %v6649, %v6587
  %v6651 = vadd.f32 %v6650, %v6588
  %v6652 = vadd.f32 %v6651, %v6589
  %v6653 = vadd.f32 %v6652, %v6590
  %v6654 = vadd.f32 %v6653, %v6591
  %v6655 = vadd.f32 %v6654, %v6592
  %v6656 = vadd.f32 %v6655, %v6593
  %v6657 = vadd.f32 %v6656, %v6594
  %v6658 = vadd.f32 %v6657, %v6595
  %v6659 = vadd.f32 %v6658, %v6596
  %v6660 = vadd.f32 %v6659, %v6597
  %v6661 = vadd.f32 %v6660, %v6598
  %v6662 = vadd.f32 %v6661, %v6599
  %v6663 = vadd.f32 %v6662, %v6600
  %v6664 = vadd.f32 %v6663, %v6601
  %v6665 = vadd.f32 %v6664, %v6602
  %v6666 = vadd.f32 %v6665, %v6603
  %v6667 = vadd.f32 %v6666, %v6604
  %v6668 = vadd.f32 %v6667, %v6605
  %v6669 = vadd.f32 %v6668, %v6606
  %v6670 = vadd.f32 %v6669, %v6607
  %v6671 = vadd.f32 %v6670, %v6608
  %v6672 = vadd.f32 %v6671, %v6609
  %v6673 = vadd.f32 %v6672, %v6610
  %v6674 = vadd.f32 %v6673, %v6611
  %v6675 = vadd.f32 %v6674, %v6612
  %v6676 = vadd.f32 %v6675, %v6613
  %v6677 = vadd.f32 %v6676, %v6614
  %v6678 = vadd.f32 %v6677, %v6615
  %v6679 = vadd.f32 %v6678, %v6616
  %v6680 = vadd.f32 %v6679, %v6617
  %v6681 = vadd.f32 %v6680, %v6618
  %v6682 = vadd.f32 %v6681, %v6619
  %v6683 = vadd.f32 %v6682, %v6620
  %v6684 = vadd.f32 %v6683, %v6621
  %v6685 = vadd.f32 %v6684, %v6622
  %v6686 = vadd.f32 %v6685, %v6623
  %v6687 = vadd.f32 %v6686, %v6624
  %v6688 = vrot.slane %v6687, 4
  %v6689 = vadd.f32 %v6687, %v6688
  %v6690 = vrot.slane %v6689, 2
  %v6691 = vadd.f32 %v6689, %v6690
  %v6692 = vrot.slane %v6691, 1
  %v6693 = vadd.f32 %v6691, %v6692
  %v6694 = vmul.f32 %v6693, %v6495
  %v6695 = vadd.f32 %v6694, 1e-05
  %v6696 = vrsqrt.pop %v6695
  %v6697 = vmul.f32 %v6497, %v6696
  %v6698 = vmul.f32 %v6498, %v6696
  %v6699 = vmul.f32 %v6499, %v6696
  %v6700 = vmul.f32 %v6500, %v6696
  %v6701 = vmul.f32 %v6501, %v6696
  %v6702 = vmul.f32 %v6502, %v6696
  %v6703 = vmul.f32 %v6503, %v6696
  %v6704 = vmul.f32 %v6504, %v6696
  %v6705 = vmul.f32 %v6505, %v6696
  %v6706 = vmul.f32 %v6506, %v6696
  %v6707 = vmul.f32 %v6507, %v6696
  %v6708 = vmul.f32 %v6508, %v6696
  %v6709 = vmul.f32 %v6509, %v6696
  %v6710 = vmul.f32 %v6510, %v6696
  %v6711 = vmul.f32 %v6511, %v6696
  %v6712 = vmul.f32 %v6512, %v6696
  %v6713 = vmul.f32 %v6513, %v6696
  %v6714 = vmul.f32 %v6514, %v6696
  %v6715 = vmul.f32 %v6515, %v6696
  %v6716 = vmul.f32 %v6516, %v6696
  %v6717 = vmul.f32 %v6517, %v6696
  %v6718 = vmul.f32 %v6518, %v6696
  %v6719 = vmul.f32 %v6519, %v6696
  %v6720 = vmul.f32 %v6520, %v6696
  %v6721 = vmul.f32 %v6521, %v6696
  %v6722 = vmul.f32 %v6522, %v6696
  %v6723 = vmul.f32 %v6523, %v6696
  %v6724 = vmul.f32 %v6524, %v6696
  %v6725 = vmul.f32 %v6525, %v6696
  %v6726 = vmul.f32 %v6526, %v6696
  %v6727 = vmul.f32 %v6527, %v6696
  %v6728 = vmul.f32 %v6528, %v6696
  %v6729 = vmul.f32 %v6529, %v6696
  %v6730 = vmul.f32 %v6530, %v6696
  %v6731 = vmul.f32 %v6531, %v6696
  %v6732 = vmul.f32 %v6532, %v6696
  %v6733 = vmul.f32 %v6533, %v6696
  %v6734 = vmul.f32 %v6534, %v6696
  %v6735 = vmul.f32 %v6535, %v6696
  %v6736 = vmul.f32 %v6536, %v6696
  %v6737 = vmul.f32 %v6537, %v6696
  %v6738 = vmul.f32 %v6538, %v6696
  %v6739 = vmul.f32 %v6539, %v6696
  %v6740 = vmul.f32 %v6540, %v6696
  %v6741 = vmul.f32 %v6541, %v6696
  %v6742 = vmul.f32 %v6542, %v6696
  %v6743 = vmul.f32 %v6543, %v6696
  %v6744 = vmul.f32 %v6544, %v6696
  %v6745 = vmul.f32 %v6545, %v6696
  %v6746 = vmul.f32 %v6546, %v6696
  %v6747 = vmul.f32 %v6547, %v6696
  %v6748 = vmul.f32 %v6548, %v6696
  %v6749 = vmul.f32 %v6549, %v6696
  %v6750 = vmul.f32 %v6550, %v6696
  %v6751 = vmul.f32 %v6551, %v6696
  %v6752 = vmul.f32 %v6552, %v6696
  %v6753 = vmul.f32 %v6553, %v6696
  %v6754 = vmul.f32 %v6554, %v6696
  %v6755 = vmul.f32 %v6555, %v6696
  %v6756 = vmul.f32 %v6556, %v6696
  %v6757 = vmul.f32 %v6557, %v6696
  %v6758 = vmul.f32 %v6558, %v6696
  %v6759 = vmul.f32 %v6559, %v6696
  %v6760 = vmul.f32 %v6560, %v6696
  %v6761 = vld [vmem:[%s2] sm:$0x1]
  %v6763 = vlaneseq
  %v6764 = vshrl.u32 %v6763, 7
  %v6765 = vsub.s32 0, %v6764
  %v6766 = vrot.slane %v6761, %v6765
  %v6768 = vmul.f32 %v6697, %v6766
  %v6769 = vmul.f32 %v6698, %v6766
  %v6770 = vmul.f32 %v6699, %v6766
  %v6771 = vmul.f32 %v6700, %v6766
  %v6772 = vmul.f32 %v6701, %v6766
  %v6773 = vmul.f32 %v6702, %v6766
  %v6774 = vmul.f32 %v6703, %v6766
  %v6775 = vmul.f32 %v6704, %v6766
  %v6776 = vmul.f32 %v6705, %v6766
  %v6777 = vmul.f32 %v6706, %v6766
  %v6778 = vmul.f32 %v6707, %v6766
  %v6779 = vmul.f32 %v6708, %v6766
  %v6780 = vmul.f32 %v6709, %v6766
  %v6781 = vmul.f32 %v6710, %v6766
  %v6782 = vmul.f32 %v6711, %v6766
  %v6783 = vmul.f32 %v6712, %v6766
  %v6784 = vmul.f32 %v6713, %v6766
  %v6785 = vmul.f32 %v6714, %v6766
  %v6786 = vmul.f32 %v6715, %v6766
  %v6787 = vmul.f32 %v6716, %v6766
  %v6788 = vmul.f32 %v6717, %v6766
  %v6789 = vmul.f32 %v6718, %v6766
  %v6790 = vmul.f32 %v6719, %v6766
  %v6791 = vmul.f32 %v6720, %v6766
  %v6792 = vmul.f32 %v6721, %v6766
  %v6793 = vmul.f32 %v6722, %v6766
  %v6794 = vmul.f32 %v6723, %v6766
  %v6795 = vmul.f32 %v6724, %v6766
  %v6796 = vmul.f32 %v6725, %v6766
  %v6797 = vmul.f32 %v6726, %v6766
  %v6798 = vmul.f32 %v6727, %v6766
  %v6799 = vmul.f32 %v6728, %v6766
  %v6800 = vmul.f32 %v6729, %v6766
  %v6801 = vmul.f32 %v6730, %v6766
  %v6802 = vmul.f32 %v6731, %v6766
  %v6803 = vmul.f32 %v6732, %v6766
  %v6804 = vmul.f32 %v6733, %v6766
  %v6805 = vmul.f32 %v6734, %v6766
  %v6806 = vmul.f32 %v6735, %v6766
  %v6807 = vmul.f32 %v6736, %v6766
  %v6808 = vmul.f32 %v6737, %v6766
  %v6809 = vmul.f32 %v6738, %v6766
  %v6810 = vmul.f32 %v6739, %v6766
  %v6811 = vmul.f32 %v6740, %v6766
  %v6812 = vmul.f32 %v6741, %v6766
  %v6813 = vmul.f32 %v6742, %v6766
  %v6814 = vmul.f32 %v6743, %v6766
  %v6815 = vmul.f32 %v6744, %v6766
  %v6816 = vmul.f32 %v6745, %v6766
  %v6817 = vmul.f32 %v6746, %v6766
  %v6818 = vmul.f32 %v6747, %v6766
  %v6819 = vmul.f32 %v6748, %v6766
  %v6820 = vmul.f32 %v6749, %v6766
  %v6821 = vmul.f32 %v6750, %v6766
  %v6822 = vmul.f32 %v6751, %v6766
  %v6823 = vmul.f32 %v6752, %v6766
  %v6824 = vmul.f32 %v6753, %v6766
  %v6825 = vmul.f32 %v6754, %v6766
  %v6826 = vmul.f32 %v6755, %v6766
  %v6827 = vmul.f32 %v6756, %v6766
  %v6828 = vmul.f32 %v6757, %v6766
  %v6829 = vmul.f32 %v6758, %v6766
  %v6830 = vmul.f32 %v6759, %v6766
  %v6831 = vmul.f32 %v6760, %v6766
  %v6832 = vld [vmem:[%s3] sm:$0x1]
  %v6834 = vlaneseq
  %v6835 = vshrl.u32 %v6834, 7
  %v6836 = vsub.s32 0, %v6835
  %v6837 = vrot.slane %v6832, %v6836
  %v6839 = vadd.f32 %v6768, %v6837
  %v6840 = vadd.f32 %v6769, %v6837
  %v6841 = vadd.f32 %v6770, %v6837
  %v6842 = vadd.f32 %v6771, %v6837
  %v6843 = vadd.f32 %v6772, %v6837
  %v6844 = vadd.f32 %v6773, %v6837
  %v6845 = vadd.f32 %v6774, %v6837
  %v6846 = vadd.f32 %v6775, %v6837
  %v6847 = vadd.f32 %v6776, %v6837
  %v6848 = vadd.f32 %v6777, %v6837
  %v6849 = vadd.f32 %v6778, %v6837
  %v6850 = vadd.f32 %v6779, %v6837
  %v6851 = vadd.f32 %v6780, %v6837
  %v6852 = vadd.f32 %v6781, %v6837
  %v6853 = vadd.f32 %v6782, %v6837
  %v6854 = vadd.f32 %v6783, %v6837
  %v6855 = vadd.f32 %v6784, %v6837
  %v6856 = vadd.f32 %v6785, %v6837
  %v6857 = vadd.f32 %v6786, %v6837
  %v6858 = vadd.f32 %v6787, %v6837
  %v6859 = vadd.f32 %v6788, %v6837
  %v6860 = vadd.f32 %v6789, %v6837
  %v6861 = vadd.f32 %v6790, %v6837
  %v6862 = vadd.f32 %v6791, %v6837
  %v6863 = vadd.f32 %v6792, %v6837
  %v6864 = vadd.f32 %v6793, %v6837
  %v6865 = vadd.f32 %v6794, %v6837
  %v6866 = vadd.f32 %v6795, %v6837
  %v6867 = vadd.f32 %v6796, %v6837
  %v6868 = vadd.f32 %v6797, %v6837
  %v6869 = vadd.f32 %v6798, %v6837
  %v6870 = vadd.f32 %v6799, %v6837
  %v6871 = vadd.f32 %v6800, %v6837
  %v6872 = vadd.f32 %v6801, %v6837
  %v6873 = vadd.f32 %v6802, %v6837
  %v6874 = vadd.f32 %v6803, %v6837
  %v6875 = vadd.f32 %v6804, %v6837
  %v6876 = vadd.f32 %v6805, %v6837
  %v6877 = vadd.f32 %v6806, %v6837
  %v6878 = vadd.f32 %v6807, %v6837
  %v6879 = vadd.f32 %v6808, %v6837
  %v6880 = vadd.f32 %v6809, %v6837
  %v6881 = vadd.f32 %v6810, %v6837
  %v6882 = vadd.f32 %v6811, %v6837
  %v6883 = vadd.f32 %v6812, %v6837
  %v6884 = vadd.f32 %v6813, %v6837
  %v6885 = vadd.f32 %v6814, %v6837
  %v6886 = vadd.f32 %v6815, %v6837
  %v6887 = vadd.f32 %v6816, %v6837
  %v6888 = vadd.f32 %v6817, %v6837
  %v6889 = vadd.f32 %v6818, %v6837
  %v6890 = vadd.f32 %v6819, %v6837
  %v6891 = vadd.f32 %v6820, %v6837
  %v6892 = vadd.f32 %v6821, %v6837
  %v6893 = vadd.f32 %v6822, %v6837
  %v6894 = vadd.f32 %v6823, %v6837
  %v6895 = vadd.f32 %v6824, %v6837
  %v6896 = vadd.f32 %v6825, %v6837
  %v6897 = vadd.f32 %v6826, %v6837
  %v6898 = vadd.f32 %v6827, %v6837
  %v6899 = vadd.f32 %v6828, %v6837
  %v6900 = vadd.f32 %v6829, %v6837
  %v6901 = vadd.f32 %v6830, %v6837
  %v6902 = vadd.f32 %v6831, %v6837
  %vm6903 = vcmp.gt.f32.partialorder %v6839, 0.0
  %vm6904 = vcmp.gt.f32.partialorder %v6840, 0.0
  %vm6905 = vcmp.gt.f32.partialorder %v6841, 0.0
  %vm6906 = vcmp.gt.f32.partialorder %v6842, 0.0
  %vm6907 = vcmp.gt.f32.partialorder %v6843, 0.0
  %vm6908 = vcmp.gt.f32.partialorder %v6844, 0.0
  %vm6909 = vcmp.gt.f32.partialorder %v6845, 0.0
  %vm6910 = vcmp.gt.f32.partialorder %v6846, 0.0
  %vm6911 = vcmp.gt.f32.partialorder %v6847, 0.0
  %vm6912 = vcmp.gt.f32.partialorder %v6848, 0.0
  %vm6913 = vcmp.gt.f32.partialorder %v6849, 0.0
  %vm6914 = vcmp.gt.f32.partialorder %v6850, 0.0
  %vm6915 = vcmp.gt.f32.partialorder %v6851, 0.0
  %vm6916 = vcmp.gt.f32.partialorder %v6852, 0.0
  %vm6917 = vcmp.gt.f32.partialorder %v6853, 0.0
  %vm6918 = vcmp.gt.f32.partialorder %v6854, 0.0
  %vm6919 = vcmp.gt.f32.partialorder %v6855, 0.0
  %vm6920 = vcmp.gt.f32.partialorder %v6856, 0.0
  %vm6921 = vcmp.gt.f32.partialorder %v6857, 0.0
  %vm6922 = vcmp.gt.f32.partialorder %v6858, 0.0
  %vm6923 = vcmp.gt.f32.partialorder %v6859, 0.0
  %vm6924 = vcmp.gt.f32.partialorder %v6860, 0.0
  %vm6925 = vcmp.gt.f32.partialorder %v6861, 0.0
  %vm6926 = vcmp.gt.f32.partialorder %v6862, 0.0
  %vm6927 = vcmp.gt.f32.partialorder %v6863, 0.0
  %vm6928 = vcmp.gt.f32.partialorder %v6864, 0.0
  %vm6929 = vcmp.gt.f32.partialorder %v6865, 0.0
  %vm6930 = vcmp.gt.f32.partialorder %v6866, 0.0
  %vm6931 = vcmp.gt.f32.partialorder %v6867, 0.0
  %vm6932 = vcmp.gt.f32.partialorder %v6868, 0.0
  %vm6933 = vcmp.gt.f32.partialorder %v6869, 0.0
  %vm6934 = vcmp.gt.f32.partialorder %v6870, 0.0
  %vm6935 = vcmp.gt.f32.partialorder %v6871, 0.0
  %vm6936 = vcmp.gt.f32.partialorder %v6872, 0.0
  %vm6937 = vcmp.gt.f32.partialorder %v6873, 0.0
  %vm6938 = vcmp.gt.f32.partialorder %v6874, 0.0
  %vm6939 = vcmp.gt.f32.partialorder %v6875, 0.0
  %vm6940 = vcmp.gt.f32.partialorder %v6876, 0.0
  %vm6941 = vcmp.gt.f32.partialorder %v6877, 0.0
  %vm6942 = vcmp.gt.f32.partialorder %v6878, 0.0
  %vm6943 = vcmp.gt.f32.partialorder %v6879, 0.0
  %vm6944 = vcmp.gt.f32.partialorder %v6880, 0.0
  %vm6945 = vcmp.gt.f32.partialorder %v6881, 0.0
  %vm6946 = vcmp.gt.f32.partialorder %v6882, 0.0
  %vm6947 = vcmp.gt.f32.partialorder %v6883, 0.0
  %vm6948 = vcmp.gt.f32.partialorder %v6884, 0.0
  %vm6949 = vcmp.gt.f32.partialorder %v6885, 0.0
  %vm6950 = vcmp.gt.f32.partialorder %v6886, 0.0
  %vm6951 = vcmp.gt.f32.partialorder %v6887, 0.0
  %vm6952 = vcmp.gt.f32.partialorder %v6888, 0.0
  %vm6953 = vcmp.gt.f32.partialorder %v6889, 0.0
  %vm6954 = vcmp.gt.f32.partialorder %v6890, 0.0
  %vm6955 = vcmp.gt.f32.partialorder %v6891, 0.0
  %vm6956 = vcmp.gt.f32.partialorder %v6892, 0.0
  %vm6957 = vcmp.gt.f32.partialorder %v6893, 0.0
  %vm6958 = vcmp.gt.f32.partialorder %v6894, 0.0
  %vm6959 = vcmp.gt.f32.partialorder %v6895, 0.0
  %vm6960 = vcmp.gt.f32.partialorder %v6896, 0.0
  %vm6961 = vcmp.gt.f32.partialorder %v6897, 0.0
  %vm6962 = vcmp.gt.f32.partialorder %v6898, 0.0
  %vm6963 = vcmp.gt.f32.partialorder %v6899, 0.0
  %vm6964 = vcmp.gt.f32.partialorder %v6900, 0.0
  %vm6965 = vcmp.gt.f32.partialorder %v6901, 0.0
  %vm6966 = vcmp.gt.f32.partialorder %v6902, 0.0
  %v6967 = vmul.f32 %v6839, 0.2
  %v6968 = vmul.f32 %v6840, 0.2
  %v6969 = vmul.f32 %v6841, 0.2
  %v6970 = vmul.f32 %v6842, 0.2
  %v6971 = vmul.f32 %v6843, 0.2
  %v6972 = vmul.f32 %v6844, 0.2
  %v6973 = vmul.f32 %v6845, 0.2
  %v6974 = vmul.f32 %v6846, 0.2
  %v6975 = vmul.f32 %v6847, 0.2
  %v6976 = vmul.f32 %v6848, 0.2
  %v6977 = vmul.f32 %v6849, 0.2
  %v6978 = vmul.f32 %v6850, 0.2
  %v6979 = vmul.f32 %v6851, 0.2
  %v6980 = vmul.f32 %v6852, 0.2
  %v6981 = vmul.f32 %v6853, 0.2
  %v6982 = vmul.f32 %v6854, 0.2
  %v6983 = vmul.f32 %v6855, 0.2
  %v6984 = vmul.f32 %v6856, 0.2
  %v6985 = vmul.f32 %v6857, 0.2
  %v6986 = vmul.f32 %v6858, 0.2
  %v6987 = vmul.f32 %v6859, 0.2
  %v6988 = vmul.f32 %v6860, 0.2
  %v6989 = vmul.f32 %v6861, 0.2
  %v6990 = vmul.f32 %v6862, 0.2
  %v6991 = vmul.f32 %v6863, 0.2
  %v6992 = vmul.f32 %v6864, 0.2
  %v6993 = vmul.f32 %v6865, 0.2
  %v6994 = vmul.f32 %v6866, 0.2
  %v6995 = vmul.f32 %v6867, 0.2
  %v6996 = vmul.f32 %v6868, 0.2
  %v6997 = vmul.f32 %v6869, 0.2
  %v6998 = vmul.f32 %v6870, 0.2
  %v6999 = vmul.f32 %v6871, 0.2
  %v7000 = vmul.f32 %v6872, 0.2
  %v7001 = vmul.f32 %v6873, 0.2
  %v7002 = vmul.f32 %v6874, 0.2
  %v7003 = vmul.f32 %v6875, 0.2
  %v7004 = vmul.f32 %v6876, 0.2
  %v7005 = vmul.f32 %v6877, 0.2
  %v7006 = vmul.f32 %v6878, 0.2
  %v7007 = vmul.f32 %v6879, 0.2
  %v7008 = vmul.f32 %v6880, 0.2
  %v7009 = vmul.f32 %v6881, 0.2
  %v7010 = vmul.f32 %v6882, 0.2
  %v7011 = vmul.f32 %v6883, 0.2
  %v7012 = vmul.f32 %v6884, 0.2
  %v7013 = vmul.f32 %v6885, 0.2
  %v7014 = vmul.f32 %v6886, 0.2
  %v7015 = vmul.f32 %v6887, 0.2
  %v7016 = vmul.f32 %v6888, 0.2
  %v7017 = vmul.f32 %v6889, 0.2
  %v7018 = vmul.f32 %v6890, 0.2
  %v7019 = vmul.f32 %v6891, 0.2
  %v7020 = vmul.f32 %v6892, 0.2
  %v7021 = vmul.f32 %v6893, 0.2
  %v7022 = vmul.f32 %v6894, 0.2
  %v7023 = vmul.f32 %v6895, 0.2
  %v7024 = vmul.f32 %v6896, 0.2
  %v7025 = vmul.f32 %v6897, 0.2
  %v7026 = vmul.f32 %v6898, 0.2
  %v7027 = vmul.f32 %v6899, 0.2
  %v7028 = vmul.f32 %v6900, 0.2
  %v7029 = vmul.f32 %v6901, 0.2
  %v7030 = vmul.f32 %v6902, 0.2
  %v7031 = vsel %vm6903, %v6839, %v6967
  %v7032 = vsel %vm6904, %v6840, %v6968
  %v7033 = vsel %vm6905, %v6841, %v6969
  %v7034 = vsel %vm6906, %v6842, %v6970
  %v7035 = vsel %vm6907, %v6843, %v6971
  %v7036 = vsel %vm6908, %v6844, %v6972
  %v7037 = vsel %vm6909, %v6845, %v6973
  %v7038 = vsel %vm6910, %v6846, %v6974
  %v7039 = vsel %vm6911, %v6847, %v6975
  %v7040 = vsel %vm6912, %v6848, %v6976
  %v7041 = vsel %vm6913, %v6849, %v6977
  %v7042 = vsel %vm6914, %v6850, %v6978
  %v7043 = vsel %vm6915, %v6851, %v6979
  %v7044 = vsel %vm6916, %v6852, %v6980
  %v7045 = vsel %vm6917, %v6853, %v6981
  %v7046 = vsel %vm6918, %v6854, %v6982
  %v7047 = vsel %vm6919, %v6855, %v6983
  %v7048 = vsel %vm6920, %v6856, %v6984
  %v7049 = vsel %vm6921, %v6857, %v6985
  %v7050 = vsel %vm6922, %v6858, %v6986
  %v7051 = vsel %vm6923, %v6859, %v6987
  %v7052 = vsel %vm6924, %v6860, %v6988
  %v7053 = vsel %vm6925, %v6861, %v6989
  %v7054 = vsel %vm6926, %v6862, %v6990
  %v7055 = vsel %vm6927, %v6863, %v6991
  %v7056 = vsel %vm6928, %v6864, %v6992
  %v7057 = vsel %vm6929, %v6865, %v6993
  %v7058 = vsel %vm6930, %v6866, %v6994
  %v7059 = vsel %vm6931, %v6867, %v6995
  %v7060 = vsel %vm6932, %v6868, %v6996
  %v7061 = vsel %vm6933, %v6869, %v6997
  %v7062 = vsel %vm6934, %v6870, %v6998
  %v7063 = vsel %vm6935, %v6871, %v6999
  %v7064 = vsel %vm6936, %v6872, %v7000
  %v7065 = vsel %vm6937, %v6873, %v7001
  %v7066 = vsel %vm6938, %v6874, %v7002
  %v7067 = vsel %vm6939, %v6875, %v7003
  %v7068 = vsel %vm6940, %v6876, %v7004
  %v7069 = vsel %vm6941, %v6877, %v7005
  %v7070 = vsel %vm6942, %v6878, %v7006
  %v7071 = vsel %vm6943, %v6879, %v7007
  %v7072 = vsel %vm6944, %v6880, %v7008
  %v7073 = vsel %vm6945, %v6881, %v7009
  %v7074 = vsel %vm6946, %v6882, %v7010
  %v7075 = vsel %vm6947, %v6883, %v7011
  %v7076 = vsel %vm6948, %v6884, %v7012
  %v7077 = vsel %vm6949, %v6885, %v7013
  %v7078 = vsel %vm6950, %v6886, %v7014
  %v7079 = vsel %vm6951, %v6887, %v7015
  %v7080 = vsel %vm6952, %v6888, %v7016
  %v7081 = vsel %vm6953, %v6889, %v7017
  %v7082 = vsel %vm6954, %v6890, %v7018
  %v7083 = vsel %vm6955, %v6891, %v7019
  %v7084 = vsel %vm6956, %v6892, %v7020
  %v7085 = vsel %vm6957, %v6893, %v7021
  %v7086 = vsel %vm6958, %v6894, %v7022
  %v7087 = vsel %vm6959, %v6895, %v7023
  %v7088 = vsel %vm6960, %v6896, %v7024
  %v7089 = vsel %vm6961, %v6897, %v7025
  %v7090 = vsel %vm6962, %v6898, %v7026
  %v7091 = vsel %vm6963, %v6899, %v7027
  %v7092 = vsel %vm6964, %v6900, %v7028
  %v7093 = vsel %vm6965, %v6901, %v7029
  %v7094 = vsel %vm6966, %v6902, %v7030
  %v7095 = vpack.c.bf16 %v7032, %v7031
  %v7096 = vpack.c.bf16 %v7034, %v7033
  %v7097 = vpack.c.bf16 %v7036, %v7035
  %v7098 = vpack.c.bf16 %v7038, %v7037
  %v7099 = vpack.c.bf16 %v7040, %v7039
  %v7100 = vpack.c.bf16 %v7042, %v7041
  %v7101 = vpack.c.bf16 %v7044, %v7043
  %v7102 = vpack.c.bf16 %v7046, %v7045
  %v7103 = vpack.c.bf16 %v7048, %v7047
  %v7104 = vpack.c.bf16 %v7050, %v7049
  %v7105 = vpack.c.bf16 %v7052, %v7051
  %v7106 = vpack.c.bf16 %v7054, %v7053
  %v7107 = vpack.c.bf16 %v7056, %v7055
  %v7108 = vpack.c.bf16 %v7058, %v7057
  %v7109 = vpack.c.bf16 %v7060, %v7059
  %v7110 = vpack.c.bf16 %v7062, %v7061
  %v7111 = vpack.c.bf16 %v7064, %v7063
  %v7112 = vpack.c.bf16 %v7066, %v7065
  %v7113 = vpack.c.bf16 %v7068, %v7067
  %v7114 = vpack.c.bf16 %v7070, %v7069
  %v7115 = vpack.c.bf16 %v7072, %v7071
  %v7116 = vpack.c.bf16 %v7074, %v7073
  %v7117 = vpack.c.bf16 %v7076, %v7075
  %v7118 = vpack.c.bf16 %v7078, %v7077
  %v7119 = vpack.c.bf16 %v7080, %v7079
  %v7120 = vpack.c.bf16 %v7082, %v7081
  %v7121 = vpack.c.bf16 %v7084, %v7083
  %v7122 = vpack.c.bf16 %v7086, %v7085
  %v7123 = vpack.c.bf16 %v7088, %v7087
  %v7124 = vpack.c.bf16 %v7090, %v7089
  %v7125 = vpack.c.bf16 %v7092, %v7091
  %v7126 = vpack.c.bf16 %v7094, %v7093
  %v7159 = vunpack.c.l.b16 %v7095
  %v7160 = vunpack.c.h.b16 %v7095
  %v7161 = vunpack.c.l.b16 %v7096
  %v7162 = vunpack.c.h.b16 %v7096
  %v7163 = vunpack.c.l.b16 %v7097
  %v7164 = vunpack.c.h.b16 %v7097
  %v7165 = vunpack.c.l.b16 %v7098
  %v7166 = vunpack.c.h.b16 %v7098
  %v7167 = vunpack.c.l.b16 %v7099
  %v7168 = vunpack.c.h.b16 %v7099
  %v7169 = vunpack.c.l.b16 %v7100
  %v7170 = vunpack.c.h.b16 %v7100
  %v7171 = vunpack.c.l.b16 %v7101
  %v7172 = vunpack.c.h.b16 %v7101
  %v7173 = vunpack.c.l.b16 %v7102
  %v7174 = vunpack.c.h.b16 %v7102
  %v7175 = vunpack.c.l.b16 %v7103
  %v7176 = vunpack.c.h.b16 %v7103
  %v7177 = vunpack.c.l.b16 %v7104
  %v7178 = vunpack.c.h.b16 %v7104
  %v7179 = vunpack.c.l.b16 %v7105
  %v7180 = vunpack.c.h.b16 %v7105
  %v7181 = vunpack.c.l.b16 %v7106
  %v7182 = vunpack.c.h.b16 %v7106
  %v7183 = vunpack.c.l.b16 %v7107
  %v7184 = vunpack.c.h.b16 %v7107
  %v7185 = vunpack.c.l.b16 %v7108
  %v7186 = vunpack.c.h.b16 %v7108
  %v7187 = vunpack.c.l.b16 %v7109
  %v7188 = vunpack.c.h.b16 %v7109
  %v7189 = vunpack.c.l.b16 %v7110
  %v7190 = vunpack.c.h.b16 %v7110
  %v7191 = vunpack.c.l.b16 %v7111
  %v7192 = vunpack.c.h.b16 %v7111
  %v7193 = vunpack.c.l.b16 %v7112
  %v7194 = vunpack.c.h.b16 %v7112
  %v7195 = vunpack.c.l.b16 %v7113
  %v7196 = vunpack.c.h.b16 %v7113
  %v7197 = vunpack.c.l.b16 %v7114
  %v7198 = vunpack.c.h.b16 %v7114
  %v7199 = vunpack.c.l.b16 %v7115
  %v7200 = vunpack.c.h.b16 %v7115
  %v7201 = vunpack.c.l.b16 %v7116
  %v7202 = vunpack.c.h.b16 %v7116
  %v7203 = vunpack.c.l.b16 %v7117
  %v7204 = vunpack.c.h.b16 %v7117
  %v7205 = vunpack.c.l.b16 %v7118
  %v7206 = vunpack.c.h.b16 %v7118
  %v7207 = vunpack.c.l.b16 %v7119
  %v7208 = vunpack.c.h.b16 %v7119
  %v7209 = vunpack.c.l.b16 %v7120
  %v7210 = vunpack.c.h.b16 %v7120
  %v7211 = vunpack.c.l.b16 %v7121
  %v7212 = vunpack.c.h.b16 %v7121
  %v7213 = vunpack.c.l.b16 %v7122
  %v7214 = vunpack.c.h.b16 %v7122
  %v7215 = vunpack.c.l.b16 %v7123
  %v7216 = vunpack.c.h.b16 %v7123
  %v7217 = vunpack.c.l.b16 %v7124
  %v7218 = vunpack.c.h.b16 %v7124
  %v7219 = vunpack.c.l.b16 %v7125
  %v7220 = vunpack.c.h.b16 %v7125
  %v7221 = vunpack.c.l.b16 %v7126
  %v7222 = vunpack.c.h.b16 %v7126
  %v7223 = vpack.c.b16 %v7159, %v7159
  %v7224 = vpack.c.b16 %v7160, %v7160
  %v7225 = vpack.c.b16 %v7161, %v7161
  %v7226 = vpack.c.b16 %v7162, %v7162
  %v7227 = vpack.c.b16 %v7163, %v7163
  %v7228 = vpack.c.b16 %v7164, %v7164
  %v7229 = vpack.c.b16 %v7165, %v7165
  %v7230 = vpack.c.b16 %v7166, %v7166
  %v7231 = vpack.c.b16 %v7167, %v7167
  %v7232 = vpack.c.b16 %v7168, %v7168
  %v7233 = vpack.c.b16 %v7169, %v7169
  %v7234 = vpack.c.b16 %v7170, %v7170
  %v7235 = vpack.c.b16 %v7171, %v7171
  %v7236 = vpack.c.b16 %v7172, %v7172
  %v7237 = vpack.c.b16 %v7173, %v7173
  %v7238 = vpack.c.b16 %v7174, %v7174
  %v7239 = vpack.c.b16 %v7175, %v7175
  %v7240 = vpack.c.b16 %v7176, %v7176
  %v7241 = vpack.c.b16 %v7177, %v7177
  %v7242 = vpack.c.b16 %v7178, %v7178
  %v7243 = vpack.c.b16 %v7179, %v7179
  %v7244 = vpack.c.b16 %v7180, %v7180
  %v7245 = vpack.c.b16 %v7181, %v7181
  %v7246 = vpack.c.b16 %v7182, %v7182
  %v7247 = vpack.c.b16 %v7183, %v7183
  %v7248 = vpack.c.b16 %v7184, %v7184
  %v7249 = vpack.c.b16 %v7185, %v7185
  %v7250 = vpack.c.b16 %v7186, %v7186
  %v7251 = vpack.c.b16 %v7187, %v7187
  %v7252 = vpack.c.b16 %v7188, %v7188
  %v7253 = vpack.c.b16 %v7189, %v7189
  %v7254 = vpack.c.b16 %v7190, %v7190
  %v7255 = vpack.c.b16 %v7191, %v7191
  %v7256 = vpack.c.b16 %v7192, %v7192
  %v7257 = vpack.c.b16 %v7193, %v7193
  %v7258 = vpack.c.b16 %v7194, %v7194
  %v7259 = vpack.c.b16 %v7195, %v7195
  %v7260 = vpack.c.b16 %v7196, %v7196
  %v7261 = vpack.c.b16 %v7197, %v7197
  %v7262 = vpack.c.b16 %v7198, %v7198
  %v7263 = vpack.c.b16 %v7199, %v7199
  %v7264 = vpack.c.b16 %v7200, %v7200
  %v7265 = vpack.c.b16 %v7201, %v7201
  %v7266 = vpack.c.b16 %v7202, %v7202
  %v7267 = vpack.c.b16 %v7203, %v7203
  %v7268 = vpack.c.b16 %v7204, %v7204
  %v7269 = vpack.c.b16 %v7205, %v7205
  %v7270 = vpack.c.b16 %v7206, %v7206
  %v7271 = vpack.c.b16 %v7207, %v7207
  %v7272 = vpack.c.b16 %v7208, %v7208
  %v7273 = vpack.c.b16 %v7209, %v7209
  %v7274 = vpack.c.b16 %v7210, %v7210
  %v7275 = vpack.c.b16 %v7211, %v7211
  %v7276 = vpack.c.b16 %v7212, %v7212
  %v7277 = vpack.c.b16 %v7213, %v7213
  %v7278 = vpack.c.b16 %v7214, %v7214
  %v7279 = vpack.c.b16 %v7215, %v7215
  %v7280 = vpack.c.b16 %v7216, %v7216
  %v7281 = vpack.c.b16 %v7217, %v7217
  %v7282 = vpack.c.b16 %v7218, %v7218
  %v7283 = vpack.c.b16 %v7219, %v7219
  %v7284 = vpack.c.b16 %v7220, %v7220
  %v7285 = vpack.c.b16 %v7221, %v7221
  %v7286 = vpack.c.b16 %v7222, %v7222
  %7351 = vst [vmem:[%s4] sm:$0xf] %v7223
  %7352 = vst [vmem:[%s4 + $0x4] sm:$0xf] %v7224
  %7353 = vst [vmem:[%s4 + $0x8] sm:$0xf] %v7225
  %7354 = vst [vmem:[%s4 + $0xc] sm:$0xf] %v7226
  %7355 = vst [vmem:[%s4 + $0x10] sm:$0xf] %v7227
  %7356 = vst [vmem:[%s4 + $0x14] sm:$0xf] %v7228
  %7357 = vst [vmem:[%s4 + $0x18] sm:$0xf] %v7229
  %7358 = vst [vmem:[%s4 + $0x1c] sm:$0xf] %v7230
  %7359 = vst [vmem:[%s4 + $0x20] sm:$0xf] %v7231
  %7360 = vst [vmem:[%s4 + $0x24] sm:$0xf] %v7232
  %7361 = vst [vmem:[%s4 + $0x28] sm:$0xf] %v7233
  %7362 = vst [vmem:[%s4 + $0x2c] sm:$0xf] %v7234
  %7363 = vst [vmem:[%s4 + $0x30] sm:$0xf] %v7235
  %7364 = vst [vmem:[%s4 + $0x34] sm:$0xf] %v7236
  %7365 = vst [vmem:[%s4 + $0x38] sm:$0xf] %v7237
  %7366 = vst [vmem:[%s4 + $0x3c] sm:$0xf] %v7238
  %7367 = vst [vmem:[%s4 + $0x40] sm:$0xf] %v7239
  %7368 = vst [vmem:[%s4 + $0x44] sm:$0xf] %v7240
  %7369 = vst [vmem:[%s4 + $0x48] sm:$0xf] %v7241
  %7370 = vst [vmem:[%s4 + $0x4c] sm:$0xf] %v7242
  %7371 = vst [vmem:[%s4 + $0x50] sm:$0xf] %v7243
  %7372 = vst [vmem:[%s4 + $0x54] sm:$0xf] %v7244
  %7373 = vst [vmem:[%s4 + $0x58] sm:$0xf] %v7245
  %7374 = vst [vmem:[%s4 + $0x5c] sm:$0xf] %v7246
  %7375 = vst [vmem:[%s4 + $0x60] sm:$0xf] %v7247
  %7376 = vst [vmem:[%s4 + $0x64] sm:$0xf] %v7248
  %7377 = vst [vmem:[%s4 + $0x68] sm:$0xf] %v7249
  %7378 = vst [vmem:[%s4 + $0x6c] sm:$0xf] %v7250
  %7379 = vst [vmem:[%s4 + $0x70] sm:$0xf] %v7251
  %7380 = vst [vmem:[%s4 + $0x74] sm:$0xf] %v7252
  %7381 = vst [vmem:[%s4 + $0x78] sm:$0xf] %v7253
  %7382 = vst [vmem:[%s4 + $0x7c] sm:$0xf] %v7254
  %7383 = vst [vmem:[%s4 + $0x80] sm:$0xf] %v7255
  %7384 = vst [vmem:[%s4 + $0x84] sm:$0xf] %v7256
  %7385 = vst [vmem:[%s4 + $0x88] sm:$0xf] %v7257
  %7386 = vst [vmem:[%s4 + $0x8c] sm:$0xf] %v7258
  %7387 = vst [vmem:[%s4 + $0x90] sm:$0xf] %v7259
  %7388 = vst [vmem:[%s4 + $0x94] sm:$0xf] %v7260
  %7389 = vst [vmem:[%s4 + $0x98] sm:$0xf] %v7261
  %7390 = vst [vmem:[%s4 + $0x9c] sm:$0xf] %v7262
  %7391 = vst [vmem:[%s4 + $0xa0] sm:$0xf] %v7263
  %7392 = vst [vmem:[%s4 + $0xa4] sm:$0xf] %v7264
  %7393 = vst [vmem:[%s4 + $0xa8] sm:$0xf] %v7265
  %7394 = vst [vmem:[%s4 + $0xac] sm:$0xf] %v7266
  %7395 = vst [vmem:[%s4 + $0xb0] sm:$0xf] %v7267
  %7396 = vst [vmem:[%s4 + $0xb4] sm:$0xf] %v7268
  %7397 = vst [vmem:[%s4 + $0xb8] sm:$0xf] %v7269
  %7398 = vst [vmem:[%s4 + $0xbc] sm:$0xf] %v7270
  %7399 = vst [vmem:[%s4 + $0xc0] sm:$0xf] %v7271
  %7400 = vst [vmem:[%s4 + $0xc4] sm:$0xf] %v7272
  %7401 = vst [vmem:[%s4 + $0xc8] sm:$0xf] %v7273
  %7402 = vst [vmem:[%s4 + $0xcc] sm:$0xf] %v7274
  %7403 = vst [vmem:[%s4 + $0xd0] sm:$0xf] %v7275
  %7404 = vst [vmem:[%s4 + $0xd4] sm:$0xf] %v7276
  %7405 = vst [vmem:[%s4 + $0xd8] sm:$0xf] %v7277
  %7406 = vst [vmem:[%s4 + $0xdc] sm:$0xf] %v7278
  %7407 = vst [vmem:[%s4 + $0xe0] sm:$0xf] %v7279
  %7408 = vst [vmem:[%s4 + $0xe4] sm:$0xf] %v7280
  %7409 = vst [vmem:[%s4 + $0xe8] sm:$0xf] %v7281
  %7410 = vst [vmem:[%s4 + $0xec] sm:$0xf] %v7282
  %7411 = vst [vmem:[%s4 + $0xf0] sm:$0xf] %v7283
  %7412 = vst [vmem:[%s4 + $0xf4] sm:$0xf] %v7284
  %7413 = vst [vmem:[%s4 + $0xf8] sm:$0xf] %v7285
  %7414 = vst [vmem:[%s4 + $0xfc] sm:$0xf] %v7286
  // Predicated region
  $region18: #{netd_forward.6} parent=0 // pred_check
    _
  $region19: #{netd_forward.6} parent=0 // pred_check_branch
    %7416 = sbr.rel (0) target = $region21
  $region20: #{netd_forward.6} parent=0 // pred_region
    _
  $region21: #{netd_forward.6} parent=0 // pred_fallthru
    _
  // Predicated region
  $region22: #{netd_forward.6} parent=0 // pred_check
    _
  $region23: #{netd_forward.6} parent=0 // pred_check_branch
    %7418 = sbr.rel (0) target = $region25
  $region24: #{netd_forward.6} parent=0 // pred_region
    _
  $region25: #{netd_forward.6} parent=0 // pred_fallthru
    _

// kernel: netd_forward.7
$region0: #{netd_forward.7}
  #allocation0 [shape = 'u32[]', space=smem, size = 0x4, offset = 0x4, fixed_abs, tag = 'smem constant byte address 0x4 - core index']
  #allocation1 [shape = 'u32[144,128]{1,0:T(1,128)}', space=vmem, size = 0x12000, scoped, tag = 'internal scratch']
  %s0 = inlined_call_operand.vmem [shape: bf16[128,2048], index: 0, kind: input, shape index: {}]
  %s1 = inlined_call_operand.vmem [shape: bf16[2048,128], index: 1, kind: input, shape index: {}]
  %s2 = inlined_call_operand.vmem [shape: f32[1,128], index: 2, kind: input, shape index: {}]
  %s3 = inlined_call_operand.vmem [shape: f32[1,128], index: 3, kind: input, shape index: {}]
  %s4 = inlined_call_operand.vmem [shape: bf16[128,128], index: 4, kind: output, shape index: {}]
  %s5 = sld [smem:[#allocation0]]
  $region26: #{netd_forward.7} parent=0
    _
  %s7 = ssub.s32 1, %s5
  %s8 = scalar_select 0, %s7, %s5
  // Predicated region
  $region2: #{netd_forward.7} parent=0 // pred_check
    _
  $region3: #{netd_forward.7} parent=0 // pred_check_branch
    %10 = sbr.rel (0) target = $region5
  $region4: #{netd_forward.7} parent=0 // pred_region
    _
  $region5: #{netd_forward.7} parent=0 // pred_fallthru
    _
  // Predicated region
  $region6: #{netd_forward.7} parent=0 // pred_check
    _
  $region7: #{netd_forward.7} parent=0 // pred_check_branch
    %12 = sbr.rel (0) target = $region9
  $region8: #{netd_forward.7} parent=0 // pred_region
    _
  $region9: #{netd_forward.7} parent=0 // pred_fallthru
    _
  // Predicated region
  $region10: #{netd_forward.7} parent=0 // pred_check
    _
  $region11: #{netd_forward.7} parent=0 // pred_check_branch
    %14 = sbr.rel (0) target = $region13
  $region12: #{netd_forward.7} parent=0 // pred_region
    _
  $region13: #{netd_forward.7} parent=0 // pred_fallthru
    _
  // Predicated region
  $region14: #{netd_forward.7} parent=0 // pred_check
    _
  $region15: #{netd_forward.7} parent=0 // pred_check_branch
    %16 = sbr.rel (0) target = $region17
  $region16: #{netd_forward.7} parent=0 // pred_region
    _
  $region17: #{netd_forward.7} parent=0 // pred_fallthru
    _
  %v18 = vld [vmem:[%s0] sm:$0xff]
  %v19 = vld [vmem:[%s0 + $0x8] sm:$0xff]
  %v20 = vld [vmem:[%s0 + $0x10] sm:$0xff]
  %v21 = vld [vmem:[%s0 + $0x18] sm:$0xff]
  %v22 = vld [vmem:[%s0 + $0x20] sm:$0xff]
  %v23 = vld [vmem:[%s0 + $0x28] sm:$0xff]
  %v24 = vld [vmem:[%s0 + $0x30] sm:$0xff]
  %v25 = vld [vmem:[%s0 + $0x38] sm:$0xff]
  %v26 = vld [vmem:[%s0 + $0x40] sm:$0xff]
  %v27 = vld [vmem:[%s0 + $0x48] sm:$0xff]
  %v28 = vld [vmem:[%s0 + $0x50] sm:$0xff]
  %v29 = vld [vmem:[%s0 + $0x58] sm:$0xff]
  %v30 = vld [vmem:[%s0 + $0x60] sm:$0xff]
  %v31 = vld [vmem:[%s0 + $0x68] sm:$0xff]
  %v32 = vld [vmem:[%s0 + $0x70] sm:$0xff]
  %v33 = vld [vmem:[%s0 + $0x78] sm:$0xff]
  %v34 = vld [vmem:[%s0 + $0x80] sm:$0xff]
  %v35 = vld [vmem:[%s0 + $0x88] sm:$0xff]
  %v36 = vld [vmem:[%s0 + $0x90] sm:$0xff]
  %v37 = vld [vmem:[%s0 + $0x98] sm:$0xff]
  %v38 = vld [vmem:[%s0 + $0xa0] sm:$0xff]
  %v39 = vld [vmem:[%s0 + $0xa8] sm:$0xff]
  %v40 = vld [vmem:[%s0 + $0xb0] sm:$0xff]
  %v41 = vld [vmem:[%s0 + $0xb8] sm:$0xff]
  %v42 = vld [vmem:[%s0 + $0xc0] sm:$0xff]
  %v43 = vld [vmem:[%s0 + $0xc8] sm:$0xff]
  %v44 = vld [vmem:[%s0 + $0xd0] sm:$0xff]
  %v45 = vld [vmem:[%s0 + $0xd8] sm:$0xff]
  %v46 = vld [vmem:[%s0 + $0xe0] sm:$0xff]
  %v47 = vld [vmem:[%s0 + $0xe8] sm:$0xff]
  %v48 = vld [vmem:[%s0 + $0xf0] sm:$0xff]
  %v49 = vld [vmem:[%s0 + $0xf8] sm:$0xff]
  %v50 = vld [vmem:[%s0 + $0x100] sm:$0xff]
  %v51 = vld [vmem:[%s0 + $0x108] sm:$0xff]
  %v52 = vld [vmem:[%s0 + $0x110] sm:$0xff]
  %v53 = vld [vmem:[%s0 + $0x118] sm:$0xff]
  %v54 = vld [vmem:[%s0 + $0x120] sm:$0xff]
  %v55 = vld [vmem:[%s0 + $0x128] sm:$0xff]
  %v56 = vld [vmem:[%s0 + $0x130] sm:$0xff]
  %v57 = vld [vmem:[%s0 + $0x138] sm:$0xff]
  %v58 = vld [vmem:[%s0 + $0x140] sm:$0xff]
  %v59 = vld [vmem:[%s0 + $0x148] sm:$0xff]
  %v60 = vld [vmem:[%s0 + $0x150] sm:$0xff]
  %v61 = vld [vmem:[%s0 + $0x158] sm:$0xff]
  %v62 = vld [vmem:[%s0 + $0x160] sm:$0xff]
  %v63 = vld [vmem:[%s0 + $0x168] sm:$0xff]
  %v64 = vld [vmem:[%s0 + $0x170] sm:$0xff]
  %v65 = vld [vmem:[%s0 + $0x178] sm:$0xff]
  %v66 = vld [vmem:[%s0 + $0x180] sm:$0xff]
  %v67 = vld [vmem:[%s0 + $0x188] sm:$0xff]
  %v68 = vld [vmem:[%s0 + $0x190] sm:$0xff]
  %v69 = vld [vmem:[%s0 + $0x198] sm:$0xff]
  %v70 = vld [vmem:[%s0 + $0x1a0] sm:$0xff]
  %v71 = vld [vmem:[%s0 + $0x1a8] sm:$0xff]
  %v72 = vld [vmem:[%s0 + $0x1b0] sm:$0xff]
  %v73 = vld [vmem:[%s0 + $0x1b8] sm:$0xff]
  %v74 = vld [vmem:[%s0 + $0x1c0] sm:$0xff]
  %v75 = vld [vmem:[%s0 + $0x1c8] sm:$0xff]
  %v76 = vld [vmem:[%s0 + $0x1d0] sm:$0xff]
  %v77 = vld [vmem:[%s0 + $0x1d8] sm:$0xff]
  %v78 = vld [vmem:[%s0 + $0x1e0] sm:$0xff]
  %v79 = vld [vmem:[%s0 + $0x1e8] sm:$0xff]
  %v80 = vld [vmem:[%s0 + $0x1f0] sm:$0xff]
  %v81 = vld [vmem:[%s0 + $0x1f8] sm:$0xff]
  %v82 = vld [vmem:[%s0 + $0x200] sm:$0xff]
  %v83 = vld [vmem:[%s0 + $0x208] sm:$0xff]
  %v84 = vld [vmem:[%s0 + $0x210] sm:$0xff]
  %v85 = vld [vmem:[%s0 + $0x218] sm:$0xff]
  %v86 = vld [vmem:[%s0 + $0x220] sm:$0xff]
  %v87 = vld [vmem:[%s0 + $0x228] sm:$0xff]
  %v88 = vld [vmem:[%s0 + $0x230] sm:$0xff]
  %v89 = vld [vmem:[%s0 + $0x238] sm:$0xff]
  %v90 = vld [vmem:[%s0 + $0x240] sm:$0xff]
  %v91 = vld [vmem:[%s0 + $0x248] sm:$0xff]
  %v92 = vld [vmem:[%s0 + $0x250] sm:$0xff]
  %v93 = vld [vmem:[%s0 + $0x258] sm:$0xff]
  %v94 = vld [vmem:[%s0 + $0x260] sm:$0xff]
  %v95 = vld [vmem:[%s0 + $0x268] sm:$0xff]
  %v96 = vld [vmem:[%s0 + $0x270] sm:$0xff]
  %v97 = vld [vmem:[%s0 + $0x278] sm:$0xff]
  %v98 = vld [vmem:[%s0 + $0x280] sm:$0xff]
  %v99 = vld [vmem:[%s0 + $0x288] sm:$0xff]
  %v100 = vld [vmem:[%s0 + $0x290] sm:$0xff]
  %v101 = vld [vmem:[%s0 + $0x298] sm:$0xff]
  %v102 = vld [vmem:[%s0 + $0x2a0] sm:$0xff]
  %v103 = vld [vmem:[%s0 + $0x2a8] sm:$0xff]
  %v104 = vld [vmem:[%s0 + $0x2b0] sm:$0xff]
  %v105 = vld [vmem:[%s0 + $0x2b8] sm:$0xff]
  %v106 = vld [vmem:[%s0 + $0x2c0] sm:$0xff]
  %v107 = vld [vmem:[%s0 + $0x2c8] sm:$0xff]
  %v108 = vld [vmem:[%s0 + $0x2d0] sm:$0xff]
  %v109 = vld [vmem:[%s0 + $0x2d8] sm:$0xff]
  %v110 = vld [vmem:[%s0 + $0x2e0] sm:$0xff]
  %v111 = vld [vmem:[%s0 + $0x2e8] sm:$0xff]
  %v112 = vld [vmem:[%s0 + $0x2f0] sm:$0xff]
  %v113 = vld [vmem:[%s0 + $0x2f8] sm:$0xff]
  %v114 = vld [vmem:[%s0 + $0x300] sm:$0xff]
  %v115 = vld [vmem:[%s0 + $0x308] sm:$0xff]
  %v116 = vld [vmem:[%s0 + $0x310] sm:$0xff]
  %v117 = vld [vmem:[%s0 + $0x318] sm:$0xff]
  %v118 = vld [vmem:[%s0 + $0x320] sm:$0xff]
  %v119 = vld [vmem:[%s0 + $0x328] sm:$0xff]
  %v120 = vld [vmem:[%s0 + $0x330] sm:$0xff]
  %v121 = vld [vmem:[%s0 + $0x338] sm:$0xff]
  %v122 = vld [vmem:[%s0 + $0x340] sm:$0xff]
  %v123 = vld [vmem:[%s0 + $0x348] sm:$0xff]
  %v124 = vld [vmem:[%s0 + $0x350] sm:$0xff]
  %v125 = vld [vmem:[%s0 + $0x358] sm:$0xff]
  %v126 = vld [vmem:[%s0 + $0x360] sm:$0xff]
  %v127 = vld [vmem:[%s0 + $0x368] sm:$0xff]
  %v128 = vld [vmem:[%s0 + $0x370] sm:$0xff]
  %v129 = vld [vmem:[%s0 + $0x378] sm:$0xff]
  %v130 = vld [vmem:[%s0 + $0x380] sm:$0xff]
  %v131 = vld [vmem:[%s0 + $0x388] sm:$0xff]
  %v132 = vld [vmem:[%s0 + $0x390] sm:$0xff]
  %v133 = vld [vmem:[%s0 + $0x398] sm:$0xff]
  %v134 = vld [vmem:[%s0 + $0x3a0] sm:$0xff]
  %v135 = vld [vmem:[%s0 + $0x3a8] sm:$0xff]
  %v136 = vld [vmem:[%s0 + $0x3b0] sm:$0xff]
  %v137 = vld [vmem:[%s0 + $0x3b8] sm:$0xff]
  %v138 = vld [vmem:[%s0 + $0x3c0] sm:$0xff]
  %v139 = vld [vmem:[%s0 + $0x3c8] sm:$0xff]
  %v140 = vld [vmem:[%s0 + $0x3d0] sm:$0xff]
  %v141 = vld [vmem:[%s0 + $0x3d8] sm:$0xff]
  %v142 = vld [vmem:[%s0 + $0x3e0] sm:$0xff]
  %v143 = vld [vmem:[%s0 + $0x3e8] sm:$0xff]
  %v144 = vld [vmem:[%s0 + $0x3f0] sm:$0xff]
  %v145 = vld [vmem:[%s0 + $0x3f8] sm:$0xff]
  %v146 = vld [vmem:[%s1] sm:$0xf]
  %v147 = vld [vmem:[%s1 + $0x4] sm:$0xf]
  %v148 = vld [vmem:[%s1 + $0x8] sm:$0xf]
  %v149 = vld [vmem:[%s1 + $0xc] sm:$0xf]
  %v150 = vld [vmem:[%s1 + $0x10] sm:$0xf]
  %v151 = vld [vmem:[%s1 + $0x14] sm:$0xf]
  %v152 = vld [vmem:[%s1 + $0x18] sm:$0xf]
  %v153 = vld [vmem:[%s1 + $0x1c] sm:$0xf]
  %v154 = vld [vmem:[%s1 + $0x20] sm:$0xf]
  %v155 = vld [vmem:[%s1 + $0x24] sm:$0xf]
  %v156 = vld [vmem:[%s1 + $0x28] sm:$0xf]
  %v157 = vld [vmem:[%s1 + $0x2c] sm:$0xf]
  %v158 = vld [vmem:[%s1 + $0x30] sm:$0xf]
  %v159 = vld [vmem:[%s1 + $0x34] sm:$0xf]
  %v160 = vld [vmem:[%s1 + $0x38] sm:$0xf]
  %v161 = vld [vmem:[%s1 + $0x3c] sm:$0xf]
  %v162 = vld [vmem:[%s1 + $0x40] sm:$0xf]
  %v163 = vld [vmem:[%s1 + $0x44] sm:$0xf]
  %v164 = vld [vmem:[%s1 + $0x48] sm:$0xf]
  %v165 = vld [vmem:[%s1 + $0x4c] sm:$0xf]
  %v166 = vld [vmem:[%s1 + $0x50] sm:$0xf]
  %v167 = vld [vmem:[%s1 + $0x54] sm:$0xf]
  %v168 = vld [vmem:[%s1 + $0x58] sm:$0xf]
  %v169 = vld [vmem:[%s1 + $0x5c] sm:$0xf]
  %v170 = vld [vmem:[%s1 + $0x60] sm:$0xf]
  %v171 = vld [vmem:[%s1 + $0x64] sm:$0xf]
  %v172 = vld [vmem:[%s1 + $0x68] sm:$0xf]
  %v173 = vld [vmem:[%s1 + $0x6c] sm:$0xf]
  %v174 = vld [vmem:[%s1 + $0x70] sm:$0xf]
  %v175 = vld [vmem:[%s1 + $0x74] sm:$0xf]
  %v176 = vld [vmem:[%s1 + $0x78] sm:$0xf]
  %v177 = vld [vmem:[%s1 + $0x7c] sm:$0xf]
  %v178 = vld [vmem:[%s1 + $0x80] sm:$0xf]
  %v179 = vld [vmem:[%s1 + $0x84] sm:$0xf]
  %v180 = vld [vmem:[%s1 + $0x88] sm:$0xf]
  %v181 = vld [vmem:[%s1 + $0x8c] sm:$0xf]
  %v182 = vld [vmem:[%s1 + $0x90] sm:$0xf]
  %v183 = vld [vmem:[%s1 + $0x94] sm:$0xf]
  %v184 = vld [vmem:[%s1 + $0x98] sm:$0xf]
  %v185 = vld [vmem:[%s1 + $0x9c] sm:$0xf]
  %v186 = vld [vmem:[%s1 + $0xa0] sm:$0xf]
  %v187 = vld [vmem:[%s1 + $0xa4] sm:$0xf]
  %v188 = vld [vmem:[%s1 + $0xa8] sm:$0xf]
  %v189 = vld [vmem:[%s1 + $0xac] sm:$0xf]
  %v190 = vld [vmem:[%s1 + $0xb0] sm:$0xf]
  %v191 = vld [vmem:[%s1 + $0xb4] sm:$0xf]
  %v192 = vld [vmem:[%s1 + $0xb8] sm:$0xf]
  %v193 = vld [vmem:[%s1 + $0xbc] sm:$0xf]
  %v194 = vld [vmem:[%s1 + $0xc0] sm:$0xf]
  %v195 = vld [vmem:[%s1 + $0xc4] sm:$0xf]
  %v196 = vld [vmem:[%s1 + $0xc8] sm:$0xf]
  %v197 = vld [vmem:[%s1 + $0xcc] sm:$0xf]
  %v198 = vld [vmem:[%s1 + $0xd0] sm:$0xf]
  %v199 = vld [vmem:[%s1 + $0xd4] sm:$0xf]
  %v200 = vld [vmem:[%s1 + $0xd8] sm:$0xf]
  %v201 = vld [vmem:[%s1 + $0xdc] sm:$0xf]
  %v202 = vld [vmem:[%s1 + $0xe0] sm:$0xf]
  %v203 = vld [vmem:[%s1 + $0xe4] sm:$0xf]
  %v204 = vld [vmem:[%s1 + $0xe8] sm:$0xf]
  %v205 = vld [vmem:[%s1 + $0xec] sm:$0xf]
  %v206 = vld [vmem:[%s1 + $0xf0] sm:$0xf]
  %v207 = vld [vmem:[%s1 + $0xf4] sm:$0xf]
  %v208 = vld [vmem:[%s1 + $0xf8] sm:$0xf]
  %v209 = vld [vmem:[%s1 + $0xfc] sm:$0xf]
  %v210 = vld [vmem:[%s1 + $0x100] sm:$0xf]
  %v211 = vld [vmem:[%s1 + $0x104] sm:$0xf]
  %v212 = vld [vmem:[%s1 + $0x108] sm:$0xf]
  %v213 = vld [vmem:[%s1 + $0x10c] sm:$0xf]
  %v214 = vld [vmem:[%s1 + $0x110] sm:$0xf]
  %v215 = vld [vmem:[%s1 + $0x114] sm:$0xf]
  %v216 = vld [vmem:[%s1 + $0x118] sm:$0xf]
  %v217 = vld [vmem:[%s1 + $0x11c] sm:$0xf]
  %v218 = vld [vmem:[%s1 + $0x120] sm:$0xf]
  %v219 = vld [vmem:[%s1 + $0x124] sm:$0xf]
  %v220 = vld [vmem:[%s1 + $0x128] sm:$0xf]
  %v221 = vld [vmem:[%s1 + $0x12c] sm:$0xf]
  %v222 = vld [vmem:[%s1 + $0x130] sm:$0xf]
  %v223 = vld [vmem:[%s1 + $0x134] sm:$0xf]
  %v224 = vld [vmem:[%s1 + $0x138] sm:$0xf]
  %v225 = vld [vmem:[%s1 + $0x13c] sm:$0xf]
  %v226 = vld [vmem:[%s1 + $0x140] sm:$0xf]
  %v227 = vld [vmem:[%s1 + $0x144] sm:$0xf]
  %v228 = vld [vmem:[%s1 + $0x148] sm:$0xf]
  %v229 = vld [vmem:[%s1 + $0x14c] sm:$0xf]
  %v230 = vld [vmem:[%s1 + $0x150] sm:$0xf]
  %v231 = vld [vmem:[%s1 + $0x154] sm:$0xf]
  %v232 = vld [vmem:[%s1 + $0x158] sm:$0xf]
  %v233 = vld [vmem:[%s1 + $0x15c] sm:$0xf]
  %v234 = vld [vmem:[%s1 + $0x160] sm:$0xf]
  %v235 = vld [vmem:[%s1 + $0x164] sm:$0xf]
  %v236 = vld [vmem:[%s1 + $0x168] sm:$0xf]
  %v237 = vld [vmem:[%s1 + $0x16c] sm:$0xf]
  %v238 = vld [vmem:[%s1 + $0x170] sm:$0xf]
  %v239 = vld [vmem:[%s1 + $0x174] sm:$0xf]
  %v240 = vld [vmem:[%s1 + $0x178] sm:$0xf]
  %v241 = vld [vmem:[%s1 + $0x17c] sm:$0xf]
  %v242 = vld [vmem:[%s1 + $0x180] sm:$0xf]
  %v243 = vld [vmem:[%s1 + $0x184] sm:$0xf]
  %v244 = vld [vmem:[%s1 + $0x188] sm:$0xf]
  %v245 = vld [vmem:[%s1 + $0x18c] sm:$0xf]
  %v246 = vld [vmem:[%s1 + $0x190] sm:$0xf]
  %v247 = vld [vmem:[%s1 + $0x194] sm:$0xf]
  %v248 = vld [vmem:[%s1 + $0x198] sm:$0xf]
  %v249 = vld [vmem:[%s1 + $0x19c] sm:$0xf]
  %v250 = vld [vmem:[%s1 + $0x1a0] sm:$0xf]
  %v251 = vld [vmem:[%s1 + $0x1a4] sm:$0xf]
  %v252 = vld [vmem:[%s1 + $0x1a8] sm:$0xf]
  %v253 = vld [vmem:[%s1 + $0x1ac] sm:$0xf]
  %v254 = vld [vmem:[%s1 + $0x1b0] sm:$0xf]
  %v255 = vld [vmem:[%s1 + $0x1b4] sm:$0xf]
  %v256 = vld [vmem:[%s1 + $0x1b8] sm:$0xf]
  %v257 = vld [vmem:[%s1 + $0x1bc] sm:$0xf]
  %v258 = vld [vmem:[%s1 + $0x1c0] sm:$0xf]
  %v259 = vld [vmem:[%s1 + $0x1c4] sm:$0xf]
  %v260 = vld [vmem:[%s1 + $0x1c8] sm:$0xf]
  %v261 = vld [vmem:[%s1 + $0x1cc] sm:$0xf]
  %v262 = vld [vmem:[%s1 + $0x1d0] sm:$0xf]
  %v263 = vld [vmem:[%s1 + $0x1d4] sm:$0xf]
  %v264 = vld [vmem:[%s1 + $0x1d8] sm:$0xf]
  %v265 = vld [vmem:[%s1 + $0x1dc] sm:$0xf]
  %v266 = vld [vmem:[%s1 + $0x1e0] sm:$0xf]
  %v267 = vld [vmem:[%s1 + $0x1e4] sm:$0xf]
  %v268 = vld [vmem:[%s1 + $0x1e8] sm:$0xf]
  %v269 = vld [vmem:[%s1 + $0x1ec] sm:$0xf]
  %v270 = vld [vmem:[%s1 + $0x1f0] sm:$0xf]
  %v271 = vld [vmem:[%s1 + $0x1f4] sm:$0xf]
  %v272 = vld [vmem:[%s1 + $0x1f8] sm:$0xf]
  %v273 = vld [vmem:[%s1 + $0x1fc] sm:$0xf]
  %v274 = vld [vmem:[%s1 + $0x200] sm:$0xf]
  %v275 = vld [vmem:[%s1 + $0x204] sm:$0xf]
  %v276 = vld [vmem:[%s1 + $0x208] sm:$0xf]
  %v277 = vld [vmem:[%s1 + $0x20c] sm:$0xf]
  %v278 = vld [vmem:[%s1 + $0x210] sm:$0xf]
  %v279 = vld [vmem:[%s1 + $0x214] sm:$0xf]
  %v280 = vld [vmem:[%s1 + $0x218] sm:$0xf]
  %v281 = vld [vmem:[%s1 + $0x21c] sm:$0xf]
  %v282 = vld [vmem:[%s1 + $0x220] sm:$0xf]
  %v283 = vld [vmem:[%s1 + $0x224] sm:$0xf]
  %v284 = vld [vmem:[%s1 + $0x228] sm:$0xf]
  %v285 = vld [vmem:[%s1 + $0x22c] sm:$0xf]
  %v286 = vld [vmem:[%s1 + $0x230] sm:$0xf]
  %v287 = vld [vmem:[%s1 + $0x234] sm:$0xf]
  %v288 = vld [vmem:[%s1 + $0x238] sm:$0xf]
  %v289 = vld [vmem:[%s1 + $0x23c] sm:$0xf]
  %v290 = vld [vmem:[%s1 + $0x240] sm:$0xf]
  %v291 = vld [vmem:[%s1 + $0x244] sm:$0xf]
  %v292 = vld [vmem:[%s1 + $0x248] sm:$0xf]
  %v293 = vld [vmem:[%s1 + $0x24c] sm:$0xf]
  %v294 = vld [vmem:[%s1 + $0x250] sm:$0xf]
  %v295 = vld [vmem:[%s1 + $0x254] sm:$0xf]
  %v296 = vld [vmem:[%s1 + $0x258] sm:$0xf]
  %v297 = vld [vmem:[%s1 + $0x25c] sm:$0xf]
  %v298 = vld [vmem:[%s1 + $0x260] sm:$0xf]
  %v299 = vld [vmem:[%s1 + $0x264] sm:$0xf]
  %v300 = vld [vmem:[%s1 + $0x268] sm:$0xf]
  %v301 = vld [vmem:[%s1 + $0x26c] sm:$0xf]
  %v302 = vld [vmem:[%s1 + $0x270] sm:$0xf]
  %v303 = vld [vmem:[%s1 + $0x274] sm:$0xf]
  %v304 = vld [vmem:[%s1 + $0x278] sm:$0xf]
  %v305 = vld [vmem:[%s1 + $0x27c] sm:$0xf]
  %v306 = vld [vmem:[%s1 + $0x280] sm:$0xf]
  %v307 = vld [vmem:[%s1 + $0x284] sm:$0xf]
  %v308 = vld [vmem:[%s1 + $0x288] sm:$0xf]
  %v309 = vld [vmem:[%s1 + $0x28c] sm:$0xf]
  %v310 = vld [vmem:[%s1 + $0x290] sm:$0xf]
  %v311 = vld [vmem:[%s1 + $0x294] sm:$0xf]
  %v312 = vld [vmem:[%s1 + $0x298] sm:$0xf]
  %v313 = vld [vmem:[%s1 + $0x29c] sm:$0xf]
  %v314 = vld [vmem:[%s1 + $0x2a0] sm:$0xf]
  %v315 = vld [vmem:[%s1 + $0x2a4] sm:$0xf]
  %v316 = vld [vmem:[%s1 + $0x2a8] sm:$0xf]
  %v317 = vld [vmem:[%s1 + $0x2ac] sm:$0xf]
  %v318 = vld [vmem:[%s1 + $0x2b0] sm:$0xf]
  %v319 = vld [vmem:[%s1 + $0x2b4] sm:$0xf]
  %v320 = vld [vmem:[%s1 + $0x2b8] sm:$0xf]
  %v321 = vld [vmem:[%s1 + $0x2bc] sm:$0xf]
  %v322 = vld [vmem:[%s1 + $0x2c0] sm:$0xf]
  %v323 = vld [vmem:[%s1 + $0x2c4] sm:$0xf]
  %v324 = vld [vmem:[%s1 + $0x2c8] sm:$0xf]
  %v325 = vld [vmem:[%s1 + $0x2cc] sm:$0xf]
  %v326 = vld [vmem:[%s1 + $0x2d0] sm:$0xf]
  %v327 = vld [vmem:[%s1 + $0x2d4] sm:$0xf]
  %v328 = vld [vmem:[%s1 + $0x2d8] sm:$0xf]
  %v329 = vld [vmem:[%s1 + $0x2dc] sm:$0xf]
  %v330 = vld [vmem:[%s1 + $0x2e0] sm:$0xf]
  %v331 = vld [vmem:[%s1 + $0x2e4] sm:$0xf]
  %v332 = vld [vmem:[%s1 + $0x2e8] sm:$0xf]
  %v333 = vld [vmem:[%s1 + $0x2ec] sm:$0xf]
  %v334 = vld [vmem:[%s1 + $0x2f0] sm:$0xf]
  %v335 = vld [vmem:[%s1 + $0x2f4] sm:$0xf]
  %v336 = vld [vmem:[%s1 + $0x2f8] sm:$0xf]
  %v337 = vld [vmem:[%s1 + $0x2fc] sm:$0xf]
  %v338 = vld [vmem:[%s1 + $0x300] sm:$0xf]
  %v339 = vld [vmem:[%s1 + $0x304] sm:$0xf]
  %v340 = vld [vmem:[%s1 + $0x308] sm:$0xf]
  %v341 = vld [vmem:[%s1 + $0x30c] sm:$0xf]
  %v342 = vld [vmem:[%s1 + $0x310] sm:$0xf]
  %v343 = vld [vmem:[%s1 + $0x314] sm:$0xf]
  %v344 = vld [vmem:[%s1 + $0x318] sm:$0xf]
  %v345 = vld [vmem:[%s1 + $0x31c] sm:$0xf]
  %v346 = vld [vmem:[%s1 + $0x320] sm:$0xf]
  %v347 = vld [vmem:[%s1 + $0x324] sm:$0xf]
  %v348 = vld [vmem:[%s1 + $0x328] sm:$0xf]
  %v349 = vld [vmem:[%s1 + $0x32c] sm:$0xf]
  %v350 = vld [vmem:[%s1 + $0x330] sm:$0xf]
  %v351 = vld [vmem:[%s1 + $0x334] sm:$0xf]
  %v352 = vld [vmem:[%s1 + $0x338] sm:$0xf]
  %v353 = vld [vmem:[%s1 + $0x33c] sm:$0xf]
  %v354 = vld [vmem:[%s1 + $0x340] sm:$0xf]
  %v355 = vld [vmem:[%s1 + $0x344] sm:$0xf]
  %v356 = vld [vmem:[%s1 + $0x348] sm:$0xf]
  %v357 = vld [vmem:[%s1 + $0x34c] sm:$0xf]
  %v358 = vld [vmem:[%s1 + $0x350] sm:$0xf]
  %v359 = vld [vmem:[%s1 + $0x354] sm:$0xf]
  %v360 = vld [vmem:[%s1 + $0x358] sm:$0xf]
  %v361 = vld [vmem:[%s1 + $0x35c] sm:$0xf]
  %v362 = vld [vmem:[%s1 + $0x360] sm:$0xf]
  %v363 = vld [vmem:[%s1 + $0x364] sm:$0xf]
  %v364 = vld [vmem:[%s1 + $0x368] sm:$0xf]
  %v365 = vld [vmem:[%s1 + $0x36c] sm:$0xf]
  %v366 = vld [vmem:[%s1 + $0x370] sm:$0xf]
  %v367 = vld [vmem:[%s1 + $0x374] sm:$0xf]
  %v368 = vld [vmem:[%s1 + $0x378] sm:$0xf]
  %v369 = vld [vmem:[%s1 + $0x37c] sm:$0xf]
  %v370 = vld [vmem:[%s1 + $0x380] sm:$0xf]
  %v371 = vld [vmem:[%s1 + $0x384] sm:$0xf]
  %v372 = vld [vmem:[%s1 + $0x388] sm:$0xf]
  %v373 = vld [vmem:[%s1 + $0x38c] sm:$0xf]
  %v374 = vld [vmem:[%s1 + $0x390] sm:$0xf]
  %v375 = vld [vmem:[%s1 + $0x394] sm:$0xf]
  %v376 = vld [vmem:[%s1 + $0x398] sm:$0xf]
  %v377 = vld [vmem:[%s1 + $0x39c] sm:$0xf]
  %v378 = vld [vmem:[%s1 + $0x3a0] sm:$0xf]
  %v379 = vld [vmem:[%s1 + $0x3a4] sm:$0xf]
  %v380 = vld [vmem:[%s1 + $0x3a8] sm:$0xf]
  %v381 = vld [vmem:[%s1 + $0x3ac] sm:$0xf]
  %v382 = vld [vmem:[%s1 + $0x3b0] sm:$0xf]
  %v383 = vld [vmem:[%s1 + $0x3b4] sm:$0xf]
  %v384 = vld [vmem:[%s1 + $0x3b8] sm:$0xf]
  %v385 = vld [vmem:[%s1 + $0x3bc] sm:$0xf]
  %v386 = vld [vmem:[%s1 + $0x3c0] sm:$0xf]
  %v387 = vld [vmem:[%s1 + $0x3c4] sm:$0xf]
  %v388 = vld [vmem:[%s1 + $0x3c8] sm:$0xf]
  %v389 = vld [vmem:[%s1 + $0x3cc] sm:$0xf]
  %v390 = vld [vmem:[%s1 + $0x3d0] sm:$0xf]
  %v391 = vld [vmem:[%s1 + $0x3d4] sm:$0xf]
  %v392 = vld [vmem:[%s1 + $0x3d8] sm:$0xf]
  %v393 = vld [vmem:[%s1 + $0x3dc] sm:$0xf]
  %v394 = vld [vmem:[%s1 + $0x3e0] sm:$0xf]
  %v395 = vld [vmem:[%s1 + $0x3e4] sm:$0xf]
  %v396 = vld [vmem:[%s1 + $0x3e8] sm:$0xf]
  %v397 = vld [vmem:[%s1 + $0x3ec] sm:$0xf]
  %v398 = vld [vmem:[%s1 + $0x3f0] sm:$0xf]
  %v399 = vld [vmem:[%s1 + $0x3f4] sm:$0xf]
  %v400 = vld [vmem:[%s1 + $0x3f8] sm:$0xf]
  %v401 = vld [vmem:[%s1 + $0x3fc] sm:$0xf]
  %v530 = vunpack.c.l.b16 %v18
  %v531 = vunpack.c.h.b16 %v18
  %v532 = vunpack.c.l.b16 %v19
  %v533 = vunpack.c.h.b16 %v19
  %v534 = vunpack.c.l.b16 %v20
  %v535 = vunpack.c.h.b16 %v20
  %v536 = vunpack.c.l.b16 %v21
  %v537 = vunpack.c.h.b16 %v21
  %v538 = vunpack.c.l.b16 %v22
  %v539 = vunpack.c.h.b16 %v22
  %v540 = vunpack.c.l.b16 %v23
  %v541 = vunpack.c.h.b16 %v23
  %v542 = vunpack.c.l.b16 %v24
  %v543 = vunpack.c.h.b16 %v24
  %v544 = vunpack.c.l.b16 %v25
  %v545 = vunpack.c.h.b16 %v25
  %v546 = vunpack.c.l.b16 %v26
  %v547 = vunpack.c.h.b16 %v26
  %v548 = vunpack.c.l.b16 %v27
  %v549 = vunpack.c.h.b16 %v27
  %v550 = vunpack.c.l.b16 %v28
  %v551 = vunpack.c.h.b16 %v28
  %v552 = vunpack.c.l.b16 %v29
  %v553 = vunpack.c.h.b16 %v29
  %v554 = vunpack.c.l.b16 %v30
  %v555 = vunpack.c.h.b16 %v30
  %v556 = vunpack.c.l.b16 %v31
  %v557 = vunpack.c.h.b16 %v31
  %v558 = vunpack.c.l.b16 %v32
  %v559 = vunpack.c.h.b16 %v32
  %v560 = vunpack.c.l.b16 %v33
  %v561 = vunpack.c.h.b16 %v33
  %v562 = vunpack.c.l.b16 %v34
  %v563 = vunpack.c.h.b16 %v34
  %v564 = vunpack.c.l.b16 %v35
  %v565 = vunpack.c.h.b16 %v35
  %v566 = vunpack.c.l.b16 %v36
  %v567 = vunpack.c.h.b16 %v36
  %v568 = vunpack.c.l.b16 %v37
  %v569 = vunpack.c.h.b16 %v37
  %v570 = vunpack.c.l.b16 %v38
  %v571 = vunpack.c.h.b16 %v38
  %v572 = vunpack.c.l.b16 %v39
  %v573 = vunpack.c.h.b16 %v39
  %v574 = vunpack.c.l.b16 %v40
  %v575 = vunpack.c.h.b16 %v40
  %v576 = vunpack.c.l.b16 %v41
  %v577 = vunpack.c.h.b16 %v41
  %v578 = vunpack.c.l.b16 %v42
  %v579 = vunpack.c.h.b16 %v42
  %v580 = vunpack.c.l.b16 %v43
  %v581 = vunpack.c.h.b16 %v43
  %v582 = vunpack.c.l.b16 %v44
  %v583 = vunpack.c.h.b16 %v44
  %v584 = vunpack.c.l.b16 %v45
  %v585 = vunpack.c.h.b16 %v45
  %v586 = vunpack.c.l.b16 %v46
  %v587 = vunpack.c.h.b16 %v46
  %v588 = vunpack.c.l.b16 %v47
  %v589 = vunpack.c.h.b16 %v47
  %v590 = vunpack.c.l.b16 %v48
  %v591 = vunpack.c.h.b16 %v48
  %v592 = vunpack.c.l.b16 %v49
  %v593 = vunpack.c.h.b16 %v49
  %v594 = vunpack.c.l.b16 %v50
  %v595 = vunpack.c.h.b16 %v50
  %v596 = vunpack.c.l.b16 %v51
  %v597 = vunpack.c.h.b16 %v51
  %v598 = vunpack.c.l.b16 %v52
  %v599 = vunpack.c.h.b16 %v52
  %v600 = vunpack.c.l.b16 %v53
  %v601 = vunpack.c.h.b16 %v53
  %v602 = vunpack.c.l.b16 %v54
  %v603 = vunpack.c.h.b16 %v54
  %v604 = vunpack.c.l.b16 %v55
  %v605 = vunpack.c.h.b16 %v55
  %v606 = vunpack.c.l.b16 %v56
  %v607 = vunpack.c.h.b16 %v56
  %v608 = vunpack.c.l.b16 %v57
  %v609 = vunpack.c.h.b16 %v57
  %v610 = vunpack.c.l.b16 %v58
  %v611 = vunpack.c.h.b16 %v58
  %v612 = vunpack.c.l.b16 %v59
  %v613 = vunpack.c.h.b16 %v59
  %v614 = vunpack.c.l.b16 %v60
  %v615 = vunpack.c.h.b16 %v60
  %v616 = vunpack.c.l.b16 %v61
  %v617 = vunpack.c.h.b16 %v61
  %v618 = vunpack.c.l.b16 %v62
  %v619 = vunpack.c.h.b16 %v62
  %v620 = vunpack.c.l.b16 %v63
  %v621 = vunpack.c.h.b16 %v63
  %v622 = vunpack.c.l.b16 %v64
  %v623 = vunpack.c.h.b16 %v64
  %v624 = vunpack.c.l.b16 %v65
  %v625 = vunpack.c.h.b16 %v65
  %v626 = vunpack.c.l.b16 %v66
  %v627 = vunpack.c.h.b16 %v66
  %v628 = vunpack.c.l.b16 %v67
  %v629 = vunpack.c.h.b16 %v67
  %v630 = vunpack.c.l.b16 %v68
  %v631 = vunpack.c.h.b16 %v68
  %v632 = vunpack.c.l.b16 %v69
  %v633 = vunpack.c.h.b16 %v69
  %v634 = vunpack.c.l.b16 %v70
  %v635 = vunpack.c.h.b16 %v70
  %v636 = vunpack.c.l.b16 %v71
  %v637 = vunpack.c.h.b16 %v71
  %v638 = vunpack.c.l.b16 %v72
  %v639 = vunpack.c.h.b16 %v72
  %v640 = vunpack.c.l.b16 %v73
  %v641 = vunpack.c.h.b16 %v73
  %v642 = vunpack.c.l.b16 %v74
  %v643 = vunpack.c.h.b16 %v74
  %v644 = vunpack.c.l.b16 %v75
  %v645 = vunpack.c.h.b16 %v75
  %v646 = vunpack.c.l.b16 %v76
  %v647 = vunpack.c.h.b16 %v76
  %v648 = vunpack.c.l.b16 %v77
  %v649 = vunpack.c.h.b16 %v77
  %v650 = vunpack.c.l.b16 %v78
  %v651 = vunpack.c.h.b16 %v78
  %v652 = vunpack.c.l.b16 %v79
  %v653 = vunpack.c.h.b16 %v79
  %v654 = vunpack.c.l.b16 %v80
  %v655 = vunpack.c.h.b16 %v80
  %v656 = vunpack.c.l.b16 %v81
  %v657 = vunpack.c.h.b16 %v81
  %v658 = vunpack.c.l.b16 %v82
  %v659 = vunpack.c.h.b16 %v82
  %v660 = vunpack.c.l.b16 %v83
  %v661 = vunpack.c.h.b16 %v83
  %v662 = vunpack.c.l.b16 %v84
  %v663 = vunpack.c.h.b16 %v84
  %v664 = vunpack.c.l.b16 %v85
  %v665 = vunpack.c.h.b16 %v85
  %v666 = vunpack.c.l.b16 %v86
  %v667 = vunpack.c.h.b16 %v86
  %v668 = vunpack.c.l.b16 %v87
  %v669 = vunpack.c.h.b16 %v87
  %v670 = vunpack.c.l.b16 %v88
  %v671 = vunpack.c.h.b16 %v88
  %v672 = vunpack.c.l.b16 %v89
  %v673 = vunpack.c.h.b16 %v89
  %v674 = vunpack.c.l.b16 %v90
  %v675 = vunpack.c.h.b16 %v90
  %v676 = vunpack.c.l.b16 %v91
  %v677 = vunpack.c.h.b16 %v91
  %v678 = vunpack.c.l.b16 %v92
  %v679 = vunpack.c.h.b16 %v92
  %v680 = vunpack.c.l.b16 %v93
  %v681 = vunpack.c.h.b16 %v93
  %v682 = vunpack.c.l.b16 %v94
  %v683 = vunpack.c.h.b16 %v94
  %v684 = vunpack.c.l.b16 %v95
  %v685 = vunpack.c.h.b16 %v95
  %v686 = vunpack.c.l.b16 %v96
  %v687 = vunpack.c.h.b16 %v96
  %v688 = vunpack.c.l.b16 %v97
  %v689 = vunpack.c.h.b16 %v97
  %v690 = vunpack.c.l.b16 %v98
  %v691 = vunpack.c.h.b16 %v98
  %v692 = vunpack.c.l.b16 %v99
  %v693 = vunpack.c.h.b16 %v99
  %v694 = vunpack.c.l.b16 %v100
  %v695 = vunpack.c.h.b16 %v100
  %v696 = vunpack.c.l.b16 %v101
  %v697 = vunpack.c.h.b16 %v101
  %v698 = vunpack.c.l.b16 %v102
  %v699 = vunpack.c.h.b16 %v102
  %v700 = vunpack.c.l.b16 %v103
  %v701 = vunpack.c.h.b16 %v103
  %v702 = vunpack.c.l.b16 %v104
  %v703 = vunpack.c.h.b16 %v104
  %v704 = vunpack.c.l.b16 %v105
  %v705 = vunpack.c.h.b16 %v105
  %v706 = vunpack.c.l.b16 %v106
  %v707 = vunpack.c.h.b16 %v106
  %v708 = vunpack.c.l.b16 %v107
  %v709 = vunpack.c.h.b16 %v107
  %v710 = vunpack.c.l.b16 %v108
  %v711 = vunpack.c.h.b16 %v108
  %v712 = vunpack.c.l.b16 %v109
  %v713 = vunpack.c.h.b16 %v109
  %v714 = vunpack.c.l.b16 %v110
  %v715 = vunpack.c.h.b16 %v110
  %v716 = vunpack.c.l.b16 %v111
  %v717 = vunpack.c.h.b16 %v111
  %v718 = vunpack.c.l.b16 %v112
  %v719 = vunpack.c.h.b16 %v112
  %v720 = vunpack.c.l.b16 %v113
  %v721 = vunpack.c.h.b16 %v113
  %v722 = vunpack.c.l.b16 %v114
  %v723 = vunpack.c.h.b16 %v114
  %v724 = vunpack.c.l.b16 %v115
  %v725 = vunpack.c.h.b16 %v115
  %v726 = vunpack.c.l.b16 %v116
  %v727 = vunpack.c.h.b16 %v116
  %v728 = vunpack.c.l.b16 %v117
  %v729 = vunpack.c.h.b16 %v117
  %v730 = vunpack.c.l.b16 %v118
  %v731 = vunpack.c.h.b16 %v118
  %v732 = vunpack.c.l.b16 %v119
  %v733 = vunpack.c.h.b16 %v119
  %v734 = vunpack.c.l.b16 %v120
  %v735 = vunpack.c.h.b16 %v120
  %v736 = vunpack.c.l.b16 %v121
  %v737 = vunpack.c.h.b16 %v121
  %v738 = vunpack.c.l.b16 %v122
  %v739 = vunpack.c.h.b16 %v122
  %v740 = vunpack.c.l.b16 %v123
  %v741 = vunpack.c.h.b16 %v123
  %v742 = vunpack.c.l.b16 %v124
  %v743 = vunpack.c.h.b16 %v124
  %v744 = vunpack.c.l.b16 %v125
  %v745 = vunpack.c.h.b16 %v125
  %v746 = vunpack.c.l.b16 %v126
  %v747 = vunpack.c.h.b16 %v126
  %v748 = vunpack.c.l.b16 %v127
  %v749 = vunpack.c.h.b16 %v127
  %v750 = vunpack.c.l.b16 %v128
  %v751 = vunpack.c.h.b16 %v128
  %v752 = vunpack.c.l.b16 %v129
  %v753 = vunpack.c.h.b16 %v129
  %v754 = vunpack.c.l.b16 %v130
  %v755 = vunpack.c.h.b16 %v130
  %v756 = vunpack.c.l.b16 %v131
  %v757 = vunpack.c.h.b16 %v131
  %v758 = vunpack.c.l.b16 %v132
  %v759 = vunpack.c.h.b16 %v132
  %v760 = vunpack.c.l.b16 %v133
  %v761 = vunpack.c.h.b16 %v133
  %v762 = vunpack.c.l.b16 %v134
  %v763 = vunpack.c.h.b16 %v134
  %v764 = vunpack.c.l.b16 %v135
  %v765 = vunpack.c.h.b16 %v135
  %v766 = vunpack.c.l.b16 %v136
  %v767 = vunpack.c.h.b16 %v136
  %v768 = vunpack.c.l.b16 %v137
  %v769 = vunpack.c.h.b16 %v137
  %v770 = vunpack.c.l.b16 %v138
  %v771 = vunpack.c.h.b16 %v138
  %v772 = vunpack.c.l.b16 %v139
  %v773 = vunpack.c.h.b16 %v139
  %v774 = vunpack.c.l.b16 %v140
  %v775 = vunpack.c.h.b16 %v140
  %v776 = vunpack.c.l.b16 %v141
  %v777 = vunpack.c.h.b16 %v141
  %v778 = vunpack.c.l.b16 %v142
  %v779 = vunpack.c.h.b16 %v142
  %v780 = vunpack.c.l.b16 %v143
  %v781 = vunpack.c.h.b16 %v143
  %v782 = vunpack.c.l.b16 %v144
  %v783 = vunpack.c.h.b16 %v144
  %v784 = vunpack.c.l.b16 %v145
  %v785 = vunpack.c.h.b16 %v145
  %v786 = vpack.c.b16 %v546, %v530
  %v787 = vpack.c.b16 %v547, %v531
  %v788 = vpack.c.b16 %v548, %v532
  %v789 = vpack.c.b16 %v549, %v533
  %v790 = vpack.c.b16 %v550, %v534
  %v791 = vpack.c.b16 %v551, %v535
  %v792 = vpack.c.b16 %v552, %v536
  %v793 = vpack.c.b16 %v553, %v537
  %v794 = vpack.c.b16 %v554, %v538
  %v795 = vpack.c.b16 %v555, %v539
  %v796 = vpack.c.b16 %v556, %v540
  %v797 = vpack.c.b16 %v557, %v541
  %v798 = vpack.c.b16 %v558, %v542
  %v799 = vpack.c.b16 %v559, %v543
  %v800 = vpack.c.b16 %v560, %v544
  %v801 = vpack.c.b16 %v561, %v545
  %v802 = vpack.c.b16 %v578, %v562
  %v803 = vpack.c.b16 %v579, %v563
  %v804 = vpack.c.b16 %v580, %v564
  %v805 = vpack.c.b16 %v581, %v565
  %v806 = vpack.c.b16 %v582, %v566
  %v807 = vpack.c.b16 %v583, %v567
  %v808 = vpack.c.b16 %v584, %v568
  %v809 = vpack.c.b16 %v585, %v569
  %v810 = vpack.c.b16 %v586, %v570
  %v811 = vpack.c.b16 %v587, %v571
  %v812 = vpack.c.b16 %v588, %v572
  %v813 = vpack.c.b16 %v589, %v573
  %v814 = vpack.c.b16 %v590, %v574
  %v815 = vpack.c.b16 %v591, %v575
  %v816 = vpack.c.b16 %v592, %v576
  %v817 = vpack.c.b16 %v593, %v577
  %v818 = vpack.c.b16 %v610, %v594
  %v819 = vpack.c.b16 %v611, %v595
  %v820 = vpack.c.b16 %v612, %v596
  %v821 = vpack.c.b16 %v613, %v597
  %v822 = vpack.c.b16 %v614, %v598
  %v823 = vpack.c.b16 %v615, %v599
  %v824 = vpack.c.b16 %v616, %v600
  %v825 = vpack.c.b16 %v617, %v601
  %v826 = vpack.c.b16 %v618, %v602
  %v827 = vpack.c.b16 %v619, %v603
  %v828 = vpack.c.b16 %v620, %v604
  %v829 = vpack.c.b16 %v621, %v605
  %v830 = vpack.c.b16 %v622, %v606
  %v831 = vpack.c.b16 %v623, %v607
  %v832 = vpack.c.b16 %v624, %v608
  %v833 = vpack.c.b16 %v625, %v609
  %v834 = vpack.c.b16 %v642, %v626
  %v835 = vpack.c.b16 %v643, %v627
  %v836 = vpack.c.b16 %v644, %v628
  %v837 = vpack.c.b16 %v645, %v629
  %v838 = vpack.c.b16 %v646, %v630
  %v839 = vpack.c.b16 %v647, %v631
  %v840 = vpack.c.b16 %v648, %v632
  %v841 = vpack.c.b16 %v649, %v633
  %v842 = vpack.c.b16 %v650, %v634
  %v843 = vpack.c.b16 %v651, %v635
  %v844 = vpack.c.b16 %v652, %v636
  %v845 = vpack.c.b16 %v653, %v637
  %v846 = vpack.c.b16 %v654, %v638
  %v847 = vpack.c.b16 %v655, %v639
  %v848 = vpack.c.b16 %v656, %v640
  %v849 = vpack.c.b16 %v657, %v641
  %v850 = vpack.c.b16 %v674, %v658
  %v851 = vpack.c.b16 %v675, %v659
  %v852 = vpack.c.b16 %v676, %v660
  %v853 = vpack.c.b16 %v677, %v661
  %v854 = vpack.c.b16 %v678, %v662
  %v855 = vpack.c.b16 %v679, %v663
  %v856 = vpack.c.b16 %v680, %v664
  %v857 = vpack.c.b16 %v681, %v665
  %v858 = vpack.c.b16 %v682, %v666
  %v859 = vpack.c.b16 %v683, %v667
  %v860 = vpack.c.b16 %v684, %v668
  %v861 = vpack.c.b16 %v685, %v669
  %v862 = vpack.c.b16 %v686, %v670
  %v863 = vpack.c.b16 %v687, %v671
  %v864 = vpack.c.b16 %v688, %v672
  %v865 = vpack.c.b16 %v689, %v673
  %v866 = vpack.c.b16 %v706, %v690
  %v867 = vpack.c.b16 %v707, %v691
  %v868 = vpack.c.b16 %v708, %v692
  %v869 = vpack.c.b16 %v709, %v693
  %v870 = vpack.c.b16 %v710, %v694
  %v871 = vpack.c.b16 %v711, %v695
  %v872 = vpack.c.b16 %v712, %v696
  %v873 = vpack.c.b16 %v713, %v697
  %v874 = vpack.c.b16 %v714, %v698
  %v875 = vpack.c.b16 %v715, %v699
  %v876 = vpack.c.b16 %v716, %v700
  %v877 = vpack.c.b16 %v717, %v701
  %v878 = vpack.c.b16 %v718, %v702
  %v879 = vpack.c.b16 %v719, %v703
  %v880 = vpack.c.b16 %v720, %v704
  %v881 = vpack.c.b16 %v721, %v705
  %v882 = vpack.c.b16 %v738, %v722
  %v883 = vpack.c.b16 %v739, %v723
  %v884 = vpack.c.b16 %v740, %v724
  %v885 = vpack.c.b16 %v741, %v725
  %v886 = vpack.c.b16 %v742, %v726
  %v887 = vpack.c.b16 %v743, %v727
  %v888 = vpack.c.b16 %v744, %v728
  %v889 = vpack.c.b16 %v745, %v729
  %v890 = vpack.c.b16 %v746, %v730
  %v891 = vpack.c.b16 %v747, %v731
  %v892 = vpack.c.b16 %v748, %v732
  %v893 = vpack.c.b16 %v749, %v733
  %v894 = vpack.c.b16 %v750, %v734
  %v895 = vpack.c.b16 %v751, %v735
  %v896 = vpack.c.b16 %v752, %v736
  %v897 = vpack.c.b16 %v753, %v737
  %v898 = vpack.c.b16 %v770, %v754
  %v899 = vpack.c.b16 %v771, %v755
  %v900 = vpack.c.b16 %v772, %v756
  %v901 = vpack.c.b16 %v773, %v757
  %v902 = vpack.c.b16 %v774, %v758
  %v903 = vpack.c.b16 %v775, %v759
  %v904 = vpack.c.b16 %v776, %v760
  %v905 = vpack.c.b16 %v777, %v761
  %v906 = vpack.c.b16 %v778, %v762
  %v907 = vpack.c.b16 %v779, %v763
  %v908 = vpack.c.b16 %v780, %v764
  %v909 = vpack.c.b16 %v781, %v765
  %v910 = vpack.c.b16 %v782, %v766
  %v911 = vpack.c.b16 %v783, %v767
  %v912 = vpack.c.b16 %v784, %v768
  %v913 = vpack.c.b16 %v785, %v769
  %v1298 = vunpack.c.l.b16 %v146
  %v1299 = vunpack.c.l.b16 %v147
  %v1300 = vunpack.c.l.b16 %v148
  %v1301 = vunpack.c.l.b16 %v149
  %v1302 = vunpack.c.l.b16 %v150
  %v1303 = vunpack.c.l.b16 %v151
  %v1304 = vunpack.c.l.b16 %v152
  %v1305 = vunpack.c.l.b16 %v153
  %v1306 = vunpack.c.l.b16 %v154
  %v1307 = vunpack.c.l.b16 %v155
  %v1308 = vunpack.c.l.b16 %v156
  %v1309 = vunpack.c.l.b16 %v157
  %v1310 = vunpack.c.l.b16 %v158
  %v1311 = vunpack.c.l.b16 %v159
  %v1312 = vunpack.c.l.b16 %v160
  %v1313 = vunpack.c.l.b16 %v161
  %v1314 = vunpack.c.l.b16 %v162
  %v1315 = vunpack.c.l.b16 %v163
  %v1316 = vunpack.c.l.b16 %v164
  %v1317 = vunpack.c.l.b16 %v165
  %v1318 = vunpack.c.l.b16 %v166
  %v1319 = vunpack.c.l.b16 %v167
  %v1320 = vunpack.c.l.b16 %v168
  %v1321 = vunpack.c.l.b16 %v169
  %v1322 = vunpack.c.l.b16 %v170
  %v1323 = vunpack.c.l.b16 %v171
  %v1324 = vunpack.c.l.b16 %v172
  %v1325 = vunpack.c.l.b16 %v173
  %v1326 = vunpack.c.l.b16 %v174
  %v1327 = vunpack.c.l.b16 %v175
  %v1328 = vunpack.c.l.b16 %v176
  %v1329 = vunpack.c.l.b16 %v177
  %v1330 = vunpack.c.l.b16 %v178
  %v1331 = vunpack.c.l.b16 %v179
  %v1332 = vunpack.c.l.b16 %v180
  %v1333 = vunpack.c.l.b16 %v181
  %v1334 = vunpack.c.l.b16 %v182
  %v1335 = vunpack.c.l.b16 %v183
  %v1336 = vunpack.c.l.b16 %v184
  %v1337 = vunpack.c.l.b16 %v185
  %v1338 = vunpack.c.l.b16 %v186
  %v1339 = vunpack.c.l.b16 %v187
  %v1340 = vunpack.c.l.b16 %v188
  %v1341 = vunpack.c.l.b16 %v189
  %v1342 = vunpack.c.l.b16 %v190
  %v1343 = vunpack.c.l.b16 %v191
  %v1344 = vunpack.c.l.b16 %v192
  %v1345 = vunpack.c.l.b16 %v193
  %v1346 = vunpack.c.l.b16 %v194
  %v1347 = vunpack.c.l.b16 %v195
  %v1348 = vunpack.c.l.b16 %v196
  %v1349 = vunpack.c.l.b16 %v197
  %v1350 = vunpack.c.l.b16 %v198
  %v1351 = vunpack.c.l.b16 %v199
  %v1352 = vunpack.c.l.b16 %v200
  %v1353 = vunpack.c.l.b16 %v201
  %v1354 = vunpack.c.l.b16 %v202
  %v1355 = vunpack.c.l.b16 %v203
  %v1356 = vunpack.c.l.b16 %v204
  %v1357 = vunpack.c.l.b16 %v205
  %v1358 = vunpack.c.l.b16 %v206
  %v1359 = vunpack.c.l.b16 %v207
  %v1360 = vunpack.c.l.b16 %v208
  %v1361 = vunpack.c.l.b16 %v209
  %v1362 = vunpack.c.l.b16 %v210
  %v1363 = vunpack.c.l.b16 %v211
  %v1364 = vunpack.c.l.b16 %v212
  %v1365 = vunpack.c.l.b16 %v213
  %v1366 = vunpack.c.l.b16 %v214
  %v1367 = vunpack.c.l.b16 %v215
  %v1368 = vunpack.c.l.b16 %v216
  %v1369 = vunpack.c.l.b16 %v217
  %v1370 = vunpack.c.l.b16 %v218
  %v1371 = vunpack.c.l.b16 %v219
  %v1372 = vunpack.c.l.b16 %v220
  %v1373 = vunpack.c.l.b16 %v221
  %v1374 = vunpack.c.l.b16 %v222
  %v1375 = vunpack.c.l.b16 %v223
  %v1376 = vunpack.c.l.b16 %v224
  %v1377 = vunpack.c.l.b16 %v225
  %v1378 = vunpack.c.l.b16 %v226
  %v1379 = vunpack.c.l.b16 %v227
  %v1380 = vunpack.c.l.b16 %v228
  %v1381 = vunpack.c.l.b16 %v229
  %v1382 = vunpack.c.l.b16 %v230
  %v1383 = vunpack.c.l.b16 %v231
  %v1384 = vunpack.c.l.b16 %v232
  %v1385 = vunpack.c.l.b16 %v233
  %v1386 = vunpack.c.l.b16 %v234
  %v1387 = vunpack.c.l.b16 %v235
  %v1388 = vunpack.c.l.b16 %v236
  %v1389 = vunpack.c.l.b16 %v237
  %v1390 = vunpack.c.l.b16 %v238
  %v1391 = vunpack.c.l.b16 %v239
  %v1392 = vunpack.c.l.b16 %v240
  %v1393 = vunpack.c.l.b16 %v241
  %v1394 = vunpack.c.l.b16 %v242
  %v1395 = vunpack.c.l.b16 %v243
  %v1396 = vunpack.c.l.b16 %v244
  %v1397 = vunpack.c.l.b16 %v245
  %v1398 = vunpack.c.l.b16 %v246
  %v1399 = vunpack.c.l.b16 %v247
  %v1400 = vunpack.c.l.b16 %v248
  %v1401 = vunpack.c.l.b16 %v249
  %v1402 = vunpack.c.l.b16 %v250
  %v1403 = vunpack.c.l.b16 %v251
  %v1404 = vunpack.c.l.b16 %v252
  %v1405 = vunpack.c.l.b16 %v253
  %v1406 = vunpack.c.l.b16 %v254
  %v1407 = vunpack.c.l.b16 %v255
  %v1408 = vunpack.c.l.b16 %v256
  %v1409 = vunpack.c.l.b16 %v257
  %v1410 = vunpack.c.l.b16 %v258
  %v1411 = vunpack.c.l.b16 %v259
  %v1412 = vunpack.c.l.b16 %v260
  %v1413 = vunpack.c.l.b16 %v261
  %v1414 = vunpack.c.l.b16 %v262
  %v1415 = vunpack.c.l.b16 %v263
  %v1416 = vunpack.c.l.b16 %v264
  %v1417 = vunpack.c.l.b16 %v265
  %v1418 = vunpack.c.l.b16 %v266
  %v1419 = vunpack.c.l.b16 %v267
  %v1420 = vunpack.c.l.b16 %v268
  %v1421 = vunpack.c.l.b16 %v269
  %v1422 = vunpack.c.l.b16 %v270
  %v1423 = vunpack.c.l.b16 %v271
  %v1424 = vunpack.c.l.b16 %v272
  %v1425 = vunpack.c.l.b16 %v273
  %v1426 = vunpack.c.l.b16 %v274
  %v1427 = vunpack.c.l.b16 %v275
  %v1428 = vunpack.c.l.b16 %v276
  %v1429 = vunpack.c.l.b16 %v277
  %v1430 = vunpack.c.l.b16 %v278
  %v1431 = vunpack.c.l.b16 %v279
  %v1432 = vunpack.c.l.b16 %v280
  %v1433 = vunpack.c.l.b16 %v281
  %v1434 = vunpack.c.l.b16 %v282
  %v1435 = vunpack.c.l.b16 %v283
  %v1436 = vunpack.c.l.b16 %v284
  %v1437 = vunpack.c.l.b16 %v285
  %v1438 = vunpack.c.l.b16 %v286
  %v1439 = vunpack.c.l.b16 %v287
  %v1440 = vunpack.c.l.b16 %v288
  %v1441 = vunpack.c.l.b16 %v289
  %v1442 = vunpack.c.l.b16 %v290
  %v1443 = vunpack.c.l.b16 %v291
  %v1444 = vunpack.c.l.b16 %v292
  %v1445 = vunpack.c.l.b16 %v293
  %v1446 = vunpack.c.l.b16 %v294
  %v1447 = vunpack.c.l.b16 %v295
  %v1448 = vunpack.c.l.b16 %v296
  %v1449 = vunpack.c.l.b16 %v297
  %v1450 = vunpack.c.l.b16 %v298
  %v1451 = vunpack.c.l.b16 %v299
  %v1452 = vunpack.c.l.b16 %v300
  %v1453 = vunpack.c.l.b16 %v301
  %v1454 = vunpack.c.l.b16 %v302
  %v1455 = vunpack.c.l.b16 %v303
  %v1456 = vunpack.c.l.b16 %v304
  %v1457 = vunpack.c.l.b16 %v305
  %v1458 = vunpack.c.l.b16 %v306
  %v1459 = vunpack.c.l.b16 %v307
  %v1460 = vunpack.c.l.b16 %v308
  %v1461 = vunpack.c.l.b16 %v309
  %v1462 = vunpack.c.l.b16 %v310
  %v1463 = vunpack.c.l.b16 %v311
  %v1464 = vunpack.c.l.b16 %v312
  %v1465 = vunpack.c.l.b16 %v313
  %v1466 = vunpack.c.l.b16 %v314
  %v1467 = vunpack.c.l.b16 %v315
  %v1468 = vunpack.c.l.b16 %v316
  %v1469 = vunpack.c.l.b16 %v317
  %v1470 = vunpack.c.l.b16 %v318
  %v1471 = vunpack.c.l.b16 %v319
  %v1472 = vunpack.c.l.b16 %v320
  %v1473 = vunpack.c.l.b16 %v321
  %v1474 = vunpack.c.l.b16 %v322
  %v1475 = vunpack.c.l.b16 %v323
  %v1476 = vunpack.c.l.b16 %v324
  %v1477 = vunpack.c.l.b16 %v325
  %v1478 = vunpack.c.l.b16 %v326
  %v1479 = vunpack.c.l.b16 %v327
  %v1480 = vunpack.c.l.b16 %v328
  %v1481 = vunpack.c.l.b16 %v329
  %v1482 = vunpack.c.l.b16 %v330
  %v1483 = vunpack.c.l.b16 %v331
  %v1484 = vunpack.c.l.b16 %v332
  %v1485 = vunpack.c.l.b16 %v333
  %v1486 = vunpack.c.l.b16 %v334
  %v1487 = vunpack.c.l.b16 %v335
  %v1488 = vunpack.c.l.b16 %v336
  %v1489 = vunpack.c.l.b16 %v337
  %v1490 = vunpack.c.l.b16 %v338
  %v1491 = vunpack.c.l.b16 %v339
  %v1492 = vunpack.c.l.b16 %v340
  %v1493 = vunpack.c.l.b16 %v341
  %v1494 = vunpack.c.l.b16 %v342
  %v1495 = vunpack.c.l.b16 %v343
  %v1496 = vunpack.c.l.b16 %v344
  %v1497 = vunpack.c.l.b16 %v345
  %v1498 = vunpack.c.l.b16 %v346
  %v1499 = vunpack.c.l.b16 %v347
  %v1500 = vunpack.c.l.b16 %v348
  %v1501 = vunpack.c.l.b16 %v349
  %v1502 = vunpack.c.l.b16 %v350
  %v1503 = vunpack.c.l.b16 %v351
  %v1504 = vunpack.c.l.b16 %v352
  %v1505 = vunpack.c.l.b16 %v353
  %v1506 = vunpack.c.l.b16 %v354
  %v1507 = vunpack.c.l.b16 %v355
  %v1508 = vunpack.c.l.b16 %v356
  %v1509 = vunpack.c.l.b16 %v357
  %v1510 = vunpack.c.l.b16 %v358
  %v1511 = vunpack.c.l.b16 %v359
  %v1512 = vunpack.c.l.b16 %v360
  %v1513 = vunpack.c.l.b16 %v361
  %v1514 = vunpack.c.l.b16 %v362
  %v1515 = vunpack.c.l.b16 %v363
  %v1516 = vunpack.c.l.b16 %v364
  %v1517 = vunpack.c.l.b16 %v365
  %v1518 = vunpack.c.l.b16 %v366
  %v1519 = vunpack.c.l.b16 %v367
  %v1520 = vunpack.c.l.b16 %v368
  %v1521 = vunpack.c.l.b16 %v369
  %v1522 = vunpack.c.l.b16 %v370
  %v1523 = vunpack.c.l.b16 %v371
  %v1524 = vunpack.c.l.b16 %v372
  %v1525 = vunpack.c.l.b16 %v373
  %v1526 = vunpack.c.l.b16 %v374
  %v1527 = vunpack.c.l.b16 %v375
  %v1528 = vunpack.c.l.b16 %v376
  %v1529 = vunpack.c.l.b16 %v377
  %v1530 = vunpack.c.l.b16 %v378
  %v1531 = vunpack.c.l.b16 %v379
  %v1532 = vunpack.c.l.b16 %v380
  %v1533 = vunpack.c.l.b16 %v381
  %v1534 = vunpack.c.l.b16 %v382
  %v1535 = vunpack.c.l.b16 %v383
  %v1536 = vunpack.c.l.b16 %v384
  %v1537 = vunpack.c.l.b16 %v385
  %v1538 = vunpack.c.l.b16 %v386
  %v1539 = vunpack.c.l.b16 %v387
  %v1540 = vunpack.c.l.b16 %v388
  %v1541 = vunpack.c.l.b16 %v389
  %v1542 = vunpack.c.l.b16 %v390
  %v1543 = vunpack.c.l.b16 %v391
  %v1544 = vunpack.c.l.b16 %v392
  %v1545 = vunpack.c.l.b16 %v393
  %v1546 = vunpack.c.l.b16 %v394
  %v1547 = vunpack.c.l.b16 %v395
  %v1548 = vunpack.c.l.b16 %v396
  %v1549 = vunpack.c.l.b16 %v397
  %v1550 = vunpack.c.l.b16 %v398
  %v1551 = vunpack.c.l.b16 %v399
  %v1552 = vunpack.c.l.b16 %v400
  %v1553 = vunpack.c.l.b16 %v401
  %v1554 = vpack.c.b16 %v1299, %v1298
  %v1555 = vpack.c.b16 %v1301, %v1300
  %v1556 = vpack.c.b16 %v1303, %v1302
  %v1557 = vpack.c.b16 %v1305, %v1304
  %v1558 = vpack.c.b16 %v1307, %v1306
  %v1559 = vpack.c.b16 %v1309, %v1308
  %v1560 = vpack.c.b16 %v1311, %v1310
  %v1561 = vpack.c.b16 %v1313, %v1312
  %v1562 = vpack.c.b16 %v1315, %v1314
  %v1563 = vpack.c.b16 %v1317, %v1316
  %v1564 = vpack.c.b16 %v1319, %v1318
  %v1565 = vpack.c.b16 %v1321, %v1320
  %v1566 = vpack.c.b16 %v1323, %v1322
  %v1567 = vpack.c.b16 %v1325, %v1324
  %v1568 = vpack.c.b16 %v1327, %v1326
  %v1569 = vpack.c.b16 %v1329, %v1328
  %v1570 = vpack.c.b16 %v1331, %v1330
  %v1571 = vpack.c.b16 %v1333, %v1332
  %v1572 = vpack.c.b16 %v1335, %v1334
  %v1573 = vpack.c.b16 %v1337, %v1336
  %v1574 = vpack.c.b16 %v1339, %v1338
  %v1575 = vpack.c.b16 %v1341, %v1340
  %v1576 = vpack.c.b16 %v1343, %v1342
  %v1577 = vpack.c.b16 %v1345, %v1344
  %v1578 = vpack.c.b16 %v1347, %v1346
  %v1579 = vpack.c.b16 %v1349, %v1348
  %v1580 = vpack.c.b16 %v1351, %v1350
  %v1581 = vpack.c.b16 %v1353, %v1352
  %v1582 = vpack.c.b16 %v1355, %v1354
  %v1583 = vpack.c.b16 %v1357, %v1356
  %v1584 = vpack.c.b16 %v1359, %v1358
  %v1585 = vpack.c.b16 %v1361, %v1360
  %v1586 = vpack.c.b16 %v1363, %v1362
  %v1587 = vpack.c.b16 %v1365, %v1364
  %v1588 = vpack.c.b16 %v1367, %v1366
  %v1589 = vpack.c.b16 %v1369, %v1368
  %v1590 = vpack.c.b16 %v1371, %v1370
  %v1591 = vpack.c.b16 %v1373, %v1372
  %v1592 = vpack.c.b16 %v1375, %v1374
  %v1593 = vpack.c.b16 %v1377, %v1376
  %v1594 = vpack.c.b16 %v1379, %v1378
  %v1595 = vpack.c.b16 %v1381, %v1380
  %v1596 = vpack.c.b16 %v1383, %v1382
  %v1597 = vpack.c.b16 %v1385, %v1384
  %v1598 = vpack.c.b16 %v1387, %v1386
  %v1599 = vpack.c.b16 %v1389, %v1388
  %v1600 = vpack.c.b16 %v1391, %v1390
  %v1601 = vpack.c.b16 %v1393, %v1392
  %v1602 = vpack.c.b16 %v1395, %v1394
  %v1603 = vpack.c.b16 %v1397, %v1396
  %v1604 = vpack.c.b16 %v1399, %v1398
  %v1605 = vpack.c.b16 %v1401, %v1400
  %v1606 = vpack.c.b16 %v1403, %v1402
  %v1607 = vpack.c.b16 %v1405, %v1404
  %v1608 = vpack.c.b16 %v1407, %v1406
  %v1609 = vpack.c.b16 %v1409, %v1408
  %v1610 = vpack.c.b16 %v1411, %v1410
  %v1611 = vpack.c.b16 %v1413, %v1412
  %v1612 = vpack.c.b16 %v1415, %v1414
  %v1613 = vpack.c.b16 %v1417, %v1416
  %v1614 = vpack.c.b16 %v1419, %v1418
  %v1615 = vpack.c.b16 %v1421, %v1420
  %v1616 = vpack.c.b16 %v1423, %v1422
  %v1617 = vpack.c.b16 %v1425, %v1424
  %v1618 = vpack.c.b16 %v1427, %v1426
  %v1619 = vpack.c.b16 %v1429, %v1428
  %v1620 = vpack.c.b16 %v1431, %v1430
  %v1621 = vpack.c.b16 %v1433, %v1432
  %v1622 = vpack.c.b16 %v1435, %v1434
  %v1623 = vpack.c.b16 %v1437, %v1436
  %v1624 = vpack.c.b16 %v1439, %v1438
  %v1625 = vpack.c.b16 %v1441, %v1440
  %v1626 = vpack.c.b16 %v1443, %v1442
  %v1627 = vpack.c.b16 %v1445, %v1444
  %v1628 = vpack.c.b16 %v1447, %v1446
  %v1629 = vpack.c.b16 %v1449, %v1448
  %v1630 = vpack.c.b16 %v1451, %v1450
  %v1631 = vpack.c.b16 %v1453, %v1452
  %v1632 = vpack.c.b16 %v1455, %v1454
  %v1633 = vpack.c.b16 %v1457, %v1456
  %v1634 = vpack.c.b16 %v1459, %v1458
  %v1635 = vpack.c.b16 %v1461, %v1460
  %v1636 = vpack.c.b16 %v1463, %v1462
  %v1637 = vpack.c.b16 %v1465, %v1464
  %v1638 = vpack.c.b16 %v1467, %v1466
  %v1639 = vpack.c.b16 %v1469, %v1468
  %v1640 = vpack.c.b16 %v1471, %v1470
  %v1641 = vpack.c.b16 %v1473, %v1472
  %v1642 = vpack.c.b16 %v1475, %v1474
  %v1643 = vpack.c.b16 %v1477, %v1476
  %v1644 = vpack.c.b16 %v1479, %v1478
  %v1645 = vpack.c.b16 %v1481, %v1480
  %v1646 = vpack.c.b16 %v1483, %v1482
  %v1647 = vpack.c.b16 %v1485, %v1484
  %v1648 = vpack.c.b16 %v1487, %v1486
  %v1649 = vpack.c.b16 %v1489, %v1488
  %v1650 = vpack.c.b16 %v1491, %v1490
  %v1651 = vpack.c.b16 %v1493, %v1492
  %v1652 = vpack.c.b16 %v1495, %v1494
  %v1653 = vpack.c.b16 %v1497, %v1496
  %v1654 = vpack.c.b16 %v1499, %v1498
  %v1655 = vpack.c.b16 %v1501, %v1500
  %v1656 = vpack.c.b16 %v1503, %v1502
  %v1657 = vpack.c.b16 %v1505, %v1504
  %v1658 = vpack.c.b16 %v1507, %v1506
  %v1659 = vpack.c.b16 %v1509, %v1508
  %v1660 = vpack.c.b16 %v1511, %v1510
  %v1661 = vpack.c.b16 %v1513, %v1512
  %v1662 = vpack.c.b16 %v1515, %v1514
  %v1663 = vpack.c.b16 %v1517, %v1516
  %v1664 = vpack.c.b16 %v1519, %v1518
  %v1665 = vpack.c.b16 %v1521, %v1520
  %v1666 = vpack.c.b16 %v1523, %v1522
  %v1667 = vpack.c.b16 %v1525, %v1524
  %v1668 = vpack.c.b16 %v1527, %v1526
  %v1669 = vpack.c.b16 %v1529, %v1528
  %v1670 = vpack.c.b16 %v1531, %v1530
  %v1671 = vpack.c.b16 %v1533, %v1532
  %v1672 = vpack.c.b16 %v1535, %v1534
  %v1673 = vpack.c.b16 %v1537, %v1536
  %v1674 = vpack.c.b16 %v1539, %v1538
  %v1675 = vpack.c.b16 %v1541, %v1540
  %v1676 = vpack.c.b16 %v1543, %v1542
  %v1677 = vpack.c.b16 %v1545, %v1544
  %v1678 = vpack.c.b16 %v1547, %v1546
  %v1679 = vpack.c.b16 %v1549, %v1548
  %v1680 = vpack.c.b16 %v1551, %v1550
  %v1681 = vpack.c.b16 %v1553, %v1552
  %1810 = vmatprep.subr.bf16.mxu0 0
  %1811 = vmatpush1.bf16.msra.mxu0 %v1561
  %1812 = vmatprep.subr.bf16.mxu0 0
  %1813 = vmatpush1.bf16.msra.mxu0 %v1560
  %1814 = vmatprep.subr.bf16.mxu0 0
  %1815 = vmatpush1.bf16.msra.mxu0 %v1559
  %1816 = vmatprep.subr.bf16.mxu0 0
  %1817 = vmatpush1.bf16.msra.mxu0 %v1558
  %1818 = vmatprep.subr.bf16.mxu0 0
  %1819 = vmatpush1.bf16.msra.mxu0 %v1557
  %1820 = vmatprep.subr.bf16.mxu0 0
  %1821 = vmatpush1.bf16.msra.mxu0 %v1556
  %1822 = vmatprep.subr.bf16.mxu0 0
  %1823 = vmatpush1.bf16.msra.mxu0 %v1555
  %1824 = vmatprep.subr.bf16.mxu0 0
  %1825 = vmatpush1.bf16.msra.mxu0 %v1554
  %1826 = vmatprep.subr.bf16.mxu0 0
  %1827 = vmatpush2.bf16.msra.mxu0 %v1569
  %1828 = vmatprep.subr.bf16.mxu0 0
  %1829 = vmatpush2.bf16.msra.mxu0 %v1568
  %1830 = vmatprep.subr.bf16.mxu0 0
  %1831 = vmatpush2.bf16.msra.mxu0 %v1567
  %1832 = vmatprep.subr.bf16.mxu0 0
  %1833 = vmatpush2.bf16.msra.mxu0 %v1566
  %1834 = vmatprep.subr.bf16.mxu0 0
  %1835 = vmatpush2.bf16.msra.mxu0 %v1565
  %1836 = vmatprep.subr.bf16.mxu0 0
  %1837 = vmatpush2.bf16.msra.mxu0 %v1564
  %1838 = vmatprep.subr.bf16.mxu0 0
  %1839 = vmatpush2.bf16.msra.mxu0 %v1563
  %1840 = vmatprep.subr.bf16.mxu0 0
  %1841 = vmatpush2.bf16.msra.mxu0 %v1562
  %1842 = vmatprep.mubr.bf16.mxu0 %v787
  %1843 = vmatmul.mubr.bf16.gmra.mxu0 %v786
  %v1844 = vpop.f32.mrf.mxu0
  %v1845 = vadd.f32 0.0, %v1844
  %v1846 = vpop.f32.mrf.mxu0
  %v1847 = vpop.f32.mrf.mxu0
  %v1848 = vadd.f32 0.0, %v1847
  %v1849 = vpop.f32.mrf.mxu0
  %1850 = vmatprep.mubr.bf16.mxu0 %v803
  %1851 = vmatmul.mubr.bf16.gmra.mxu0 %v802
  %v1852 = vpop.f32.mrf.mxu0
  %v1853 = vadd.f32 0.0, %v1852
  %v1854 = vpop.f32.mrf.mxu0
  %v1855 = vpop.f32.mrf.mxu0
  %v1856 = vadd.f32 0.0, %v1855
  %v1857 = vpop.f32.mrf.mxu0
  %1858 = vmatprep.mubr.bf16.mxu0 %v819
  %1859 = vmatmul.mubr.bf16.gmra.mxu0 %v818
  %v1860 = vpop.f32.mrf.mxu0
  %v1861 = vadd.f32 0.0, %v1860
  %v1862 = vpop.f32.mrf.mxu0
  %v1863 = vpop.f32.mrf.mxu0
  %v1864 = vadd.f32 0.0, %v1863
  %v1865 = vpop.f32.mrf.mxu0
  %1866 = vmatprep.mubr.bf16.mxu0 %v835
  %1867 = vmatmul.mubr.bf16.gmra.mxu0 %v834
  %v1868 = vpop.f32.mrf.mxu0
  %v1869 = vadd.f32 0.0, %v1868
  %v1870 = vpop.f32.mrf.mxu0
  %v1871 = vpop.f32.mrf.mxu0
  %v1872 = vadd.f32 0.0, %v1871
  %v1873 = vpop.f32.mrf.mxu0
  %1874 = vmatprep.mubr.bf16.mxu0 %v851
  %1875 = vmatmul.mubr.bf16.gmra.mxu0 %v850
  %v1876 = vpop.f32.mrf.mxu0
  %v1877 = vadd.f32 0.0, %v1876
  %v1878 = vpop.f32.mrf.mxu0
  %v1879 = vpop.f32.mrf.mxu0
  %v1880 = vadd.f32 0.0, %v1879
  %v1881 = vpop.f32.mrf.mxu0
  %1882 = vmatprep.mubr.bf16.mxu0 %v867
  %1883 = vmatmul.mubr.bf16.gmra.mxu0 %v866
  %v1884 = vpop.f32.mrf.mxu0
  %v1885 = vadd.f32 0.0, %v1884
  %v1886 = vpop.f32.mrf.mxu0
  %v1887 = vpop.f32.mrf.mxu0
  %v1888 = vadd.f32 0.0, %v1887
  %v1889 = vpop.f32.mrf.mxu0
  %1890 = vmatprep.mubr.bf16.mxu0 %v883
  %1891 = vmatmul.mubr.bf16.gmra.mxu0 %v882
  %v1892 = vpop.f32.mrf.mxu0
  %v1893 = vadd.f32 0.0, %v1892
  %v1894 = vpop.f32.mrf.mxu0
  %v1895 = vpop.f32.mrf.mxu0
  %v1896 = vadd.f32 0.0, %v1895
  %v1897 = vpop.f32.mrf.mxu0
  %1898 = vmatprep.mubr.bf16.mxu0 %v899
  %1899 = vmatmul.mubr.bf16.gmra.mxu0 %v898
  %v1900 = vpop.f32.mrf.mxu0
  %v1901 = vadd.f32 0.0, %v1900
  %v1902 = vpop.f32.mrf.mxu0
  %v1903 = vpop.f32.mrf.mxu0
  %v1904 = vadd.f32 0.0, %v1903
  %v1905 = vpop.f32.mrf.mxu0
  %1906 = vdwg.mxu0
  %1907 = vmatprep.subr.bf16.mxu0 0
  %1908 = vmatpush1.bf16.msra.mxu0 %v1577
  %1909 = vmatprep.subr.bf16.mxu0 0
  %1910 = vmatpush1.bf16.msra.mxu0 %v1576
  %1911 = vmatprep.subr.bf16.mxu0 0
  %1912 = vmatpush1.bf16.msra.mxu0 %v1575
  %1913 = vmatprep.subr.bf16.mxu0 0
  %1914 = vmatpush1.bf16.msra.mxu0 %v1574
  %1915 = vmatprep.subr.bf16.mxu0 0
  %1916 = vmatpush1.bf16.msra.mxu0 %v1573
  %1917 = vmatprep.subr.bf16.mxu0 0
  %1918 = vmatpush1.bf16.msra.mxu0 %v1572
  %1919 = vmatprep.subr.bf16.mxu0 0
  %1920 = vmatpush1.bf16.msra.mxu0 %v1571
  %1921 = vmatprep.subr.bf16.mxu0 0
  %1922 = vmatpush1.bf16.msra.mxu0 %v1570
  %1923 = vmatprep.subr.bf16.mxu0 0
  %1924 = vmatpush2.bf16.msra.mxu0 %v1585
  %1925 = vmatprep.subr.bf16.mxu0 0
  %1926 = vmatpush2.bf16.msra.mxu0 %v1584
  %1927 = vmatprep.subr.bf16.mxu0 0
  %1928 = vmatpush2.bf16.msra.mxu0 %v1583
  %1929 = vmatprep.subr.bf16.mxu0 0
  %1930 = vmatpush2.bf16.msra.mxu0 %v1582
  %1931 = vmatprep.subr.bf16.mxu0 0
  %1932 = vmatpush2.bf16.msra.mxu0 %v1581
  %1933 = vmatprep.subr.bf16.mxu0 0
  %1934 = vmatpush2.bf16.msra.mxu0 %v1580
  %1935 = vmatprep.subr.bf16.mxu0 0
  %1936 = vmatpush2.bf16.msra.mxu0 %v1579
  %1937 = vmatprep.subr.bf16.mxu0 0
  %1938 = vmatpush2.bf16.msra.mxu0 %v1578
  %1939 = vmatprep.mubr.bf16.mxu0 %v789
  %1940 = vmatmul.mubr.bf16.gmra.mxu0 %v788
  %v1941 = vpop.f32.mrf.mxu0
  %v1942 = vadd.f32 %v1845, %v1941
  %v1943 = vpop.f32.mrf.mxu0
  %v1944 = vpop.f32.mrf.mxu0
  %v1945 = vadd.f32 %v1848, %v1944
  %v1946 = vpop.f32.mrf.mxu0
  %1947 = vmatprep.mubr.bf16.mxu0 %v805
  %1948 = vmatmul.mubr.bf16.gmra.mxu0 %v804
  %v1949 = vpop.f32.mrf.mxu0
  %v1950 = vadd.f32 %v1853, %v1949
  %v1951 = vpop.f32.mrf.mxu0
  %v1952 = vpop.f32.mrf.mxu0
  %v1953 = vadd.f32 %v1856, %v1952
  %v1954 = vpop.f32.mrf.mxu0
  %1955 = vmatprep.mubr.bf16.mxu0 %v821
  %1956 = vmatmul.mubr.bf16.gmra.mxu0 %v820
  %v1957 = vpop.f32.mrf.mxu0
  %v1958 = vadd.f32 %v1861, %v1957
  %v1959 = vpop.f32.mrf.mxu0
  %v1960 = vpop.f32.mrf.mxu0
  %v1961 = vadd.f32 %v1864, %v1960
  %v1962 = vpop.f32.mrf.mxu0
  %1963 = vmatprep.mubr.bf16.mxu0 %v837
  %1964 = vmatmul.mubr.bf16.gmra.mxu0 %v836
  %v1965 = vpop.f32.mrf.mxu0
  %v1966 = vadd.f32 %v1869, %v1965
  %v1967 = vpop.f32.mrf.mxu0
  %v1968 = vpop.f32.mrf.mxu0
  %v1969 = vadd.f32 %v1872, %v1968
  %v1970 = vpop.f32.mrf.mxu0
  %1971 = vmatprep.mubr.bf16.mxu0 %v853
  %1972 = vmatmul.mubr.bf16.gmra.mxu0 %v852
  %v1973 = vpop.f32.mrf.mxu0
  %v1974 = vadd.f32 %v1877, %v1973
  %v1975 = vpop.f32.mrf.mxu0
  %v1976 = vpop.f32.mrf.mxu0
  %v1977 = vadd.f32 %v1880, %v1976
  %v1978 = vpop.f32.mrf.mxu0
  %1979 = vmatprep.mubr.bf16.mxu0 %v869
  %1980 = vmatmul.mubr.bf16.gmra.mxu0 %v868
  %v1981 = vpop.f32.mrf.mxu0
  %v1982 = vadd.f32 %v1885, %v1981
  %v1983 = vpop.f32.mrf.mxu0
  %v1984 = vpop.f32.mrf.mxu0
  %v1985 = vadd.f32 %v1888, %v1984
  %v1986 = vpop.f32.mrf.mxu0
  %1987 = vmatprep.mubr.bf16.mxu0 %v885
  %1988 = vmatmul.mubr.bf16.gmra.mxu0 %v884
  %v1989 = vpop.f32.mrf.mxu0
  %v1990 = vadd.f32 %v1893, %v1989
  %v1991 = vpop.f32.mrf.mxu0
  %v1992 = vpop.f32.mrf.mxu0
  %v1993 = vadd.f32 %v1896, %v1992
  %v1994 = vpop.f32.mrf.mxu0
  %1995 = vmatprep.mubr.bf16.mxu0 %v901
  %1996 = vmatmul.mubr.bf16.gmra.mxu0 %v900
  %v1997 = vpop.f32.mrf.mxu0
  %v1998 = vadd.f32 %v1901, %v1997
  %v1999 = vpop.f32.mrf.mxu0
  %v2000 = vpop.f32.mrf.mxu0
  %v2001 = vadd.f32 %v1904, %v2000
  %v2002 = vpop.f32.mrf.mxu0
  %2003 = vdwg.mxu0
  %2004 = vmatprep.subr.bf16.mxu0 0
  %2005 = vmatpush1.bf16.msra.mxu0 %v1593
  %2006 = vmatprep.subr.bf16.mxu0 0
  %2007 = vmatpush1.bf16.msra.mxu0 %v1592
  %2008 = vmatprep.subr.bf16.mxu0 0
  %2009 = vmatpush1.bf16.msra.mxu0 %v1591
  %2010 = vmatprep.subr.bf16.mxu0 0
  %2011 = vmatpush1.bf16.msra.mxu0 %v1590
  %2012 = vmatprep.subr.bf16.mxu0 0
  %2013 = vmatpush1.bf16.msra.mxu0 %v1589
  %2014 = vmatprep.subr.bf16.mxu0 0
  %2015 = vmatpush1.bf16.msra.mxu0 %v1588
  %2016 = vmatprep.subr.bf16.mxu0 0
  %2017 = vmatpush1.bf16.msra.mxu0 %v1587
  %2018 = vmatprep.subr.bf16.mxu0 0
  %2019 = vmatpush1.bf16.msra.mxu0 %v1586
  %2020 = vmatprep.subr.bf16.mxu0 0
  %2021 = vmatpush2.bf16.msra.mxu0 %v1601
  %2022 = vmatprep.subr.bf16.mxu0 0
  %2023 = vmatpush2.bf16.msra.mxu0 %v1600
  %2024 = vmatprep.subr.bf16.mxu0 0
  %2025 = vmatpush2.bf16.msra.mxu0 %v1599
  %2026 = vmatprep.subr.bf16.mxu0 0
  %2027 = vmatpush2.bf16.msra.mxu0 %v1598
  %2028 = vmatprep.subr.bf16.mxu0 0
  %2029 = vmatpush2.bf16.msra.mxu0 %v1597
  %2030 = vmatprep.subr.bf16.mxu0 0
  %2031 = vmatpush2.bf16.msra.mxu0 %v1596
  %2032 = vmatprep.subr.bf16.mxu0 0
  %2033 = vmatpush2.bf16.msra.mxu0 %v1595
  %2034 = vmatprep.subr.bf16.mxu0 0
  %2035 = vmatpush2.bf16.msra.mxu0 %v1594
  %2036 = vmatprep.mubr.bf16.mxu0 %v791
  %2037 = vmatmul.mubr.bf16.gmra.mxu0 %v790
  %v2038 = vpop.f32.mrf.mxu0
  %v2039 = vadd.f32 %v1942, %v2038
  %v2040 = vpop.f32.mrf.mxu0
  %v2041 = vpop.f32.mrf.mxu0
  %v2042 = vadd.f32 %v1945, %v2041
  %v2043 = vpop.f32.mrf.mxu0
  %2044 = vmatprep.mubr.bf16.mxu0 %v807
  %2045 = vmatmul.mubr.bf16.gmra.mxu0 %v806
  %v2046 = vpop.f32.mrf.mxu0
  %v2047 = vadd.f32 %v1950, %v2046
  %v2048 = vpop.f32.mrf.mxu0
  %v2049 = vpop.f32.mrf.mxu0
  %v2050 = vadd.f32 %v1953, %v2049
  %v2051 = vpop.f32.mrf.mxu0
  %2052 = vmatprep.mubr.bf16.mxu0 %v823
  %2053 = vmatmul.mubr.bf16.gmra.mxu0 %v822
  %v2054 = vpop.f32.mrf.mxu0
  %v2055 = vadd.f32 %v1958, %v2054
  %v2056 = vpop.f32.mrf.mxu0
  %v2057 = vpop.f32.mrf.mxu0
  %v2058 = vadd.f32 %v1961, %v2057
  %v2059 = vpop.f32.mrf.mxu0
  %2060 = vmatprep.mubr.bf16.mxu0 %v839
  %2061 = vmatmul.mubr.bf16.gmra.mxu0 %v838
  %v2062 = vpop.f32.mrf.mxu0
  %v2063 = vadd.f32 %v1966, %v2062
  %v2064 = vpop.f32.mrf.mxu0
  %v2065 = vpop.f32.mrf.mxu0
  %v2066 = vadd.f32 %v1969, %v2065
  %v2067 = vpop.f32.mrf.mxu0
  %2068 = vmatprep.mubr.bf16.mxu0 %v855
  %2069 = vmatmul.mubr.bf16.gmra.mxu0 %v854
  %v2070 = vpop.f32.mrf.mxu0
  %v2071 = vadd.f32 %v1974, %v2070
  %v2072 = vpop.f32.mrf.mxu0
  %v2073 = vpop.f32.mrf.mxu0
  %v2074 = vadd.f32 %v1977, %v2073
  %v2075 = vpop.f32.mrf.mxu0
  %2076 = vmatprep.mubr.bf16.mxu0 %v871
  %2077 = vmatmul.mubr.bf16.gmra.mxu0 %v870
  %v2078 = vpop.f32.mrf.mxu0
  %v2079 = vadd.f32 %v1982, %v2078
  %v2080 = vpop.f32.mrf.mxu0
  %v2081 = vpop.f32.mrf.mxu0
  %v2082 = vadd.f32 %v1985, %v2081
  %v2083 = vpop.f32.mrf.mxu0
  %2084 = vmatprep.mubr.bf16.mxu0 %v887
  %2085 = vmatmul.mubr.bf16.gmra.mxu0 %v886
  %v2086 = vpop.f32.mrf.mxu0
  %v2087 = vadd.f32 %v1990, %v2086
  %v2088 = vpop.f32.mrf.mxu0
  %v2089 = vpop.f32.mrf.mxu0
  %v2090 = vadd.f32 %v1993, %v2089
  %v2091 = vpop.f32.mrf.mxu0
  %2092 = vmatprep.mubr.bf16.mxu0 %v903
  %2093 = vmatmul.mubr.bf16.gmra.mxu0 %v902
  %v2094 = vpop.f32.mrf.mxu0
  %v2095 = vadd.f32 %v1998, %v2094
  %v2096 = vpop.f32.mrf.mxu0
  %v2097 = vpop.f32.mrf.mxu0
  %v2098 = vadd.f32 %v2001, %v2097
  %v2099 = vpop.f32.mrf.mxu0
  %2100 = vdwg.mxu0
  %2101 = vmatprep.subr.bf16.mxu0 0
  %2102 = vmatpush1.bf16.msra.mxu0 %v1609
  %2103 = vmatprep.subr.bf16.mxu0 0
  %2104 = vmatpush1.bf16.msra.mxu0 %v1608
  %2105 = vmatprep.subr.bf16.mxu0 0
  %2106 = vmatpush1.bf16.msra.mxu0 %v1607
  %2107 = vmatprep.subr.bf16.mxu0 0
  %2108 = vmatpush1.bf16.msra.mxu0 %v1606
  %2109 = vmatprep.subr.bf16.mxu0 0
  %2110 = vmatpush1.bf16.msra.mxu0 %v1605
  %2111 = vmatprep.subr.bf16.mxu0 0
  %2112 = vmatpush1.bf16.msra.mxu0 %v1604
  %2113 = vmatprep.subr.bf16.mxu0 0
  %2114 = vmatpush1.bf16.msra.mxu0 %v1603
  %2115 = vmatprep.subr.bf16.mxu0 0
  %2116 = vmatpush1.bf16.msra.mxu0 %v1602
  %2117 = vmatprep.subr.bf16.mxu0 0
  %2118 = vmatpush2.bf16.msra.mxu0 %v1617
  %2119 = vmatprep.subr.bf16.mxu0 0
  %2120 = vmatpush2.bf16.msra.mxu0 %v1616
  %2121 = vmatprep.subr.bf16.mxu0 0
  %2122 = vmatpush2.bf16.msra.mxu0 %v1615
  %2123 = vmatprep.subr.bf16.mxu0 0
  %2124 = vmatpush2.bf16.msra.mxu0 %v1614
  %2125 = vmatprep.subr.bf16.mxu0 0
  %2126 = vmatpush2.bf16.msra.mxu0 %v1613
  %2127 = vmatprep.subr.bf16.mxu0 0
  %2128 = vmatpush2.bf16.msra.mxu0 %v1612
  %2129 = vmatprep.subr.bf16.mxu0 0
  %2130 = vmatpush2.bf16.msra.mxu0 %v1611
  %2131 = vmatprep.subr.bf16.mxu0 0
  %2132 = vmatpush2.bf16.msra.mxu0 %v1610
  %2133 = vmatprep.mubr.bf16.mxu0 %v793
  %2134 = vmatmul.mubr.bf16.gmra.mxu0 %v792
  %v2135 = vpop.f32.mrf.mxu0
  %v2136 = vadd.f32 %v2039, %v2135
  %v2137 = vpop.f32.mrf.mxu0
  %v2138 = vpop.f32.mrf.mxu0
  %v2139 = vadd.f32 %v2042, %v2138
  %v2140 = vpop.f32.mrf.mxu0
  %2141 = vmatprep.mubr.bf16.mxu0 %v809
  %2142 = vmatmul.mubr.bf16.gmra.mxu0 %v808
  %v2143 = vpop.f32.mrf.mxu0
  %v2144 = vadd.f32 %v2047, %v2143
  %v2145 = vpop.f32.mrf.mxu0
  %v2146 = vpop.f32.mrf.mxu0
  %v2147 = vadd.f32 %v2050, %v2146
  %v2148 = vpop.f32.mrf.mxu0
  %2149 = vmatprep.mubr.bf16.mxu0 %v825
  %2150 = vmatmul.mubr.bf16.gmra.mxu0 %v824
  %v2151 = vpop.f32.mrf.mxu0
  %v2152 = vadd.f32 %v2055, %v2151
  %v2153 = vpop.f32.mrf.mxu0
  %v2154 = vpop.f32.mrf.mxu0
  %v2155 = vadd.f32 %v2058, %v2154
  %v2156 = vpop.f32.mrf.mxu0
  %2157 = vmatprep.mubr.bf16.mxu0 %v841
  %2158 = vmatmul.mubr.bf16.gmra.mxu0 %v840
  %v2159 = vpop.f32.mrf.mxu0
  %v2160 = vadd.f32 %v2063, %v2159
  %v2161 = vpop.f32.mrf.mxu0
  %v2162 = vpop.f32.mrf.mxu0
  %v2163 = vadd.f32 %v2066, %v2162
  %v2164 = vpop.f32.mrf.mxu0
  %2165 = vmatprep.mubr.bf16.mxu0 %v857
  %2166 = vmatmul.mubr.bf16.gmra.mxu0 %v856
  %v2167 = vpop.f32.mrf.mxu0
  %v2168 = vadd.f32 %v2071, %v2167
  %v2169 = vpop.f32.mrf.mxu0
  %v2170 = vpop.f32.mrf.mxu0
  %v2171 = vadd.f32 %v2074, %v2170
  %v2172 = vpop.f32.mrf.mxu0
  %2173 = vmatprep.mubr.bf16.mxu0 %v873
  %2174 = vmatmul.mubr.bf16.gmra.mxu0 %v872
  %v2175 = vpop.f32.mrf.mxu0
  %v2176 = vadd.f32 %v2079, %v2175
  %v2177 = vpop.f32.mrf.mxu0
  %v2178 = vpop.f32.mrf.mxu0
  %v2179 = vadd.f32 %v2082, %v2178
  %v2180 = vpop.f32.mrf.mxu0
  %2181 = vmatprep.mubr.bf16.mxu0 %v889
  %2182 = vmatmul.mubr.bf16.gmra.mxu0 %v888
  %v2183 = vpop.f32.mrf.mxu0
  %v2184 = vadd.f32 %v2087, %v2183
  %v2185 = vpop.f32.mrf.mxu0
  %v2186 = vpop.f32.mrf.mxu0
  %v2187 = vadd.f32 %v2090, %v2186
  %v2188 = vpop.f32.mrf.mxu0
  %2189 = vmatprep.mubr.bf16.mxu0 %v905
  %2190 = vmatmul.mubr.bf16.gmra.mxu0 %v904
  %v2191 = vpop.f32.mrf.mxu0
  %v2192 = vadd.f32 %v2095, %v2191
  %v2193 = vpop.f32.mrf.mxu0
  %v2194 = vpop.f32.mrf.mxu0
  %v2195 = vadd.f32 %v2098, %v2194
  %v2196 = vpop.f32.mrf.mxu0
  %2197 = vdwg.mxu0
  %2198 = vmatprep.subr.bf16.mxu0 0
  %2199 = vmatpush1.bf16.msra.mxu0 %v1625
  %2200 = vmatprep.subr.bf16.mxu0 0
  %2201 = vmatpush1.bf16.msra.mxu0 %v1624
  %2202 = vmatprep.subr.bf16.mxu0 0
  %2203 = vmatpush1.bf16.msra.mxu0 %v1623
  %2204 = vmatprep.subr.bf16.mxu0 0
  %2205 = vmatpush1.bf16.msra.mxu0 %v1622
  %2206 = vmatprep.subr.bf16.mxu0 0
  %2207 = vmatpush1.bf16.msra.mxu0 %v1621
  %2208 = vmatprep.subr.bf16.mxu0 0
  %2209 = vmatpush1.bf16.msra.mxu0 %v1620
  %2210 = vmatprep.subr.bf16.mxu0 0
  %2211 = vmatpush1.bf16.msra.mxu0 %v1619
  %2212 = vmatprep.subr.bf16.mxu0 0
  %2213 = vmatpush1.bf16.msra.mxu0 %v1618
  %2214 = vmatprep.subr.bf16.mxu0 0
  %2215 = vmatpush2.bf16.msra.mxu0 %v1633
  %2216 = vmatprep.subr.bf16.mxu0 0
  %2217 = vmatpush2.bf16.msra.mxu0 %v1632
  %2218 = vmatprep.subr.bf16.mxu0 0
  %2219 = vmatpush2.bf16.msra.mxu0 %v1631
  %2220 = vmatprep.subr.bf16.mxu0 0
  %2221 = vmatpush2.bf16.msra.mxu0 %v1630
  %2222 = vmatprep.subr.bf16.mxu0 0
  %2223 = vmatpush2.bf16.msra.mxu0 %v1629
  %2224 = vmatprep.subr.bf16.mxu0 0
  %2225 = vmatpush2.bf16.msra.mxu0 %v1628
  %2226 = vmatprep.subr.bf16.mxu0 0
  %2227 = vmatpush2.bf16.msra.mxu0 %v1627
  %2228 = vmatprep.subr.bf16.mxu0 0
  %2229 = vmatpush2.bf16.msra.mxu0 %v1626
  %2230 = vmatprep.mubr.bf16.mxu0 %v795
  %2231 = vmatmul.mubr.bf16.gmra.mxu0 %v794
  %v2232 = vpop.f32.mrf.mxu0
  %v2233 = vadd.f32 %v2136, %v2232
  %v2234 = vpop.f32.mrf.mxu0
  %v2235 = vpop.f32.mrf.mxu0
  %v2236 = vadd.f32 %v2139, %v2235
  %v2237 = vpop.f32.mrf.mxu0
  %2238 = vmatprep.mubr.bf16.mxu0 %v811
  %2239 = vmatmul.mubr.bf16.gmra.mxu0 %v810
  %v2240 = vpop.f32.mrf.mxu0
  %v2241 = vadd.f32 %v2144, %v2240
  %v2242 = vpop.f32.mrf.mxu0
  %v2243 = vpop.f32.mrf.mxu0
  %v2244 = vadd.f32 %v2147, %v2243
  %v2245 = vpop.f32.mrf.mxu0
  %2246 = vmatprep.mubr.bf16.mxu0 %v827
  %2247 = vmatmul.mubr.bf16.gmra.mxu0 %v826
  %v2248 = vpop.f32.mrf.mxu0
  %v2249 = vadd.f32 %v2152, %v2248
  %v2250 = vpop.f32.mrf.mxu0
  %v2251 = vpop.f32.mrf.mxu0
  %v2252 = vadd.f32 %v2155, %v2251
  %v2253 = vpop.f32.mrf.mxu0
  %2254 = vmatprep.mubr.bf16.mxu0 %v843
  %2255 = vmatmul.mubr.bf16.gmra.mxu0 %v842
  %v2256 = vpop.f32.mrf.mxu0
  %v2257 = vadd.f32 %v2160, %v2256
  %v2258 = vpop.f32.mrf.mxu0
  %v2259 = vpop.f32.mrf.mxu0
  %v2260 = vadd.f32 %v2163, %v2259
  %v2261 = vpop.f32.mrf.mxu0
  %2262 = vmatprep.mubr.bf16.mxu0 %v859
  %2263 = vmatmul.mubr.bf16.gmra.mxu0 %v858
  %v2264 = vpop.f32.mrf.mxu0
  %v2265 = vadd.f32 %v2168, %v2264
  %v2266 = vpop.f32.mrf.mxu0
  %v2267 = vpop.f32.mrf.mxu0
  %v2268 = vadd.f32 %v2171, %v2267
  %v2269 = vpop.f32.mrf.mxu0
  %2270 = vmatprep.mubr.bf16.mxu0 %v875
  %2271 = vmatmul.mubr.bf16.gmra.mxu0 %v874
  %v2272 = vpop.f32.mrf.mxu0
  %v2273 = vadd.f32 %v2176, %v2272
  %v2274 = vpop.f32.mrf.mxu0
  %v2275 = vpop.f32.mrf.mxu0
  %v2276 = vadd.f32 %v2179, %v2275
  %v2277 = vpop.f32.mrf.mxu0
  %2278 = vmatprep.mubr.bf16.mxu0 %v891
  %2279 = vmatmul.mubr.bf16.gmra.mxu0 %v890
  %v2280 = vpop.f32.mrf.mxu0
  %v2281 = vadd.f32 %v2184, %v2280
  %v2282 = vpop.f32.mrf.mxu0
  %v2283 = vpop.f32.mrf.mxu0
  %v2284 = vadd.f32 %v2187, %v2283
  %v2285 = vpop.f32.mrf.mxu0
  %2286 = vmatprep.mubr.bf16.mxu0 %v907
  %2287 = vmatmul.mubr.bf16.gmra.mxu0 %v906
  %v2288 = vpop.f32.mrf.mxu0
  %v2289 = vadd.f32 %v2192, %v2288
  %v2290 = vpop.f32.mrf.mxu0
  %v2291 = vpop.f32.mrf.mxu0
  %v2292 = vadd.f32 %v2195, %v2291
  %v2293 = vpop.f32.mrf.mxu0
  %2294 = vdwg.mxu0
  %2295 = vmatprep.subr.bf16.mxu0 0
  %2296 = vmatpush1.bf16.msra.mxu0 %v1641
  %2297 = vmatprep.subr.bf16.mxu0 0
  %2298 = vmatpush1.bf16.msra.mxu0 %v1640
  %2299 = vmatprep.subr.bf16.mxu0 0
  %2300 = vmatpush1.bf16.msra.mxu0 %v1639
  %2301 = vmatprep.subr.bf16.mxu0 0
  %2302 = vmatpush1.bf16.msra.mxu0 %v1638
  %2303 = vmatprep.subr.bf16.mxu0 0
  %2304 = vmatpush1.bf16.msra.mxu0 %v1637
  %2305 = vmatprep.subr.bf16.mxu0 0
  %2306 = vmatpush1.bf16.msra.mxu0 %v1636
  %2307 = vmatprep.subr.bf16.mxu0 0
  %2308 = vmatpush1.bf16.msra.mxu0 %v1635
  %2309 = vmatprep.subr.bf16.mxu0 0
  %2310 = vmatpush1.bf16.msra.mxu0 %v1634
  %2311 = vmatprep.subr.bf16.mxu0 0
  %2312 = vmatpush2.bf16.msra.mxu0 %v1649
  %2313 = vmatprep.subr.bf16.mxu0 0
  %2314 = vmatpush2.bf16.msra.mxu0 %v1648
  %2315 = vmatprep.subr.bf16.mxu0 0
  %2316 = vmatpush2.bf16.msra.mxu0 %v1647
  %2317 = vmatprep.subr.bf16.mxu0 0
  %2318 = vmatpush2.bf16.msra.mxu0 %v1646
  %2319 = vmatprep.subr.bf16.mxu0 0
  %2320 = vmatpush2.bf16.msra.mxu0 %v1645
  %2321 = vmatprep.subr.bf16.mxu0 0
  %2322 = vmatpush2.bf16.msra.mxu0 %v1644
  %2323 = vmatprep.subr.bf16.mxu0 0
  %2324 = vmatpush2.bf16.msra.mxu0 %v1643
  %2325 = vmatprep.subr.bf16.mxu0 0
  %2326 = vmatpush2.bf16.msra.mxu0 %v1642
  %2327 = vmatprep.mubr.bf16.mxu0 %v797
  %2328 = vmatmul.mubr.bf16.gmra.mxu0 %v796
  %v2329 = vpop.f32.mrf.mxu0
  %v2330 = vadd.f32 %v2233, %v2329
  %v2331 = vpop.f32.mrf.mxu0
  %v2332 = vpop.f32.mrf.mxu0
  %v2333 = vadd.f32 %v2236, %v2332
  %v2334 = vpop.f32.mrf.mxu0
  %2335 = vmatprep.mubr.bf16.mxu0 %v813
  %2336 = vmatmul.mubr.bf16.gmra.mxu0 %v812
  %v2337 = vpop.f32.mrf.mxu0
  %v2338 = vadd.f32 %v2241, %v2337
  %v2339 = vpop.f32.mrf.mxu0
  %v2340 = vpop.f32.mrf.mxu0
  %v2341 = vadd.f32 %v2244, %v2340
  %v2342 = vpop.f32.mrf.mxu0
  %2343 = vmatprep.mubr.bf16.mxu0 %v829
  %2344 = vmatmul.mubr.bf16.gmra.mxu0 %v828
  %v2345 = vpop.f32.mrf.mxu0
  %v2346 = vadd.f32 %v2249, %v2345
  %v2347 = vpop.f32.mrf.mxu0
  %v2348 = vpop.f32.mrf.mxu0
  %v2349 = vadd.f32 %v2252, %v2348
  %v2350 = vpop.f32.mrf.mxu0
  %2351 = vmatprep.mubr.bf16.mxu0 %v845
  %2352 = vmatmul.mubr.bf16.gmra.mxu0 %v844
  %v2353 = vpop.f32.mrf.mxu0
  %v2354 = vadd.f32 %v2257, %v2353
  %v2355 = vpop.f32.mrf.mxu0
  %v2356 = vpop.f32.mrf.mxu0
  %v2357 = vadd.f32 %v2260, %v2356
  %v2358 = vpop.f32.mrf.mxu0
  %2359 = vmatprep.mubr.bf16.mxu0 %v861
  %2360 = vmatmul.mubr.bf16.gmra.mxu0 %v860
  %v2361 = vpop.f32.mrf.mxu0
  %v2362 = vadd.f32 %v2265, %v2361
  %v2363 = vpop.f32.mrf.mxu0
  %v2364 = vpop.f32.mrf.mxu0
  %v2365 = vadd.f32 %v2268, %v2364
  %v2366 = vpop.f32.mrf.mxu0
  %2367 = vmatprep.mubr.bf16.mxu0 %v877
  %2368 = vmatmul.mubr.bf16.gmra.mxu0 %v876
  %v2369 = vpop.f32.mrf.mxu0
  %v2370 = vadd.f32 %v2273, %v2369
  %v2371 = vpop.f32.mrf.mxu0
  %v2372 = vpop.f32.mrf.mxu0
  %v2373 = vadd.f32 %v2276, %v2372
  %v2374 = vpop.f32.mrf.mxu0
  %2375 = vmatprep.mubr.bf16.mxu0 %v893
  %2376 = vmatmul.mubr.bf16.gmra.mxu0 %v892
  %v2377 = vpop.f32.mrf.mxu0
  %v2378 = vadd.f32 %v2281, %v2377
  %v2379 = vpop.f32.mrf.mxu0
  %v2380 = vpop.f32.mrf.mxu0
  %v2381 = vadd.f32 %v2284, %v2380
  %v2382 = vpop.f32.mrf.mxu0
  %2383 = vmatprep.mubr.bf16.mxu0 %v909
  %2384 = vmatmul.mubr.bf16.gmra.mxu0 %v908
  %v2385 = vpop.f32.mrf.mxu0
  %v2386 = vadd.f32 %v2289, %v2385
  %v2387 = vpop.f32.mrf.mxu0
  %v2388 = vpop.f32.mrf.mxu0
  %v2389 = vadd.f32 %v2292, %v2388
  %v2390 = vpop.f32.mrf.mxu0
  %2391 = vdwg.mxu0
  %2392 = vmatprep.subr.bf16.mxu0 0
  %2393 = vmatpush1.bf16.msra.mxu0 %v1657
  %2394 = vmatprep.subr.bf16.mxu0 0
  %2395 = vmatpush1.bf16.msra.mxu0 %v1656
  %2396 = vmatprep.subr.bf16.mxu0 0
  %2397 = vmatpush1.bf16.msra.mxu0 %v1655
  %2398 = vmatprep.subr.bf16.mxu0 0
  %2399 = vmatpush1.bf16.msra.mxu0 %v1654
  %2400 = vmatprep.subr.bf16.mxu0 0
  %2401 = vmatpush1.bf16.msra.mxu0 %v1653
  %2402 = vmatprep.subr.bf16.mxu0 0
  %2403 = vmatpush1.bf16.msra.mxu0 %v1652
  %2404 = vmatprep.subr.bf16.mxu0 0
  %2405 = vmatpush1.bf16.msra.mxu0 %v1651
  %2406 = vmatprep.subr.bf16.mxu0 0
  %2407 = vmatpush1.bf16.msra.mxu0 %v1650
  %2408 = vmatprep.subr.bf16.mxu0 0
  %2409 = vmatpush2.bf16.msra.mxu0 %v1665
  %2410 = vmatprep.subr.bf16.mxu0 0
  %2411 = vmatpush2.bf16.msra.mxu0 %v1664
  %2412 = vmatprep.subr.bf16.mxu0 0
  %2413 = vmatpush2.bf16.msra.mxu0 %v1663
  %2414 = vmatprep.subr.bf16.mxu0 0
  %2415 = vmatpush2.bf16.msra.mxu0 %v1662
  %2416 = vmatprep.subr.bf16.mxu0 0
  %2417 = vmatpush2.bf16.msra.mxu0 %v1661
  %2418 = vmatprep.subr.bf16.mxu0 0
  %2419 = vmatpush2.bf16.msra.mxu0 %v1660
  %2420 = vmatprep.subr.bf16.mxu0 0
  %2421 = vmatpush2.bf16.msra.mxu0 %v1659
  %2422 = vmatprep.subr.bf16.mxu0 0
  %2423 = vmatpush2.bf16.msra.mxu0 %v1658
  %2424 = vmatprep.mubr.bf16.mxu0 %v799
  %2425 = vmatmul.mubr.bf16.gmra.mxu0 %v798
  %v2426 = vpop.f32.mrf.mxu0
  %v2427 = vadd.f32 %v2330, %v2426
  %v2428 = vpop.f32.mrf.mxu0
  %v2429 = vpop.f32.mrf.mxu0
  %v2430 = vadd.f32 %v2333, %v2429
  %v2431 = vpop.f32.mrf.mxu0
  %2432 = vmatprep.mubr.bf16.mxu0 %v815
  %2433 = vmatmul.mubr.bf16.gmra.mxu0 %v814
  %v2434 = vpop.f32.mrf.mxu0
  %v2435 = vadd.f32 %v2338, %v2434
  %v2436 = vpop.f32.mrf.mxu0
  %v2437 = vpop.f32.mrf.mxu0
  %v2438 = vadd.f32 %v2341, %v2437
  %v2439 = vpop.f32.mrf.mxu0
  %2440 = vmatprep.mubr.bf16.mxu0 %v831
  %2441 = vmatmul.mubr.bf16.gmra.mxu0 %v830
  %v2442 = vpop.f32.mrf.mxu0
  %v2443 = vadd.f32 %v2346, %v2442
  %v2444 = vpop.f32.mrf.mxu0
  %v2445 = vpop.f32.mrf.mxu0
  %v2446 = vadd.f32 %v2349, %v2445
  %v2447 = vpop.f32.mrf.mxu0
  %2448 = vmatprep.mubr.bf16.mxu0 %v847
  %2449 = vmatmul.mubr.bf16.gmra.mxu0 %v846
  %v2450 = vpop.f32.mrf.mxu0
  %v2451 = vadd.f32 %v2354, %v2450
  %v2452 = vpop.f32.mrf.mxu0
  %v2453 = vpop.f32.mrf.mxu0
  %v2454 = vadd.f32 %v2357, %v2453
  %v2455 = vpop.f32.mrf.mxu0
  %2456 = vmatprep.mubr.bf16.mxu0 %v863
  %2457 = vmatmul.mubr.bf16.gmra.mxu0 %v862
  %v2458 = vpop.f32.mrf.mxu0
  %v2459 = vadd.f32 %v2362, %v2458
  %v2460 = vpop.f32.mrf.mxu0
  %v2461 = vpop.f32.mrf.mxu0
  %v2462 = vadd.f32 %v2365, %v2461
  %v2463 = vpop.f32.mrf.mxu0
  %2464 = vmatprep.mubr.bf16.mxu0 %v879
  %2465 = vmatmul.mubr.bf16.gmra.mxu0 %v878
  %v2466 = vpop.f32.mrf.mxu0
  %v2467 = vadd.f32 %v2370, %v2466
  %v2468 = vpop.f32.mrf.mxu0
  %v2469 = vpop.f32.mrf.mxu0
  %v2470 = vadd.f32 %v2373, %v2469
  %v2471 = vpop.f32.mrf.mxu0
  %2472 = vmatprep.mubr.bf16.mxu0 %v895
  %2473 = vmatmul.mubr.bf16.gmra.mxu0 %v894
  %v2474 = vpop.f32.mrf.mxu0
  %v2475 = vadd.f32 %v2378, %v2474
  %v2476 = vpop.f32.mrf.mxu0
  %v2477 = vpop.f32.mrf.mxu0
  %v2478 = vadd.f32 %v2381, %v2477
  %v2479 = vpop.f32.mrf.mxu0
  %2480 = vmatprep.mubr.bf16.mxu0 %v911
  %2481 = vmatmul.mubr.bf16.gmra.mxu0 %v910
  %v2482 = vpop.f32.mrf.mxu0
  %v2483 = vadd.f32 %v2386, %v2482
  %v2484 = vpop.f32.mrf.mxu0
  %v2485 = vpop.f32.mrf.mxu0
  %v2486 = vadd.f32 %v2389, %v2485
  %v2487 = vpop.f32.mrf.mxu0
  %2488 = vdwg.mxu0
  %2489 = vmatprep.subr.bf16.mxu0 0
  %2490 = vmatpush1.bf16.msra.mxu0 %v1673
  %2491 = vmatprep.subr.bf16.mxu0 0
  %2492 = vmatpush1.bf16.msra.mxu0 %v1672
  %2493 = vmatprep.subr.bf16.mxu0 0
  %2494 = vmatpush1.bf16.msra.mxu0 %v1671
  %2495 = vmatprep.subr.bf16.mxu0 0
  %2496 = vmatpush1.bf16.msra.mxu0 %v1670
  %2497 = vmatprep.subr.bf16.mxu0 0
  %2498 = vmatpush1.bf16.msra.mxu0 %v1669
  %2499 = vmatprep.subr.bf16.mxu0 0
  %2500 = vmatpush1.bf16.msra.mxu0 %v1668
  %2501 = vmatprep.subr.bf16.mxu0 0
  %2502 = vmatpush1.bf16.msra.mxu0 %v1667
  %2503 = vmatprep.subr.bf16.mxu0 0
  %2504 = vmatpush1.bf16.msra.mxu0 %v1666
  %2505 = vmatprep.subr.bf16.mxu0 0
  %2506 = vmatpush2.bf16.msra.mxu0 %v1681
  %2507 = vmatprep.subr.bf16.mxu0 0
  %2508 = vmatpush2.bf16.msra.mxu0 %v1680
  %2509 = vmatprep.subr.bf16.mxu0 0
  %2510 = vmatpush2.bf16.msra.mxu0 %v1679
  %2511 = vmatprep.subr.bf16.mxu0 0
  %2512 = vmatpush2.bf16.msra.mxu0 %v1678
  %2513 = vmatprep.subr.bf16.mxu0 0
  %2514 = vmatpush2.bf16.msra.mxu0 %v1677
  %2515 = vmatprep.subr.bf16.mxu0 0
  %2516 = vmatpush2.bf16.msra.mxu0 %v1676
  %2517 = vmatprep.subr.bf16.mxu0 0
  %2518 = vmatpush2.bf16.msra.mxu0 %v1675
  %2519 = vmatprep.subr.bf16.mxu0 0
  %2520 = vmatpush2.bf16.msra.mxu0 %v1674
  %2521 = vmatprep.mubr.bf16.mxu0 %v801
  %2522 = vmatmul.mubr.bf16.gmra.mxu0 %v800
  %v2523 = vpop.f32.mrf.mxu0
  %v2524 = vadd.f32 %v2427, %v2523
  %v2525 = vpop.f32.mrf.mxu0
  %v2526 = vpop.f32.mrf.mxu0
  %v2527 = vadd.f32 %v2430, %v2526
  %v2528 = vpop.f32.mrf.mxu0
  %2529 = vmatprep.mubr.bf16.mxu0 %v817
  %2530 = vmatmul.mubr.bf16.gmra.mxu0 %v816
  %v2531 = vpop.f32.mrf.mxu0
  %v2532 = vadd.f32 %v2435, %v2531
  %v2533 = vpop.f32.mrf.mxu0
  %v2534 = vpop.f32.mrf.mxu0
  %v2535 = vadd.f32 %v2438, %v2534
  %v2536 = vpop.f32.mrf.mxu0
  %2537 = vmatprep.mubr.bf16.mxu0 %v833
  %2538 = vmatmul.mubr.bf16.gmra.mxu0 %v832
  %v2539 = vpop.f32.mrf.mxu0
  %v2540 = vadd.f32 %v2443, %v2539
  %v2541 = vpop.f32.mrf.mxu0
  %v2542 = vpop.f32.mrf.mxu0
  %v2543 = vadd.f32 %v2446, %v2542
  %v2544 = vpop.f32.mrf.mxu0
  %2545 = vmatprep.mubr.bf16.mxu0 %v849
  %2546 = vmatmul.mubr.bf16.gmra.mxu0 %v848
  %v2547 = vpop.f32.mrf.mxu0
  %v2548 = vadd.f32 %v2451, %v2547
  %v2549 = vpop.f32.mrf.mxu0
  %v2550 = vpop.f32.mrf.mxu0
  %v2551 = vadd.f32 %v2454, %v2550
  %v2552 = vpop.f32.mrf.mxu0
  %2553 = vmatprep.mubr.bf16.mxu0 %v865
  %2554 = vmatmul.mubr.bf16.gmra.mxu0 %v864
  %v2555 = vpop.f32.mrf.mxu0
  %v2556 = vadd.f32 %v2459, %v2555
  %v2557 = vpop.f32.mrf.mxu0
  %v2558 = vpop.f32.mrf.mxu0
  %v2559 = vadd.f32 %v2462, %v2558
  %v2560 = vpop.f32.mrf.mxu0
  %2561 = vmatprep.mubr.bf16.mxu0 %v881
  %2562 = vmatmul.mubr.bf16.gmra.mxu0 %v880
  %v2563 = vpop.f32.mrf.mxu0
  %v2564 = vadd.f32 %v2467, %v2563
  %v2565 = vpop.f32.mrf.mxu0
  %v2566 = vpop.f32.mrf.mxu0
  %v2567 = vadd.f32 %v2470, %v2566
  %v2568 = vpop.f32.mrf.mxu0
  %2569 = vmatprep.mubr.bf16.mxu0 %v897
  %2570 = vmatmul.mubr.bf16.gmra.mxu0 %v896
  %v2571 = vpop.f32.mrf.mxu0
  %v2572 = vadd.f32 %v2475, %v2571
  %v2573 = vpop.f32.mrf.mxu0
  %v2574 = vpop.f32.mrf.mxu0
  %v2575 = vadd.f32 %v2478, %v2574
  %v2576 = vpop.f32.mrf.mxu0
  %2577 = vmatprep.mubr.bf16.mxu0 %v913
  %2578 = vmatmul.mubr.bf16.gmra.mxu0 %v912
  %v2579 = vpop.f32.mrf.mxu0
  %v2580 = vadd.f32 %v2483, %v2579
  %v2581 = vpop.f32.mrf.mxu0
  %v2582 = vpop.f32.mrf.mxu0
  %v2583 = vadd.f32 %v2486, %v2582
  %v2584 = vpop.f32.mrf.mxu0
  %2585 = vdwg.mxu0
  %v2586 = vadd.f32 %v2524, %v2527
  %v2587 = vadd.f32 %v2586, %v2532
  %v2588 = vadd.f32 %v2587, %v2535
  %v2589 = vadd.f32 %v2588, %v2540
  %v2590 = vadd.f32 %v2589, %v2543
  %v2591 = vadd.f32 %v2590, %v2548
  %v2592 = vadd.f32 %v2591, %v2551
  %v2593 = vadd.f32 %v2592, %v2556
  %v2594 = vadd.f32 %v2593, %v2559
  %v2595 = vadd.f32 %v2594, %v2564
  %v2596 = vadd.f32 %v2595, %v2567
  %v2597 = vadd.f32 %v2596, %v2572
  %v2598 = vadd.f32 %v2597, %v2575
  %v2599 = vadd.f32 %v2598, %v2580
  %v2600 = vadd.f32 %v2599, %v2583
  %v2601 = vrot.slane %v2600, 4
  %v2602 = vadd.f32 %v2600, %v2601
  %v2603 = vrot.slane %v2602, 2
  %v2604 = vadd.f32 %v2602, %v2603
  %v2605 = vrot.slane %v2604, 1
  %v2606 = vadd.f32 %v2604, %v2605
  %v2607 = vrcp.pop 128.0
  %v2608 = vmul.f32 %v2606, %v2607
  %v2609 = vsub.f32 %v2524, %v2608
  %v2610 = vsub.f32 %v2527, %v2608
  %v2611 = vsub.f32 %v2532, %v2608
  %v2612 = vsub.f32 %v2535, %v2608
  %v2613 = vsub.f32 %v2540, %v2608
  %v2614 = vsub.f32 %v2543, %v2608
  %v2615 = vsub.f32 %v2548, %v2608
  %v2616 = vsub.f32 %v2551, %v2608
  %v2617 = vsub.f32 %v2556, %v2608
  %v2618 = vsub.f32 %v2559, %v2608
  %v2619 = vsub.f32 %v2564, %v2608
  %v2620 = vsub.f32 %v2567, %v2608
  %v2621 = vsub.f32 %v2572, %v2608
  %v2622 = vsub.f32 %v2575, %v2608
  %v2623 = vsub.f32 %v2580, %v2608
  %v2624 = vsub.f32 %v2583, %v2608
  %v2625 = vmul.f32 %v2609, %v2609
  %v2626 = vmul.f32 %v2610, %v2610
  %v2627 = vmul.f32 %v2611, %v2611
  %v2628 = vmul.f32 %v2612, %v2612
  %v2629 = vmul.f32 %v2613, %v2613
  %v2630 = vmul.f32 %v2614, %v2614
  %v2631 = vmul.f32 %v2615, %v2615
  %v2632 = vmul.f32 %v2616, %v2616
  %v2633 = vmul.f32 %v2617, %v2617
  %v2634 = vmul.f32 %v2618, %v2618
  %v2635 = vmul.f32 %v2619, %v2619
  %v2636 = vmul.f32 %v2620, %v2620
  %v2637 = vmul.f32 %v2621, %v2621
  %v2638 = vmul.f32 %v2622, %v2622
  %v2639 = vmul.f32 %v2623, %v2623
  %v2640 = vmul.f32 %v2624, %v2624
  %v2641 = vadd.f32 %v2625, %v2626
  %v2642 = vadd.f32 %v2641, %v2627
  %v2643 = vadd.f32 %v2642, %v2628
  %v2644 = vadd.f32 %v2643, %v2629
  %v2645 = vadd.f32 %v2644, %v2630
  %v2646 = vadd.f32 %v2645, %v2631
  %v2647 = vadd.f32 %v2646, %v2632
  %v2648 = vadd.f32 %v2647, %v2633
  %v2649 = vadd.f32 %v2648, %v2634
  %v2650 = vadd.f32 %v2649, %v2635
  %v2651 = vadd.f32 %v2650, %v2636
  %v2652 = vadd.f32 %v2651, %v2637
  %v2653 = vadd.f32 %v2652, %v2638
  %v2654 = vadd.f32 %v2653, %v2639
  %v2655 = vadd.f32 %v2654, %v2640
  %v2656 = vrot.slane %v2655, 4
  %v2657 = vadd.f32 %v2655, %v2656
  %v2658 = vrot.slane %v2657, 2
  %v2659 = vadd.f32 %v2657, %v2658
  %v2660 = vrot.slane %v2659, 1
  %v2661 = vadd.f32 %v2659, %v2660
  %v2662 = vmul.f32 %v2661, %v2607
  %v2663 = vadd.f32 %v2662, 1e-05
  %v2664 = vrsqrt.pop %v2663
  %v2665 = vmul.f32 %v2609, %v2664
  %v2666 = vmul.f32 %v2610, %v2664
  %v2667 = vmul.f32 %v2611, %v2664
  %v2668 = vmul.f32 %v2612, %v2664
  %v2669 = vmul.f32 %v2613, %v2664
  %v2670 = vmul.f32 %v2614, %v2664
  %v2671 = vmul.f32 %v2615, %v2664
  %v2672 = vmul.f32 %v2616, %v2664
  %v2673 = vmul.f32 %v2617, %v2664
  %v2674 = vmul.f32 %v2618, %v2664
  %v2675 = vmul.f32 %v2619, %v2664
  %v2676 = vmul.f32 %v2620, %v2664
  %v2677 = vmul.f32 %v2621, %v2664
  %v2678 = vmul.f32 %v2622, %v2664
  %v2679 = vmul.f32 %v2623, %v2664
  %v2680 = vmul.f32 %v2624, %v2664
  %v2681 = vld [vmem:[%s2] sm:$0x1]
  %v2683 = vlaneseq
  %v2684 = vshrl.u32 %v2683, 7
  %v2685 = vsub.s32 0, %v2684
  %v2686 = vrot.slane %v2681, %v2685
  %v2688 = vmul.f32 %v2665, %v2686
  %v2689 = vmul.f32 %v2666, %v2686
  %v2690 = vmul.f32 %v2667, %v2686
  %v2691 = vmul.f32 %v2668, %v2686
  %v2692 = vmul.f32 %v2669, %v2686
  %v2693 = vmul.f32 %v2670, %v2686
  %v2694 = vmul.f32 %v2671, %v2686
  %v2695 = vmul.f32 %v2672, %v2686
  %v2696 = vmul.f32 %v2673, %v2686
  %v2697 = vmul.f32 %v2674, %v2686
  %v2698 = vmul.f32 %v2675, %v2686
  %v2699 = vmul.f32 %v2676, %v2686
  %v2700 = vmul.f32 %v2677, %v2686
  %v2701 = vmul.f32 %v2678, %v2686
  %v2702 = vmul.f32 %v2679, %v2686
  %v2703 = vmul.f32 %v2680, %v2686
  %v2704 = vld [vmem:[%s3] sm:$0x1]
  %v2706 = vlaneseq
  %v2707 = vshrl.u32 %v2706, 7
  %v2708 = vsub.s32 0, %v2707
  %v2709 = vrot.slane %v2704, %v2708
  %v2711 = vadd.f32 %v2688, %v2709
  %v2712 = vadd.f32 %v2689, %v2709
  %v2713 = vadd.f32 %v2690, %v2709
  %v2714 = vadd.f32 %v2691, %v2709
  %v2715 = vadd.f32 %v2692, %v2709
  %v2716 = vadd.f32 %v2693, %v2709
  %v2717 = vadd.f32 %v2694, %v2709
  %v2718 = vadd.f32 %v2695, %v2709
  %v2719 = vadd.f32 %v2696, %v2709
  %v2720 = vadd.f32 %v2697, %v2709
  %v2721 = vadd.f32 %v2698, %v2709
  %v2722 = vadd.f32 %v2699, %v2709
  %v2723 = vadd.f32 %v2700, %v2709
  %v2724 = vadd.f32 %v2701, %v2709
  %v2725 = vadd.f32 %v2702, %v2709
  %v2726 = vadd.f32 %v2703, %v2709
  %vm2727 = vcmp.gt.f32.partialorder %v2711, 0.0
  %vm2728 = vcmp.gt.f32.partialorder %v2712, 0.0
  %vm2729 = vcmp.gt.f32.partialorder %v2713, 0.0
  %vm2730 = vcmp.gt.f32.partialorder %v2714, 0.0
  %vm2731 = vcmp.gt.f32.partialorder %v2715, 0.0
  %vm2732 = vcmp.gt.f32.partialorder %v2716, 0.0
  %vm2733 = vcmp.gt.f32.partialorder %v2717, 0.0
  %vm2734 = vcmp.gt.f32.partialorder %v2718, 0.0
  %vm2735 = vcmp.gt.f32.partialorder %v2719, 0.0
  %vm2736 = vcmp.gt.f32.partialorder %v2720, 0.0
  %vm2737 = vcmp.gt.f32.partialorder %v2721, 0.0
  %vm2738 = vcmp.gt.f32.partialorder %v2722, 0.0
  %vm2739 = vcmp.gt.f32.partialorder %v2723, 0.0
  %vm2740 = vcmp.gt.f32.partialorder %v2724, 0.0
  %vm2741 = vcmp.gt.f32.partialorder %v2725, 0.0
  %vm2742 = vcmp.gt.f32.partialorder %v2726, 0.0
  %v2743 = vmul.f32 %v2711, 0.2
  %v2744 = vmul.f32 %v2712, 0.2
  %v2745 = vmul.f32 %v2713, 0.2
  %v2746 = vmul.f32 %v2714, 0.2
  %v2747 = vmul.f32 %v2715, 0.2
  %v2748 = vmul.f32 %v2716, 0.2
  %v2749 = vmul.f32 %v2717, 0.2
  %v2750 = vmul.f32 %v2718, 0.2
  %v2751 = vmul.f32 %v2719, 0.2
  %v2752 = vmul.f32 %v2720, 0.2
  %v2753 = vmul.f32 %v2721, 0.2
  %v2754 = vmul.f32 %v2722, 0.2
  %v2755 = vmul.f32 %v2723, 0.2
  %v2756 = vmul.f32 %v2724, 0.2
  %v2757 = vmul.f32 %v2725, 0.2
  %v2758 = vmul.f32 %v2726, 0.2
  %v2759 = vsel %vm2727, %v2711, %v2743
  %v2760 = vsel %vm2728, %v2712, %v2744
  %v2761 = vsel %vm2729, %v2713, %v2745
  %v2762 = vsel %vm2730, %v2714, %v2746
  %v2763 = vsel %vm2731, %v2715, %v2747
  %v2764 = vsel %vm2732, %v2716, %v2748
  %v2765 = vsel %vm2733, %v2717, %v2749
  %v2766 = vsel %vm2734, %v2718, %v2750
  %v2767 = vsel %vm2735, %v2719, %v2751
  %v2768 = vsel %vm2736, %v2720, %v2752
  %v2769 = vsel %vm2737, %v2721, %v2753
  %v2770 = vsel %vm2738, %v2722, %v2754
  %v2771 = vsel %vm2739, %v2723, %v2755
  %v2772 = vsel %vm2740, %v2724, %v2756
  %v2773 = vsel %vm2741, %v2725, %v2757
  %v2774 = vsel %vm2742, %v2726, %v2758
  %v2775 = vpack.c.bf16 %v2760, %v2759
  %v2776 = vpack.c.bf16 %v2762, %v2761
  %v2777 = vpack.c.bf16 %v2764, %v2763
  %v2778 = vpack.c.bf16 %v2766, %v2765
  %v2779 = vpack.c.bf16 %v2768, %v2767
  %v2780 = vpack.c.bf16 %v2770, %v2769
  %v2781 = vpack.c.bf16 %v2772, %v2771
  %v2782 = vpack.c.bf16 %v2774, %v2773
  %v2791 = vunpack.c.l.b16 %v2775
  %v2792 = vunpack.c.h.b16 %v2775
  %v2793 = vunpack.c.l.b16 %v2776
  %v2794 = vunpack.c.h.b16 %v2776
  %v2795 = vunpack.c.l.b16 %v2777
  %v2796 = vunpack.c.h.b16 %v2777
  %v2797 = vunpack.c.l.b16 %v2778
  %v2798 = vunpack.c.h.b16 %v2778
  %v2799 = vunpack.c.l.b16 %v2779
  %v2800 = vunpack.c.h.b16 %v2779
  %v2801 = vunpack.c.l.b16 %v2780
  %v2802 = vunpack.c.h.b16 %v2780
  %v2803 = vunpack.c.l.b16 %v2781
  %v2804 = vunpack.c.h.b16 %v2781
  %v2805 = vunpack.c.l.b16 %v2782
  %v2806 = vunpack.c.h.b16 %v2782
  %v2807 = vpack.c.b16 %v2791, %v2791
  %v2808 = vpack.c.b16 %v2792, %v2792
  %v2809 = vpack.c.b16 %v2793, %v2793
  %v2810 = vpack.c.b16 %v2794, %v2794
  %v2811 = vpack.c.b16 %v2795, %v2795
  %v2812 = vpack.c.b16 %v2796, %v2796
  %v2813 = vpack.c.b16 %v2797, %v2797
  %v2814 = vpack.c.b16 %v2798, %v2798
  %v2815 = vpack.c.b16 %v2799, %v2799
  %v2816 = vpack.c.b16 %v2800, %v2800
  %v2817 = vpack.c.b16 %v2801, %v2801
  %v2818 = vpack.c.b16 %v2802, %v2802
  %v2819 = vpack.c.b16 %v2803, %v2803
  %v2820 = vpack.c.b16 %v2804, %v2804
  %v2821 = vpack.c.b16 %v2805, %v2805
  %v2822 = vpack.c.b16 %v2806, %v2806
  %2839 = vst [vmem:[%s4] sm:$0xf] %v2807
  %2840 = vst [vmem:[%s4 + $0x4] sm:$0xf] %v2808
  %2841 = vst [vmem:[%s4 + $0x8] sm:$0xf] %v2809
  %2842 = vst [vmem:[%s4 + $0xc] sm:$0xf] %v2810
  %2843 = vst [vmem:[%s4 + $0x10] sm:$0xf] %v2811
  %2844 = vst [vmem:[%s4 + $0x14] sm:$0xf] %v2812
  %2845 = vst [vmem:[%s4 + $0x18] sm:$0xf] %v2813
  %2846 = vst [vmem:[%s4 + $0x1c] sm:$0xf] %v2814
  %2847 = vst [vmem:[%s4 + $0x20] sm:$0xf] %v2815
  %2848 = vst [vmem:[%s4 + $0x24] sm:$0xf] %v2816
  %2849 = vst [vmem:[%s4 + $0x28] sm:$0xf] %v2817
  %2850 = vst [vmem:[%s4 + $0x2c] sm:$0xf] %v2818
  %2851 = vst [vmem:[%s4 + $0x30] sm:$0xf] %v2819
  %2852 = vst [vmem:[%s4 + $0x34] sm:$0xf] %v2820
  %2853 = vst [vmem:[%s4 + $0x38] sm:$0xf] %v2821
  %2854 = vst [vmem:[%s4 + $0x3c] sm:$0xf] %v2822
  // Predicated region
  $region18: #{netd_forward.7} parent=0 // pred_check
    _
  $region19: #{netd_forward.7} parent=0 // pred_check_branch
    %2856 = sbr.rel (0) target = $region21
  $region20: #{netd_forward.7} parent=0 // pred_region
    _
  $region21: #{netd_forward.7} parent=0 // pred_fallthru
    _
  // Predicated region
  $region22: #{netd_forward.7} parent=0 // pred_check
    _
  $region23: #{netd_forward.7} parent=0 // pred_check_branch
    %2858 = sbr.rel (0) target = $region25
  $region24: #{netd_forward.7} parent=0 // pred_region
    _
  $region25: #{netd_forward.7} parent=0 // pred_fallthru
    _

// kernel: netd_forward.8
$region0: #{netd_forward.8}
  #allocation0 [shape = 'u32[]', space=smem, size = 0x4, offset = 0x4, fixed_abs, tag = 'smem constant byte address 0x4 - core index']
  #allocation1 [shape = 'u32[144,128]{1,0:T(1,128)}', space=vmem, size = 0x12000, scoped, tag = 'internal scratch']
  %s0 = inlined_call_operand.vmem [shape: bf16[32,2048], index: 0, kind: input, shape index: {}]
  %s1 = inlined_call_operand.vmem [shape: bf16[2048,128], index: 1, kind: input, shape index: {}]
  %s2 = inlined_call_operand.vmem [shape: f32[1,128], index: 2, kind: input, shape index: {}]
  %s3 = inlined_call_operand.vmem [shape: f32[1,128], index: 3, kind: input, shape index: {}]
  %s4 = inlined_call_operand.vmem [shape: bf16[32,128], index: 4, kind: output, shape index: {}]
  %s5 = sld [smem:[#allocation0]]
  $region26: #{netd_forward.8} parent=0
    _
  %s7 = ssub.s32 1, %s5
  %s8 = scalar_select 0, %s7, %s5
  // Predicated region
  $region2: #{netd_forward.8} parent=0 // pred_check
    _
  $region3: #{netd_forward.8} parent=0 // pred_check_branch
    %10 = sbr.rel (0) target = $region5
  $region4: #{netd_forward.8} parent=0 // pred_region
    _
  $region5: #{netd_forward.8} parent=0 // pred_fallthru
    _
  // Predicated region
  $region6: #{netd_forward.8} parent=0 // pred_check
    _
  $region7: #{netd_forward.8} parent=0 // pred_check_branch
    %12 = sbr.rel (0) target = $region9
  $region8: #{netd_forward.8} parent=0 // pred_region
    _
  $region9: #{netd_forward.8} parent=0 // pred_fallthru
    _
  // Predicated region
  $region10: #{netd_forward.8} parent=0 // pred_check
    _
  $region11: #{netd_forward.8} parent=0 // pred_check_branch
    %14 = sbr.rel (0) target = $region13
  $region12: #{netd_forward.8} parent=0 // pred_region
    _
  $region13: #{netd_forward.8} parent=0 // pred_fallthru
    _
  // Predicated region
  $region14: #{netd_forward.8} parent=0 // pred_check
    _
  $region15: #{netd_forward.8} parent=0 // pred_check_branch
    %16 = sbr.rel (0) target = $region17
  $region16: #{netd_forward.8} parent=0 // pred_region
    _
  $region17: #{netd_forward.8} parent=0 // pred_fallthru
    _
  %v18 = vld [vmem:[%s0] sm:$0xff]
  %v19 = vld [vmem:[%s0 + $0x8] sm:$0xff]
  %v20 = vld [vmem:[%s0 + $0x10] sm:$0xff]
  %v21 = vld [vmem:[%s0 + $0x18] sm:$0xff]
  %v22 = vld [vmem:[%s0 + $0x20] sm:$0xff]
  %v23 = vld [vmem:[%s0 + $0x28] sm:$0xff]
  %v24 = vld [vmem:[%s0 + $0x30] sm:$0xff]
  %v25 = vld [vmem:[%s0 + $0x38] sm:$0xff]
  %v26 = vld [vmem:[%s0 + $0x40] sm:$0xff]
  %v27 = vld [vmem:[%s0 + $0x48] sm:$0xff]
  %v28 = vld [vmem:[%s0 + $0x50] sm:$0xff]
  %v29 = vld [vmem:[%s0 + $0x58] sm:$0xff]
  %v30 = vld [vmem:[%s0 + $0x60] sm:$0xff]
  %v31 = vld [vmem:[%s0 + $0x68] sm:$0xff]
  %v32 = vld [vmem:[%s0 + $0x70] sm:$0xff]
  %v33 = vld [vmem:[%s0 + $0x78] sm:$0xff]
  %v34 = vld [vmem:[%s0 + $0x80] sm:$0xff]
  %v35 = vld [vmem:[%s0 + $0x88] sm:$0xff]
  %v36 = vld [vmem:[%s0 + $0x90] sm:$0xff]
  %v37 = vld [vmem:[%s0 + $0x98] sm:$0xff]
  %v38 = vld [vmem:[%s0 + $0xa0] sm:$0xff]
  %v39 = vld [vmem:[%s0 + $0xa8] sm:$0xff]
  %v40 = vld [vmem:[%s0 + $0xb0] sm:$0xff]
  %v41 = vld [vmem:[%s0 + $0xb8] sm:$0xff]
  %v42 = vld [vmem:[%s0 + $0xc0] sm:$0xff]
  %v43 = vld [vmem:[%s0 + $0xc8] sm:$0xff]
  %v44 = vld [vmem:[%s0 + $0xd0] sm:$0xff]
  %v45 = vld [vmem:[%s0 + $0xd8] sm:$0xff]
  %v46 = vld [vmem:[%s0 + $0xe0] sm:$0xff]
  %v47 = vld [vmem:[%s0 + $0xe8] sm:$0xff]
  %v48 = vld [vmem:[%s0 + $0xf0] sm:$0xff]
  %v49 = vld [vmem:[%s0 + $0xf8] sm:$0xff]
  %v50 = vld [vmem:[%s1] sm:$0xf]
  %v51 = vld [vmem:[%s1 + $0x4] sm:$0xf]
  %v52 = vld [vmem:[%s1 + $0x8] sm:$0xf]
  %v53 = vld [vmem:[%s1 + $0xc] sm:$0xf]
  %v54 = vld [vmem:[%s1 + $0x10] sm:$0xf]
  %v55 = vld [vmem:[%s1 + $0x14] sm:$0xf]
  %v56 = vld [vmem:[%s1 + $0x18] sm:$0xf]
  %v57 = vld [vmem:[%s1 + $0x1c] sm:$0xf]
  %v58 = vld [vmem:[%s1 + $0x20] sm:$0xf]
  %v59 = vld [vmem:[%s1 + $0x24] sm:$0xf]
  %v60 = vld [vmem:[%s1 + $0x28] sm:$0xf]
  %v61 = vld [vmem:[%s1 + $0x2c] sm:$0xf]
  %v62 = vld [vmem:[%s1 + $0x30] sm:$0xf]
  %v63 = vld [vmem:[%s1 + $0x34] sm:$0xf]
  %v64 = vld [vmem:[%s1 + $0x38] sm:$0xf]
  %v65 = vld [vmem:[%s1 + $0x3c] sm:$0xf]
  %v66 = vld [vmem:[%s1 + $0x40] sm:$0xf]
  %v67 = vld [vmem:[%s1 + $0x44] sm:$0xf]
  %v68 = vld [vmem:[%s1 + $0x48] sm:$0xf]
  %v69 = vld [vmem:[%s1 + $0x4c] sm:$0xf]
  %v70 = vld [vmem:[%s1 + $0x50] sm:$0xf]
  %v71 = vld [vmem:[%s1 + $0x54] sm:$0xf]
  %v72 = vld [vmem:[%s1 + $0x58] sm:$0xf]
  %v73 = vld [vmem:[%s1 + $0x5c] sm:$0xf]
  %v74 = vld [vmem:[%s1 + $0x60] sm:$0xf]
  %v75 = vld [vmem:[%s1 + $0x64] sm:$0xf]
  %v76 = vld [vmem:[%s1 + $0x68] sm:$0xf]
  %v77 = vld [vmem:[%s1 + $0x6c] sm:$0xf]
  %v78 = vld [vmem:[%s1 + $0x70] sm:$0xf]
  %v79 = vld [vmem:[%s1 + $0x74] sm:$0xf]
  %v80 = vld [vmem:[%s1 + $0x78] sm:$0xf]
  %v81 = vld [vmem:[%s1 + $0x7c] sm:$0xf]
  %v82 = vld [vmem:[%s1 + $0x80] sm:$0xf]
  %v83 = vld [vmem:[%s1 + $0x84] sm:$0xf]
  %v84 = vld [vmem:[%s1 + $0x88] sm:$0xf]
  %v85 = vld [vmem:[%s1 + $0x8c] sm:$0xf]
  %v86 = vld [vmem:[%s1 + $0x90] sm:$0xf]
  %v87 = vld [vmem:[%s1 + $0x94] sm:$0xf]
  %v88 = vld [vmem:[%s1 + $0x98] sm:$0xf]
  %v89 = vld [vmem:[%s1 + $0x9c] sm:$0xf]
  %v90 = vld [vmem:[%s1 + $0xa0] sm:$0xf]
  %v91 = vld [vmem:[%s1 + $0xa4] sm:$0xf]
  %v92 = vld [vmem:[%s1 + $0xa8] sm:$0xf]
  %v93 = vld [vmem:[%s1 + $0xac] sm:$0xf]
  %v94 = vld [vmem:[%s1 + $0xb0] sm:$0xf]
  %v95 = vld [vmem:[%s1 + $0xb4] sm:$0xf]
  %v96 = vld [vmem:[%s1 + $0xb8] sm:$0xf]
  %v97 = vld [vmem:[%s1 + $0xbc] sm:$0xf]
  %v98 = vld [vmem:[%s1 + $0xc0] sm:$0xf]
  %v99 = vld [vmem:[%s1 + $0xc4] sm:$0xf]
  %v100 = vld [vmem:[%s1 + $0xc8] sm:$0xf]
  %v101 = vld [vmem:[%s1 + $0xcc] sm:$0xf]
  %v102 = vld [vmem:[%s1 + $0xd0] sm:$0xf]
  %v103 = vld [vmem:[%s1 + $0xd4] sm:$0xf]
  %v104 = vld [vmem:[%s1 + $0xd8] sm:$0xf]
  %v105 = vld [vmem:[%s1 + $0xdc] sm:$0xf]
  %v106 = vld [vmem:[%s1 + $0xe0] sm:$0xf]
  %v107 = vld [vmem:[%s1 + $0xe4] sm:$0xf]
  %v108 = vld [vmem:[%s1 + $0xe8] sm:$0xf]
  %v109 = vld [vmem:[%s1 + $0xec] sm:$0xf]
  %v110 = vld [vmem:[%s1 + $0xf0] sm:$0xf]
  %v111 = vld [vmem:[%s1 + $0xf4] sm:$0xf]
  %v112 = vld [vmem:[%s1 + $0xf8] sm:$0xf]
  %v113 = vld [vmem:[%s1 + $0xfc] sm:$0xf]
  %v114 = vld [vmem:[%s1 + $0x100] sm:$0xf]
  %v115 = vld [vmem:[%s1 + $0x104] sm:$0xf]
  %v116 = vld [vmem:[%s1 + $0x108] sm:$0xf]
  %v117 = vld [vmem:[%s1 + $0x10c] sm:$0xf]
  %v118 = vld [vmem:[%s1 + $0x110] sm:$0xf]
  %v119 = vld [vmem:[%s1 + $0x114] sm:$0xf]
  %v120 = vld [vmem:[%s1 + $0x118] sm:$0xf]
  %v121 = vld [vmem:[%s1 + $0x11c] sm:$0xf]
  %v122 = vld [vmem:[%s1 + $0x120] sm:$0xf]
  %v123 = vld [vmem:[%s1 + $0x124] sm:$0xf]
  %v124 = vld [vmem:[%s1 + $0x128] sm:$0xf]
  %v125 = vld [vmem:[%s1 + $0x12c] sm:$0xf]
  %v126 = vld [vmem:[%s1 + $0x130] sm:$0xf]
  %v127 = vld [vmem:[%s1 + $0x134] sm:$0xf]
  %v128 = vld [vmem:[%s1 + $0x138] sm:$0xf]
  %v129 = vld [vmem:[%s1 + $0x13c] sm:$0xf]
  %v130 = vld [vmem:[%s1 + $0x140] sm:$0xf]
  %v131 = vld [vmem:[%s1 + $0x144] sm:$0xf]
  %v132 = vld [vmem:[%s1 + $0x148] sm:$0xf]
  %v133 = vld [vmem:[%s1 + $0x14c] sm:$0xf]
  %v134 = vld [vmem:[%s1 + $0x150] sm:$0xf]
  %v135 = vld [vmem:[%s1 + $0x154] sm:$0xf]
  %v136 = vld [vmem:[%s1 + $0x158] sm:$0xf]
  %v137 = vld [vmem:[%s1 + $0x15c] sm:$0xf]
  %v138 = vld [vmem:[%s1 + $0x160] sm:$0xf]
  %v139 = vld [vmem:[%s1 + $0x164] sm:$0xf]
  %v140 = vld [vmem:[%s1 + $0x168] sm:$0xf]
  %v141 = vld [vmem:[%s1 + $0x16c] sm:$0xf]
  %v142 = vld [vmem:[%s1 + $0x170] sm:$0xf]
  %v143 = vld [vmem:[%s1 + $0x174] sm:$0xf]
  %v144 = vld [vmem:[%s1 + $0x178] sm:$0xf]
  %v145 = vld [vmem:[%s1 + $0x17c] sm:$0xf]
  %v146 = vld [vmem:[%s1 + $0x180] sm:$0xf]
  %v147 = vld [vmem:[%s1 + $0x184] sm:$0xf]
  %v148 = vld [vmem:[%s1 + $0x188] sm:$0xf]
  %v149 = vld [vmem:[%s1 + $0x18c] sm:$0xf]
  %v150 = vld [vmem:[%s1 + $0x190] sm:$0xf]
  %v151 = vld [vmem:[%s1 + $0x194] sm:$0xf]
  %v152 = vld [vmem:[%s1 + $0x198] sm:$0xf]
  %v153 = vld [vmem:[%s1 + $0x19c] sm:$0xf]
  %v154 = vld [vmem:[%s1 + $0x1a0] sm:$0xf]
  %v155 = vld [vmem:[%s1 + $0x1a4] sm:$0xf]
  %v156 = vld [vmem:[%s1 + $0x1a8] sm:$0xf]
  %v157 = vld [vmem:[%s1 + $0x1ac] sm:$0xf]
  %v158 = vld [vmem:[%s1 + $0x1b0] sm:$0xf]
  %v159 = vld [vmem:[%s1 + $0x1b4] sm:$0xf]
  %v160 = vld [vmem:[%s1 + $0x1b8] sm:$0xf]
  %v161 = vld [vmem:[%s1 + $0x1bc] sm:$0xf]
  %v162 = vld [vmem:[%s1 + $0x1c0] sm:$0xf]
  %v163 = vld [vmem:[%s1 + $0x1c4] sm:$0xf]
  %v164 = vld [vmem:[%s1 + $0x1c8] sm:$0xf]
  %v165 = vld [vmem:[%s1 + $0x1cc] sm:$0xf]
  %v166 = vld [vmem:[%s1 + $0x1d0] sm:$0xf]
  %v167 = vld [vmem:[%s1 + $0x1d4] sm:$0xf]
  %v168 = vld [vmem:[%s1 + $0x1d8] sm:$0xf]
  %v169 = vld [vmem:[%s1 + $0x1dc] sm:$0xf]
  %v170 = vld [vmem:[%s1 + $0x1e0] sm:$0xf]
  %v171 = vld [vmem:[%s1 + $0x1e4] sm:$0xf]
  %v172 = vld [vmem:[%s1 + $0x1e8] sm:$0xf]
  %v173 = vld [vmem:[%s1 + $0x1ec] sm:$0xf]
  %v174 = vld [vmem:[%s1 + $0x1f0] sm:$0xf]
  %v175 = vld [vmem:[%s1 + $0x1f4] sm:$0xf]
  %v176 = vld [vmem:[%s1 + $0x1f8] sm:$0xf]
  %v177 = vld [vmem:[%s1 + $0x1fc] sm:$0xf]
  %v178 = vld [vmem:[%s1 + $0x200] sm:$0xf]
  %v179 = vld [vmem:[%s1 + $0x204] sm:$0xf]
  %v180 = vld [vmem:[%s1 + $0x208] sm:$0xf]
  %v181 = vld [vmem:[%s1 + $0x20c] sm:$0xf]
  %v182 = vld [vmem:[%s1 + $0x210] sm:$0xf]
  %v183 = vld [vmem:[%s1 + $0x214] sm:$0xf]
  %v184 = vld [vmem:[%s1 + $0x218] sm:$0xf]
  %v185 = vld [vmem:[%s1 + $0x21c] sm:$0xf]
  %v186 = vld [vmem:[%s1 + $0x220] sm:$0xf]
  %v187 = vld [vmem:[%s1 + $0x224] sm:$0xf]
  %v188 = vld [vmem:[%s1 + $0x228] sm:$0xf]
  %v189 = vld [vmem:[%s1 + $0x22c] sm:$0xf]
  %v190 = vld [vmem:[%s1 + $0x230] sm:$0xf]
  %v191 = vld [vmem:[%s1 + $0x234] sm:$0xf]
  %v192 = vld [vmem:[%s1 + $0x238] sm:$0xf]
  %v193 = vld [vmem:[%s1 + $0x23c] sm:$0xf]
  %v194 = vld [vmem:[%s1 + $0x240] sm:$0xf]
  %v195 = vld [vmem:[%s1 + $0x244] sm:$0xf]
  %v196 = vld [vmem:[%s1 + $0x248] sm:$0xf]
  %v197 = vld [vmem:[%s1 + $0x24c] sm:$0xf]
  %v198 = vld [vmem:[%s1 + $0x250] sm:$0xf]
  %v199 = vld [vmem:[%s1 + $0x254] sm:$0xf]
  %v200 = vld [vmem:[%s1 + $0x258] sm:$0xf]
  %v201 = vld [vmem:[%s1 + $0x25c] sm:$0xf]
  %v202 = vld [vmem:[%s1 + $0x260] sm:$0xf]
  %v203 = vld [vmem:[%s1 + $0x264] sm:$0xf]
  %v204 = vld [vmem:[%s1 + $0x268] sm:$0xf]
  %v205 = vld [vmem:[%s1 + $0x26c] sm:$0xf]
  %v206 = vld [vmem:[%s1 + $0x270] sm:$0xf]
  %v207 = vld [vmem:[%s1 + $0x274] sm:$0xf]
  %v208 = vld [vmem:[%s1 + $0x278] sm:$0xf]
  %v209 = vld [vmem:[%s1 + $0x27c] sm:$0xf]
  %v210 = vld [vmem:[%s1 + $0x280] sm:$0xf]
  %v211 = vld [vmem:[%s1 + $0x284] sm:$0xf]
  %v212 = vld [vmem:[%s1 + $0x288] sm:$0xf]
  %v213 = vld [vmem:[%s1 + $0x28c] sm:$0xf]
  %v214 = vld [vmem:[%s1 + $0x290] sm:$0xf]
  %v215 = vld [vmem:[%s1 + $0x294] sm:$0xf]
  %v216 = vld [vmem:[%s1 + $0x298] sm:$0xf]
  %v217 = vld [vmem:[%s1 + $0x29c] sm:$0xf]
  %v218 = vld [vmem:[%s1 + $0x2a0] sm:$0xf]
  %v219 = vld [vmem:[%s1 + $0x2a4] sm:$0xf]
  %v220 = vld [vmem:[%s1 + $0x2a8] sm:$0xf]
  %v221 = vld [vmem:[%s1 + $0x2ac] sm:$0xf]
  %v222 = vld [vmem:[%s1 + $0x2b0] sm:$0xf]
  %v223 = vld [vmem:[%s1 + $0x2b4] sm:$0xf]
  %v224 = vld [vmem:[%s1 + $0x2b8] sm:$0xf]
  %v225 = vld [vmem:[%s1 + $0x2bc] sm:$0xf]
  %v226 = vld [vmem:[%s1 + $0x2c0] sm:$0xf]
  %v227 = vld [vmem:[%s1 + $0x2c4] sm:$0xf]
  %v228 = vld [vmem:[%s1 + $0x2c8] sm:$0xf]
  %v229 = vld [vmem:[%s1 + $0x2cc] sm:$0xf]
  %v230 = vld [vmem:[%s1 + $0x2d0] sm:$0xf]
  %v231 = vld [vmem:[%s1 + $0x2d4] sm:$0xf]
  %v232 = vld [vmem:[%s1 + $0x2d8] sm:$0xf]
  %v233 = vld [vmem:[%s1 + $0x2dc] sm:$0xf]
  %v234 = vld [vmem:[%s1 + $0x2e0] sm:$0xf]
  %v235 = vld [vmem:[%s1 + $0x2e4] sm:$0xf]
  %v236 = vld [vmem:[%s1 + $0x2e8] sm:$0xf]
  %v237 = vld [vmem:[%s1 + $0x2ec] sm:$0xf]
  %v238 = vld [vmem:[%s1 + $0x2f0] sm:$0xf]
  %v239 = vld [vmem:[%s1 + $0x2f4] sm:$0xf]
  %v240 = vld [vmem:[%s1 + $0x2f8] sm:$0xf]
  %v241 = vld [vmem:[%s1 + $0x2fc] sm:$0xf]
  %v242 = vld [vmem:[%s1 + $0x300] sm:$0xf]
  %v243 = vld [vmem:[%s1 + $0x304] sm:$0xf]
  %v244 = vld [vmem:[%s1 + $0x308] sm:$0xf]
  %v245 = vld [vmem:[%s1 + $0x30c] sm:$0xf]
  %v246 = vld [vmem:[%s1 + $0x310] sm:$0xf]
  %v247 = vld [vmem:[%s1 + $0x314] sm:$0xf]
  %v248 = vld [vmem:[%s1 + $0x318] sm:$0xf]
  %v249 = vld [vmem:[%s1 + $0x31c] sm:$0xf]
  %v250 = vld [vmem:[%s1 + $0x320] sm:$0xf]
  %v251 = vld [vmem:[%s1 + $0x324] sm:$0xf]
  %v252 = vld [vmem:[%s1 + $0x328] sm:$0xf]
  %v253 = vld [vmem:[%s1 + $0x32c] sm:$0xf]
  %v254 = vld [vmem:[%s1 + $0x330] sm:$0xf]
  %v255 = vld [vmem:[%s1 + $0x334] sm:$0xf]
  %v256 = vld [vmem:[%s1 + $0x338] sm:$0xf]
  %v257 = vld [vmem:[%s1 + $0x33c] sm:$0xf]
  %v258 = vld [vmem:[%s1 + $0x340] sm:$0xf]
  %v259 = vld [vmem:[%s1 + $0x344] sm:$0xf]
  %v260 = vld [vmem:[%s1 + $0x348] sm:$0xf]
  %v261 = vld [vmem:[%s1 + $0x34c] sm:$0xf]
  %v262 = vld [vmem:[%s1 + $0x350] sm:$0xf]
  %v263 = vld [vmem:[%s1 + $0x354] sm:$0xf]
  %v264 = vld [vmem:[%s1 + $0x358] sm:$0xf]
  %v265 = vld [vmem:[%s1 + $0x35c] sm:$0xf]
  %v266 = vld [vmem:[%s1 + $0x360] sm:$0xf]
  %v267 = vld [vmem:[%s1 + $0x364] sm:$0xf]
  %v268 = vld [vmem:[%s1 + $0x368] sm:$0xf]
  %v269 = vld [vmem:[%s1 + $0x36c] sm:$0xf]
  %v270 = vld [vmem:[%s1 + $0x370] sm:$0xf]
  %v271 = vld [vmem:[%s1 + $0x374] sm:$0xf]
  %v272 = vld [vmem:[%s1 + $0x378] sm:$0xf]
  %v273 = vld [vmem:[%s1 + $0x37c] sm:$0xf]
  %v274 = vld [vmem:[%s1 + $0x380] sm:$0xf]
  %v275 = vld [vmem:[%s1 + $0x384] sm:$0xf]
  %v276 = vld [vmem:[%s1 + $0x388] sm:$0xf]
  %v277 = vld [vmem:[%s1 + $0x38c] sm:$0xf]
  %v278 = vld [vmem:[%s1 + $0x390] sm:$0xf]
  %v279 = vld [vmem:[%s1 + $0x394] sm:$0xf]
  %v280 = vld [vmem:[%s1 + $0x398] sm:$0xf]
  %v281 = vld [vmem:[%s1 + $0x39c] sm:$0xf]
  %v282 = vld [vmem:[%s1 + $0x3a0] sm:$0xf]
  %v283 = vld [vmem:[%s1 + $0x3a4] sm:$0xf]
  %v284 = vld [vmem:[%s1 + $0x3a8] sm:$0xf]
  %v285 = vld [vmem:[%s1 + $0x3ac] sm:$0xf]
  %v286 = vld [vmem:[%s1 + $0x3b0] sm:$0xf]
  %v287 = vld [vmem:[%s1 + $0x3b4] sm:$0xf]
  %v288 = vld [vmem:[%s1 + $0x3b8] sm:$0xf]
  %v289 = vld [vmem:[%s1 + $0x3bc] sm:$0xf]
  %v290 = vld [vmem:[%s1 + $0x3c0] sm:$0xf]
  %v291 = vld [vmem:[%s1 + $0x3c4] sm:$0xf]
  %v292 = vld [vmem:[%s1 + $0x3c8] sm:$0xf]
  %v293 = vld [vmem:[%s1 + $0x3cc] sm:$0xf]
  %v294 = vld [vmem:[%s1 + $0x3d0] sm:$0xf]
  %v295 = vld [vmem:[%s1 + $0x3d4] sm:$0xf]
  %v296 = vld [vmem:[%s1 + $0x3d8] sm:$0xf]
  %v297 = vld [vmem:[%s1 + $0x3dc] sm:$0xf]
  %v298 = vld [vmem:[%s1 + $0x3e0] sm:$0xf]
  %v299 = vld [vmem:[%s1 + $0x3e4] sm:$0xf]
  %v300 = vld [vmem:[%s1 + $0x3e8] sm:$0xf]
  %v301 = vld [vmem:[%s1 + $0x3ec] sm:$0xf]
  %v302 = vld [vmem:[%s1 + $0x3f0] sm:$0xf]
  %v303 = vld [vmem:[%s1 + $0x3f4] sm:$0xf]
  %v304 = vld [vmem:[%s1 + $0x3f8] sm:$0xf]
  %v305 = vld [vmem:[%s1 + $0x3fc] sm:$0xf]
  %v338 = vunpack.c.l.b16 %v18
  %v339 = vunpack.c.h.b16 %v18
  %v340 = vunpack.c.l.b16 %v19
  %v341 = vunpack.c.h.b16 %v19
  %v342 = vunpack.c.l.b16 %v20
  %v343 = vunpack.c.h.b16 %v20
  %v344 = vunpack.c.l.b16 %v21
  %v345 = vunpack.c.h.b16 %v21
  %v346 = vunpack.c.l.b16 %v22
  %v347 = vunpack.c.h.b16 %v22
  %v348 = vunpack.c.l.b16 %v23
  %v349 = vunpack.c.h.b16 %v23
  %v350 = vunpack.c.l.b16 %v24
  %v351 = vunpack.c.h.b16 %v24
  %v352 = vunpack.c.l.b16 %v25
  %v353 = vunpack.c.h.b16 %v25
  %v354 = vunpack.c.l.b16 %v26
  %v355 = vunpack.c.h.b16 %v26
  %v356 = vunpack.c.l.b16 %v27
  %v357 = vunpack.c.h.b16 %v27
  %v358 = vunpack.c.l.b16 %v28
  %v359 = vunpack.c.h.b16 %v28
  %v360 = vunpack.c.l.b16 %v29
  %v361 = vunpack.c.h.b16 %v29
  %v362 = vunpack.c.l.b16 %v30
  %v363 = vunpack.c.h.b16 %v30
  %v364 = vunpack.c.l.b16 %v31
  %v365 = vunpack.c.h.b16 %v31
  %v366 = vunpack.c.l.b16 %v32
  %v367 = vunpack.c.h.b16 %v32
  %v368 = vunpack.c.l.b16 %v33
  %v369 = vunpack.c.h.b16 %v33
  %v370 = vunpack.c.l.b16 %v34
  %v371 = vunpack.c.h.b16 %v34
  %v372 = vunpack.c.l.b16 %v35
  %v373 = vunpack.c.h.b16 %v35
  %v374 = vunpack.c.l.b16 %v36
  %v375 = vunpack.c.h.b16 %v36
  %v376 = vunpack.c.l.b16 %v37
  %v377 = vunpack.c.h.b16 %v37
  %v378 = vunpack.c.l.b16 %v38
  %v379 = vunpack.c.h.b16 %v38
  %v380 = vunpack.c.l.b16 %v39
  %v381 = vunpack.c.h.b16 %v39
  %v382 = vunpack.c.l.b16 %v40
  %v383 = vunpack.c.h.b16 %v40
  %v384 = vunpack.c.l.b16 %v41
  %v385 = vunpack.c.h.b16 %v41
  %v386 = vunpack.c.l.b16 %v42
  %v387 = vunpack.c.h.b16 %v42
  %v388 = vunpack.c.l.b16 %v43
  %v389 = vunpack.c.h.b16 %v43
  %v390 = vunpack.c.l.b16 %v44
  %v391 = vunpack.c.h.b16 %v44
  %v392 = vunpack.c.l.b16 %v45
  %v393 = vunpack.c.h.b16 %v45
  %v394 = vunpack.c.l.b16 %v46
  %v395 = vunpack.c.h.b16 %v46
  %v396 = vunpack.c.l.b16 %v47
  %v397 = vunpack.c.h.b16 %v47
  %v398 = vunpack.c.l.b16 %v48
  %v399 = vunpack.c.h.b16 %v48
  %v400 = vunpack.c.l.b16 %v49
  %v401 = vunpack.c.h.b16 %v49
  %v402 = vpack.c.b16 %v354, %v338
  %v403 = vpack.c.b16 %v355, %v339
  %v404 = vpack.c.b16 %v356, %v340
  %v405 = vpack.c.b16 %v357, %v341
  %v406 = vpack.c.b16 %v358, %v342
  %v407 = vpack.c.b16 %v359, %v343
  %v408 = vpack.c.b16 %v360, %v344
  %v409 = vpack.c.b16 %v361, %v345
  %v410 = vpack.c.b16 %v362, %v346
  %v411 = vpack.c.b16 %v363, %v347
  %v412 = vpack.c.b16 %v364, %v348
  %v413 = vpack.c.b16 %v365, %v349
  %v414 = vpack.c.b16 %v366, %v350
  %v415 = vpack.c.b16 %v367, %v351
  %v416 = vpack.c.b16 %v368, %v352
  %v417 = vpack.c.b16 %v369, %v353
  %v418 = vpack.c.b16 %v386, %v370
  %v419 = vpack.c.b16 %v387, %v371
  %v420 = vpack.c.b16 %v388, %v372
  %v421 = vpack.c.b16 %v389, %v373
  %v422 = vpack.c.b16 %v390, %v374
  %v423 = vpack.c.b16 %v391, %v375
  %v424 = vpack.c.b16 %v392, %v376
  %v425 = vpack.c.b16 %v393, %v377
  %v426 = vpack.c.b16 %v394, %v378
  %v427 = vpack.c.b16 %v395, %v379
  %v428 = vpack.c.b16 %v396, %v380
  %v429 = vpack.c.b16 %v397, %v381
  %v430 = vpack.c.b16 %v398, %v382
  %v431 = vpack.c.b16 %v399, %v383
  %v432 = vpack.c.b16 %v400, %v384
  %v433 = vpack.c.b16 %v401, %v385
  %v722 = vunpack.c.l.b16 %v50
  %v723 = vunpack.c.l.b16 %v51
  %v724 = vunpack.c.l.b16 %v52
  %v725 = vunpack.c.l.b16 %v53
  %v726 = vunpack.c.l.b16 %v54
  %v727 = vunpack.c.l.b16 %v55
  %v728 = vunpack.c.l.b16 %v56
  %v729 = vunpack.c.l.b16 %v57
  %v730 = vunpack.c.l.b16 %v58
  %v731 = vunpack.c.l.b16 %v59
  %v732 = vunpack.c.l.b16 %v60
  %v733 = vunpack.c.l.b16 %v61
  %v734 = vunpack.c.l.b16 %v62
  %v735 = vunpack.c.l.b16 %v63
  %v736 = vunpack.c.l.b16 %v64
  %v737 = vunpack.c.l.b16 %v65
  %v738 = vunpack.c.l.b16 %v66
  %v739 = vunpack.c.l.b16 %v67
  %v740 = vunpack.c.l.b16 %v68
  %v741 = vunpack.c.l.b16 %v69
  %v742 = vunpack.c.l.b16 %v70
  %v743 = vunpack.c.l.b16 %v71
  %v744 = vunpack.c.l.b16 %v72
  %v745 = vunpack.c.l.b16 %v73
  %v746 = vunpack.c.l.b16 %v74
  %v747 = vunpack.c.l.b16 %v75
  %v748 = vunpack.c.l.b16 %v76
  %v749 = vunpack.c.l.b16 %v77
  %v750 = vunpack.c.l.b16 %v78
  %v751 = vunpack.c.l.b16 %v79
  %v752 = vunpack.c.l.b16 %v80
  %v753 = vunpack.c.l.b16 %v81
  %v754 = vunpack.c.l.b16 %v82
  %v755 = vunpack.c.l.b16 %v83
  %v756 = vunpack.c.l.b16 %v84
  %v757 = vunpack.c.l.b16 %v85
  %v758 = vunpack.c.l.b16 %v86
  %v759 = vunpack.c.l.b16 %v87
  %v760 = vunpack.c.l.b16 %v88
  %v761 = vunpack.c.l.b16 %v89
  %v762 = vunpack.c.l.b16 %v90
  %v763 = vunpack.c.l.b16 %v91
  %v764 = vunpack.c.l.b16 %v92
  %v765 = vunpack.c.l.b16 %v93
  %v766 = vunpack.c.l.b16 %v94
  %v767 = vunpack.c.l.b16 %v95
  %v768 = vunpack.c.l.b16 %v96
  %v769 = vunpack.c.l.b16 %v97
  %v770 = vunpack.c.l.b16 %v98
  %v771 = vunpack.c.l.b16 %v99
  %v772 = vunpack.c.l.b16 %v100
  %v773 = vunpack.c.l.b16 %v101
  %v774 = vunpack.c.l.b16 %v102
  %v775 = vunpack.c.l.b16 %v103
  %v776 = vunpack.c.l.b16 %v104
  %v777 = vunpack.c.l.b16 %v105
  %v778 = vunpack.c.l.b16 %v106
  %v779 = vunpack.c.l.b16 %v107
  %v780 = vunpack.c.l.b16 %v108
  %v781 = vunpack.c.l.b16 %v109
  %v782 = vunpack.c.l.b16 %v110
  %v783 = vunpack.c.l.b16 %v111
  %v784 = vunpack.c.l.b16 %v112
  %v785 = vunpack.c.l.b16 %v113
  %v786 = vunpack.c.l.b16 %v114
  %v787 = vunpack.c.l.b16 %v115
  %v788 = vunpack.c.l.b16 %v116
  %v789 = vunpack.c.l.b16 %v117
  %v790 = vunpack.c.l.b16 %v118
  %v791 = vunpack.c.l.b16 %v119
  %v792 = vunpack.c.l.b16 %v120
  %v793 = vunpack.c.l.b16 %v121
  %v794 = vunpack.c.l.b16 %v122
  %v795 = vunpack.c.l.b16 %v123
  %v796 = vunpack.c.l.b16 %v124
  %v797 = vunpack.c.l.b16 %v125
  %v798 = vunpack.c.l.b16 %v126
  %v799 = vunpack.c.l.b16 %v127
  %v800 = vunpack.c.l.b16 %v128
  %v801 = vunpack.c.l.b16 %v129
  %v802 = vunpack.c.l.b16 %v130
  %v803 = vunpack.c.l.b16 %v131
  %v804 = vunpack.c.l.b16 %v132
  %v805 = vunpack.c.l.b16 %v133
  %v806 = vunpack.c.l.b16 %v134
  %v807 = vunpack.c.l.b16 %v135
  %v808 = vunpack.c.l.b16 %v136
  %v809 = vunpack.c.l.b16 %v137
  %v810 = vunpack.c.l.b16 %v138
  %v811 = vunpack.c.l.b16 %v139
  %v812 = vunpack.c.l.b16 %v140
  %v813 = vunpack.c.l.b16 %v141
  %v814 = vunpack.c.l.b16 %v142
  %v815 = vunpack.c.l.b16 %v143
  %v816 = vunpack.c.l.b16 %v144
  %v817 = vunpack.c.l.b16 %v145
  %v818 = vunpack.c.l.b16 %v146
  %v819 = vunpack.c.l.b16 %v147
  %v820 = vunpack.c.l.b16 %v148
  %v821 = vunpack.c.l.b16 %v149
  %v822 = vunpack.c.l.b16 %v150
  %v823 = vunpack.c.l.b16 %v151
  %v824 = vunpack.c.l.b16 %v152
  %v825 = vunpack.c.l.b16 %v153
  %v826 = vunpack.c.l.b16 %v154
  %v827 = vunpack.c.l.b16 %v155
  %v828 = vunpack.c.l.b16 %v156
  %v829 = vunpack.c.l.b16 %v157
  %v830 = vunpack.c.l.b16 %v158
  %v831 = vunpack.c.l.b16 %v159
  %v832 = vunpack.c.l.b16 %v160
  %v833 = vunpack.c.l.b16 %v161
  %v834 = vunpack.c.l.b16 %v162
  %v835 = vunpack.c.l.b16 %v163
  %v836 = vunpack.c.l.b16 %v164
  %v837 = vunpack.c.l.b16 %v165
  %v838 = vunpack.c.l.b16 %v166
  %v839 = vunpack.c.l.b16 %v167
  %v840 = vunpack.c.l.b16 %v168
  %v841 = vunpack.c.l.b16 %v169
  %v842 = vunpack.c.l.b16 %v170
  %v843 = vunpack.c.l.b16 %v171
  %v844 = vunpack.c.l.b16 %v172
  %v845 = vunpack.c.l.b16 %v173
  %v846 = vunpack.c.l.b16 %v174
  %v847 = vunpack.c.l.b16 %v175
  %v848 = vunpack.c.l.b16 %v176
  %v849 = vunpack.c.l.b16 %v177
  %v850 = vunpack.c.l.b16 %v178
  %v851 = vunpack.c.l.b16 %v179
  %v852 = vunpack.c.l.b16 %v180
  %v853 = vunpack.c.l.b16 %v181
  %v854 = vunpack.c.l.b16 %v182
  %v855 = vunpack.c.l.b16 %v183
  %v856 = vunpack.c.l.b16 %v184
  %v857 = vunpack.c.l.b16 %v185
  %v858 = vunpack.c.l.b16 %v186
  %v859 = vunpack.c.l.b16 %v187
  %v860 = vunpack.c.l.b16 %v188
  %v861 = vunpack.c.l.b16 %v189
  %v862 = vunpack.c.l.b16 %v190
  %v863 = vunpack.c.l.b16 %v191
  %v864 = vunpack.c.l.b16 %v192
  %v865 = vunpack.c.l.b16 %v193
  %v866 = vunpack.c.l.b16 %v194
  %v867 = vunpack.c.l.b16 %v195
  %v868 = vunpack.c.l.b16 %v196
  %v869 = vunpack.c.l.b16 %v197
  %v870 = vunpack.c.l.b16 %v198
  %v871 = vunpack.c.l.b16 %v199
  %v872 = vunpack.c.l.b16 %v200
  %v873 = vunpack.c.l.b16 %v201
  %v874 = vunpack.c.l.b16 %v202
  %v875 = vunpack.c.l.b16 %v203
  %v876 = vunpack.c.l.b16 %v204
  %v877 = vunpack.c.l.b16 %v205
  %v878 = vunpack.c.l.b16 %v206
  %v879 = vunpack.c.l.b16 %v207
  %v880 = vunpack.c.l.b16 %v208
  %v881 = vunpack.c.l.b16 %v209
  %v882 = vunpack.c.l.b16 %v210
  %v883 = vunpack.c.l.b16 %v211
  %v884 = vunpack.c.l.b16 %v212
  %v885 = vunpack.c.l.b16 %v213
  %v886 = vunpack.c.l.b16 %v214
  %v887 = vunpack.c.l.b16 %v215
  %v888 = vunpack.c.l.b16 %v216
  %v889 = vunpack.c.l.b16 %v217
  %v890 = vunpack.c.l.b16 %v218
  %v891 = vunpack.c.l.b16 %v219
  %v892 = vunpack.c.l.b16 %v220
  %v893 = vunpack.c.l.b16 %v221
  %v894 = vunpack.c.l.b16 %v222
  %v895 = vunpack.c.l.b16 %v223
  %v896 = vunpack.c.l.b16 %v224
  %v897 = vunpack.c.l.b16 %v225
  %v898 = vunpack.c.l.b16 %v226
  %v899 = vunpack.c.l.b16 %v227
  %v900 = vunpack.c.l.b16 %v228
  %v901 = vunpack.c.l.b16 %v229
  %v902 = vunpack.c.l.b16 %v230
  %v903 = vunpack.c.l.b16 %v231
  %v904 = vunpack.c.l.b16 %v232
  %v905 = vunpack.c.l.b16 %v233
  %v906 = vunpack.c.l.b16 %v234
  %v907 = vunpack.c.l.b16 %v235
  %v908 = vunpack.c.l.b16 %v236
  %v909 = vunpack.c.l.b16 %v237
  %v910 = vunpack.c.l.b16 %v238
  %v911 = vunpack.c.l.b16 %v239
  %v912 = vunpack.c.l.b16 %v240
  %v913 = vunpack.c.l.b16 %v241
  %v914 = vunpack.c.l.b16 %v242
  %v915 = vunpack.c.l.b16 %v243
  %v916 = vunpack.c.l.b16 %v244
  %v917 = vunpack.c.l.b16 %v245
  %v918 = vunpack.c.l.b16 %v246
  %v919 = vunpack.c.l.b16 %v247
  %v920 = vunpack.c.l.b16 %v248
  %v921 = vunpack.c.l.b16 %v249
  %v922 = vunpack.c.l.b16 %v250
  %v923 = vunpack.c.l.b16 %v251
  %v924 = vunpack.c.l.b16 %v252
  %v925 = vunpack.c.l.b16 %v253
  %v926 = vunpack.c.l.b16 %v254
  %v927 = vunpack.c.l.b16 %v255
  %v928 = vunpack.c.l.b16 %v256
  %v929 = vunpack.c.l.b16 %v257
  %v930 = vunpack.c.l.b16 %v258
  %v931 = vunpack.c.l.b16 %v259
  %v932 = vunpack.c.l.b16 %v260
  %v933 = vunpack.c.l.b16 %v261
  %v934 = vunpack.c.l.b16 %v262
  %v935 = vunpack.c.l.b16 %v263
  %v936 = vunpack.c.l.b16 %v264
  %v937 = vunpack.c.l.b16 %v265
  %v938 = vunpack.c.l.b16 %v266
  %v939 = vunpack.c.l.b16 %v267
  %v940 = vunpack.c.l.b16 %v268
  %v941 = vunpack.c.l.b16 %v269
  %v942 = vunpack.c.l.b16 %v270
  %v943 = vunpack.c.l.b16 %v271
  %v944 = vunpack.c.l.b16 %v272
  %v945 = vunpack.c.l.b16 %v273
  %v946 = vunpack.c.l.b16 %v274
  %v947 = vunpack.c.l.b16 %v275
  %v948 = vunpack.c.l.b16 %v276
  %v949 = vunpack.c.l.b16 %v277
  %v950 = vunpack.c.l.b16 %v278
  %v951 = vunpack.c.l.b16 %v279
  %v952 = vunpack.c.l.b16 %v280
  %v953 = vunpack.c.l.b16 %v281
  %v954 = vunpack.c.l.b16 %v282
  %v955 = vunpack.c.l.b16 %v283
  %v956 = vunpack.c.l.b16 %v284
  %v957 = vunpack.c.l.b16 %v285
  %v958 = vunpack.c.l.b16 %v286
  %v959 = vunpack.c.l.b16 %v287
  %v960 = vunpack.c.l.b16 %v288
  %v961 = vunpack.c.l.b16 %v289
  %v962 = vunpack.c.l.b16 %v290
  %v963 = vunpack.c.l.b16 %v291
  %v964 = vunpack.c.l.b16 %v292
  %v965 = vunpack.c.l.b16 %v293
  %v966 = vunpack.c.l.b16 %v294
  %v967 = vunpack.c.l.b16 %v295
  %v968 = vunpack.c.l.b16 %v296
  %v969 = vunpack.c.l.b16 %v297
  %v970 = vunpack.c.l.b16 %v298
  %v971 = vunpack.c.l.b16 %v299
  %v972 = vunpack.c.l.b16 %v300
  %v973 = vunpack.c.l.b16 %v301
  %v974 = vunpack.c.l.b16 %v302
  %v975 = vunpack.c.l.b16 %v303
  %v976 = vunpack.c.l.b16 %v304
  %v977 = vunpack.c.l.b16 %v305
  %v978 = vpack.c.b16 %v723, %v722
  %v979 = vpack.c.b16 %v725, %v724
  %v980 = vpack.c.b16 %v727, %v726
  %v981 = vpack.c.b16 %v729, %v728
  %v982 = vpack.c.b16 %v731, %v730
  %v983 = vpack.c.b16 %v733, %v732
  %v984 = vpack.c.b16 %v735, %v734
  %v985 = vpack.c.b16 %v737, %v736
  %v986 = vpack.c.b16 %v739, %v738
  %v987 = vpack.c.b16 %v741, %v740
  %v988 = vpack.c.b16 %v743, %v742
  %v989 = vpack.c.b16 %v745, %v744
  %v990 = vpack.c.b16 %v747, %v746
  %v991 = vpack.c.b16 %v749, %v748
  %v992 = vpack.c.b16 %v751, %v750
  %v993 = vpack.c.b16 %v753, %v752
  %v994 = vpack.c.b16 %v755, %v754
  %v995 = vpack.c.b16 %v757, %v756
  %v996 = vpack.c.b16 %v759, %v758
  %v997 = vpack.c.b16 %v761, %v760
  %v998 = vpack.c.b16 %v763, %v762
  %v999 = vpack.c.b16 %v765, %v764
  %v1000 = vpack.c.b16 %v767, %v766
  %v1001 = vpack.c.b16 %v769, %v768
  %v1002 = vpack.c.b16 %v771, %v770
  %v1003 = vpack.c.b16 %v773, %v772
  %v1004 = vpack.c.b16 %v775, %v774
  %v1005 = vpack.c.b16 %v777, %v776
  %v1006 = vpack.c.b16 %v779, %v778
  %v1007 = vpack.c.b16 %v781, %v780
  %v1008 = vpack.c.b16 %v783, %v782
  %v1009 = vpack.c.b16 %v785, %v784
  %v1010 = vpack.c.b16 %v787, %v786
  %v1011 = vpack.c.b16 %v789, %v788
  %v1012 = vpack.c.b16 %v791, %v790
  %v1013 = vpack.c.b16 %v793, %v792
  %v1014 = vpack.c.b16 %v795, %v794
  %v1015 = vpack.c.b16 %v797, %v796
  %v1016 = vpack.c.b16 %v799, %v798
  %v1017 = vpack.c.b16 %v801, %v800
  %v1018 = vpack.c.b16 %v803, %v802
  %v1019 = vpack.c.b16 %v805, %v804
  %v1020 = vpack.c.b16 %v807, %v806
  %v1021 = vpack.c.b16 %v809, %v808
  %v1022 = vpack.c.b16 %v811, %v810
  %v1023 = vpack.c.b16 %v813, %v812
  %v1024 = vpack.c.b16 %v815, %v814
  %v1025 = vpack.c.b16 %v817, %v816
  %v1026 = vpack.c.b16 %v819, %v818
  %v1027 = vpack.c.b16 %v821, %v820
  %v1028 = vpack.c.b16 %v823, %v822
  %v1029 = vpack.c.b16 %v825, %v824
  %v1030 = vpack.c.b16 %v827, %v826
  %v1031 = vpack.c.b16 %v829, %v828
  %v1032 = vpack.c.b16 %v831, %v830
  %v1033 = vpack.c.b16 %v833, %v832
  %v1034 = vpack.c.b16 %v835, %v834
  %v1035 = vpack.c.b16 %v837, %v836
  %v1036 = vpack.c.b16 %v839, %v838
  %v1037 = vpack.c.b16 %v841, %v840
  %v1038 = vpack.c.b16 %v843, %v842
  %v1039 = vpack.c.b16 %v845, %v844
  %v1040 = vpack.c.b16 %v847, %v846
  %v1041 = vpack.c.b16 %v849, %v848
  %v1042 = vpack.c.b16 %v851, %v850
  %v1043 = vpack.c.b16 %v853, %v852
  %v1044 = vpack.c.b16 %v855, %v854
  %v1045 = vpack.c.b16 %v857, %v856
  %v1046 = vpack.c.b16 %v859, %v858
  %v1047 = vpack.c.b16 %v861, %v860
  %v1048 = vpack.c.b16 %v863, %v862
  %v1049 = vpack.c.b16 %v865, %v864
  %v1050 = vpack.c.b16 %v867, %v866
  %v1051 = vpack.c.b16 %v869, %v868
  %v1052 = vpack.c.b16 %v871, %v870
  %v1053 = vpack.c.b16 %v873, %v872
  %v1054 = vpack.c.b16 %v875, %v874
  %v1055 = vpack.c.b16 %v877, %v876
  %v1056 = vpack.c.b16 %v879, %v878
  %v1057 = vpack.c.b16 %v881, %v880
  %v1058 = vpack.c.b16 %v883, %v882
  %v1059 = vpack.c.b16 %v885, %v884
  %v1060 = vpack.c.b16 %v887, %v886
  %v1061 = vpack.c.b16 %v889, %v888
  %v1062 = vpack.c.b16 %v891, %v890
  %v1063 = vpack.c.b16 %v893, %v892
  %v1064 = vpack.c.b16 %v895, %v894
  %v1065 = vpack.c.b16 %v897, %v896
  %v1066 = vpack.c.b16 %v899, %v898
  %v1067 = vpack.c.b16 %v901, %v900
  %v1068 = vpack.c.b16 %v903, %v902
  %v1069 = vpack.c.b16 %v905, %v904
  %v1070 = vpack.c.b16 %v907, %v906
  %v1071 = vpack.c.b16 %v909, %v908
  %v1072 = vpack.c.b16 %v911, %v910
  %v1073 = vpack.c.b16 %v913, %v912
  %v1074 = vpack.c.b16 %v915, %v914
  %v1075 = vpack.c.b16 %v917, %v916
  %v1076 = vpack.c.b16 %v919, %v918
  %v1077 = vpack.c.b16 %v921, %v920
  %v1078 = vpack.c.b16 %v923, %v922
  %v1079 = vpack.c.b16 %v925, %v924
  %v1080 = vpack.c.b16 %v927, %v926
  %v1081 = vpack.c.b16 %v929, %v928
  %v1082 = vpack.c.b16 %v931, %v930
  %v1083 = vpack.c.b16 %v933, %v932
  %v1084 = vpack.c.b16 %v935, %v934
  %v1085 = vpack.c.b16 %v937, %v936
  %v1086 = vpack.c.b16 %v939, %v938
  %v1087 = vpack.c.b16 %v941, %v940
  %v1088 = vpack.c.b16 %v943, %v942
  %v1089 = vpack.c.b16 %v945, %v944
  %v1090 = vpack.c.b16 %v947, %v946
  %v1091 = vpack.c.b16 %v949, %v948
  %v1092 = vpack.c.b16 %v951, %v950
  %v1093 = vpack.c.b16 %v953, %v952
  %v1094 = vpack.c.b16 %v955, %v954
  %v1095 = vpack.c.b16 %v957, %v956
  %v1096 = vpack.c.b16 %v959, %v958
  %v1097 = vpack.c.b16 %v961, %v960
  %v1098 = vpack.c.b16 %v963, %v962
  %v1099 = vpack.c.b16 %v965, %v964
  %v1100 = vpack.c.b16 %v967, %v966
  %v1101 = vpack.c.b16 %v969, %v968
  %v1102 = vpack.c.b16 %v971, %v970
  %v1103 = vpack.c.b16 %v973, %v972
  %v1104 = vpack.c.b16 %v975, %v974
  %v1105 = vpack.c.b16 %v977, %v976
  %1234 = vmatprep.subr.bf16.mxu0 0
  %1235 = vmatpush1.bf16.msra.mxu0 %v985
  %1236 = vmatprep.subr.bf16.mxu0 0
  %1237 = vmatpush1.bf16.msra.mxu0 %v984
  %1238 = vmatprep.subr.bf16.mxu0 0
  %1239 = vmatpush1.bf16.msra.mxu0 %v983
  %1240 = vmatprep.subr.bf16.mxu0 0
  %1241 = vmatpush1.bf16.msra.mxu0 %v982
  %1242 = vmatprep.subr.bf16.mxu0 0
  %1243 = vmatpush1.bf16.msra.mxu0 %v981
  %1244 = vmatprep.subr.bf16.mxu0 0
  %1245 = vmatpush1.bf16.msra.mxu0 %v980
  %1246 = vmatprep.subr.bf16.mxu0 0
  %1247 = vmatpush1.bf16.msra.mxu0 %v979
  %1248 = vmatprep.subr.bf16.mxu0 0
  %1249 = vmatpush1.bf16.msra.mxu0 %v978
  %1250 = vmatprep.subr.bf16.mxu0 0
  %1251 = vmatpush2.bf16.msra.mxu0 %v993
  %1252 = vmatprep.subr.bf16.mxu0 0
  %1253 = vmatpush2.bf16.msra.mxu0 %v992
  %1254 = vmatprep.subr.bf16.mxu0 0
  %1255 = vmatpush2.bf16.msra.mxu0 %v991
  %1256 = vmatprep.subr.bf16.mxu0 0
  %1257 = vmatpush2.bf16.msra.mxu0 %v990
  %1258 = vmatprep.subr.bf16.mxu0 0
  %1259 = vmatpush2.bf16.msra.mxu0 %v989
  %1260 = vmatprep.subr.bf16.mxu0 0
  %1261 = vmatpush2.bf16.msra.mxu0 %v988
  %1262 = vmatprep.subr.bf16.mxu0 0
  %1263 = vmatpush2.bf16.msra.mxu0 %v987
  %1264 = vmatprep.subr.bf16.mxu0 0
  %1265 = vmatpush2.bf16.msra.mxu0 %v986
  %1266 = vmatprep.mubr.bf16.mxu0 %v403
  %1267 = vmatmul.mubr.bf16.gmra.mxu0 %v402
  %v1268 = vpop.f32.mrf.mxu0
  %v1269 = vadd.f32 0.0, %v1268
  %v1270 = vpop.f32.mrf.mxu0
  %v1271 = vpop.f32.mrf.mxu0
  %v1272 = vadd.f32 0.0, %v1271
  %v1273 = vpop.f32.mrf.mxu0
  %1274 = vmatprep.mubr.bf16.mxu0 %v419
  %1275 = vmatmul.mubr.bf16.gmra.mxu0 %v418
  %v1276 = vpop.f32.mrf.mxu0
  %v1277 = vadd.f32 0.0, %v1276
  %v1278 = vpop.f32.mrf.mxu0
  %v1279 = vpop.f32.mrf.mxu0
  %v1280 = vadd.f32 0.0, %v1279
  %v1281 = vpop.f32.mrf.mxu0
  %1282 = vdwg.mxu0
  %1283 = vmatprep.subr.bf16.mxu0 0
  %1284 = vmatpush1.bf16.msra.mxu0 %v1001
  %1285 = vmatprep.subr.bf16.mxu0 0
  %1286 = vmatpush1.bf16.msra.mxu0 %v1000
  %1287 = vmatprep.subr.bf16.mxu0 0
  %1288 = vmatpush1.bf16.msra.mxu0 %v999
  %1289 = vmatprep.subr.bf16.mxu0 0
  %1290 = vmatpush1.bf16.msra.mxu0 %v998
  %1291 = vmatprep.subr.bf16.mxu0 0
  %1292 = vmatpush1.bf16.msra.mxu0 %v997
  %1293 = vmatprep.subr.bf16.mxu0 0
  %1294 = vmatpush1.bf16.msra.mxu0 %v996
  %1295 = vmatprep.subr.bf16.mxu0 0
  %1296 = vmatpush1.bf16.msra.mxu0 %v995
  %1297 = vmatprep.subr.bf16.mxu0 0
  %1298 = vmatpush1.bf16.msra.mxu0 %v994
  %1299 = vmatprep.subr.bf16.mxu0 0
  %1300 = vmatpush2.bf16.msra.mxu0 %v1009
  %1301 = vmatprep.subr.bf16.mxu0 0
  %1302 = vmatpush2.bf16.msra.mxu0 %v1008
  %1303 = vmatprep.subr.bf16.mxu0 0
  %1304 = vmatpush2.bf16.msra.mxu0 %v1007
  %1305 = vmatprep.subr.bf16.mxu0 0
  %1306 = vmatpush2.bf16.msra.mxu0 %v1006
  %1307 = vmatprep.subr.bf16.mxu0 0
  %1308 = vmatpush2.bf16.msra.mxu0 %v1005
  %1309 = vmatprep.subr.bf16.mxu0 0
  %1310 = vmatpush2.bf16.msra.mxu0 %v1004
  %1311 = vmatprep.subr.bf16.mxu0 0
  %1312 = vmatpush2.bf16.msra.mxu0 %v1003
  %1313 = vmatprep.subr.bf16.mxu0 0
  %1314 = vmatpush2.bf16.msra.mxu0 %v1002
  %1315 = vmatprep.mubr.bf16.mxu0 %v405
  %1316 = vmatmul.mubr.bf16.gmra.mxu0 %v404
  %v1317 = vpop.f32.mrf.mxu0
  %v1318 = vadd.f32 %v1269, %v1317
  %v1319 = vpop.f32.mrf.mxu0
  %v1320 = vpop.f32.mrf.mxu0
  %v1321 = vadd.f32 %v1272, %v1320
  %v1322 = vpop.f32.mrf.mxu0
  %1323 = vmatprep.mubr.bf16.mxu0 %v421
  %1324 = vmatmul.mubr.bf16.gmra.mxu0 %v420
  %v1325 = vpop.f32.mrf.mxu0
  %v1326 = vadd.f32 %v1277, %v1325
  %v1327 = vpop.f32.mrf.mxu0
  %v1328 = vpop.f32.mrf.mxu0
  %v1329 = vadd.f32 %v1280, %v1328
  %v1330 = vpop.f32.mrf.mxu0
  %1331 = vdwg.mxu0
  %1332 = vmatprep.subr.bf16.mxu0 0
  %1333 = vmatpush1.bf16.msra.mxu0 %v1017
  %1334 = vmatprep.subr.bf16.mxu0 0
  %1335 = vmatpush1.bf16.msra.mxu0 %v1016
  %1336 = vmatprep.subr.bf16.mxu0 0
  %1337 = vmatpush1.bf16.msra.mxu0 %v1015
  %1338 = vmatprep.subr.bf16.mxu0 0
  %1339 = vmatpush1.bf16.msra.mxu0 %v1014
  %1340 = vmatprep.subr.bf16.mxu0 0
  %1341 = vmatpush1.bf16.msra.mxu0 %v1013
  %1342 = vmatprep.subr.bf16.mxu0 0
  %1343 = vmatpush1.bf16.msra.mxu0 %v1012
  %1344 = vmatprep.subr.bf16.mxu0 0
  %1345 = vmatpush1.bf16.msra.mxu0 %v1011
  %1346 = vmatprep.subr.bf16.mxu0 0
  %1347 = vmatpush1.bf16.msra.mxu0 %v1010
  %1348 = vmatprep.subr.bf16.mxu0 0
  %1349 = vmatpush2.bf16.msra.mxu0 %v1025
  %1350 = vmatprep.subr.bf16.mxu0 0
  %1351 = vmatpush2.bf16.msra.mxu0 %v1024
  %1352 = vmatprep.subr.bf16.mxu0 0
  %1353 = vmatpush2.bf16.msra.mxu0 %v1023
  %1354 = vmatprep.subr.bf16.mxu0 0
  %1355 = vmatpush2.bf16.msra.mxu0 %v1022
  %1356 = vmatprep.subr.bf16.mxu0 0
  %1357 = vmatpush2.bf16.msra.mxu0 %v1021
  %1358 = vmatprep.subr.bf16.mxu0 0
  %1359 = vmatpush2.bf16.msra.mxu0 %v1020
  %1360 = vmatprep.subr.bf16.mxu0 0
  %1361 = vmatpush2.bf16.msra.mxu0 %v1019
  %1362 = vmatprep.subr.bf16.mxu0 0
  %1363 = vmatpush2.bf16.msra.mxu0 %v1018
  %1364 = vmatprep.mubr.bf16.mxu0 %v407
  %1365 = vmatmul.mubr.bf16.gmra.mxu0 %v406
  %v1366 = vpop.f32.mrf.mxu0
  %v1367 = vadd.f32 %v1318, %v1366
  %v1368 = vpop.f32.mrf.mxu0
  %v1369 = vpop.f32.mrf.mxu0
  %v1370 = vadd.f32 %v1321, %v1369
  %v1371 = vpop.f32.mrf.mxu0
  %1372 = vmatprep.mubr.bf16.mxu0 %v423
  %1373 = vmatmul.mubr.bf16.gmra.mxu0 %v422
  %v1374 = vpop.f32.mrf.mxu0
  %v1375 = vadd.f32 %v1326, %v1374
  %v1376 = vpop.f32.mrf.mxu0
  %v1377 = vpop.f32.mrf.mxu0
  %v1378 = vadd.f32 %v1329, %v1377
  %v1379 = vpop.f32.mrf.mxu0
  %1380 = vdwg.mxu0
  %1381 = vmatprep.subr.bf16.mxu0 0
  %1382 = vmatpush1.bf16.msra.mxu0 %v1033
  %1383 = vmatprep.subr.bf16.mxu0 0
  %1384 = vmatpush1.bf16.msra.mxu0 %v1032
  %1385 = vmatprep.subr.bf16.mxu0 0
  %1386 = vmatpush1.bf16.msra.mxu0 %v1031
  %1387 = vmatprep.subr.bf16.mxu0 0
  %1388 = vmatpush1.bf16.msra.mxu0 %v1030
  %1389 = vmatprep.subr.bf16.mxu0 0
  %1390 = vmatpush1.bf16.msra.mxu0 %v1029
  %1391 = vmatprep.subr.bf16.mxu0 0
  %1392 = vmatpush1.bf16.msra.mxu0 %v1028
  %1393 = vmatprep.subr.bf16.mxu0 0
  %1394 = vmatpush1.bf16.msra.mxu0 %v1027
  %1395 = vmatprep.subr.bf16.mxu0 0
  %1396 = vmatpush1.bf16.msra.mxu0 %v1026
  %1397 = vmatprep.subr.bf16.mxu0 0
  %1398 = vmatpush2.bf16.msra.mxu0 %v1041
  %1399 = vmatprep.subr.bf16.mxu0 0
  %1400 = vmatpush2.bf16.msra.mxu0 %v1040
  %1401 = vmatprep.subr.bf16.mxu0 0
  %1402 = vmatpush2.bf16.msra.mxu0 %v1039
  %1403 = vmatprep.subr.bf16.mxu0 0
  %1404 = vmatpush2.bf16.msra.mxu0 %v1038
  %1405 = vmatprep.subr.bf16.mxu0 0
  %1406 = vmatpush2.bf16.msra.mxu0 %v1037
  %1407 = vmatprep.subr.bf16.mxu0 0
  %1408 = vmatpush2.bf16.msra.mxu0 %v1036
  %1409 = vmatprep.subr.bf16.mxu0 0
  %1410 = vmatpush2.bf16.msra.mxu0 %v1035
  %1411 = vmatprep.subr.bf16.mxu0 0
  %1412 = vmatpush2.bf16.msra.mxu0 %v1034
  %1413 = vmatprep.mubr.bf16.mxu0 %v409
  %1414 = vmatmul.mubr.bf16.gmra.mxu0 %v408
  %v1415 = vpop.f32.mrf.mxu0
  %v1416 = vadd.f32 %v1367, %v1415
  %v1417 = vpop.f32.mrf.mxu0
  %v1418 = vpop.f32.mrf.mxu0
  %v1419 = vadd.f32 %v1370, %v1418
  %v1420 = vpop.f32.mrf.mxu0
  %1421 = vmatprep.mubr.bf16.mxu0 %v425
  %1422 = vmatmul.mubr.bf16.gmra.mxu0 %v424
  %v1423 = vpop.f32.mrf.mxu0
  %v1424 = vadd.f32 %v1375, %v1423
  %v1425 = vpop.f32.mrf.mxu0
  %v1426 = vpop.f32.mrf.mxu0
  %v1427 = vadd.f32 %v1378, %v1426
  %v1428 = vpop.f32.mrf.mxu0
  %1429 = vdwg.mxu0
  %1430 = vmatprep.subr.bf16.mxu0 0
  %1431 = vmatpush1.bf16.msra.mxu0 %v1049
  %1432 = vmatprep.subr.bf16.mxu0 0
  %1433 = vmatpush1.bf16.msra.mxu0 %v1048
  %1434 = vmatprep.subr.bf16.mxu0 0
  %1435 = vmatpush1.bf16.msra.mxu0 %v1047
  %1436 = vmatprep.subr.bf16.mxu0 0
  %1437 = vmatpush1.bf16.msra.mxu0 %v1046
  %1438 = vmatprep.subr.bf16.mxu0 0
  %1439 = vmatpush1.bf16.msra.mxu0 %v1045
  %1440 = vmatprep.subr.bf16.mxu0 0
  %1441 = vmatpush1.bf16.msra.mxu0 %v1044
  %1442 = vmatprep.subr.bf16.mxu0 0
  %1443 = vmatpush1.bf16.msra.mxu0 %v1043
  %1444 = vmatprep.subr.bf16.mxu0 0
  %1445 = vmatpush1.bf16.msra.mxu0 %v1042
  %1446 = vmatprep.subr.bf16.mxu0 0
  %1447 = vmatpush2.bf16.msra.mxu0 %v1057
  %1448 = vmatprep.subr.bf16.mxu0 0
  %1449 = vmatpush2.bf16.msra.mxu0 %v1056
  %1450 = vmatprep.subr.bf16.mxu0 0
  %1451 = vmatpush2.bf16.msra.mxu0 %v1055
  %1452 = vmatprep.subr.bf16.mxu0 0
  %1453 = vmatpush2.bf16.msra.mxu0 %v1054
  %1454 = vmatprep.subr.bf16.mxu0 0
  %1455 = vmatpush2.bf16.msra.mxu0 %v1053
  %1456 = vmatprep.subr.bf16.mxu0 0
  %1457 = vmatpush2.bf16.msra.mxu0 %v1052
  %1458 = vmatprep.subr.bf16.mxu0 0
  %1459 = vmatpush2.bf16.msra.mxu0 %v1051
  %1460 = vmatprep.subr.bf16.mxu0 0
  %1461 = vmatpush2.bf16.msra.mxu0 %v1050
  %1462 = vmatprep.mubr.bf16.mxu0 %v411
  %1463 = vmatmul.mubr.bf16.gmra.mxu0 %v410
  %v1464 = vpop.f32.mrf.mxu0
  %v1465 = vadd.f32 %v1416, %v1464
  %v1466 = vpop.f32.mrf.mxu0
  %v1467 = vpop.f32.mrf.mxu0
  %v1468 = vadd.f32 %v1419, %v1467
  %v1469 = vpop.f32.mrf.mxu0
  %1470 = vmatprep.mubr.bf16.mxu0 %v427
  %1471 = vmatmul.mubr.bf16.gmra.mxu0 %v426
  %v1472 = vpop.f32.mrf.mxu0
  %v1473 = vadd.f32 %v1424, %v1472
  %v1474 = vpop.f32.mrf.mxu0
  %v1475 = vpop.f32.mrf.mxu0
  %v1476 = vadd.f32 %v1427, %v1475
  %v1477 = vpop.f32.mrf.mxu0
  %1478 = vdwg.mxu0
  %1479 = vmatprep.subr.bf16.mxu0 0
  %1480 = vmatpush1.bf16.msra.mxu0 %v1065
  %1481 = vmatprep.subr.bf16.mxu0 0
  %1482 = vmatpush1.bf16.msra.mxu0 %v1064
  %1483 = vmatprep.subr.bf16.mxu0 0
  %1484 = vmatpush1.bf16.msra.mxu0 %v1063
  %1485 = vmatprep.subr.bf16.mxu0 0
  %1486 = vmatpush1.bf16.msra.mxu0 %v1062
  %1487 = vmatprep.subr.bf16.mxu0 0
  %1488 = vmatpush1.bf16.msra.mxu0 %v1061
  %1489 = vmatprep.subr.bf16.mxu0 0
  %1490 = vmatpush1.bf16.msra.mxu0 %v1060
  %1491 = vmatprep.subr.bf16.mxu0 0
  %1492 = vmatpush1.bf16.msra.mxu0 %v1059
  %1493 = vmatprep.subr.bf16.mxu0 0
  %1494 = vmatpush1.bf16.msra.mxu0 %v1058
  %1495 = vmatprep.subr.bf16.mxu0 0
  %1496 = vmatpush2.bf16.msra.mxu0 %v1073
  %1497 = vmatprep.subr.bf16.mxu0 0
  %1498 = vmatpush2.bf16.msra.mxu0 %v1072
  %1499 = vmatprep.subr.bf16.mxu0 0
  %1500 = vmatpush2.bf16.msra.mxu0 %v1071
  %1501 = vmatprep.subr.bf16.mxu0 0
  %1502 = vmatpush2.bf16.msra.mxu0 %v1070
  %1503 = vmatprep.subr.bf16.mxu0 0
  %1504 = vmatpush2.bf16.msra.mxu0 %v1069
  %1505 = vmatprep.subr.bf16.mxu0 0
  %1506 = vmatpush2.bf16.msra.mxu0 %v1068
  %1507 = vmatprep.subr.bf16.mxu0 0
  %1508 = vmatpush2.bf16.msra.mxu0 %v1067
  %1509 = vmatprep.subr.bf16.mxu0 0
  %1510 = vmatpush2.bf16.msra.mxu0 %v1066
  %1511 = vmatprep.mubr.bf16.mxu0 %v413
  %1512 = vmatmul.mubr.bf16.gmra.mxu0 %v412
  %v1513 = vpop.f32.mrf.mxu0
  %v1514 = vadd.f32 %v1465, %v1513
  %v1515 = vpop.f32.mrf.mxu0
  %v1516 = vpop.f32.mrf.mxu0
  %v1517 = vadd.f32 %v1468, %v1516
  %v1518 = vpop.f32.mrf.mxu0
  %1519 = vmatprep.mubr.bf16.mxu0 %v429
  %1520 = vmatmul.mubr.bf16.gmra.mxu0 %v428
  %v1521 = vpop.f32.mrf.mxu0
  %v1522 = vadd.f32 %v1473, %v1521
  %v1523 = vpop.f32.mrf.mxu0
  %v1524 = vpop.f32.mrf.mxu0
  %v1525 = vadd.f32 %v1476, %v1524
  %v1526 = vpop.f32.mrf.mxu0
  %1527 = vdwg.mxu0
  %1528 = vmatprep.subr.bf16.mxu0 0
  %1529 = vmatpush1.bf16.msra.mxu0 %v1081
  %1530 = vmatprep.subr.bf16.mxu0 0
  %1531 = vmatpush1.bf16.msra.mxu0 %v1080
  %1532 = vmatprep.subr.bf16.mxu0 0
  %1533 = vmatpush1.bf16.msra.mxu0 %v1079
  %1534 = vmatprep.subr.bf16.mxu0 0
  %1535 = vmatpush1.bf16.msra.mxu0 %v1078
  %1536 = vmatprep.subr.bf16.mxu0 0
  %1537 = vmatpush1.bf16.msra.mxu0 %v1077
  %1538 = vmatprep.subr.bf16.mxu0 0
  %1539 = vmatpush1.bf16.msra.mxu0 %v1076
  %1540 = vmatprep.subr.bf16.mxu0 0
  %1541 = vmatpush1.bf16.msra.mxu0 %v1075
  %1542 = vmatprep.subr.bf16.mxu0 0
  %1543 = vmatpush1.bf16.msra.mxu0 %v1074
  %1544 = vmatprep.subr.bf16.mxu0 0
  %1545 = vmatpush2.bf16.msra.mxu0 %v1089
  %1546 = vmatprep.subr.bf16.mxu0 0
  %1547 = vmatpush2.bf16.msra.mxu0 %v1088
  %1548 = vmatprep.subr.bf16.mxu0 0
  %1549 = vmatpush2.bf16.msra.mxu0 %v1087
  %1550 = vmatprep.subr.bf16.mxu0 0
  %1551 = vmatpush2.bf16.msra.mxu0 %v1086
  %1552 = vmatprep.subr.bf16.mxu0 0
  %1553 = vmatpush2.bf16.msra.mxu0 %v1085
  %1554 = vmatprep.subr.bf16.mxu0 0
  %1555 = vmatpush2.bf16.msra.mxu0 %v1084
  %1556 = vmatprep.subr.bf16.mxu0 0
  %1557 = vmatpush2.bf16.msra.mxu0 %v1083
  %1558 = vmatprep.subr.bf16.mxu0 0
  %1559 = vmatpush2.bf16.msra.mxu0 %v1082
  %1560 = vmatprep.mubr.bf16.mxu0 %v415
  %1561 = vmatmul.mubr.bf16.gmra.mxu0 %v414
  %v1562 = vpop.f32.mrf.mxu0
  %v1563 = vadd.f32 %v1514, %v1562
  %v1564 = vpop.f32.mrf.mxu0
  %v1565 = vpop.f32.mrf.mxu0
  %v1566 = vadd.f32 %v1517, %v1565
  %v1567 = vpop.f32.mrf.mxu0
  %1568 = vmatprep.mubr.bf16.mxu0 %v431
  %1569 = vmatmul.mubr.bf16.gmra.mxu0 %v430
  %v1570 = vpop.f32.mrf.mxu0
  %v1571 = vadd.f32 %v1522, %v1570
  %v1572 = vpop.f32.mrf.mxu0
  %v1573 = vpop.f32.mrf.mxu0
  %v1574 = vadd.f32 %v1525, %v1573
  %v1575 = vpop.f32.mrf.mxu0
  %1576 = vdwg.mxu0
  %1577 = vmatprep.subr.bf16.mxu0 0
  %1578 = vmatpush1.bf16.msra.mxu0 %v1097
  %1579 = vmatprep.subr.bf16.mxu0 0
  %1580 = vmatpush1.bf16.msra.mxu0 %v1096
  %1581 = vmatprep.subr.bf16.mxu0 0
  %1582 = vmatpush1.bf16.msra.mxu0 %v1095
  %1583 = vmatprep.subr.bf16.mxu0 0
  %1584 = vmatpush1.bf16.msra.mxu0 %v1094
  %1585 = vmatprep.subr.bf16.mxu0 0
  %1586 = vmatpush1.bf16.msra.mxu0 %v1093
  %1587 = vmatprep.subr.bf16.mxu0 0
  %1588 = vmatpush1.bf16.msra.mxu0 %v1092
  %1589 = vmatprep.subr.bf16.mxu0 0
  %1590 = vmatpush1.bf16.msra.mxu0 %v1091
  %1591 = vmatprep.subr.bf16.mxu0 0
  %1592 = vmatpush1.bf16.msra.mxu0 %v1090
  %1593 = vmatprep.subr.bf16.mxu0 0
  %1594 = vmatpush2.bf16.msra.mxu0 %v1105
  %1595 = vmatprep.subr.bf16.mxu0 0
  %1596 = vmatpush2.bf16.msra.mxu0 %v1104
  %1597 = vmatprep.subr.bf16.mxu0 0
  %1598 = vmatpush2.bf16.msra.mxu0 %v1103
  %1599 = vmatprep.subr.bf16.mxu0 0
  %1600 = vmatpush2.bf16.msra.mxu0 %v1102
  %1601 = vmatprep.subr.bf16.mxu0 0
  %1602 = vmatpush2.bf16.msra.mxu0 %v1101
  %1603 = vmatprep.subr.bf16.mxu0 0
  %1604 = vmatpush2.bf16.msra.mxu0 %v1100
  %1605 = vmatprep.subr.bf16.mxu0 0
  %1606 = vmatpush2.bf16.msra.mxu0 %v1099
  %1607 = vmatprep.subr.bf16.mxu0 0
  %1608 = vmatpush2.bf16.msra.mxu0 %v1098
  %1609 = vmatprep.mubr.bf16.mxu0 %v417
  %1610 = vmatmul.mubr.bf16.gmra.mxu0 %v416
  %v1611 = vpop.f32.mrf.mxu0
  %v1612 = vadd.f32 %v1563, %v1611
  %v1613 = vpop.f32.mrf.mxu0
  %v1614 = vpop.f32.mrf.mxu0
  %v1615 = vadd.f32 %v1566, %v1614
  %v1616 = vpop.f32.mrf.mxu0
  %1617 = vmatprep.mubr.bf16.mxu0 %v433
  %1618 = vmatmul.mubr.bf16.gmra.mxu0 %v432
  %v1619 = vpop.f32.mrf.mxu0
  %v1620 = vadd.f32 %v1571, %v1619
  %v1621 = vpop.f32.mrf.mxu0
  %v1622 = vpop.f32.mrf.mxu0
  %v1623 = vadd.f32 %v1574, %v1622
  %v1624 = vpop.f32.mrf.mxu0
  %1625 = vdwg.mxu0
  %v1626 = vadd.f32 %v1612, %v1615
  %v1627 = vadd.f32 %v1626, %v1620
  %v1628 = vadd.f32 %v1627, %v1623
  %v1629 = vrot.slane %v1628, 4
  %v1630 = vadd.f32 %v1628, %v1629
  %v1631 = vrot.slane %v1630, 2
  %v1632 = vadd.f32 %v1630, %v1631
  %v1633 = vrot.slane %v1632, 1
  %v1634 = vadd.f32 %v1632, %v1633
  %v1635 = vrcp.pop 32.0
  %v1636 = vmul.f32 %v1634, %v1635
  %v1637 = vsub.f32 %v1612, %v1636
  %v1638 = vsub.f32 %v1615, %v1636
  %v1639 = vsub.f32 %v1620, %v1636
  %v1640 = vsub.f32 %v1623, %v1636
  %v1641 = vmul.f32 %v1637, %v1637
  %v1642 = vmul.f32 %v1638, %v1638
  %v1643 = vmul.f32 %v1639, %v1639
  %v1644 = vmul.f32 %v1640, %v1640
  %v1645 = vadd.f32 %v1641, %v1642
  %v1646 = vadd.f32 %v1645, %v1643
  %v1647 = vadd.f32 %v1646, %v1644
  %v1648 = vrot.slane %v1647, 4
  %v1649 = vadd.f32 %v1647, %v1648
  %v1650 = vrot.slane %v1649, 2
  %v1651 = vadd.f32 %v1649, %v1650
  %v1652 = vrot.slane %v1651, 1
  %v1653 = vadd.f32 %v1651, %v1652
  %v1654 = vmul.f32 %v1653, %v1635
  %v1655 = vadd.f32 %v1654, 1e-05
  %v1656 = vrsqrt.pop %v1655
  %v1657 = vmul.f32 %v1637, %v1656
  %v1658 = vmul.f32 %v1638, %v1656
  %v1659 = vmul.f32 %v1639, %v1656
  %v1660 = vmul.f32 %v1640, %v1656
  %v1661 = vld [vmem:[%s2] sm:$0x1]
  %v1663 = vlaneseq
  %v1664 = vshrl.u32 %v1663, 7
  %v1665 = vsub.s32 0, %v1664
  %v1666 = vrot.slane %v1661, %v1665
  %v1668 = vmul.f32 %v1657, %v1666
  %v1669 = vmul.f32 %v1658, %v1666
  %v1670 = vmul.f32 %v1659, %v1666
  %v1671 = vmul.f32 %v1660, %v1666
  %v1672 = vld [vmem:[%s3] sm:$0x1]
  %v1674 = vlaneseq
  %v1675 = vshrl.u32 %v1674, 7
  %v1676 = vsub.s32 0, %v1675
  %v1677 = vrot.slane %v1672, %v1676
  %v1679 = vadd.f32 %v1668, %v1677
  %v1680 = vadd.f32 %v1669, %v1677
  %v1681 = vadd.f32 %v1670, %v1677
  %v1682 = vadd.f32 %v1671, %v1677
  %vm1683 = vcmp.gt.f32.partialorder %v1679, 0.0
  %vm1684 = vcmp.gt.f32.partialorder %v1680, 0.0
  %vm1685 = vcmp.gt.f32.partialorder %v1681, 0.0
  %vm1686 = vcmp.gt.f32.partialorder %v1682, 0.0
  %v1687 = vmul.f32 %v1679, 0.2
  %v1688 = vmul.f32 %v1680, 0.2
  %v1689 = vmul.f32 %v1681, 0.2
  %v1690 = vmul.f32 %v1682, 0.2
  %v1691 = vsel %vm1683, %v1679, %v1687
  %v1692 = vsel %vm1684, %v1680, %v1688
  %v1693 = vsel %vm1685, %v1681, %v1689
  %v1694 = vsel %vm1686, %v1682, %v1690
  %v1695 = vpack.c.bf16 %v1692, %v1691
  %v1696 = vpack.c.bf16 %v1694, %v1693
  %v1699 = vunpack.c.l.b16 %v1695
  %v1700 = vunpack.c.h.b16 %v1695
  %v1701 = vunpack.c.l.b16 %v1696
  %v1702 = vunpack.c.h.b16 %v1696
  %v1703 = vpack.c.b16 %v1699, %v1699
  %v1704 = vpack.c.b16 %v1700, %v1700
  %v1705 = vpack.c.b16 %v1701, %v1701
  %v1706 = vpack.c.b16 %v1702, %v1702
  %1711 = vst [vmem:[%s4] sm:$0xf] %v1703
  %1712 = vst [vmem:[%s4 + $0x4] sm:$0xf] %v1704
  %1713 = vst [vmem:[%s4 + $0x8] sm:$0xf] %v1705
  %1714 = vst [vmem:[%s4 + $0xc] sm:$0xf] %v1706
  // Predicated region
  $region18: #{netd_forward.8} parent=0 // pred_check
    _
  $region19: #{netd_forward.8} parent=0 // pred_check_branch
    %1716 = sbr.rel (0) target = $region21
  $region20: #{netd_forward.8} parent=0 // pred_region
    _
  $region21: #{netd_forward.8} parent=0 // pred_fallthru
    _
  // Predicated region
  $region22: #{netd_forward.8} parent=0 // pred_check
    _
  $region23: #{netd_forward.8} parent=0 // pred_check_branch
    %1718 = sbr.rel (0) target = $region25
  $region24: #{netd_forward.8} parent=0 // pred_region
    _
  $region25: #{netd_forward.8} parent=0 // pred_fallthru
    _

// kernel: netd_forward.9
$region0: #{netd_forward.9}
  #allocation0 [shape = 'u32[]', space=smem, size = 0x4, offset = 0x4, fixed_abs, tag = 'smem constant byte address 0x4 - core index']
  #allocation1 [shape = 'u32[144,128]{1,0:T(1,128)}', space=vmem, size = 0x12000, scoped, tag = 'internal scratch']
  #allocation2 [shape = 'f32[1,1]{1,0:T(1,128)S(1)}', space=vmem, size = 0x200, scoped, tag = 'scoped memory for netd_forward.9']
  %s0 = inlined_call_operand.vmem [shape: bf16[2,2048], index: 0, kind: input, shape index: {}]
  %s1 = inlined_call_operand.vmem [shape: bf16[2048,16], index: 1, kind: input, shape index: {}]
  %s2 = inlined_call_operand.vmem [shape: f32[16,1], index: 2, kind: input, shape index: {}]
  %s3 = inlined_call_operand.<no memory space> [shape: f32[1,1], index: 3, kind: input, shape index: {}]
  %s4 = inlined_call_operand.vmem [shape: f32[16,10], index: 4, kind: input, shape index: {}]
  %s5 = inlined_call_operand.vmem [shape: f32[1,10], index: 5, kind: input, shape index: {}]
  %s6 = inlined_call_operand.vmem [shape: f32[2,1], index: 6, kind: output, shape index: {0}]
  %s7 = inlined_call_operand.hbm [shape: f32[2,10], index: 7, kind: output, shape index: {1}]
  %s8 = inlined_call_operand.hbm [shape: f32[2,16], index: 8, kind: output, shape index: {2}]
  %9 = xla_tuple %s6, %s7, %s8
  %s10 = sld [smem:[#allocation0]]
  $region50: #{netd_forward.9} parent=0
    _
  %s12 = ssub.s32 1, %s10
  %s13 = scalar_select 0, %s12, %s10
  %v14 = vstv %s3
  %15 = vst [vmem:[#allocation2] sm:$0x1] %v14
  $region1: #{netd_forward.9} parent=0
    #allocation3 [shape = 'u8[1024]{0}', space=vmem, size = 0x400, scoped, tag = 'output window, operand 1, single buffered']
    #allocation4 [shape = 's32[1]{0}', space=sflag, size = 0x4, scoped, tag = 'scoped memory for netd_forward.9']
    #allocation5 [shape = 'u8[1024]{0}', space=vmem, size = 0x400, scoped, tag = 'output window, operand 2, single buffered']
    #allocation6 [shape = 's32[1]{0}', space=sflag, size = 0x4, scoped, tag = 'scoped memory for netd_forward.9']
    %16 = vsyncpa [#allocation4], 0
    %17 = vsyncpa [#allocation6], 0
    // Predicated region
    $region2: #{netd_forward.9} parent=1 // pred_check
      _
    $region3: #{netd_forward.9} parent=1 // pred_check_branch
      %19 = sbr.rel (0) target = $region5
    $region4: #{netd_forward.9} parent=1 // pred_region
      _
    $region5: #{netd_forward.9} parent=1 // pred_fallthru
      _
    // Predicated region
    $region6: #{netd_forward.9} parent=1 // pred_check
      _
    $region7: #{netd_forward.9} parent=1 // pred_check_branch
      %21 = sbr.rel (0) target = $region9
    $region8: #{netd_forward.9} parent=1 // pred_region
      _
    $region9: #{netd_forward.9} parent=1 // pred_fallthru
      _
    // Predicated region
    $region10: #{netd_forward.9} parent=1 // pred_check
      _
    $region11: #{netd_forward.9} parent=1 // pred_check_branch
      %23 = sbr.rel (0) target = $region13
    $region12: #{netd_forward.9} parent=1 // pred_region
      _
    $region13: #{netd_forward.9} parent=1 // pred_fallthru
      _
    // Predicated region
    $region14: #{netd_forward.9} parent=1 // pred_check
      _
    $region15: #{netd_forward.9} parent=1 // pred_check_branch
      %25 = sbr.rel (0) target = $region17
    $region16: #{netd_forward.9} parent=1 // pred_region
      _
    $region17: #{netd_forward.9} parent=1 // pred_fallthru
      _
    // Predicated region
    $region18: #{netd_forward.9} parent=1 // pred_check
      _
    $region19: #{netd_forward.9} parent=1 // pred_check_branch
      %27 = sbr.rel (0) target = $region21
    $region20: #{netd_forward.9} parent=1 // pred_region
      _
    $region21: #{netd_forward.9} parent=1 // pred_fallthru
      _
    // Predicated region
    $region22: #{netd_forward.9} parent=1 // pred_check
      _
    $region23: #{netd_forward.9} parent=1 // pred_check_branch
      %29 = sbr.rel (0) target = $region25
    $region24: #{netd_forward.9} parent=1 // pred_region
      _
    $region25: #{netd_forward.9} parent=1 // pred_fallthru
      _
    %v31 = vld [vmem:[%s0] sm:$0xff]
    %v32 = vld [vmem:[%s0 + $0x8] sm:$0xff]
    %v33 = vld [vmem:[%s1] sm:$0xf]
    %v34 = vld [vmem:[%s1 + $0x4] sm:$0xf]
    %v35 = vld [vmem:[%s1 + $0x8] sm:$0xf]
    %v36 = vld [vmem:[%s1 + $0xc] sm:$0xf]
    %v37 = vld [vmem:[%s1 + $0x10] sm:$0xf]
    %v38 = vld [vmem:[%s1 + $0x14] sm:$0xf]
    %v39 = vld [vmem:[%s1 + $0x18] sm:$0xf]
    %v40 = vld [vmem:[%s1 + $0x1c] sm:$0xf]
    %v41 = vld [vmem:[%s1 + $0x20] sm:$0xf]
    %v42 = vld [vmem:[%s1 + $0x24] sm:$0xf]
    %v43 = vld [vmem:[%s1 + $0x28] sm:$0xf]
    %v44 = vld [vmem:[%s1 + $0x2c] sm:$0xf]
    %v45 = vld [vmem:[%s1 + $0x30] sm:$0xf]
    %v46 = vld [vmem:[%s1 + $0x34] sm:$0xf]
    %v47 = vld [vmem:[%s1 + $0x38] sm:$0xf]
    %v48 = vld [vmem:[%s1 + $0x3c] sm:$0xf]
    %v49 = vld [vmem:[%s1 + $0x40] sm:$0xf]
    %v50 = vld [vmem:[%s1 + $0x44] sm:$0xf]
    %v51 = vld [vmem:[%s1 + $0x48] sm:$0xf]
    %v52 = vld [vmem:[%s1 + $0x4c] sm:$0xf]
    %v53 = vld [vmem:[%s1 + $0x50] sm:$0xf]
    %v54 = vld [vmem:[%s1 + $0x54] sm:$0xf]
    %v55 = vld [vmem:[%s1 + $0x58] sm:$0xf]
    %v56 = vld [vmem:[%s1 + $0x5c] sm:$0xf]
    %v57 = vld [vmem:[%s1 + $0x60] sm:$0xf]
    %v58 = vld [vmem:[%s1 + $0x64] sm:$0xf]
    %v59 = vld [vmem:[%s1 + $0x68] sm:$0xf]
    %v60 = vld [vmem:[%s1 + $0x6c] sm:$0xf]
    %v61 = vld [vmem:[%s1 + $0x70] sm:$0xf]
    %v62 = vld [vmem:[%s1 + $0x74] sm:$0xf]
    %v63 = vld [vmem:[%s1 + $0x78] sm:$0xf]
    %v64 = vld [vmem:[%s1 + $0x7c] sm:$0xf]
    %v65 = vld [vmem:[%s1 + $0x80] sm:$0xf]
    %v66 = vld [vmem:[%s1 + $0x84] sm:$0xf]
    %v67 = vld [vmem:[%s1 + $0x88] sm:$0xf]
    %v68 = vld [vmem:[%s1 + $0x8c] sm:$0xf]
    %v69 = vld [vmem:[%s1 + $0x90] sm:$0xf]
    %v70 = vld [vmem:[%s1 + $0x94] sm:$0xf]
    %v71 = vld [vmem:[%s1 + $0x98] sm:$0xf]
    %v72 = vld [vmem:[%s1 + $0x9c] sm:$0xf]
    %v73 = vld [vmem:[%s1 + $0xa0] sm:$0xf]
    %v74 = vld [vmem:[%s1 + $0xa4] sm:$0xf]
    %v75 = vld [vmem:[%s1 + $0xa8] sm:$0xf]
    %v76 = vld [vmem:[%s1 + $0xac] sm:$0xf]
    %v77 = vld [vmem:[%s1 + $0xb0] sm:$0xf]
    %v78 = vld [vmem:[%s1 + $0xb4] sm:$0xf]
    %v79 = vld [vmem:[%s1 + $0xb8] sm:$0xf]
    %v80 = vld [vmem:[%s1 + $0xbc] sm:$0xf]
    %v81 = vld [vmem:[%s1 + $0xc0] sm:$0xf]
    %v82 = vld [vmem:[%s1 + $0xc4] sm:$0xf]
    %v83 = vld [vmem:[%s1 + $0xc8] sm:$0xf]
    %v84 = vld [vmem:[%s1 + $0xcc] sm:$0xf]
    %v85 = vld [vmem:[%s1 + $0xd0] sm:$0xf]
    %v86 = vld [vmem:[%s1 + $0xd4] sm:$0xf]
    %v87 = vld [vmem:[%s1 + $0xd8] sm:$0xf]
    %v88 = vld [vmem:[%s1 + $0xdc] sm:$0xf]
    %v89 = vld [vmem:[%s1 + $0xe0] sm:$0xf]
    %v90 = vld [vmem:[%s1 + $0xe4] sm:$0xf]
    %v91 = vld [vmem:[%s1 + $0xe8] sm:$0xf]
    %v92 = vld [vmem:[%s1 + $0xec] sm:$0xf]
    %v93 = vld [vmem:[%s1 + $0xf0] sm:$0xf]
    %v94 = vld [vmem:[%s1 + $0xf4] sm:$0xf]
    %v95 = vld [vmem:[%s1 + $0xf8] sm:$0xf]
    %v96 = vld [vmem:[%s1 + $0xfc] sm:$0xf]
    %v97 = vld [vmem:[%s1 + $0x100] sm:$0xf]
    %v98 = vld [vmem:[%s1 + $0x104] sm:$0xf]
    %v99 = vld [vmem:[%s1 + $0x108] sm:$0xf]
    %v100 = vld [vmem:[%s1 + $0x10c] sm:$0xf]
    %v101 = vld [vmem:[%s1 + $0x110] sm:$0xf]
    %v102 = vld [vmem:[%s1 + $0x114] sm:$0xf]
    %v103 = vld [vmem:[%s1 + $0x118] sm:$0xf]
    %v104 = vld [vmem:[%s1 + $0x11c] sm:$0xf]
    %v105 = vld [vmem:[%s1 + $0x120] sm:$0xf]
    %v106 = vld [vmem:[%s1 + $0x124] sm:$0xf]
    %v107 = vld [vmem:[%s1 + $0x128] sm:$0xf]
    %v108 = vld [vmem:[%s1 + $0x12c] sm:$0xf]
    %v109 = vld [vmem:[%s1 + $0x130] sm:$0xf]
    %v110 = vld [vmem:[%s1 + $0x134] sm:$0xf]
    %v111 = vld [vmem:[%s1 + $0x138] sm:$0xf]
    %v112 = vld [vmem:[%s1 + $0x13c] sm:$0xf]
    %v113 = vld [vmem:[%s1 + $0x140] sm:$0xf]
    %v114 = vld [vmem:[%s1 + $0x144] sm:$0xf]
    %v115 = vld [vmem:[%s1 + $0x148] sm:$0xf]
    %v116 = vld [vmem:[%s1 + $0x14c] sm:$0xf]
    %v117 = vld [vmem:[%s1 + $0x150] sm:$0xf]
    %v118 = vld [vmem:[%s1 + $0x154] sm:$0xf]
    %v119 = vld [vmem:[%s1 + $0x158] sm:$0xf]
    %v120 = vld [vmem:[%s1 + $0x15c] sm:$0xf]
    %v121 = vld [vmem:[%s1 + $0x160] sm:$0xf]
    %v122 = vld [vmem:[%s1 + $0x164] sm:$0xf]
    %v123 = vld [vmem:[%s1 + $0x168] sm:$0xf]
    %v124 = vld [vmem:[%s1 + $0x16c] sm:$0xf]
    %v125 = vld [vmem:[%s1 + $0x170] sm:$0xf]
    %v126 = vld [vmem:[%s1 + $0x174] sm:$0xf]
    %v127 = vld [vmem:[%s1 + $0x178] sm:$0xf]
    %v128 = vld [vmem:[%s1 + $0x17c] sm:$0xf]
    %v129 = vld [vmem:[%s1 + $0x180] sm:$0xf]
    %v130 = vld [vmem:[%s1 + $0x184] sm:$0xf]
    %v131 = vld [vmem:[%s1 + $0x188] sm:$0xf]
    %v132 = vld [vmem:[%s1 + $0x18c] sm:$0xf]
    %v133 = vld [vmem:[%s1 + $0x190] sm:$0xf]
    %v134 = vld [vmem:[%s1 + $0x194] sm:$0xf]
    %v135 = vld [vmem:[%s1 + $0x198] sm:$0xf]
    %v136 = vld [vmem:[%s1 + $0x19c] sm:$0xf]
    %v137 = vld [vmem:[%s1 + $0x1a0] sm:$0xf]
    %v138 = vld [vmem:[%s1 + $0x1a4] sm:$0xf]
    %v139 = vld [vmem:[%s1 + $0x1a8] sm:$0xf]
    %v140 = vld [vmem:[%s1 + $0x1ac] sm:$0xf]
    %v141 = vld [vmem:[%s1 + $0x1b0] sm:$0xf]
    %v142 = vld [vmem:[%s1 + $0x1b4] sm:$0xf]
    %v143 = vld [vmem:[%s1 + $0x1b8] sm:$0xf]
    %v144 = vld [vmem:[%s1 + $0x1bc] sm:$0xf]
    %v145 = vld [vmem:[%s1 + $0x1c0] sm:$0xf]
    %v146 = vld [vmem:[%s1 + $0x1c4] sm:$0xf]
    %v147 = vld [vmem:[%s1 + $0x1c8] sm:$0xf]
    %v148 = vld [vmem:[%s1 + $0x1cc] sm:$0xf]
    %v149 = vld [vmem:[%s1 + $0x1d0] sm:$0xf]
    %v150 = vld [vmem:[%s1 + $0x1d4] sm:$0xf]
    %v151 = vld [vmem:[%s1 + $0x1d8] sm:$0xf]
    %v152 = vld [vmem:[%s1 + $0x1dc] sm:$0xf]
    %v153 = vld [vmem:[%s1 + $0x1e0] sm:$0xf]
    %v154 = vld [vmem:[%s1 + $0x1e4] sm:$0xf]
    %v155 = vld [vmem:[%s1 + $0x1e8] sm:$0xf]
    %v156 = vld [vmem:[%s1 + $0x1ec] sm:$0xf]
    %v157 = vld [vmem:[%s1 + $0x1f0] sm:$0xf]
    %v158 = vld [vmem:[%s1 + $0x1f4] sm:$0xf]
    %v159 = vld [vmem:[%s1 + $0x1f8] sm:$0xf]
    %v160 = vld [vmem:[%s1 + $0x1fc] sm:$0xf]
    %v161 = vld [vmem:[%s1 + $0x200] sm:$0xf]
    %v162 = vld [vmem:[%s1 + $0x204] sm:$0xf]
    %v163 = vld [vmem:[%s1 + $0x208] sm:$0xf]
    %v164 = vld [vmem:[%s1 + $0x20c] sm:$0xf]
    %v165 = vld [vmem:[%s1 + $0x210] sm:$0xf]
    %v166 = vld [vmem:[%s1 + $0x214] sm:$0xf]
    %v167 = vld [vmem:[%s1 + $0x218] sm:$0xf]
    %v168 = vld [vmem:[%s1 + $0x21c] sm:$0xf]
    %v169 = vld [vmem:[%s1 + $0x220] sm:$0xf]
    %v170 = vld [vmem:[%s1 + $0x224] sm:$0xf]
    %v171 = vld [vmem:[%s1 + $0x228] sm:$0xf]
    %v172 = vld [vmem:[%s1 + $0x22c] sm:$0xf]
    %v173 = vld [vmem:[%s1 + $0x230] sm:$0xf]
    %v174 = vld [vmem:[%s1 + $0x234] sm:$0xf]
    %v175 = vld [vmem:[%s1 + $0x238] sm:$0xf]
    %v176 = vld [vmem:[%s1 + $0x23c] sm:$0xf]
    %v177 = vld [vmem:[%s1 + $0x240] sm:$0xf]
    %v178 = vld [vmem:[%s1 + $0x244] sm:$0xf]
    %v179 = vld [vmem:[%s1 + $0x248] sm:$0xf]
    %v180 = vld [vmem:[%s1 + $0x24c] sm:$0xf]
    %v181 = vld [vmem:[%s1 + $0x250] sm:$0xf]
    %v182 = vld [vmem:[%s1 + $0x254] sm:$0xf]
    %v183 = vld [vmem:[%s1 + $0x258] sm:$0xf]
    %v184 = vld [vmem:[%s1 + $0x25c] sm:$0xf]
    %v185 = vld [vmem:[%s1 + $0x260] sm:$0xf]
    %v186 = vld [vmem:[%s1 + $0x264] sm:$0xf]
    %v187 = vld [vmem:[%s1 + $0x268] sm:$0xf]
    %v188 = vld [vmem:[%s1 + $0x26c] sm:$0xf]
    %v189 = vld [vmem:[%s1 + $0x270] sm:$0xf]
    %v190 = vld [vmem:[%s1 + $0x274] sm:$0xf]
    %v191 = vld [vmem:[%s1 + $0x278] sm:$0xf]
    %v192 = vld [vmem:[%s1 + $0x27c] sm:$0xf]
    %v193 = vld [vmem:[%s1 + $0x280] sm:$0xf]
    %v194 = vld [vmem:[%s1 + $0x284] sm:$0xf]
    %v195 = vld [vmem:[%s1 + $0x288] sm:$0xf]
    %v196 = vld [vmem:[%s1 + $0x28c] sm:$0xf]
    %v197 = vld [vmem:[%s1 + $0x290] sm:$0xf]
    %v198 = vld [vmem:[%s1 + $0x294] sm:$0xf]
    %v199 = vld [vmem:[%s1 + $0x298] sm:$0xf]
    %v200 = vld [vmem:[%s1 + $0x29c] sm:$0xf]
    %v201 = vld [vmem:[%s1 + $0x2a0] sm:$0xf]
    %v202 = vld [vmem:[%s1 + $0x2a4] sm:$0xf]
    %v203 = vld [vmem:[%s1 + $0x2a8] sm:$0xf]
    %v204 = vld [vmem:[%s1 + $0x2ac] sm:$0xf]
    %v205 = vld [vmem:[%s1 + $0x2b0] sm:$0xf]
    %v206 = vld [vmem:[%s1 + $0x2b4] sm:$0xf]
    %v207 = vld [vmem:[%s1 + $0x2b8] sm:$0xf]
    %v208 = vld [vmem:[%s1 + $0x2bc] sm:$0xf]
    %v209 = vld [vmem:[%s1 + $0x2c0] sm:$0xf]
    %v210 = vld [vmem:[%s1 + $0x2c4] sm:$0xf]
    %v211 = vld [vmem:[%s1 + $0x2c8] sm:$0xf]
    %v212 = vld [vmem:[%s1 + $0x2cc] sm:$0xf]
    %v213 = vld [vmem:[%s1 + $0x2d0] sm:$0xf]
    %v214 = vld [vmem:[%s1 + $0x2d4] sm:$0xf]
    %v215 = vld [vmem:[%s1 + $0x2d8] sm:$0xf]
    %v216 = vld [vmem:[%s1 + $0x2dc] sm:$0xf]
    %v217 = vld [vmem:[%s1 + $0x2e0] sm:$0xf]
    %v218 = vld [vmem:[%s1 + $0x2e4] sm:$0xf]
    %v219 = vld [vmem:[%s1 + $0x2e8] sm:$0xf]
    %v220 = vld [vmem:[%s1 + $0x2ec] sm:$0xf]
    %v221 = vld [vmem:[%s1 + $0x2f0] sm:$0xf]
    %v222 = vld [vmem:[%s1 + $0x2f4] sm:$0xf]
    %v223 = vld [vmem:[%s1 + $0x2f8] sm:$0xf]
    %v224 = vld [vmem:[%s1 + $0x2fc] sm:$0xf]
    %v225 = vld [vmem:[%s1 + $0x300] sm:$0xf]
    %v226 = vld [vmem:[%s1 + $0x304] sm:$0xf]
    %v227 = vld [vmem:[%s1 + $0x308] sm:$0xf]
    %v228 = vld [vmem:[%s1 + $0x30c] sm:$0xf]
    %v229 = vld [vmem:[%s1 + $0x310] sm:$0xf]
    %v230 = vld [vmem:[%s1 + $0x314] sm:$0xf]
    %v231 = vld [vmem:[%s1 + $0x318] sm:$0xf]
    %v232 = vld [vmem:[%s1 + $0x31c] sm:$0xf]
    %v233 = vld [vmem:[%s1 + $0x320] sm:$0xf]
    %v234 = vld [vmem:[%s1 + $0x324] sm:$0xf]
    %v235 = vld [vmem:[%s1 + $0x328] sm:$0xf]
    %v236 = vld [vmem:[%s1 + $0x32c] sm:$0xf]
    %v237 = vld [vmem:[%s1 + $0x330] sm:$0xf]
    %v238 = vld [vmem:[%s1 + $0x334] sm:$0xf]
    %v239 = vld [vmem:[%s1 + $0x338] sm:$0xf]
    %v240 = vld [vmem:[%s1 + $0x33c] sm:$0xf]
    %v241 = vld [vmem:[%s1 + $0x340] sm:$0xf]
    %v242 = vld [vmem:[%s1 + $0x344] sm:$0xf]
    %v243 = vld [vmem:[%s1 + $0x348] sm:$0xf]
    %v244 = vld [vmem:[%s1 + $0x34c] sm:$0xf]
    %v245 = vld [vmem:[%s1 + $0x350] sm:$0xf]
    %v246 = vld [vmem:[%s1 + $0x354] sm:$0xf]
    %v247 = vld [vmem:[%s1 + $0x358] sm:$0xf]
    %v248 = vld [vmem:[%s1 + $0x35c] sm:$0xf]
    %v249 = vld [vmem:[%s1 + $0x360] sm:$0xf]
    %v250 = vld [vmem:[%s1 + $0x364] sm:$0xf]
    %v251 = vld [vmem:[%s1 + $0x368] sm:$0xf]
    %v252 = vld [vmem:[%s1 + $0x36c] sm:$0xf]
    %v253 = vld [vmem:[%s1 + $0x370] sm:$0xf]
    %v254 = vld [vmem:[%s1 + $0x374] sm:$0xf]
    %v255 = vld [vmem:[%s1 + $0x378] sm:$0xf]
    %v256 = vld [vmem:[%s1 + $0x37c] sm:$0xf]
    %v257 = vld [vmem:[%s1 + $0x380] sm:$0xf]
    %v258 = vld [vmem:[%s1 + $0x384] sm:$0xf]
    %v259 = vld [vmem:[%s1 + $0x388] sm:$0xf]
    %v260 = vld [vmem:[%s1 + $0x38c] sm:$0xf]
    %v261 = vld [vmem:[%s1 + $0x390] sm:$0xf]
    %v262 = vld [vmem:[%s1 + $0x394] sm:$0xf]
    %v263 = vld [vmem:[%s1 + $0x398] sm:$0xf]
    %v264 = vld [vmem:[%s1 + $0x39c] sm:$0xf]
    %v265 = vld [vmem:[%s1 + $0x3a0] sm:$0xf]
    %v266 = vld [vmem:[%s1 + $0x3a4] sm:$0xf]
    %v267 = vld [vmem:[%s1 + $0x3a8] sm:$0xf]
    %v268 = vld [vmem:[%s1 + $0x3ac] sm:$0xf]
    %v269 = vld [vmem:[%s1 + $0x3b0] sm:$0xf]
    %v270 = vld [vmem:[%s1 + $0x3b4] sm:$0xf]
    %v271 = vld [vmem:[%s1 + $0x3b8] sm:$0xf]
    %v272 = vld [vmem:[%s1 + $0x3bc] sm:$0xf]
    %v273 = vld [vmem:[%s1 + $0x3c0] sm:$0xf]
    %v274 = vld [vmem:[%s1 + $0x3c4] sm:$0xf]
    %v275 = vld [vmem:[%s1 + $0x3c8] sm:$0xf]
    %v276 = vld [vmem:[%s1 + $0x3cc] sm:$0xf]
    %v277 = vld [vmem:[%s1 + $0x3d0] sm:$0xf]
    %v278 = vld [vmem:[%s1 + $0x3d4] sm:$0xf]
    %v279 = vld [vmem:[%s1 + $0x3d8] sm:$0xf]
    %v280 = vld [vmem:[%s1 + $0x3dc] sm:$0xf]
    %v281 = vld [vmem:[%s1 + $0x3e0] sm:$0xf]
    %v282 = vld [vmem:[%s1 + $0x3e4] sm:$0xf]
    %v283 = vld [vmem:[%s1 + $0x3e8] sm:$0xf]
    %v284 = vld [vmem:[%s1 + $0x3ec] sm:$0xf]
    %v285 = vld [vmem:[%s1 + $0x3f0] sm:$0xf]
    %v286 = vld [vmem:[%s1 + $0x3f4] sm:$0xf]
    %v287 = vld [vmem:[%s1 + $0x3f8] sm:$0xf]
    %v288 = vld [vmem:[%s1 + $0x3fc] sm:$0xf]
    %v291 = vcombine.high %v31, %v31
    %v293 = vunpack.c.l.s4 1966171168
    %v294 = vunpack.c.0.s8 %v293
    %v295 = vlaneseq
    %v296 = vshrl.u32 %v295, 7
    %v297 = vsub.s32 %v294, %v296
    %v298 = vrot.slane %v31, %v297
    %v300 = vunpack.c.l.s4 1966171168
    %v301 = vunpack.c.0.s8 %v300
    %v302 = vlaneseq
    %v303 = vshrl.u32 %v302, 7
    %v304 = vsub.s32 %v301, %v303
    %v305 = vrot.slane %v291, %v304
    %v306 = vcombine.high %v298, %v298
    %v307 = vcombine.high %v305, %v305
    %v309 = vunpack.c.l.s4 1966171168
    %v310 = vunpack.c.0.s8 %v309
    %v311 = vlaneseq
    %v312 = vshrl.u32 %v311, 7
    %v313 = vsub.s32 %v310, %v312
    %v314 = vrot.slane %v298, %v313
    %v316 = vunpack.c.l.s4 1966171168
    %v317 = vunpack.c.0.s8 %v316
    %v318 = vlaneseq
    %v319 = vshrl.u32 %v318, 7
    %v320 = vsub.s32 %v317, %v319
    %v321 = vrot.slane %v305, %v320
    %v323 = vunpack.c.l.s4 1966171168
    %v324 = vunpack.c.0.s8 %v323
    %v325 = vlaneseq
    %v326 = vshrl.u32 %v325, 7
    %v327 = vsub.s32 %v324, %v326
    %v328 = vrot.slane %v306, %v327
    %v330 = vunpack.c.l.s4 1966171168
    %v331 = vunpack.c.0.s8 %v330
    %v332 = vlaneseq
    %v333 = vshrl.u32 %v332, 7
    %v334 = vsub.s32 %v331, %v333
    %v335 = vrot.slane %v307, %v334
    %v336 = vcombine.high %v314, %v314
    %v337 = vcombine.high %v321, %v321
    %v338 = vcombine.high %v328, %v328
    %v339 = vcombine.high %v335, %v335
    %v340 = vcombine.high %v32, %v32
    %v342 = vunpack.c.l.s4 1966171168
    %v343 = vunpack.c.0.s8 %v342
    %v344 = vlaneseq
    %v345 = vshrl.u32 %v344, 7
    %v346 = vsub.s32 %v343, %v345
    %v347 = vrot.slane %v32, %v346
    %v349 = vunpack.c.l.s4 1966171168
    %v350 = vunpack.c.0.s8 %v349
    %v351 = vlaneseq
    %v352 = vshrl.u32 %v351, 7
    %v353 = vsub.s32 %v350, %v352
    %v354 = vrot.slane %v340, %v353
    %v355 = vcombine.high %v347, %v347
    %v356 = vcombine.high %v354, %v354
    %v358 = vunpack.c.l.s4 1966171168
    %v359 = vunpack.c.0.s8 %v358
    %v360 = vlaneseq
    %v361 = vshrl.u32 %v360, 7
    %v362 = vsub.s32 %v359, %v361
    %v363 = vrot.slane %v347, %v362
    %v365 = vunpack.c.l.s4 1966171168
    %v366 = vunpack.c.0.s8 %v365
    %v367 = vlaneseq
    %v368 = vshrl.u32 %v367, 7
    %v369 = vsub.s32 %v366, %v368
    %v370 = vrot.slane %v354, %v369
    %v372 = vunpack.c.l.s4 1966171168
    %v373 = vunpack.c.0.s8 %v372
    %v374 = vlaneseq
    %v375 = vshrl.u32 %v374, 7
    %v376 = vsub.s32 %v373, %v375
    %v377 = vrot.slane %v355, %v376
    %v379 = vunpack.c.l.s4 1966171168
    %v380 = vunpack.c.0.s8 %v379
    %v381 = vlaneseq
    %v382 = vshrl.u32 %v381, 7
    %v383 = vsub.s32 %v380, %v382
    %v384 = vrot.slane %v356, %v383
    %v385 = vcombine.high %v363, %v363
    %v386 = vcombine.high %v370, %v370
    %v387 = vcombine.high %v377, %v377
    %v388 = vcombine.high %v384, %v384
    %v661 = vunpack.c.l.b16 %v33
    %v662 = vunpack.c.l.b16 %v34
    %v663 = vunpack.c.l.b16 %v35
    %v664 = vunpack.c.l.b16 %v36
    %v665 = vunpack.c.l.b16 %v37
    %v666 = vunpack.c.l.b16 %v38
    %v667 = vunpack.c.l.b16 %v39
    %v668 = vunpack.c.l.b16 %v40
    %v669 = vunpack.c.l.b16 %v41
    %v670 = vunpack.c.l.b16 %v42
    %v671 = vunpack.c.l.b16 %v43
    %v672 = vunpack.c.l.b16 %v44
    %v673 = vunpack.c.l.b16 %v45
    %v674 = vunpack.c.l.b16 %v46
    %v675 = vunpack.c.l.b16 %v47
    %v676 = vunpack.c.l.b16 %v48
    %v677 = vunpack.c.l.b16 %v49
    %v678 = vunpack.c.l.b16 %v50
    %v679 = vunpack.c.l.b16 %v51
    %v680 = vunpack.c.l.b16 %v52
    %v681 = vunpack.c.l.b16 %v53
    %v682 = vunpack.c.l.b16 %v54
    %v683 = vunpack.c.l.b16 %v55
    %v684 = vunpack.c.l.b16 %v56
    %v685 = vunpack.c.l.b16 %v57
    %v686 = vunpack.c.l.b16 %v58
    %v687 = vunpack.c.l.b16 %v59
    %v688 = vunpack.c.l.b16 %v60
    %v689 = vunpack.c.l.b16 %v61
    %v690 = vunpack.c.l.b16 %v62
    %v691 = vunpack.c.l.b16 %v63
    %v692 = vunpack.c.l.b16 %v64
    %v693 = vunpack.c.l.b16 %v65
    %v694 = vunpack.c.l.b16 %v66
    %v695 = vunpack.c.l.b16 %v67
    %v696 = vunpack.c.l.b16 %v68
    %v697 = vunpack.c.l.b16 %v69
    %v698 = vunpack.c.l.b16 %v70
    %v699 = vunpack.c.l.b16 %v71
    %v700 = vunpack.c.l.b16 %v72
    %v701 = vunpack.c.l.b16 %v73
    %v702 = vunpack.c.l.b16 %v74
    %v703 = vunpack.c.l.b16 %v75
    %v704 = vunpack.c.l.b16 %v76
    %v705 = vunpack.c.l.b16 %v77
    %v706 = vunpack.c.l.b16 %v78
    %v707 = vunpack.c.l.b16 %v79
    %v708 = vunpack.c.l.b16 %v80
    %v709 = vunpack.c.l.b16 %v81
    %v710 = vunpack.c.l.b16 %v82
    %v711 = vunpack.c.l.b16 %v83
    %v712 = vunpack.c.l.b16 %v84
    %v713 = vunpack.c.l.b16 %v85
    %v714 = vunpack.c.l.b16 %v86
    %v715 = vunpack.c.l.b16 %v87
    %v716 = vunpack.c.l.b16 %v88
    %v717 = vunpack.c.l.b16 %v89
    %v718 = vunpack.c.l.b16 %v90
    %v719 = vunpack.c.l.b16 %v91
    %v720 = vunpack.c.l.b16 %v92
    %v721 = vunpack.c.l.b16 %v93
    %v722 = vunpack.c.l.b16 %v94
    %v723 = vunpack.c.l.b16 %v95
    %v724 = vunpack.c.l.b16 %v96
    %v725 = vunpack.c.l.b16 %v97
    %v726 = vunpack.c.l.b16 %v98
    %v727 = vunpack.c.l.b16 %v99
    %v728 = vunpack.c.l.b16 %v100
    %v729 = vunpack.c.l.b16 %v101
    %v730 = vunpack.c.l.b16 %v102
    %v731 = vunpack.c.l.b16 %v103
    %v732 = vunpack.c.l.b16 %v104
    %v733 = vunpack.c.l.b16 %v105
    %v734 = vunpack.c.l.b16 %v106
    %v735 = vunpack.c.l.b16 %v107
    %v736 = vunpack.c.l.b16 %v108
    %v737 = vunpack.c.l.b16 %v109
    %v738 = vunpack.c.l.b16 %v110
    %v739 = vunpack.c.l.b16 %v111
    %v740 = vunpack.c.l.b16 %v112
    %v741 = vunpack.c.l.b16 %v113
    %v742 = vunpack.c.l.b16 %v114
    %v743 = vunpack.c.l.b16 %v115
    %v744 = vunpack.c.l.b16 %v116
    %v745 = vunpack.c.l.b16 %v117
    %v746 = vunpack.c.l.b16 %v118
    %v747 = vunpack.c.l.b16 %v119
    %v748 = vunpack.c.l.b16 %v120
    %v749 = vunpack.c.l.b16 %v121
    %v750 = vunpack.c.l.b16 %v122
    %v751 = vunpack.c.l.b16 %v123
    %v752 = vunpack.c.l.b16 %v124
    %v753 = vunpack.c.l.b16 %v125
    %v754 = vunpack.c.l.b16 %v126
    %v755 = vunpack.c.l.b16 %v127
    %v756 = vunpack.c.l.b16 %v128
    %v757 = vunpack.c.l.b16 %v129
    %v758 = vunpack.c.l.b16 %v130
    %v759 = vunpack.c.l.b16 %v131
    %v760 = vunpack.c.l.b16 %v132
    %v761 = vunpack.c.l.b16 %v133
    %v762 = vunpack.c.l.b16 %v134
    %v763 = vunpack.c.l.b16 %v135
    %v764 = vunpack.c.l.b16 %v136
    %v765 = vunpack.c.l.b16 %v137
    %v766 = vunpack.c.l.b16 %v138
    %v767 = vunpack.c.l.b16 %v139
    %v768 = vunpack.c.l.b16 %v140
    %v769 = vunpack.c.l.b16 %v141
    %v770 = vunpack.c.l.b16 %v142
    %v771 = vunpack.c.l.b16 %v143
    %v772 = vunpack.c.l.b16 %v144
    %v773 = vunpack.c.l.b16 %v145
    %v774 = vunpack.c.l.b16 %v146
    %v775 = vunpack.c.l.b16 %v147
    %v776 = vunpack.c.l.b16 %v148
    %v777 = vunpack.c.l.b16 %v149
    %v778 = vunpack.c.l.b16 %v150
    %v779 = vunpack.c.l.b16 %v151
    %v780 = vunpack.c.l.b16 %v152
    %v781 = vunpack.c.l.b16 %v153
    %v782 = vunpack.c.l.b16 %v154
    %v783 = vunpack.c.l.b16 %v155
    %v784 = vunpack.c.l.b16 %v156
    %v785 = vunpack.c.l.b16 %v157
    %v786 = vunpack.c.l.b16 %v158
    %v787 = vunpack.c.l.b16 %v159
    %v788 = vunpack.c.l.b16 %v160
    %v789 = vunpack.c.l.b16 %v161
    %v790 = vunpack.c.l.b16 %v162
    %v791 = vunpack.c.l.b16 %v163
    %v792 = vunpack.c.l.b16 %v164
    %v793 = vunpack.c.l.b16 %v165
    %v794 = vunpack.c.l.b16 %v166
    %v795 = vunpack.c.l.b16 %v167
    %v796 = vunpack.c.l.b16 %v168
    %v797 = vunpack.c.l.b16 %v169
    %v798 = vunpack.c.l.b16 %v170
    %v799 = vunpack.c.l.b16 %v171
    %v800 = vunpack.c.l.b16 %v172
    %v801 = vunpack.c.l.b16 %v173
    %v802 = vunpack.c.l.b16 %v174
    %v803 = vunpack.c.l.b16 %v175
    %v804 = vunpack.c.l.b16 %v176
    %v805 = vunpack.c.l.b16 %v177
    %v806 = vunpack.c.l.b16 %v178
    %v807 = vunpack.c.l.b16 %v179
    %v808 = vunpack.c.l.b16 %v180
    %v809 = vunpack.c.l.b16 %v181
    %v810 = vunpack.c.l.b16 %v182
    %v811 = vunpack.c.l.b16 %v183
    %v812 = vunpack.c.l.b16 %v184
    %v813 = vunpack.c.l.b16 %v185
    %v814 = vunpack.c.l.b16 %v186
    %v815 = vunpack.c.l.b16 %v187
    %v816 = vunpack.c.l.b16 %v188
    %v817 = vunpack.c.l.b16 %v189
    %v818 = vunpack.c.l.b16 %v190
    %v819 = vunpack.c.l.b16 %v191
    %v820 = vunpack.c.l.b16 %v192
    %v821 = vunpack.c.l.b16 %v193
    %v822 = vunpack.c.l.b16 %v194
    %v823 = vunpack.c.l.b16 %v195
    %v824 = vunpack.c.l.b16 %v196
    %v825 = vunpack.c.l.b16 %v197
    %v826 = vunpack.c.l.b16 %v198
    %v827 = vunpack.c.l.b16 %v199
    %v828 = vunpack.c.l.b16 %v200
    %v829 = vunpack.c.l.b16 %v201
    %v830 = vunpack.c.l.b16 %v202
    %v831 = vunpack.c.l.b16 %v203
    %v832 = vunpack.c.l.b16 %v204
    %v833 = vunpack.c.l.b16 %v205
    %v834 = vunpack.c.l.b16 %v206
    %v835 = vunpack.c.l.b16 %v207
    %v836 = vunpack.c.l.b16 %v208
    %v837 = vunpack.c.l.b16 %v209
    %v838 = vunpack.c.l.b16 %v210
    %v839 = vunpack.c.l.b16 %v211
    %v840 = vunpack.c.l.b16 %v212
    %v841 = vunpack.c.l.b16 %v213
    %v842 = vunpack.c.l.b16 %v214
    %v843 = vunpack.c.l.b16 %v215
    %v844 = vunpack.c.l.b16 %v216
    %v845 = vunpack.c.l.b16 %v217
    %v846 = vunpack.c.l.b16 %v218
    %v847 = vunpack.c.l.b16 %v219
    %v848 = vunpack.c.l.b16 %v220
    %v849 = vunpack.c.l.b16 %v221
    %v850 = vunpack.c.l.b16 %v222
    %v851 = vunpack.c.l.b16 %v223
    %v852 = vunpack.c.l.b16 %v224
    %v853 = vunpack.c.l.b16 %v225
    %v854 = vunpack.c.l.b16 %v226
    %v855 = vunpack.c.l.b16 %v227
    %v856 = vunpack.c.l.b16 %v228
    %v857 = vunpack.c.l.b16 %v229
    %v858 = vunpack.c.l.b16 %v230
    %v859 = vunpack.c.l.b16 %v231
    %v860 = vunpack.c.l.b16 %v232
    %v861 = vunpack.c.l.b16 %v233
    %v862 = vunpack.c.l.b16 %v234
    %v863 = vunpack.c.l.b16 %v235
    %v864 = vunpack.c.l.b16 %v236
    %v865 = vunpack.c.l.b16 %v237
    %v866 = vunpack.c.l.b16 %v238
    %v867 = vunpack.c.l.b16 %v239
    %v868 = vunpack.c.l.b16 %v240
    %v869 = vunpack.c.l.b16 %v241
    %v870 = vunpack.c.l.b16 %v242
    %v871 = vunpack.c.l.b16 %v243
    %v872 = vunpack.c.l.b16 %v244
    %v873 = vunpack.c.l.b16 %v245
    %v874 = vunpack.c.l.b16 %v246
    %v875 = vunpack.c.l.b16 %v247
    %v876 = vunpack.c.l.b16 %v248
    %v877 = vunpack.c.l.b16 %v249
    %v878 = vunpack.c.l.b16 %v250
    %v879 = vunpack.c.l.b16 %v251
    %v880 = vunpack.c.l.b16 %v252
    %v881 = vunpack.c.l.b16 %v253
    %v882 = vunpack.c.l.b16 %v254
    %v883 = vunpack.c.l.b16 %v255
    %v884 = vunpack.c.l.b16 %v256
    %v885 = vunpack.c.l.b16 %v257
    %v886 = vunpack.c.l.b16 %v258
    %v887 = vunpack.c.l.b16 %v259
    %v888 = vunpack.c.l.b16 %v260
    %v889 = vunpack.c.l.b16 %v261
    %v890 = vunpack.c.l.b16 %v262
    %v891 = vunpack.c.l.b16 %v263
    %v892 = vunpack.c.l.b16 %v264
    %v893 = vunpack.c.l.b16 %v265
    %v894 = vunpack.c.l.b16 %v266
    %v895 = vunpack.c.l.b16 %v267
    %v896 = vunpack.c.l.b16 %v268
    %v897 = vunpack.c.l.b16 %v269
    %v898 = vunpack.c.l.b16 %v270
    %v899 = vunpack.c.l.b16 %v271
    %v900 = vunpack.c.l.b16 %v272
    %v901 = vunpack.c.l.b16 %v273
    %v902 = vunpack.c.l.b16 %v274
    %v903 = vunpack.c.l.b16 %v275
    %v904 = vunpack.c.l.b16 %v276
    %v905 = vunpack.c.l.b16 %v277
    %v906 = vunpack.c.l.b16 %v278
    %v907 = vunpack.c.l.b16 %v279
    %v908 = vunpack.c.l.b16 %v280
    %v909 = vunpack.c.l.b16 %v281
    %v910 = vunpack.c.l.b16 %v282
    %v911 = vunpack.c.l.b16 %v283
    %v912 = vunpack.c.l.b16 %v284
    %v913 = vunpack.c.l.b16 %v285
    %v914 = vunpack.c.l.b16 %v286
    %v915 = vunpack.c.l.b16 %v287
    %v916 = vunpack.c.l.b16 %v288
    %v917 = vpack.c.b16 %v662, %v661
    %v918 = vpack.c.b16 %v664, %v663
    %v919 = vpack.c.b16 %v666, %v665
    %v920 = vpack.c.b16 %v668, %v667
    %v921 = vpack.c.b16 %v670, %v669
    %v922 = vpack.c.b16 %v672, %v671
    %v923 = vpack.c.b16 %v674, %v673
    %v924 = vpack.c.b16 %v676, %v675
    %v925 = vpack.c.b16 %v678, %v677
    %v926 = vpack.c.b16 %v680, %v679
    %v927 = vpack.c.b16 %v682, %v681
    %v928 = vpack.c.b16 %v684, %v683
    %v929 = vpack.c.b16 %v686, %v685
    %v930 = vpack.c.b16 %v688, %v687
    %v931 = vpack.c.b16 %v690, %v689
    %v932 = vpack.c.b16 %v692, %v691
    %v933 = vpack.c.b16 %v694, %v693
    %v934 = vpack.c.b16 %v696, %v695
    %v935 = vpack.c.b16 %v698, %v697
    %v936 = vpack.c.b16 %v700, %v699
    %v937 = vpack.c.b16 %v702, %v701
    %v938 = vpack.c.b16 %v704, %v703
    %v939 = vpack.c.b16 %v706, %v705
    %v940 = vpack.c.b16 %v708, %v707
    %v941 = vpack.c.b16 %v710, %v709
    %v942 = vpack.c.b16 %v712, %v711
    %v943 = vpack.c.b16 %v714, %v713
    %v944 = vpack.c.b16 %v716, %v715
    %v945 = vpack.c.b16 %v718, %v717
    %v946 = vpack.c.b16 %v720, %v719
    %v947 = vpack.c.b16 %v722, %v721
    %v948 = vpack.c.b16 %v724, %v723
    %v949 = vpack.c.b16 %v726, %v725
    %v950 = vpack.c.b16 %v728, %v727
    %v951 = vpack.c.b16 %v730, %v729
    %v952 = vpack.c.b16 %v732, %v731
    %v953 = vpack.c.b16 %v734, %v733
    %v954 = vpack.c.b16 %v736, %v735
    %v955 = vpack.c.b16 %v738, %v737
    %v956 = vpack.c.b16 %v740, %v739
    %v957 = vpack.c.b16 %v742, %v741
    %v958 = vpack.c.b16 %v744, %v743
    %v959 = vpack.c.b16 %v746, %v745
    %v960 = vpack.c.b16 %v748, %v747
    %v961 = vpack.c.b16 %v750, %v749
    %v962 = vpack.c.b16 %v752, %v751
    %v963 = vpack.c.b16 %v754, %v753
    %v964 = vpack.c.b16 %v756, %v755
    %v965 = vpack.c.b16 %v758, %v757
    %v966 = vpack.c.b16 %v760, %v759
    %v967 = vpack.c.b16 %v762, %v761
    %v968 = vpack.c.b16 %v764, %v763
    %v969 = vpack.c.b16 %v766, %v765
    %v970 = vpack.c.b16 %v768, %v767
    %v971 = vpack.c.b16 %v770, %v769
    %v972 = vpack.c.b16 %v772, %v771
    %v973 = vpack.c.b16 %v774, %v773
    %v974 = vpack.c.b16 %v776, %v775
    %v975 = vpack.c.b16 %v778, %v777
    %v976 = vpack.c.b16 %v780, %v779
    %v977 = vpack.c.b16 %v782, %v781
    %v978 = vpack.c.b16 %v784, %v783
    %v979 = vpack.c.b16 %v786, %v785
    %v980 = vpack.c.b16 %v788, %v787
    %v981 = vpack.c.b16 %v790, %v789
    %v982 = vpack.c.b16 %v792, %v791
    %v983 = vpack.c.b16 %v794, %v793
    %v984 = vpack.c.b16 %v796, %v795
    %v985 = vpack.c.b16 %v798, %v797
    %v986 = vpack.c.b16 %v800, %v799
    %v987 = vpack.c.b16 %v802, %v801
    %v988 = vpack.c.b16 %v804, %v803
    %v989 = vpack.c.b16 %v806, %v805
    %v990 = vpack.c.b16 %v808, %v807
    %v991 = vpack.c.b16 %v810, %v809
    %v992 = vpack.c.b16 %v812, %v811
    %v993 = vpack.c.b16 %v814, %v813
    %v994 = vpack.c.b16 %v816, %v815
    %v995 = vpack.c.b16 %v818, %v817
    %v996 = vpack.c.b16 %v820, %v819
    %v997 = vpack.c.b16 %v822, %v821
    %v998 = vpack.c.b16 %v824, %v823
    %v999 = vpack.c.b16 %v826, %v825
    %v1000 = vpack.c.b16 %v828, %v827
    %v1001 = vpack.c.b16 %v830, %v829
    %v1002 = vpack.c.b16 %v832, %v831
    %v1003 = vpack.c.b16 %v834, %v833
    %v1004 = vpack.c.b16 %v836, %v835
    %v1005 = vpack.c.b16 %v838, %v837
    %v1006 = vpack.c.b16 %v840, %v839
    %v1007 = vpack.c.b16 %v842, %v841
    %v1008 = vpack.c.b16 %v844, %v843
    %v1009 = vpack.c.b16 %v846, %v845
    %v1010 = vpack.c.b16 %v848, %v847
    %v1011 = vpack.c.b16 %v850, %v849
    %v1012 = vpack.c.b16 %v852, %v851
    %v1013 = vpack.c.b16 %v854, %v853
    %v1014 = vpack.c.b16 %v856, %v855
    %v1015 = vpack.c.b16 %v858, %v857
    %v1016 = vpack.c.b16 %v860, %v859
    %v1017 = vpack.c.b16 %v862, %v861
    %v1018 = vpack.c.b16 %v864, %v863
    %v1019 = vpack.c.b16 %v866, %v865
    %v1020 = vpack.c.b16 %v868, %v867
    %v1021 = vpack.c.b16 %v870, %v869
    %v1022 = vpack.c.b16 %v872, %v871
    %v1023 = vpack.c.b16 %v874, %v873
    %v1024 = vpack.c.b16 %v876, %v875
    %v1025 = vpack.c.b16 %v878, %v877
    %v1026 = vpack.c.b16 %v880, %v879
    %v1027 = vpack.c.b16 %v882, %v881
    %v1028 = vpack.c.b16 %v884, %v883
    %v1029 = vpack.c.b16 %v886, %v885
    %v1030 = vpack.c.b16 %v888, %v887
    %v1031 = vpack.c.b16 %v890, %v889
    %v1032 = vpack.c.b16 %v892, %v891
    %v1033 = vpack.c.b16 %v894, %v893
    %v1034 = vpack.c.b16 %v896, %v895
    %v1035 = vpack.c.b16 %v898, %v897
    %v1036 = vpack.c.b16 %v900, %v899
    %v1037 = vpack.c.b16 %v902, %v901
    %v1038 = vpack.c.b16 %v904, %v903
    %v1039 = vpack.c.b16 %v906, %v905
    %v1040 = vpack.c.b16 %v908, %v907
    %v1041 = vpack.c.b16 %v910, %v909
    %v1042 = vpack.c.b16 %v912, %v911
    %v1043 = vpack.c.b16 %v914, %v913
    %v1044 = vpack.c.b16 %v916, %v915
    %1173 = vmatprep.subr.bf16.mxu0 0
    %1174 = vmatpush1.bf16.msra.mxu0 %v924
    %1175 = vmatprep.subr.bf16.mxu0 0
    %1176 = vmatpush1.bf16.msra.mxu0 %v923
    %1177 = vmatprep.subr.bf16.mxu0 0
    %1178 = vmatpush1.bf16.msra.mxu0 %v922
    %1179 = vmatprep.subr.bf16.mxu0 0
    %1180 = vmatpush1.bf16.msra.mxu0 %v921
    %1181 = vmatprep.subr.bf16.mxu0 0
    %1182 = vmatpush1.bf16.msra.mxu0 %v920
    %1183 = vmatprep.subr.bf16.mxu0 0
    %1184 = vmatpush1.bf16.msra.mxu0 %v919
    %1185 = vmatprep.subr.bf16.mxu0 0
    %1186 = vmatpush1.bf16.msra.mxu0 %v918
    %1187 = vmatprep.subr.bf16.mxu0 0
    %1188 = vmatpush1.bf16.msra.mxu0 %v917
    %1189 = vmatprep.subr.bf16.mxu0 0
    %1190 = vmatpush2.bf16.msra.mxu0 %v932
    %1191 = vmatprep.subr.bf16.mxu0 0
    %1192 = vmatpush2.bf16.msra.mxu0 %v931
    %1193 = vmatprep.subr.bf16.mxu0 0
    %1194 = vmatpush2.bf16.msra.mxu0 %v930
    %1195 = vmatprep.subr.bf16.mxu0 0
    %1196 = vmatpush2.bf16.msra.mxu0 %v929
    %1197 = vmatprep.subr.bf16.mxu0 0
    %1198 = vmatpush2.bf16.msra.mxu0 %v928
    %1199 = vmatprep.subr.bf16.mxu0 0
    %1200 = vmatpush2.bf16.msra.mxu0 %v927
    %1201 = vmatprep.subr.bf16.mxu0 0
    %1202 = vmatpush2.bf16.msra.mxu0 %v926
    %1203 = vmatprep.subr.bf16.mxu0 0
    %1204 = vmatpush2.bf16.msra.mxu0 %v925
    %1205 = vmatprep.mubr.bf16.mxu0 %v328
    %1206 = vmatmul.mubr.bf16.gmra.mxu0 %v314
    %v1207 = vpop.f32.mrf.mxu0
    %v1208 = vadd.f32 0.0, %v1207
    %v1209 = vpop.f32.mrf.mxu0
    %v1210 = vpop.f32.mrf.mxu0
    %v1211 = vpop.f32.mrf.mxu0
    %1212 = vdwg.mxu0
    %1213 = vmatprep.subr.bf16.mxu0 0
    %1214 = vmatpush1.bf16.msra.mxu0 %v940
    %1215 = vmatprep.subr.bf16.mxu0 0
    %1216 = vmatpush1.bf16.msra.mxu0 %v939
    %1217 = vmatprep.subr.bf16.mxu0 0
    %1218 = vmatpush1.bf16.msra.mxu0 %v938
    %1219 = vmatprep.subr.bf16.mxu0 0
    %1220 = vmatpush1.bf16.msra.mxu0 %v937
    %1221 = vmatprep.subr.bf16.mxu0 0
    %1222 = vmatpush1.bf16.msra.mxu0 %v936
    %1223 = vmatprep.subr.bf16.mxu0 0
    %1224 = vmatpush1.bf16.msra.mxu0 %v935
    %1225 = vmatprep.subr.bf16.mxu0 0
    %1226 = vmatpush1.bf16.msra.mxu0 %v934
    %1227 = vmatprep.subr.bf16.mxu0 0
    %1228 = vmatpush1.bf16.msra.mxu0 %v933
    %1229 = vmatprep.subr.bf16.mxu0 0
    %1230 = vmatpush2.bf16.msra.mxu0 %v948
    %1231 = vmatprep.subr.bf16.mxu0 0
    %1232 = vmatpush2.bf16.msra.mxu0 %v947
    %1233 = vmatprep.subr.bf16.mxu0 0
    %1234 = vmatpush2.bf16.msra.mxu0 %v946
    %1235 = vmatprep.subr.bf16.mxu0 0
    %1236 = vmatpush2.bf16.msra.mxu0 %v945
    %1237 = vmatprep.subr.bf16.mxu0 0
    %1238 = vmatpush2.bf16.msra.mxu0 %v944
    %1239 = vmatprep.subr.bf16.mxu0 0
    %1240 = vmatpush2.bf16.msra.mxu0 %v943
    %1241 = vmatprep.subr.bf16.mxu0 0
    %1242 = vmatpush2.bf16.msra.mxu0 %v942
    %1243 = vmatprep.subr.bf16.mxu0 0
    %1244 = vmatpush2.bf16.msra.mxu0 %v941
    %1245 = vmatprep.mubr.bf16.mxu0 %v338
    %1246 = vmatmul.mubr.bf16.gmra.mxu0 %v336
    %v1247 = vpop.f32.mrf.mxu0
    %v1248 = vadd.f32 %v1208, %v1247
    %v1249 = vpop.f32.mrf.mxu0
    %v1250 = vpop.f32.mrf.mxu0
    %v1251 = vpop.f32.mrf.mxu0
    %1252 = vdwg.mxu0
    %1253 = vmatprep.subr.bf16.mxu0 0
    %1254 = vmatpush1.bf16.msra.mxu0 %v956
    %1255 = vmatprep.subr.bf16.mxu0 0
    %1256 = vmatpush1.bf16.msra.mxu0 %v955
    %1257 = vmatprep.subr.bf16.mxu0 0
    %1258 = vmatpush1.bf16.msra.mxu0 %v954
    %1259 = vmatprep.subr.bf16.mxu0 0
    %1260 = vmatpush1.bf16.msra.mxu0 %v953
    %1261 = vmatprep.subr.bf16.mxu0 0
    %1262 = vmatpush1.bf16.msra.mxu0 %v952
    %1263 = vmatprep.subr.bf16.mxu0 0
    %1264 = vmatpush1.bf16.msra.mxu0 %v951
    %1265 = vmatprep.subr.bf16.mxu0 0
    %1266 = vmatpush1.bf16.msra.mxu0 %v950
    %1267 = vmatprep.subr.bf16.mxu0 0
    %1268 = vmatpush1.bf16.msra.mxu0 %v949
    %1269 = vmatprep.subr.bf16.mxu0 0
    %1270 = vmatpush2.bf16.msra.mxu0 %v964
    %1271 = vmatprep.subr.bf16.mxu0 0
    %1272 = vmatpush2.bf16.msra.mxu0 %v963
    %1273 = vmatprep.subr.bf16.mxu0 0
    %1274 = vmatpush2.bf16.msra.mxu0 %v962
    %1275 = vmatprep.subr.bf16.mxu0 0
    %1276 = vmatpush2.bf16.msra.mxu0 %v961
    %1277 = vmatprep.subr.bf16.mxu0 0
    %1278 = vmatpush2.bf16.msra.mxu0 %v960
    %1279 = vmatprep.subr.bf16.mxu0 0
    %1280 = vmatpush2.bf16.msra.mxu0 %v959
    %1281 = vmatprep.subr.bf16.mxu0 0
    %1282 = vmatpush2.bf16.msra.mxu0 %v958
    %1283 = vmatprep.subr.bf16.mxu0 0
    %1284 = vmatpush2.bf16.msra.mxu0 %v957
    %1285 = vmatprep.mubr.bf16.mxu0 %v335
    %1286 = vmatmul.mubr.bf16.gmra.mxu0 %v321
    %v1287 = vpop.f32.mrf.mxu0
    %v1288 = vadd.f32 %v1248, %v1287
    %v1289 = vpop.f32.mrf.mxu0
    %v1290 = vpop.f32.mrf.mxu0
    %v1291 = vpop.f32.mrf.mxu0
    %1292 = vdwg.mxu0
    %1293 = vmatprep.subr.bf16.mxu0 0
    %1294 = vmatpush1.bf16.msra.mxu0 %v972
    %1295 = vmatprep.subr.bf16.mxu0 0
    %1296 = vmatpush1.bf16.msra.mxu0 %v971
    %1297 = vmatprep.subr.bf16.mxu0 0
    %1298 = vmatpush1.bf16.msra.mxu0 %v970
    %1299 = vmatprep.subr.bf16.mxu0 0
    %1300 = vmatpush1.bf16.msra.mxu0 %v969
    %1301 = vmatprep.subr.bf16.mxu0 0
    %1302 = vmatpush1.bf16.msra.mxu0 %v968
    %1303 = vmatprep.subr.bf16.mxu0 0
    %1304 = vmatpush1.bf16.msra.mxu0 %v967
    %1305 = vmatprep.subr.bf16.mxu0 0
    %1306 = vmatpush1.bf16.msra.mxu0 %v966
    %1307 = vmatprep.subr.bf16.mxu0 0
    %1308 = vmatpush1.bf16.msra.mxu0 %v965
    %1309 = vmatprep.subr.bf16.mxu0 0
    %1310 = vmatpush2.bf16.msra.mxu0 %v980
    %1311 = vmatprep.subr.bf16.mxu0 0
    %1312 = vmatpush2.bf16.msra.mxu0 %v979
    %1313 = vmatprep.subr.bf16.mxu0 0
    %1314 = vmatpush2.bf16.msra.mxu0 %v978
    %1315 = vmatprep.subr.bf16.mxu0 0
    %1316 = vmatpush2.bf16.msra.mxu0 %v977
    %1317 = vmatprep.subr.bf16.mxu0 0
    %1318 = vmatpush2.bf16.msra.mxu0 %v976
    %1319 = vmatprep.subr.bf16.mxu0 0
    %1320 = vmatpush2.bf16.msra.mxu0 %v975
    %1321 = vmatprep.subr.bf16.mxu0 0
    %1322 = vmatpush2.bf16.msra.mxu0 %v974
    %1323 = vmatprep.subr.bf16.mxu0 0
    %1324 = vmatpush2.bf16.msra.mxu0 %v973
    %1325 = vmatprep.mubr.bf16.mxu0 %v339
    %1326 = vmatmul.mubr.bf16.gmra.mxu0 %v337
    %v1327 = vpop.f32.mrf.mxu0
    %v1328 = vadd.f32 %v1288, %v1327
    %v1329 = vpop.f32.mrf.mxu0
    %v1330 = vpop.f32.mrf.mxu0
    %v1331 = vpop.f32.mrf.mxu0
    %1332 = vdwg.mxu0
    %1333 = vmatprep.subr.bf16.mxu0 0
    %1334 = vmatpush1.bf16.msra.mxu0 %v988
    %1335 = vmatprep.subr.bf16.mxu0 0
    %1336 = vmatpush1.bf16.msra.mxu0 %v987
    %1337 = vmatprep.subr.bf16.mxu0 0
    %1338 = vmatpush1.bf16.msra.mxu0 %v986
    %1339 = vmatprep.subr.bf16.mxu0 0
    %1340 = vmatpush1.bf16.msra.mxu0 %v985
    %1341 = vmatprep.subr.bf16.mxu0 0
    %1342 = vmatpush1.bf16.msra.mxu0 %v984
    %1343 = vmatprep.subr.bf16.mxu0 0
    %1344 = vmatpush1.bf16.msra.mxu0 %v983
    %1345 = vmatprep.subr.bf16.mxu0 0
    %1346 = vmatpush1.bf16.msra.mxu0 %v982
    %1347 = vmatprep.subr.bf16.mxu0 0
    %1348 = vmatpush1.bf16.msra.mxu0 %v981
    %1349 = vmatprep.subr.bf16.mxu0 0
    %1350 = vmatpush2.bf16.msra.mxu0 %v996
    %1351 = vmatprep.subr.bf16.mxu0 0
    %1352 = vmatpush2.bf16.msra.mxu0 %v995
    %1353 = vmatprep.subr.bf16.mxu0 0
    %1354 = vmatpush2.bf16.msra.mxu0 %v994
    %1355 = vmatprep.subr.bf16.mxu0 0
    %1356 = vmatpush2.bf16.msra.mxu0 %v993
    %1357 = vmatprep.subr.bf16.mxu0 0
    %1358 = vmatpush2.bf16.msra.mxu0 %v992
    %1359 = vmatprep.subr.bf16.mxu0 0
    %1360 = vmatpush2.bf16.msra.mxu0 %v991
    %1361 = vmatprep.subr.bf16.mxu0 0
    %1362 = vmatpush2.bf16.msra.mxu0 %v990
    %1363 = vmatprep.subr.bf16.mxu0 0
    %1364 = vmatpush2.bf16.msra.mxu0 %v989
    %1365 = vmatprep.mubr.bf16.mxu0 %v377
    %1366 = vmatmul.mubr.bf16.gmra.mxu0 %v363
    %v1367 = vpop.f32.mrf.mxu0
    %v1368 = vadd.f32 %v1328, %v1367
    %v1369 = vpop.f32.mrf.mxu0
    %v1370 = vpop.f32.mrf.mxu0
    %v1371 = vpop.f32.mrf.mxu0
    %1372 = vdwg.mxu0
    %1373 = vmatprep.subr.bf16.mxu0 0
    %1374 = vmatpush1.bf16.msra.mxu0 %v1004
    %1375 = vmatprep.subr.bf16.mxu0 0
    %1376 = vmatpush1.bf16.msra.mxu0 %v1003
    %1377 = vmatprep.subr.bf16.mxu0 0
    %1378 = vmatpush1.bf16.msra.mxu0 %v1002
    %1379 = vmatprep.subr.bf16.mxu0 0
    %1380 = vmatpush1.bf16.msra.mxu0 %v1001
    %1381 = vmatprep.subr.bf16.mxu0 0
    %1382 = vmatpush1.bf16.msra.mxu0 %v1000
    %1383 = vmatprep.subr.bf16.mxu0 0
    %1384 = vmatpush1.bf16.msra.mxu0 %v999
    %1385 = vmatprep.subr.bf16.mxu0 0
    %1386 = vmatpush1.bf16.msra.mxu0 %v998
    %1387 = vmatprep.subr.bf16.mxu0 0
    %1388 = vmatpush1.bf16.msra.mxu0 %v997
    %1389 = vmatprep.subr.bf16.mxu0 0
    %1390 = vmatpush2.bf16.msra.mxu0 %v1012
    %1391 = vmatprep.subr.bf16.mxu0 0
    %1392 = vmatpush2.bf16.msra.mxu0 %v1011
    %1393 = vmatprep.subr.bf16.mxu0 0
    %1394 = vmatpush2.bf16.msra.mxu0 %v1010
    %1395 = vmatprep.subr.bf16.mxu0 0
    %1396 = vmatpush2.bf16.msra.mxu0 %v1009
    %1397 = vmatprep.subr.bf16.mxu0 0
    %1398 = vmatpush2.bf16.msra.mxu0 %v1008
    %1399 = vmatprep.subr.bf16.mxu0 0
    %1400 = vmatpush2.bf16.msra.mxu0 %v1007
    %1401 = vmatprep.subr.bf16.mxu0 0
    %1402 = vmatpush2.bf16.msra.mxu0 %v1006
    %1403 = vmatprep.subr.bf16.mxu0 0
    %1404 = vmatpush2.bf16.msra.mxu0 %v1005
    %1405 = vmatprep.mubr.bf16.mxu0 %v387
    %1406 = vmatmul.mubr.bf16.gmra.mxu0 %v385
    %v1407 = vpop.f32.mrf.mxu0
    %v1408 = vadd.f32 %v1368, %v1407
    %v1409 = vpop.f32.mrf.mxu0
    %v1410 = vpop.f32.mrf.mxu0
    %v1411 = vpop.f32.mrf.mxu0
    %1412 = vdwg.mxu0
    %1413 = vmatprep.subr.bf16.mxu0 0
    %1414 = vmatpush1.bf16.msra.mxu0 %v1020
    %1415 = vmatprep.subr.bf16.mxu0 0
    %1416 = vmatpush1.bf16.msra.mxu0 %v1019
    %1417 = vmatprep.subr.bf16.mxu0 0
    %1418 = vmatpush1.bf16.msra.mxu0 %v1018
    %1419 = vmatprep.subr.bf16.mxu0 0
    %1420 = vmatpush1.bf16.msra.mxu0 %v1017
    %1421 = vmatprep.subr.bf16.mxu0 0
    %1422 = vmatpush1.bf16.msra.mxu0 %v1016
    %1423 = vmatprep.subr.bf16.mxu0 0
    %1424 = vmatpush1.bf16.msra.mxu0 %v1015
    %1425 = vmatprep.subr.bf16.mxu0 0
    %1426 = vmatpush1.bf16.msra.mxu0 %v1014
    %1427 = vmatprep.subr.bf16.mxu0 0
    %1428 = vmatpush1.bf16.msra.mxu0 %v1013
    %1429 = vmatprep.subr.bf16.mxu0 0
    %1430 = vmatpush2.bf16.msra.mxu0 %v1028
    %1431 = vmatprep.subr.bf16.mxu0 0
    %1432 = vmatpush2.bf16.msra.mxu0 %v1027
    %1433 = vmatprep.subr.bf16.mxu0 0
    %1434 = vmatpush2.bf16.msra.mxu0 %v1026
    %1435 = vmatprep.subr.bf16.mxu0 0
    %1436 = vmatpush2.bf16.msra.mxu0 %v1025
    %1437 = vmatprep.subr.bf16.mxu0 0
    %1438 = vmatpush2.bf16.msra.mxu0 %v1024
    %1439 = vmatprep.subr.bf16.mxu0 0
    %1440 = vmatpush2.bf16.msra.mxu0 %v1023
    %1441 = vmatprep.subr.bf16.mxu0 0
    %1442 = vmatpush2.bf16.msra.mxu0 %v1022
    %1443 = vmatprep.subr.bf16.mxu0 0
    %1444 = vmatpush2.bf16.msra.mxu0 %v1021
    %1445 = vmatprep.mubr.bf16.mxu0 %v384
    %1446 = vmatmul.mubr.bf16.gmra.mxu0 %v370
    %v1447 = vpop.f32.mrf.mxu0
    %v1448 = vadd.f32 %v1408, %v1447
    %v1449 = vpop.f32.mrf.mxu0
    %v1450 = vpop.f32.mrf.mxu0
    %v1451 = vpop.f32.mrf.mxu0
    %1452 = vdwg.mxu0
    %1453 = vmatprep.subr.bf16.mxu0 0
    %1454 = vmatpush1.bf16.msra.mxu0 %v1036
    %1455 = vmatprep.subr.bf16.mxu0 0
    %1456 = vmatpush1.bf16.msra.mxu0 %v1035
    %1457 = vmatprep.subr.bf16.mxu0 0
    %1458 = vmatpush1.bf16.msra.mxu0 %v1034
    %1459 = vmatprep.subr.bf16.mxu0 0
    %1460 = vmatpush1.bf16.msra.mxu0 %v1033
    %1461 = vmatprep.subr.bf16.mxu0 0
    %1462 = vmatpush1.bf16.msra.mxu0 %v1032
    %1463 = vmatprep.subr.bf16.mxu0 0
    %1464 = vmatpush1.bf16.msra.mxu0 %v1031
    %1465 = vmatprep.subr.bf16.mxu0 0
    %1466 = vmatpush1.bf16.msra.mxu0 %v1030
    %1467 = vmatprep.subr.bf16.mxu0 0
    %1468 = vmatpush1.bf16.msra.mxu0 %v1029
    %1469 = vmatprep.subr.bf16.mxu0 0
    %1470 = vmatpush2.bf16.msra.mxu0 %v1044
    %1471 = vmatprep.subr.bf16.mxu0 0
    %1472 = vmatpush2.bf16.msra.mxu0 %v1043
    %1473 = vmatprep.subr.bf16.mxu0 0
    %1474 = vmatpush2.bf16.msra.mxu0 %v1042
    %1475 = vmatprep.subr.bf16.mxu0 0
    %1476 = vmatpush2.bf16.msra.mxu0 %v1041
    %1477 = vmatprep.subr.bf16.mxu0 0
    %1478 = vmatpush2.bf16.msra.mxu0 %v1040
    %1479 = vmatprep.subr.bf16.mxu0 0
    %1480 = vmatpush2.bf16.msra.mxu0 %v1039
    %1481 = vmatprep.subr.bf16.mxu0 0
    %1482 = vmatpush2.bf16.msra.mxu0 %v1038
    %1483 = vmatprep.subr.bf16.mxu0 0
    %1484 = vmatpush2.bf16.msra.mxu0 %v1037
    %1485 = vmatprep.mubr.bf16.mxu0 %v388
    %1486 = vmatmul.mubr.bf16.gmra.mxu0 %v386
    %v1487 = vpop.f32.mrf.mxu0
    %v1488 = vadd.f32 %v1448, %v1487
    %v1489 = vpop.f32.mrf.mxu0
    %v1490 = vpop.f32.mrf.mxu0
    %v1491 = vpop.f32.mrf.mxu0
    %1492 = vdwg.mxu0
    %vm1493 = vcmask 123904
    %1494 = vst.msk [vmem:[#allocation5] sm:$0x3] %vm1493, %v1488
    %v1495 = vld [vmem:[%s2] sm:$0xff]
    %v1496 = vld [vmem:[%s2 + $0x8] sm:$0xff]
    %v1497 = vld [vmem:[#allocation2] sm:$0x1]
    %v1499 = vlaneseq
    %v1500 = vshrl.u32 %v1499, 7
    %v1501 = vsub.s32 0, %v1500
    %v1502 = vrot.slane %v1497, %v1501
    %vm1504 = vcmask 130048
    %v1506 = vsel %vm1504, %v1488, 0
    %1508 = vmatprep.subr.mxu0 0.0
    %1509 = vmatpush1.msra.mxu0 0.0
    %1510 = vmatprep.subr.mxu0 0.0
    %1511 = vmatpush1.msra.mxu0 0.0
    %1512 = vmatprep.subr.mxu0 0.0
    %1513 = vmatpush1.msra.mxu0 0.0
    %1514 = vmatprep.subr.mxu0 0.0
    %1515 = vmatpush1.msra.mxu0 0.0
    %1516 = vmatprep.subr.mxu0 0.0
    %1517 = vmatpush1.msra.mxu0 0.0
    %1518 = vmatprep.subr.mxu0 0.0
    %1519 = vmatpush1.msra.mxu0 0.0
    %1520 = vmatprep.subr.mxu0 0.0
    %1521 = vmatpush1.msra.mxu0 0.0
    %1522 = vmatprep.subr.mxu0 0.0
    %1523 = vmatpush1.msra.mxu0 0.0
    %1524 = vmatprep.subr.mxu0 0.0
    %1525 = vmatpush1.msra.mxu0 0.0
    %1526 = vmatprep.subr.mxu0 0.0
    %1527 = vmatpush1.msra.mxu0 0.0
    %1528 = vmatprep.subr.mxu0 0.0
    %1529 = vmatpush1.msra.mxu0 0.0
    %1530 = vmatprep.subr.mxu0 0.0
    %1531 = vmatpush1.msra.mxu0 0.0
    %1532 = vmatprep.subr.mxu0 0.0
    %1533 = vmatpush1.msra.mxu0 0.0
    %1534 = vmatprep.subr.mxu0 0.0
    %1535 = vmatpush1.msra.mxu0 0.0
    %1536 = vmatprep.subr.mxu0 0.0
    %1537 = vmatpush1.msra.mxu0 %v1496
    %1538 = vmatprep.subr.mxu0 0.0
    %1539 = vmatpush1.msra.mxu0 %v1495
    %1540 = vmatprep.subr.mxu0 0.0
    %1541 = vmatpush2.msra.mxu0 0.0
    %1542 = vmatprep.subr.mxu0 0.0
    %1543 = vmatpush2.msra.mxu0 0.0
    %1544 = vmatprep.subr.mxu0 0.0
    %1545 = vmatpush2.msra.mxu0 0.0
    %1546 = vmatprep.subr.mxu0 0.0
    %1547 = vmatpush2.msra.mxu0 0.0
    %1548 = vmatprep.subr.mxu0 0.0
    %1549 = vmatpush2.msra.mxu0 0.0
    %1550 = vmatprep.subr.mxu0 0.0
    %1551 = vmatpush2.msra.mxu0 0.0
    %1552 = vmatprep.subr.mxu0 0.0
    %1553 = vmatpush2.msra.mxu0 0.0
    %1554 = vmatprep.subr.mxu0 0.0
    %1555 = vmatpush2.msra.mxu0 0.0
    %1556 = vmatprep.subr.mxu0 0.0
    %1557 = vmatpush2.msra.mxu0 0.0
    %1558 = vmatprep.subr.mxu0 0.0
    %1559 = vmatpush2.msra.mxu0 0.0
    %1560 = vmatprep.subr.mxu0 0.0
    %1561 = vmatpush2.msra.mxu0 0.0
    %1562 = vmatprep.subr.mxu0 0.0
    %1563 = vmatpush2.msra.mxu0 0.0
    %1564 = vmatprep.subr.mxu0 0.0
    %1565 = vmatpush2.msra.mxu0 0.0
    %1566 = vmatprep.subr.mxu0 0.0
    %1567 = vmatpush2.msra.mxu0 0.0
    %1568 = vmatprep.subr.mxu0 0.0
    %1569 = vmatpush2.msra.mxu0 0.0
    %1570 = vmatprep.subr.mxu0 0.0
    %1571 = vmatpush2.msra.mxu0 0.0
    %1572 = vmatprep.mubr.f32.mxu0 0.0
    %1573 = vmatmul.mubr.f32.gmra.mxu0 %v1506
    %v1574 = vpop.f32.mrf.mxu0
    %v1575 = vadd.f32 %v1502, %v1574
    %v1576 = vpop.f32.mrf.mxu0
    %1577 = vdwg.mxu0
    %v1578 = vsub.f32 0.0, %v1575
    %v1579 = vmul.f32 %v1578, 1.442695
    %v1580 = vpow.pop %v1579
    %v1581 = vadd.f32 %v1580, 1.0
    %v1582 = vrcp.pop %v1581
    %vm1583 = vcmask 1024
    %1584 = vst.msk [vmem:[%s6] sm:$0x3] %vm1583, %v1582
    %v1585 = vld [vmem:[%s4] sm:$0xff]
    %v1586 = vld [vmem:[%s4 + $0x8] sm:$0xff]
    %v1587 = vld [vmem:[%s5] sm:$0x1]
    %v1589 = vlaneseq
    %v1590 = vshrl.u32 %v1589, 7
    %v1591 = vsub.s32 0, %v1590
    %v1592 = vrot.slane %v1587, %v1591
    %1594 = vmatprep.subr.mxu0 0.0
    %1595 = vmatpush1.msra.mxu0 0.0
    %1596 = vmatprep.subr.mxu0 0.0
    %1597 = vmatpush1.msra.mxu0 0.0
    %1598 = vmatprep.subr.mxu0 0.0
    %1599 = vmatpush1.msra.mxu0 0.0
    %1600 = vmatprep.subr.mxu0 0.0
    %1601 = vmatpush1.msra.mxu0 0.0
    %1602 = vmatprep.subr.mxu0 0.0
    %1603 = vmatpush1.msra.mxu0 0.0
    %1604 = vmatprep.subr.mxu0 0.0
    %1605 = vmatpush1.msra.mxu0 0.0
    %1606 = vmatprep.subr.mxu0 0.0
    %1607 = vmatpush1.msra.mxu0 0.0
    %1608 = vmatprep.subr.mxu0 0.0
    %1609 = vmatpush1.msra.mxu0 0.0
    %1610 = vmatprep.subr.mxu0 0.0
    %1611 = vmatpush1.msra.mxu0 0.0
    %1612 = vmatprep.subr.mxu0 0.0
    %1613 = vmatpush1.msra.mxu0 0.0
    %1614 = vmatprep.subr.mxu0 0.0
    %1615 = vmatpush1.msra.mxu0 0.0
    %1616 = vmatprep.subr.mxu0 0.0
    %1617 = vmatpush1.msra.mxu0 0.0
    %1618 = vmatprep.subr.mxu0 0.0
    %1619 = vmatpush1.msra.mxu0 0.0
    %1620 = vmatprep.subr.mxu0 0.0
    %1621 = vmatpush1.msra.mxu0 0.0
    %1622 = vmatprep.subr.mxu0 0.0
    %1623 = vmatpush1.msra.mxu0 %v1586
    %1624 = vmatprep.subr.mxu0 0.0
    %1625 = vmatpush1.msra.mxu0 %v1585
    %1626 = vmatprep.subr.mxu0 0.0
    %1627 = vmatpush2.msra.mxu0 0.0
    %1628 = vmatprep.subr.mxu0 0.0
    %1629 = vmatpush2.msra.mxu0 0.0
    %1630 = vmatprep.subr.mxu0 0.0
    %1631 = vmatpush2.msra.mxu0 0.0
    %1632 = vmatprep.subr.mxu0 0.0
    %1633 = vmatpush2.msra.mxu0 0.0
    %1634 = vmatprep.subr.mxu0 0.0
    %1635 = vmatpush2.msra.mxu0 0.0
    %1636 = vmatprep.subr.mxu0 0.0
    %1637 = vmatpush2.msra.mxu0 0.0
    %1638 = vmatprep.subr.mxu0 0.0
    %1639 = vmatpush2.msra.mxu0 0.0
    %1640 = vmatprep.subr.mxu0 0.0
    %1641 = vmatpush2.msra.mxu0 0.0
    %1642 = vmatprep.subr.mxu0 0.0
    %1643 = vmatpush2.msra.mxu0 0.0
    %1644 = vmatprep.subr.mxu0 0.0
    %1645 = vmatpush2.msra.mxu0 0.0
    %1646 = vmatprep.subr.mxu0 0.0
    %1647 = vmatpush2.msra.mxu0 0.0
    %1648 = vmatprep.subr.mxu0 0.0
    %1649 = vmatpush2.msra.mxu0 0.0
    %1650 = vmatprep.subr.mxu0 0.0
    %1651 = vmatpush2.msra.mxu0 0.0
    %1652 = vmatprep.subr.mxu0 0.0
    %1653 = vmatpush2.msra.mxu0 0.0
    %1654 = vmatprep.subr.mxu0 0.0
    %1655 = vmatpush2.msra.mxu0 0.0
    %1656 = vmatprep.subr.mxu0 0.0
    %1657 = vmatpush2.msra.mxu0 0.0
    %1658 = vmatprep.mubr.f32.mxu0 0.0
    %1659 = vmatmul.mubr.f32.gmra.mxu0 %v1506
    %v1660 = vpop.f32.mrf.mxu0
    %v1661 = vadd.f32 %v1592, %v1660
    %v1662 = vpop.f32.mrf.mxu0
    %1663 = vdwg.mxu0
    %vm1664 = vcmask 74752
    %v1665 = vsel %vm1664, %v1661, -inf
    %1666 = vmax.xlane.f32.xlu0 %v1665
    %v1667 = vpop.xlane.xlu0 %1666
    %v1668 = vsub.f32 %v1661, %v1667
    %v1669 = vmul.f32 %v1668, 1.442695
    %v1670 = vpow.pop %v1669
    %v1671 = vsel %vm1664, %v1670, 0.0
    %1672 = vadd.xlane.f32.xlu0 %v1671
    %v1673 = vpop.xlane.xlu0 %1672
    %v1674 = vrcp.pop %v1673
    %v1675 = vmul.f32 %v1670, %v1674
    %1676 = vst.msk [vmem:[#allocation3] sm:$0x3] %vm1664, %v1675
    // Predicated region
    $region26: #{netd_forward.9} parent=1 // pred_check
      _
    $region27: #{netd_forward.9} parent=1 // pred_check_branch
      %1678 = sbr.rel (0) target = $region29
    $region28: #{netd_forward.9} parent=1 // pred_region
      _
    $region29: #{netd_forward.9} parent=1 // pred_fallthru
      _
    // Predicated region
    $region30: #{netd_forward.9} parent=1 // pred_check
      _
    $region31: #{netd_forward.9} parent=1 // pred_check_branch
      %1680 = sbr.rel (0) target = $region33
    $region32: #{netd_forward.9} parent=1 // pred_region
      %s1682 = ssub.s32 32, 32
      %1683 = vsyncadd [#allocation4], %s1682
      %s1685 = sshll.u32 [#allocation3], 4
      %s1686 = int_to_ptr.vmem [resolvable:$true] %s1685
      %1688 = dma.vmem_to_hbm [thread:$0]  %s1686, 32, %s7, [#allocation4]
    $region33: #{netd_forward.9} parent=1 // pred_fallthru
      _
    // Predicated region
    $region34: #{netd_forward.9} parent=1 // pred_check
      _
    $region35: #{netd_forward.9} parent=1 // pred_check_branch
      %1690 = sbr.rel (0) target = $region37
    $region36: #{netd_forward.9} parent=1 // pred_region
      %s1692 = ssub.s32 32, 32
      %1693 = vsyncadd [#allocation6], %s1692
      %s1695 = sshll.u32 [#allocation5], 4
      %s1696 = int_to_ptr.vmem [resolvable:$true] %s1695
      %1698 = dma.vmem_to_hbm [thread:$0]  %s1696, 32, %s8, [#allocation6]
    $region37: #{netd_forward.9} parent=1 // pred_fallthru
      _
    // Predicated region
    $region38: #{netd_forward.9} parent=1 // pred_check
      _
    $region39: #{netd_forward.9} parent=1 // pred_check_branch
      %1700 = sbr.rel (0) target = $region41
    $region40: #{netd_forward.9} parent=1 // pred_region
      _
    $region41: #{netd_forward.9} parent=1 // pred_fallthru
      _
    // Predicated region
    $region42: #{netd_forward.9} parent=1 // pred_check
      _
    $region43: #{netd_forward.9} parent=1 // pred_check_branch
      %1702 = sbr.rel (0) target = $region45
    $region44: #{netd_forward.9} parent=1 // pred_region
      %1703 = dma.done [#allocation4], 32
    $region45: #{netd_forward.9} parent=1 // pred_fallthru
      _
    // Predicated region
    $region46: #{netd_forward.9} parent=1 // pred_check
      _
    $region47: #{netd_forward.9} parent=1 // pred_check_branch
      %1705 = sbr.rel (0) target = $region49
    $region48: #{netd_forward.9} parent=1 // pred_region
      %1706 = dma.done [#allocation6], 32
    $region49: #{netd_forward.9} parent=1 // pred_fallthru
      _
    %1707 = vsyncpa [#allocation4], 1
    %1708 = vsyncpa [#allocation6], 1

</llo_original>
